<compile_context>
chip_gen: v7x
topology: tpu7x:2x2x1
jax: 0.10.0
libtpu: 0.0.40
codegen_flags: <defaults>
</compile_context>

<pallas_src>
import functools
import numpy as np

import jax
import jax.numpy as jnp
from jax.experimental import pallas as pl
from jax.experimental.pallas import tpu as pltpu

# ---------------- small config consistent with BertAbsSum / BertDecoder ----------------
PAD, BOS, EOS = 0, 2, 3
VOCAB = 128          # shared encoder / decoder vocab
D_MODEL = 32         # d_model / bert hidden_size
N_HEAD = 4
D_K = D_V = 8        # decoder d_k / d_v  (encoder head dim = D_MODEL // N_HEAD = 8 too)
D_INNER = 64         # d_inner / bert intermediate_size
N_ENC_LAYERS = 2
N_DEC_LAYERS = 2
MAX_POS = 64         # bert max position embeddings
MAX_TGT_SEQ_LEN = 32 # Constants.MAX_TGT_SEQ_LEN for sinusoid table

NEG_MASK = -1e9      # large finite negative (avoids -inf - (-inf) = NaN in softmax)


# ---------------------------------- Pallas kernels ----------------------------------
def _mha_kernel(q_ref, kv_ref, m_ref, wq_ref, bq_ref, wkv_ref, bkv_ref,
                wo_ref, bo_ref, g_ref, beta_ref, o_ref,
                *, n_head, d_k, d_v, scale, eps):
    """Fused MHA for one batch element: QKV proj -> per-head masked softmax attention
    -> output proj -> residual add -> LayerNorm."""
    x_q = q_ref[0]                      # (Lq, D)
    x_kv = kv_ref[0]                    # (Lk, D)
    madd = m_ref[0]                     # (Lq, Lk) additive mask (0 or large negative)

    qp = jnp.dot(x_q, wq_ref[...], preferred_element_type=jnp.float32) + bq_ref[...]
    kvp = jnp.dot(x_kv, wkv_ref[...], preferred_element_type=jnp.float32) + bkv_ref[...]
    hdk = n_head * d_k

    ctx_heads = []
    for h in range(n_head):             # static unrolled loop over heads (lane slices)
        qh = qp[:, h * d_k:(h + 1) * d_k]                       # (Lq, Dk)
        kh = kvp[:, h * d_k:(h + 1) * d_k]                      # (Lk, Dk)
        vh = kvp[:, hdk + h * d_v: hdk + (h + 1) * d_v]         # (Lk, Dv)
        s = jax.lax.dot_general(qh, kh, (((1,), (1,)), ((), ())),
                                preferred_element_type=jnp.float32)
        s = s * scale + madd
        s = s - jnp.max(s, axis=-1, keepdims=True)
        p = jnp.exp(s)
        p = p * pl.reciprocal(jnp.sum(p, axis=-1, keepdims=True), approx=True)
        ctx_heads.append(jnp.dot(p, vh, preferred_element_type=jnp.float32))
    ctx = jnp.concatenate(ctx_heads, axis=-1)                   # (Lq, H*Dv)

    out = jnp.dot(ctx, wo_ref[...], preferred_element_type=jnp.float32) + bo_ref[...]
    y = out + x_q                                               # residual
    mu = jnp.mean(y, axis=-1, keepdims=True)
    var = jnp.mean((y - mu) * (y - mu), axis=-1, keepdims=True)
    yn = (y - mu) * jax.lax.rsqrt(var + eps)
    o_ref[0] = (yn * g_ref[...] + beta_ref[...]).astype(o_ref.dtype)


def mha_fused(p, q_in, kv_in, mask_add, n_head, d_k, d_v, ln_eps):
    """q_in: [B,Lq,D], kv_in: [B,Lk,D], mask_add: [B,Lq,Lk] (no per-head replication)."""
    B, Lq, D = q_in.shape
    Lk = kv_in.shape[1]
    HDk, HDv = n_head * d_k, n_head * d_v
    kernel = functools.partial(_mha_kernel, n_head=n_head, d_k=d_k, d_v=d_v,
                               scale=1.0 / float(np.sqrt(d_k)), eps=ln_eps)
    return pl.pallas_call(
        kernel,
        out_shape=jax.ShapeDtypeStruct((B, Lq, D), jnp.float32),
        grid=(B,),
        in_specs=[
            pl.BlockSpec((1, Lq, D), lambda b: (b, 0, 0)),
            pl.BlockSpec((1, Lk, D), lambda b: (b, 0, 0)),
            pl.BlockSpec((1, Lq, Lk), lambda b: (b, 0, 0)),
            pl.BlockSpec((D, HDk), lambda b: (0, 0)),
            pl.BlockSpec((1, HDk), lambda b: (0, 0)),
            pl.BlockSpec((D, HDk + HDv), lambda b: (0, 0)),
            pl.BlockSpec((1, HDk + HDv), lambda b: (0, 0)),
            pl.BlockSpec((HDv, D), lambda b: (0, 0)),
            pl.BlockSpec((1, D), lambda b: (0, 0)),
            pl.BlockSpec((1, D), lambda b: (0, 0)),
            pl.BlockSpec((1, D), lambda b: (0, 0)),
        ],
        out_specs=pl.BlockSpec((1, Lq, D), lambda b: (b, 0, 0)),
        compiler_params=pltpu.CompilerParams(dimension_semantics=("parallel",)),
    )(q_in, kv_in, mask_add, p["wq"], p["bq"], p["wkv"], p["bkv"],
      p["wo"], p["bo"], p["ln_g"], p["ln_b"])


def _ffn_kernel(x_ref, w1_ref, b1_ref, w2_ref, b2_ref, g_ref, beta_ref, o_ref,
                *, activation, eps):
    """Fused feed-forward: lin -> activation -> lin -> residual add -> LayerNorm."""
    x = x_ref[...]                                              # (M, D)
    h = jnp.dot(x, w1_ref[...], preferred_element_type=jnp.float32) + b1_ref[...]
    if activation == "relu":
        h = jnp.maximum(h, 0.0)
    elif activation == "gelu":
        # tanh-approx GELU.  TODO(synk): exact erf-GELU if the BERT config uses "gelu".
        c = 0.7978845608028654  # sqrt(2/pi)
        h = 0.5 * h * (1.0 + jnp.tanh(c * (h + 0.044715 * h * h * h)))
    y = jnp.dot(h, w2_ref[...], preferred_element_type=jnp.float32) + b2_ref[...] + x
    mu = jnp.mean(y, axis=-1, keepdims=True)
    var = jnp.mean((y - mu) * (y - mu), axis=-1, keepdims=True)
    yn = (y - mu) * jax.lax.rsqrt(var + eps)
    o_ref[...] = (yn * g_ref[...] + beta_ref[...]).astype(o_ref.dtype)


def ffn_fused(x2d, w1, b1, w2, b2, g, beta, activation, eps):
    """Single-block fused FFN (whole [M<=32, D] problem fits VMEM trivially)."""
    M, D = x2d.shape
    return pl.pallas_call(
        functools.partial(_ffn_kernel, activation=activation, eps=eps),
        out_shape=jax.ShapeDtypeStruct((M, D), jnp.float32),
    )(x2d, w1, b1, w2, b2, g, beta)


def _ln_kernel(x_ref, g_ref, beta_ref, o_ref, *, eps):
    x = x_ref[...]
    mu = jnp.mean(x, axis=-1, keepdims=True)
    var = jnp.mean((x - mu) * (x - mu), axis=-1, keepdims=True)
    o_ref[...] = ((x - mu) * jax.lax.rsqrt(var + eps) * g_ref[...]
                  + beta_ref[...]).astype(o_ref.dtype)


def layernorm(x2d, g, beta, eps):
    """Plain LayerNorm over the last dim (no zero residual allocated)."""
    return pl.pallas_call(
        functools.partial(_ln_kernel, eps=eps),
        out_shape=jax.ShapeDtypeStruct(x2d.shape, jnp.float32),
    )(x2d, g, beta)


def _matmul_bias_kernel(x_ref, w_ref, b_ref, o_ref):
    o_ref[...] = (jnp.dot(x_ref[...], w_ref[...], preferred_element_type=jnp.float32)
                  + b_ref[...]).astype(o_ref.dtype)


def matmul_bias(x2d, w, b):
    """Single-block GEMM + bias (lane-dense N=128 output for the vocab projection)."""
    M, K = x2d.shape
    N = w.shape[1]
    return pl.pallas_call(
        _matmul_bias_kernel,
        out_shape=jax.ShapeDtypeStruct((M, N), jnp.float32),
    )(x2d, w, b)


# ---------------------------------- JAX glue layers ----------------------------------
def bert_embeddings(p, ids, ln_eps=1e-12):
    """BertEmbeddings: word + position + token_type -> LayerNorm (dropout = eval no-op)."""
    B, L = ids.shape
    word = jnp.take(p["word"], ids, axis=0)
    pos = jnp.take(p["pos"], jnp.arange(L), axis=0)[None, :, :]
    typ = p["type"][0][None, None, :]               # token_type_ids == 0
    emb = word + pos + typ
    out = layernorm(emb.reshape(B * L, -1), p["ln_g"], p["ln_b"], ln_eps)
    return out.reshape(B, L, -1)


def bert_encoder(p, src_seq, src_mask):
    """Minimal BERT encoder (embeddings + post-LN transformer layers)."""
    B, Ls = src_seq.shape
    x = bert_embeddings(p["emb"], src_seq)
    ext = (1.0 - src_mask.astype(jnp.float32)) * -10000.0       # HF-style additive mask
    mask_add = jnp.broadcast_to(ext[:, None, :], (B, Ls, Ls)).astype(jnp.float32)
    d_h = D_MODEL // N_HEAD
    for layer in p["layers"]:
        x = mha_fused(layer["attn"], x, x, mask_add, N_HEAD, d_h, d_h, ln_eps=1e-12)
        x2 = ffn_fused(x.reshape(B * Ls, D_MODEL),
                       layer["wi"], layer["bi"], layer["wo"], layer["bo"],
                       layer["ln_g"], layer["ln_b"], activation="gelu", eps=1e-12)
        x = x2.reshape(B, Ls, D_MODEL)
    return x


def bert_decoder(p, src_seq, enc_output, tgt_seq):
    B, Lt = tgt_seq.shape
    Ls = src_seq.shape[1]

    non_pad = (tgt_seq != PAD).astype(jnp.float32)[:, :, None]                  # (B,Lt,1)
    subseq = jnp.triu(jnp.ones((Lt, Lt), jnp.float32), k=1)[None, :, :]         # future mask
    keypad = (tgt_seq == PAD).astype(jnp.float32)[:, None, :]                   # key pad mask
    slf_mask = (keypad + subseq) > 0                                            # (B,Lt,Lt)
    slf_add = jnp.where(slf_mask, NEG_MASK, 0.0).astype(jnp.float32)
    enc_pad = (src_seq == PAD)[:, None, :]
    enc_add = jnp.where(jnp.broadcast_to(enc_pad, (B, Lt, Ls)),
                        NEG_MASK, 0.0).astype(jnp.float32)

    seq_emb = bert_embeddings(p["seq_emb"], tgt_seq)                            # BertEmbeddings
    pos_ids = jnp.arange(1, Lt + 1)                                             # positions 1..Lt
    pos_emb = jnp.take(p["sinusoid"], pos_ids, axis=0)[None, :, :]              # frozen sinusoid
    dec = seq_emb + pos_emb

    for layer in p["layers"]:
        out = mha_fused(layer["slf"], dec, dec, slf_add, N_HEAD, D_K, D_V, ln_eps=1e-5)
        out = out * non_pad
        out = mha_fused(layer["enc"], out, enc_output, enc_add, N_HEAD, D_K, D_V, ln_eps=1e-5)
        out = out * non_pad
        ffn = layer["ffn"]
        out2 = ffn_fused(out.reshape(B * Lt, D_MODEL),
                         ffn["w1"], ffn["b1"], ffn["w2"], ffn["b2"],
                         ffn["ln_g"], ffn["ln_b"], activation="relu", eps=1e-5)
        dec = out2.reshape(B, Lt, D_MODEL) * non_pad

    logits = matmul_bias(dec.reshape(B * Lt, D_MODEL), p["last_w"], p["last_b"])
    return logits.reshape(B, Lt, VOCAB)


@jax.jit
def bert_abs_sum_forward(params, src_seq, src_mask, tgt_seq, tgt_mask):
    tgt_seq = tgt_seq[:, :-1]
    tgt_mask = tgt_mask[:, :-1]      # (sliced like the PyTorch module; unused downstream)
    enc_out = bert_encoder(params["encoder"], src_seq, src_mask)
    return bert_decoder(params["decoder"], src_seq, enc_out, tgt_seq)


# ---------------------------------- deterministic init ----------------------------------
def sinusoid_table(n_position, d_hid, padding_idx=0):
    pos = np.arange(n_position)[:, None].astype(np.float64)
    hid = np.arange(d_hid)[None, :]
    angle = pos / np.power(10000, 2 * (hid // 2) / d_hid)
    table = np.zeros((n_position, d_hid), dtype=np.float32)
    table[:, 0::2] = np.sin(angle[:, 0::2])
    table[:, 1::2] = np.cos(angle[:, 1::2])
    table[padding_idx] = 0.0
    return jnp.asarray(table)


def init_params(key):
    keys = iter(jax.random.split(key, 256))

    def nrm(*shape):
        return 0.02 * jax.random.normal(next(keys), shape, dtype=jnp.float32)

    def ones_row():
        return jnp.ones((1, D_MODEL), jnp.float32)

    def zeros_row():
        return jnp.zeros((1, D_MODEL), jnp.float32)

    def emb_params():
        return dict(word=nrm(VOCAB, D_MODEL), pos=nrm(MAX_POS, D_MODEL),
                    type=nrm(2, D_MODEL), ln_g=ones_row(), ln_b=zeros_row())

    def mha_params(d_qk_out, d_v_out):
        # K|V projection weights are pre-concatenated so the kernel does one KV GEMM.
        return dict(wq=nrm(D_MODEL, d_qk_out), bq=nrm(1, d_qk_out),
                    wkv=nrm(D_MODEL, d_qk_out + d_v_out), bkv=nrm(1, d_qk_out + d_v_out),
                    wo=nrm(d_v_out, D_MODEL), bo=nrm(1, D_MODEL),
                    ln_g=ones_row(), ln_b=zeros_row())

    enc_layers = []
    for _ in range(N_ENC_LAYERS):
        enc_layers.append(dict(
            attn=mha_params(D_MODEL, D_MODEL),
            wi=nrm(D_MODEL, D_INNER), bi=nrm(1, D_INNER),
            wo=nrm(D_INNER, D_MODEL), bo=nrm(1, D_MODEL),
            ln_g=ones_row(), ln_b=zeros_row()))
    encoder = dict(emb=emb_params(), layers=enc_layers)

    dec_layers = []
    for _ in range(N_DEC_LAYERS):
        dec_layers.append(dict(
            slf=mha_params(N_HEAD * D_K, N_HEAD * D_V),
            enc=mha_params(N_HEAD * D_K, N_HEAD * D_V),
            ffn=dict(w1=nrm(D_MODEL, D_INNER), b1=nrm(1, D_INNER),
                     w2=nrm(D_INNER, D_MODEL), b2=nrm(1, D_MODEL),
                     ln_g=ones_row(), ln_b=zeros_row())))
    decoder = dict(seq_emb=emb_params(),
                   sinusoid=sinusoid_table(MAX_TGT_SEQ_LEN + 1, D_MODEL, padding_idx=0),
                   layers=dec_layers,
                   last_w=nrm(D_MODEL, VOCAB), last_b=nrm(1, VOCAB))
    return dict(encoder=encoder, decoder=decoder)


# --------------------------------------- main ---------------------------------------
if __name__ == "__main__":
    B, L_SRC, L_TGT_IN = 2, 16, 9   # tgt becomes length 8 after the [:, :-1] slice

    key = jax.random.PRNGKey(0)
    k_param, k_src, k_tgt = jax.random.split(key, 3)
    params = init_params(k_param)

    src_seq = jax.random.randint(k_src, (B, L_SRC), 4, VOCAB).astype(jnp.int32)
    src_seq = src_seq.at[1, 12:].set(PAD)                      # some padding in sample 1
    src_mask = (src_seq != PAD).astype(jnp.int32)

    tgt_seq = jax.random.randint(k_tgt, (B, L_TGT_IN), 4, VOCAB).astype(jnp.int32)
    tgt_seq = tgt_seq.at[:, 0].set(BOS)
    tgt_seq = tgt_seq.at[1, 6:].set(PAD)
    tgt_mask = (tgt_seq != PAD).astype(jnp.int32)

    logits = bert_abs_sum_forward(params, src_seq, src_mask, tgt_seq, tgt_mask)
    logits = jax.block_until_ready(logits)

    assert logits.shape == (B, L_TGT_IN - 1, VOCAB), logits.shape
    assert logits.dtype == jnp.float32
    assert bool(jnp.all(jnp.isfinite(logits)))
    print("KERNEL_OK")
</pallas_src>

<mosaic_0001>
module attributes {stable_mosaic.version = 11 : i64} {
  func.func @_ln_kernel(%arg0: memref<16x32xf32, #tpu.memory_space<vmem>>, %arg1: memref<1x32xf32, #tpu.memory_space<vmem>>, %arg2: memref<1x32xf32, #tpu.memory_space<vmem>>, %arg3: memref<16x32xf32, #tpu.memory_space<vmem>>) attributes {dimension_semantics = [], scalar_prefetch = 0 : i64, scratch_operands = 0 : i64, tpu.core_type = #tpu.core_type<tc>} {
    %c0 = arith.constant 0 : index
    %c0_0 = arith.constant 0 : index
    %0 = vector.load %arg0[%c0, %c0_0] : memref<16x32xf32, #tpu.memory_space<vmem>>, vector<16x32xf32>
    %cst = arith.constant dense<0.000000e+00> : vector<16xf32>
    %1 = vector.multi_reduction <add>, %0, %cst [1] : vector<16x32xf32> to vector<16xf32>
    %2 = vector.shape_cast %1 : vector<16xf32> to vector<16x1xf32>
    %cst_1 = arith.constant 3.200000e+01 : f32
    %3 = vector.broadcast %cst_1 : f32 to vector<16x1xf32>
    %4 = arith.divf %2, %3 : vector<16x1xf32>
    %5 = vector.broadcast %4 : vector<16x1xf32> to vector<16x32xf32>
    %6 = arith.subf %0, %5 : vector<16x32xf32>
    %7 = vector.broadcast %4 : vector<16x1xf32> to vector<16x32xf32>
    %8 = arith.subf %0, %7 : vector<16x32xf32>
    %9 = arith.mulf %6, %8 : vector<16x32xf32>
    %cst_2 = arith.constant dense<0.000000e+00> : vector<16xf32>
    %10 = vector.multi_reduction <add>, %9, %cst_2 [1] : vector<16x32xf32> to vector<16xf32>
    %11 = vector.shape_cast %10 : vector<16xf32> to vector<16x1xf32>
    %cst_3 = arith.constant 3.200000e+01 : f32
    %12 = vector.broadcast %cst_3 : f32 to vector<16x1xf32>
    %13 = arith.divf %11, %12 : vector<16x1xf32>
    %14 = vector.broadcast %4 : vector<16x1xf32> to vector<16x32xf32>
    %15 = arith.subf %0, %14 : vector<16x32xf32>
    %cst_4 = arith.constant 9.99999996E-13 : f32
    %16 = vector.broadcast %cst_4 : f32 to vector<16x1xf32>
    %17 = arith.addf %13, %16 : vector<16x1xf32>
    %18 = math.rsqrt %17 : vector<16x1xf32>
    %19 = vector.broadcast %18 : vector<16x1xf32> to vector<16x32xf32>
    %20 = arith.mulf %15, %19 : vector<16x32xf32>
    %c0_5 = arith.constant 0 : index
    %c0_6 = arith.constant 0 : index
    %21 = vector.load %arg1[%c0_5, %c0_6] : memref<1x32xf32, #tpu.memory_space<vmem>>, vector<1x32xf32>
    %22 = vector.broadcast %21 : vector<1x32xf32> to vector<16x32xf32>
    %23 = arith.mulf %20, %22 : vector<16x32xf32>
    %c0_7 = arith.constant 0 : index
    %c0_8 = arith.constant 0 : index
    %24 = vector.load %arg2[%c0_7, %c0_8] : memref<1x32xf32, #tpu.memory_space<vmem>>, vector<1x32xf32>
    %25 = vector.broadcast %24 : vector<1x32xf32> to vector<16x32xf32>
    %26 = arith.addf %23, %25 : vector<16x32xf32>
    %c0_9 = arith.constant 0 : index
    %c0_10 = arith.constant 0 : index
    %27 = vector.load %arg3[%c0_9, %c0_10] : memref<16x32xf32, #tpu.memory_space<vmem>>, vector<16x32xf32>
    tpu.vector_store %arg3[%c0_9, %c0_10], %26 {strides = array<i32>} : memref<16x32xf32, #tpu.memory_space<vmem>>, vector<16x32xf32>,
    return
  }
}

module attributes {stable_mosaic.version = 11 : i64} {
  func.func @_mha_kernel(%arg0: i32, %arg1: memref<1x8x32xf32, #tpu.memory_space<vmem>>, %arg2: memref<1x8x32xf32, #tpu.memory_space<vmem>>, %arg3: memref<1x8x8xf32, #tpu.memory_space<vmem>>, %arg4: memref<32x32xf32, #tpu.memory_space<vmem>>, %arg5: memref<1x32xf32, #tpu.memory_space<vmem>>, %arg6: memref<32x64xf32, #tpu.memory_space<vmem>>, %arg7: memref<1x64xf32, #tpu.memory_space<vmem>>, %arg8: memref<32x32xf32, #tpu.memory_space<vmem>>, %arg9: memref<1x32xf32, #tpu.memory_space<vmem>>, %arg10: memref<1x32xf32, #tpu.memory_space<vmem>>, %arg11: memref<1x32xf32, #tpu.memory_space<vmem>>, %arg12: memref<1x8x32xf32, #tpu.memory_space<vmem>>) attributes {dimension_semantics = [#tpu.dimension_semantics<parallel>], iteration_bounds = array<i64: 2>, scalar_prefetch = 0 : i64, scratch_operands = 0 : i64, tpu.core_type = #tpu.core_type<tc>, window_params = [{transform_indices = @transform_0, window_bounds = array<i64: 1, 8, 32>}, {transform_indices = @transform_1, window_bounds = array<i64: 1, 8, 32>}, {transform_indices = @transform_2, window_bounds = array<i64: 1, 8, 8>}, {pipeline_mode = #tpu.pipeline_mode<synchronous>, transform_indices = @transform_3, window_bounds = array<i64: 32, 32>}, {pipeline_mode = #tpu.pipeline_mode<synchronous>, transform_indices = @transform_4, window_bounds = array<i64: 1, 32>}, {pipeline_mode = #tpu.pipeline_mode<synchronous>, transform_indices = @transform_5, window_bounds = array<i64: 32, 64>}, {pipeline_mode = #tpu.pipeline_mode<synchronous>, transform_indices = @transform_6, window_bounds = array<i64: 1, 64>}, {pipeline_mode = #tpu.pipeline_mode<synchronous>, transform_indices = @transform_7, window_bounds = array<i64: 32, 32>}, {pipeline_mode = #tpu.pipeline_mode<synchronous>, transform_indices = @transform_8, window_bounds = array<i64: 1, 32>}, {pipeline_mode = #tpu.pipeline_mode<synchronous>, transform_indices = @transform_9, window_bounds = array<i64: 1, 32>}, {pipeline_mode = #tpu.pipeline_mode<synchronous>, transform_indices = @transform_10, window_bounds = array<i64: 1, 32>}, {transform_indices = @transform_11, window_bounds = array<i64: 1, 8, 32>}]} {
    %c0 = arith.constant 0 : index
    %c0_0 = arith.constant 0 : index
    %c0_1 = arith.constant 0 : index
    %0 = vector.load %arg1[%c0, %c0_0, %c0_1] : memref<1x8x32xf32, #tpu.memory_space<vmem>>, vector<1x8x32xf32>
    %1 = vector.shape_cast %0 : vector<1x8x32xf32> to vector<8x32xf32>
    %c0_2 = arith.constant 0 : index
    %c0_3 = arith.constant 0 : index
    %c0_4 = arith.constant 0 : index
    %2 = vector.load %arg2[%c0_2, %c0_3, %c0_4] : memref<1x8x32xf32, #tpu.memory_space<vmem>>, vector<1x8x32xf32>
    %3 = vector.shape_cast %2 : vector<1x8x32xf32> to vector<8x32xf32>
    %c0_5 = arith.constant 0 : index
    %c0_6 = arith.constant 0 : index
    %c0_7 = arith.constant 0 : index
    %4 = vector.load %arg3[%c0_5, %c0_6, %c0_7] : memref<1x8x8xf32, #tpu.memory_space<vmem>>, vector<1x8x8xf32>
    %5 = vector.shape_cast %4 : vector<1x8x8xf32> to vector<8x8xf32>
    %c0_8 = arith.constant 0 : index
    %c0_9 = arith.constant 0 : index
    %6 = vector.load %arg4[%c0_8, %c0_9] : memref<32x32xf32, #tpu.memory_space<vmem>>, vector<32x32xf32>
    %cst = arith.constant dense<0.000000e+00> : vector<8x32xf32>
    %7 = tpu.matmul %1, %6, %cst {dimension_numbers = #tpu.dot_dimension_numbers<[1], [0], [0], [1], [0, 0, 1, 1], [], []>} : vector<8x32xf32>, vector<32x32xf32>, vector<8x32xf32> -> vector<8x32xf32>
    %c0_10 = arith.constant 0 : index
    %c0_11 = arith.constant 0 : index
    %8 = vector.load %arg5[%c0_10, %c0_11] : memref<1x32xf32, #tpu.memory_space<vmem>>, vector<1x32xf32>
    %9 = vector.broadcast %8 : vector<1x32xf32> to vector<8x32xf32>
    %10 = arith.addf %7, %9 : vector<8x32xf32>
    %c0_12 = arith.constant 0 : index
    %c0_13 = arith.constant 0 : index
    %11 = vector.load %arg6[%c0_12, %c0_13] : memref<32x64xf32, #tpu.memory_space<vmem>>, vector<32x64xf32>
    %cst_14 = arith.constant dense<0.000000e+00> : vector<8x64xf32>
    %12 = tpu.matmul %3, %11, %cst_14 {dimension_numbers = #tpu.dot_dimension_numbers<[1], [0], [0], [1], [0, 0, 1, 1], [], []>} : vector<8x32xf32>, vector<32x64xf32>, vector<8x64xf32> -> vector<8x64xf32>
    %c0_15 = arith.constant 0 : index
    %c0_16 = arith.constant 0 : index
    %13 = vector.load %arg7[%c0_15, %c0_16] : memref<1x64xf32, #tpu.memory_space<vmem>>, vector<1x64xf32>
    %14 = vector.broadcast %13 : vector<1x64xf32> to vector<8x64xf32>
    %15 = arith.addf %12, %14 : vector<8x64xf32>
    %16 = vector.extract_strided_slice %10 {offsets = [0, 0], sizes = [8, 8], strides = [1, 1]} : vector<8x32xf32> to vector<8x8xf32>
    %17 = vector.extract_strided_slice %15 {offsets = [0, 0], sizes = [8, 8], strides = [1, 1]} : vector<8x64xf32> to vector<8x8xf32>
    %18 = vector.extract_strided_slice %15 {offsets = [0, 32], sizes = [8, 8], strides = [1, 1]} : vector<8x64xf32> to vector<8x8xf32>
    %cst_17 = arith.constant dense<0.000000e+00> : vector<8x8xf32>
    %19 = tpu.matmul %16, %17, %cst_17 {dimension_numbers = #tpu.dot_dimension_numbers<[1], [1], [0], [0], [0, 0, 1, 0], [], []>} : vector<8x8xf32>, vector<8x8xf32>, vector<8x8xf32> -> vector<8x8xf32>
    %cst_18 = arith.constant 0.353553385 : f32
    %20 = vector.broadcast %cst_18 : f32 to vector<8x8xf32>
    %21 = arith.mulf %19, %20 : vector<8x8xf32>
    %22 = arith.addf %21, %5 : vector<8x8xf32>
    %cst_19 = arith.constant dense<0xFF800000> : vector<8xf32>
    %23 = vector.multi_reduction <maximumf>, %22, %cst_19 [1] : vector<8x8xf32> to vector<8xf32>
    %24 = vector.shape_cast %23 : vector<8xf32> to vector<8x1xf32>
    %25 = vector.broadcast %24 : vector<8x1xf32> to vector<8x8xf32>
    %26 = arith.subf %22, %25 : vector<8x8xf32>
    %27 = math.exp %26 : vector<8x8xf32>
    %cst_20 = arith.constant dense<0.000000e+00> : vector<8xf32>
    %28 = vector.multi_reduction <add>, %27, %cst_20 [1] : vector<8x8xf32> to vector<8xf32>
    %29 = vector.shape_cast %28 : vector<8xf32> to vector<8x1xf32>
    %30 = tpu.reciprocal %29 {approx = true} : vector<8x1xf32> -> vector<8x1xf32>
    %31 = vector.broadcast %30 : vector<8x1xf32> to vector<8x8xf32>
    %32 = arith.mulf %27, %31 : vector<8x8xf32>
    %cst_21 = arith.constant dense<0.000000e+00> : vector<8x8xf32>
    %33 = tpu.matmul %32, %18, %cst_21 {dimension_numbers = #tpu.dot_dimension_numbers<[1], [0], [0], [1], [0, 0, 1, 1], [], []>} : vector<8x8xf32>, vector<8x8xf32>, vector<8x8xf32> -> vector<8x8xf32>
    %34 = vector.extract_strided_slice %10 {offsets = [0, 8], sizes = [8, 8], strides = [1, 1]} : vector<8x32xf32> to vector<8x8xf32>
    %35 = vector.extract_strided_slice %15 {offsets = [0, 8], sizes = [8, 8], strides = [1, 1]} : vector<8x64xf32> to vector<8x8xf32>
    %36 = vector.extract_strided_slice %15 {offsets = [0, 40], sizes = [8, 8], strides = [1, 1]} : vector<8x64xf32> to vector<8x8xf32>
    %cst_22 = arith.constant dense<0.000000e+00> : vector<8x8xf32>
    %37 = tpu.matmul %34, %35, %cst_22 {dimension_numbers = #tpu.dot_dimension_numbers<[1], [1], [0], [0], [0, 0, 1, 0], [], []>} : vector<8x8xf32>, vector<8x8xf32>, vector<8x8xf32> -> vector<8x8xf32>
    %cst_23 = arith.constant 0.353553385 : f32
    %38 = vector.broadcast %cst_23 : f32 to vector<8x8xf32>
    %39 = arith.mulf %37, %38 : vector<8x8xf32>
    %40 = arith.addf %39, %5 : vector<8x8xf32>
    %cst_24 = arith.constant dense<0xFF800000> : vector<8xf32>
    %41 = vector.multi_reduction <maximumf>, %40, %cst_24 [1] : vector<8x8xf32> to vector<8xf32>
    %42 = vector.shape_cast %41 : vector<8xf32> to vector<8x1xf32>
    %43 = vector.broadcast %42 : vector<8x1xf32> to vector<8x8xf32>
    %44 = arith.subf %40, %43 : vector<8x8xf32>
    %45 = math.exp %44 : vector<8x8xf32>
    %cst_25 = arith.constant dense<0.000000e+00> : vector<8xf32>
    %46 = vector.multi_reduction <add>, %45, %cst_25 [1] : vector<8x8xf32> to vector<8xf32>
    %47 = vector.shape_cast %46 : vector<8xf32> to vector<8x1xf32>
    %48 = tpu.reciprocal %47 {approx = true} : vector<8x1xf32> -> vector<8x1xf32>
    %49 = vector.broadcast %48 : vector<8x1xf32> to vector<8x8xf32>
    %50 = arith.mulf %45, %49 : vector<8x8xf32>
    %cst_26 = arith.constant dense<0.000000e+00> : vector<8x8xf32>
    %51 = tpu.matmul %50, %36, %cst_26 {dimension_numbers = #tpu.dot_dimension_numbers<[1], [0], [0], [1], [0, 0, 1, 1], [], []>} : vector<8x8xf32>, vector<8x8xf32>, vector<8x8xf32> -> vector<8x8xf32>
    %52 = vector.extract_strided_slice %10 {offsets = [0, 16], sizes = [8, 8], strides = [1, 1]} : vector<8x32xf32> to vector<8x8xf32>
    %53 = vector.extract_strided_slice %15 {offsets = [0, 16], sizes = [8, 8], strides = [1, 1]} : vector<8x64xf32> to vector<8x8xf32>
    %54 = vector.extract_strided_slice %15 {offsets = [0, 48], sizes = [8, 8], strides = [1, 1]} : vector<8x64xf32> to vector<8x8xf32>
    %cst_27 = arith.constant dense<0.000000e+00> : vector<8x8xf32>
    %55 = tpu.matmul %52, %53, %cst_27 {dimension_numbers = #tpu.dot_dimension_numbers<[1], [1], [0], [0], [0, 0, 1, 0], [], []>} : vector<8x8xf32>, vector<8x8xf32>, vector<8x8xf32> -> vector<8x8xf32>
    %cst_28 = arith.constant 0.353553385 : f32
    %56 = vector.broadcast %cst_28 : f32 to vector<8x8xf32>
    %57 = arith.mulf %55, %56 : vector<8x8xf32>
    %58 = arith.addf %57, %5 : vector<8x8xf32>
    %cst_29 = arith.constant dense<0xFF800000> : vector<8xf32>
    %59 = vector.multi_reduction <maximumf>, %58, %cst_29 [1] : vector<8x8xf32> to vector<8xf32>
    %60 = vector.shape_cast %59 : vector<8xf32> to vector<8x1xf32>
    %61 = vector.broadcast %60 : vector<8x1xf32> to vector<8x8xf32>
    %62 = arith.subf %58, %61 : vector<8x8xf32>
    %63 = math.exp %62 : vector<8x8xf32>
    %cst_30 = arith.constant dense<0.000000e+00> : vector<8xf32>
    %64 = vector.multi_reduction <add>, %63, %cst_30 [1] : vector<8x8xf32> to vector<8xf32>
    %65 = vector.shape_cast %64 : vector<8xf32> to vector<8x1xf32>
    %66 = tpu.reciprocal %65 {approx = true} : vector<8x1xf32> -> vector<8x1xf32>
    %67 = vector.broadcast %66 : vector<8x1xf32> to vector<8x8xf32>
    %68 = arith.mulf %63, %67 : vector<8x8xf32>
    %cst_31 = arith.constant dense<0.000000e+00> : vector<8x8xf32>
    %69 = tpu.matmul %68, %54, %cst_31 {dimension_numbers = #tpu.dot_dimension_numbers<[1], [0], [0], [1], [0, 0, 1, 1], [], []>} : vector<8x8xf32>, vector<8x8xf32>, vector<8x8xf32> -> vector<8x8xf32>
    %70 = vector.extract_strided_slice %10 {offsets = [0, 24], sizes = [8, 8], strides = [1, 1]} : vector<8x32xf32> to vector<8x8xf32>
    %71 = vector.extract_strided_slice %15 {offsets = [0, 24], sizes = [8, 8], strides = [1, 1]} : vector<8x64xf32> to vector<8x8xf32>
    %72 = vector.extract_strided_slice %15 {offsets = [0, 56], sizes = [8, 8], strides = [1, 1]} : vector<8x64xf32> to vector<8x8xf32>
    %cst_32 = arith.constant dense<0.000000e+00> : vector<8x8xf32>
    %73 = tpu.matmul %70, %71, %cst_32 {dimension_numbers = #tpu.dot_dimension_numbers<[1], [1], [0], [0], [0, 0, 1, 0], [], []>} : vector<8x8xf32>, vector<8x8xf32>, vector<8x8xf32> -> vector<8x8xf32>
    %cst_33 = arith.constant 0.353553385 : f32
    %74 = vector.broadcast %cst_33 : f32 to vector<8x8xf32>
    %75 = arith.mulf %73, %74 : vector<8x8xf32>
    %76 = arith.addf %75, %5 : vector<8x8xf32>
    %cst_34 = arith.constant dense<0xFF800000> : vector<8xf32>
    %77 = vector.multi_reduction <maximumf>, %76, %cst_34 [1] : vector<8x8xf32> to vector<8xf32>
    %78 = vector.shape_cast %77 : vector<8xf32> to vector<8x1xf32>
    %79 = vector.broadcast %78 : vector<8x1xf32> to vector<8x8xf32>
    %80 = arith.subf %76, %79 : vector<8x8xf32>
    %81 = math.exp %80 : vector<8x8xf32>
    %cst_35 = arith.constant dense<0.000000e+00> : vector<8xf32>
    %82 = vector.multi_reduction <add>, %81, %cst_35 [1] : vector<8x8xf32> to vector<8xf32>
    %83 = vector.shape_cast %82 : vector<8xf32> to vector<8x1xf32>
    %84 = tpu.reciprocal %83 {approx = true} : vector<8x1xf32> -> vector<8x1xf32>
    %85 = vector.broadcast %84 : vector<8x1xf32> to vector<8x8xf32>
    %86 = arith.mulf %81, %85 : vector<8x8xf32>
    %cst_36 = arith.constant dense<0.000000e+00> : vector<8x8xf32>
    %87 = tpu.matmul %86, %72, %cst_36 {dimension_numbers = #tpu.dot_dimension_numbers<[1], [0], [0], [1], [0, 0, 1, 1], [], []>} : vector<8x8xf32>, vector<8x8xf32>, vector<8x8xf32> -> vector<8x8xf32>
    %88 = tpu.concatenate %33, %51, %69, %87 in 1 : vector<8x8xf32>, vector<8x8xf32>, vector<8x8xf32>, vector<8x8xf32> -> vector<8x32xf32>
    %c0_37 = arith.constant 0 : index
    %c0_38 = arith.constant 0 : index
    %89 = vector.load %arg8[%c0_37, %c0_38] : memref<32x32xf32, #tpu.memory_space<vmem>>, vector<32x32xf32>
    %cst_39 = arith.constant dense<0.000000e+00> : vector<8x32xf32>
    %90 = tpu.matmul %88, %89, %cst_39 {dimension_numbers = #tpu.dot_dimension_numbers<[1], [0], [0], [1], [0, 0, 1, 1], [], []>} : vector<8x32xf32>, vector<32x32xf32>, vector<8x32xf32> -> vector<8x32xf32>
    %c0_40 = arith.constant 0 : index
    %c0_41 = arith.constant 0 : index
    %91 = vector.load %arg9[%c0_40, %c0_41] : memref<1x32xf32, #tpu.memory_space<vmem>>, vector<1x32xf32>
    %92 = vector.broadcast %91 : vector<1x32xf32> to vector<8x32xf32>
    %93 = arith.addf %90, %92 : vector<8x32xf32>
    %94 = arith.addf %93, %1 : vector<8x32xf32>
    %cst_42 = arith.constant dense<0.000000e+00> : vector<8xf32>
    %95 = vector.multi_reduction <add>, %94, %cst_42 [1] : vector<8x32xf32> to vector<8xf32>
    %96 = vector.shape_cast %95 : vector<8xf32> to vector<8x1xf32>
    %cst_43 = arith.constant 3.200000e+01 : f32
    %97 = vector.broadcast %cst_43 : f32 to vector<8x1xf32>
    %98 = arith.divf %96, %97 : vector<8x1xf32>
    %99 = vector.broadcast %98 : vector<8x1xf32> to vector<8x32xf32>
    %100 = arith.subf %94, %99 : vector<8x32xf32>
    %101 = vector.broadcast %98 : vector<8x1xf32> to vector<8x32xf32>
    %102 = arith.subf %94, %101 : vector<8x32xf32>
    %103 = arith.mulf %100, %102 : vector<8x32xf32>
    %cst_44 = arith.constant dense<0.000000e+00> : vector<8xf32>
    %104 = vector.multi_reduction <add>, %103, %cst_44 [1] : vector<8x32xf32> to vector<8xf32>
    %105 = vector.shape_cast %104 : vector<8xf32> to vector<8x1xf32>
    %cst_45 = arith.constant 3.200000e+01 : f32
    %106 = vector.broadcast %cst_45 : f32 to vector<8x1xf32>
    %107 = arith.divf %105, %106 : vector<8x1xf32>
    %108 = vector.broadcast %98 : vector<8x1xf32> to vector<8x32xf32>
    %109 = arith.subf %94, %108 : vector<8x32xf32>
    %cst_46 = arith.constant 9.99999974E-6 : f32
    %110 = vector.broadcast %cst_46 : f32 to vector<8x1xf32>
    %111 = arith.addf %107, %110 : vector<8x1xf32>
    %112 = math.rsqrt %111 : vector<8x1xf32>
    %113 = vector.broadcast %112 : vector<8x1xf32> to vector<8x32xf32>
    %114 = arith.mulf %109, %113 : vector<8x32xf32>
    %c0_47 = arith.constant 0 : index
    %c0_48 = arith.constant 0 : index
    %115 = vector.load %arg10[%c0_47, %c0_48] : memref<1x32xf32, #tpu.memory_space<vmem>>, vector<1x32xf32>
    %116 = vector.broadcast %115 : vector<1x32xf32> to vector<8x32xf32>
    %117 = arith.mulf %114, %116 : vector<8x32xf32>
    %c0_49 = arith.constant 0 : index
    %c0_50 = arith.constant 0 : index
    %118 = vector.load %arg11[%c0_49, %c0_50] : memref<1x32xf32, #tpu.memory_space<vmem>>, vector<1x32xf32>
    %119 = vector.broadcast %118 : vector<1x32xf32> to vector<8x32xf32>
    %120 = arith.addf %117, %119 : vector<8x32xf32>
    %c0_51 = arith.constant 0 : index
    %c0_52 = arith.constant 0 : index
    %c0_53 = arith.constant 0 : index
    %121 = vector.load %arg12[%c0_51, %c0_52, %c0_53] : memref<1x8x32xf32, #tpu.memory_space<vmem>>, vector<1x8x32xf32>
    %122 = vector.shape_cast %121 : vector<1x8x32xf32> to vector<8x32xf32>
    %123 = vector.shape_cast %120 : vector<8x32xf32> to vector<1x8x32xf32>
    tpu.vector_store %arg12[%c0_51, %c0_52, %c0_53], %123 {strides = array<i32>} : memref<1x8x32xf32, #tpu.memory_space<vmem>>, vector<1x8x32xf32>,
    return
  }
  func.func @transform_0(%arg0: i32) -> (i32, i32, i32) {
    %c0_i32 = arith.constant 0 : i32
    %c0_i32_0 = arith.constant 0 : i32
    %c0_i32_1 = arith.constant 0 : i32
    return %arg0, %c0_i32, %c0_i32_0 : i32, i32, i32
  }
  func.func @transform_1(%arg0: i32) -> (i32, i32, i32) {
    %c0_i32 = arith.constant 0 : i32
    %c0_i32_0 = arith.constant 0 : i32
    %c0_i32_1 = arith.constant 0 : i32
    return %arg0, %c0_i32, %c0_i32_0 : i32, i32, i32
  }
  func.func @transform_2(%arg0: i32) -> (i32, i32, i32) {
    %c0_i32 = arith.constant 0 : i32
    %c0_i32_0 = arith.constant 0 : i32
    %c0_i32_1 = arith.constant 0 : i32
    return %arg0, %c0_i32, %c0_i32_0 : i32, i32, i32
  }
  func.func @transform_3(%arg0: i32) -> (i32, i32) {
    %c0_i32 = arith.constant 0 : i32
    %c0_i32_0 = arith.constant 0 : i32
    %c0_i32_1 = arith.constant 0 : i32
    return %c0_i32, %c0_i32_0 : i32, i32
  }
  func.func @transform_4(%arg0: i32) -> (i32, i32) {
    %c0_i32 = arith.constant 0 : i32
    %c0_i32_0 = arith.constant 0 : i32
    %c0_i32_1 = arith.constant 0 : i32
    return %c0_i32, %c0_i32_0 : i32, i32
  }
  func.func @transform_5(%arg0: i32) -> (i32, i32) {
    %c0_i32 = arith.constant 0 : i32
    %c0_i32_0 = arith.constant 0 : i32
    %c0_i32_1 = arith.constant 0 : i32
    return %c0_i32, %c0_i32_0 : i32, i32
  }
  func.func @transform_6(%arg0: i32) -> (i32, i32) {
    %c0_i32 = arith.constant 0 : i32
    %c0_i32_0 = arith.constant 0 : i32
    %c0_i32_1 = arith.constant 0 : i32
    return %c0_i32, %c0_i32_0 : i32, i32
  }
  func.func @transform_7(%arg0: i32) -> (i32, i32) {
    %c0_i32 = arith.constant 0 : i32
    %c0_i32_0 = arith.constant 0 : i32
    %c0_i32_1 = arith.constant 0 : i32
    return %c0_i32, %c0_i32_0 : i32, i32
  }
  func.func @transform_8(%arg0: i32) -> (i32, i32) {
    %c0_i32 = arith.constant 0 : i32
    %c0_i32_0 = arith.constant 0 : i32
    %c0_i32_1 = arith.constant 0 : i32
    return %c0_i32, %c0_i32_0 : i32, i32
  }
  func.func @transform_9(%arg0: i32) -> (i32, i32) {
    %c0_i32 = arith.constant 0 : i32
    %c0_i32_0 = arith.constant 0 : i32
    %c0_i32_1 = arith.constant 0 : i32
    return %c0_i32, %c0_i32_0 : i32, i32
  }
  func.func @transform_10(%arg0: i32) -> (i32, i32) {
    %c0_i32 = arith.constant 0 : i32
    %c0_i32_0 = arith.constant 0 : i32
    %c0_i32_1 = arith.constant 0 : i32
    return %c0_i32, %c0_i32_0 : i32, i32
  }
  func.func @transform_11(%arg0: i32) -> (i32, i32, i32) {
    %c0_i32 = arith.constant 0 : i32
    %c0_i32_0 = arith.constant 0 : i32
    %c0_i32_1 = arith.constant 0 : i32
    return %arg0, %c0_i32, %c0_i32_0 : i32, i32, i32
  }
}

module attributes {stable_mosaic.version = 11 : i64} {
  func.func @_ln_kernel(%arg0: memref<32x32xf32, #tpu.memory_space<vmem>>, %arg1: memref<1x32xf32, #tpu.memory_space<vmem>>, %arg2: memref<1x32xf32, #tpu.memory_space<vmem>>, %arg3: memref<32x32xf32, #tpu.memory_space<vmem>>) attributes {dimension_semantics = [], scalar_prefetch = 0 : i64, scratch_operands = 0 : i64, tpu.core_type = #tpu.core_type<tc>} {
    %c0 = arith.constant 0 : index
    %c0_0 = arith.constant 0 : index
    %0 = vector.load %arg0[%c0, %c0_0] : memref<32x32xf32, #tpu.memory_space<vmem>>, vector<32x32xf32>
    %cst = arith.constant dense<0.000000e+00> : vector<32xf32>
    %1 = vector.multi_reduction <add>, %0, %cst [1] : vector<32x32xf32> to vector<32xf32>
    %2 = vector.shape_cast %1 : vector<32xf32> to vector<32x1xf32>
    %cst_1 = arith.constant 3.200000e+01 : f32
    %3 = vector.broadcast %cst_1 : f32 to vector<32x1xf32>
    %4 = arith.divf %2, %3 : vector<32x1xf32>
    %5 = vector.broadcast %4 : vector<32x1xf32> to vector<32x32xf32>
    %6 = arith.subf %0, %5 : vector<32x32xf32>
    %7 = vector.broadcast %4 : vector<32x1xf32> to vector<32x32xf32>
    %8 = arith.subf %0, %7 : vector<32x32xf32>
    %9 = arith.mulf %6, %8 : vector<32x32xf32>
    %cst_2 = arith.constant dense<0.000000e+00> : vector<32xf32>
    %10 = vector.multi_reduction <add>, %9, %cst_2 [1] : vector<32x32xf32> to vector<32xf32>
    %11 = vector.shape_cast %10 : vector<32xf32> to vector<32x1xf32>
    %cst_3 = arith.constant 3.200000e+01 : f32
    %12 = vector.broadcast %cst_3 : f32 to vector<32x1xf32>
    %13 = arith.divf %11, %12 : vector<32x1xf32>
    %14 = vector.broadcast %4 : vector<32x1xf32> to vector<32x32xf32>
    %15 = arith.subf %0, %14 : vector<32x32xf32>
    %cst_4 = arith.constant 9.99999996E-13 : f32
    %16 = vector.broadcast %cst_4 : f32 to vector<32x1xf32>
    %17 = arith.addf %13, %16 : vector<32x1xf32>
    %18 = math.rsqrt %17 : vector<32x1xf32>
    %19 = vector.broadcast %18 : vector<32x1xf32> to vector<32x32xf32>
    %20 = arith.mulf %15, %19 : vector<32x32xf32>
    %c0_5 = arith.constant 0 : index
    %c0_6 = arith.constant 0 : index
    %21 = vector.load %arg1[%c0_5, %c0_6] : memref<1x32xf32, #tpu.memory_space<vmem>>, vector<1x32xf32>
    %22 = vector.broadcast %21 : vector<1x32xf32> to vector<32x32xf32>
    %23 = arith.mulf %20, %22 : vector<32x32xf32>
    %c0_7 = arith.constant 0 : index
    %c0_8 = arith.constant 0 : index
    %24 = vector.load %arg2[%c0_7, %c0_8] : memref<1x32xf32, #tpu.memory_space<vmem>>, vector<1x32xf32>
    %25 = vector.broadcast %24 : vector<1x32xf32> to vector<32x32xf32>
    %26 = arith.addf %23, %25 : vector<32x32xf32>
    %c0_9 = arith.constant 0 : index
    %c0_10 = arith.constant 0 : index
    %27 = vector.load %arg3[%c0_9, %c0_10] : memref<32x32xf32, #tpu.memory_space<vmem>>, vector<32x32xf32>
    tpu.vector_store %arg3[%c0_9, %c0_10], %26 {strides = array<i32>} : memref<32x32xf32, #tpu.memory_space<vmem>>, vector<32x32xf32>,
    return
  }
}

module attributes {stable_mosaic.version = 11 : i64} {
  func.func @_mha_kernel(%arg0: i32, %arg1: memref<1x16x32xf32, #tpu.memory_space<vmem>>, %arg2: memref<1x16x32xf32, #tpu.memory_space<vmem>>, %arg3: memref<1x16x16xf32, #tpu.memory_space<vmem>>, %arg4: memref<32x32xf32, #tpu.memory_space<vmem>>, %arg5: memref<1x32xf32, #tpu.memory_space<vmem>>, %arg6: memref<32x64xf32, #tpu.memory_space<vmem>>, %arg7: memref<1x64xf32, #tpu.memory_space<vmem>>, %arg8: memref<32x32xf32, #tpu.memory_space<vmem>>, %arg9: memref<1x32xf32, #tpu.memory_space<vmem>>, %arg10: memref<1x32xf32, #tpu.memory_space<vmem>>, %arg11: memref<1x32xf32, #tpu.memory_space<vmem>>, %arg12: memref<1x16x32xf32, #tpu.memory_space<vmem>>) attributes {dimension_semantics = [#tpu.dimension_semantics<parallel>], iteration_bounds = array<i64: 2>, scalar_prefetch = 0 : i64, scratch_operands = 0 : i64, tpu.core_type = #tpu.core_type<tc>, window_params = [{transform_indices = @transform_0, window_bounds = array<i64: 1, 16, 32>}, {transform_indices = @transform_1, window_bounds = array<i64: 1, 16, 32>}, {transform_indices = @transform_2, window_bounds = array<i64: 1, 16, 16>}, {pipeline_mode = #tpu.pipeline_mode<synchronous>, transform_indices = @transform_3, window_bounds = array<i64: 32, 32>}, {pipeline_mode = #tpu.pipeline_mode<synchronous>, transform_indices = @transform_4, window_bounds = array<i64: 1, 32>}, {pipeline_mode = #tpu.pipeline_mode<synchronous>, transform_indices = @transform_5, window_bounds = array<i64: 32, 64>}, {pipeline_mode = #tpu.pipeline_mode<synchronous>, transform_indices = @transform_6, window_bounds = array<i64: 1, 64>}, {pipeline_mode = #tpu.pipeline_mode<synchronous>, transform_indices = @transform_7, window_bounds = array<i64: 32, 32>}, {pipeline_mode = #tpu.pipeline_mode<synchronous>, transform_indices = @transform_8, window_bounds = array<i64: 1, 32>}, {pipeline_mode = #tpu.pipeline_mode<synchronous>, transform_indices = @transform_9, window_bounds = array<i64: 1, 32>}, {pipeline_mode = #tpu.pipeline_mode<synchronous>, transform_indices = @transform_10, window_bounds = array<i64: 1, 32>}, {transform_indices = @transform_11, window_bounds = array<i64: 1, 16, 32>}]} {
    %c0 = arith.constant 0 : index
    %c0_0 = arith.constant 0 : index
    %c0_1 = arith.constant 0 : index
    %0 = vector.load %arg1[%c0, %c0_0, %c0_1] : memref<1x16x32xf32, #tpu.memory_space<vmem>>, vector<1x16x32xf32>
    %1 = vector.shape_cast %0 : vector<1x16x32xf32> to vector<16x32xf32>
    %c0_2 = arith.constant 0 : index
    %c0_3 = arith.constant 0 : index
    %c0_4 = arith.constant 0 : index
    %2 = vector.load %arg2[%c0_2, %c0_3, %c0_4] : memref<1x16x32xf32, #tpu.memory_space<vmem>>, vector<1x16x32xf32>
    %3 = vector.shape_cast %2 : vector<1x16x32xf32> to vector<16x32xf32>
    %c0_5 = arith.constant 0 : index
    %c0_6 = arith.constant 0 : index
    %c0_7 = arith.constant 0 : index
    %4 = vector.load %arg3[%c0_5, %c0_6, %c0_7] : memref<1x16x16xf32, #tpu.memory_space<vmem>>, vector<1x16x16xf32>
    %5 = vector.shape_cast %4 : vector<1x16x16xf32> to vector<16x16xf32>
    %c0_8 = arith.constant 0 : index
    %c0_9 = arith.constant 0 : index
    %6 = vector.load %arg4[%c0_8, %c0_9] : memref<32x32xf32, #tpu.memory_space<vmem>>, vector<32x32xf32>
    %cst = arith.constant dense<0.000000e+00> : vector<16x32xf32>
    %7 = tpu.matmul %1, %6, %cst {dimension_numbers = #tpu.dot_dimension_numbers<[1], [0], [0], [1], [0, 0, 1, 1], [], []>} : vector<16x32xf32>, vector<32x32xf32>, vector<16x32xf32> -> vector<16x32xf32>
    %c0_10 = arith.constant 0 : index
    %c0_11 = arith.constant 0 : index
    %8 = vector.load %arg5[%c0_10, %c0_11] : memref<1x32xf32, #tpu.memory_space<vmem>>, vector<1x32xf32>
    %9 = vector.broadcast %8 : vector<1x32xf32> to vector<16x32xf32>
    %10 = arith.addf %7, %9 : vector<16x32xf32>
    %c0_12 = arith.constant 0 : index
    %c0_13 = arith.constant 0 : index
    %11 = vector.load %arg6[%c0_12, %c0_13] : memref<32x64xf32, #tpu.memory_space<vmem>>, vector<32x64xf32>
    %cst_14 = arith.constant dense<0.000000e+00> : vector<16x64xf32>
    %12 = tpu.matmul %3, %11, %cst_14 {dimension_numbers = #tpu.dot_dimension_numbers<[1], [0], [0], [1], [0, 0, 1, 1], [], []>} : vector<16x32xf32>, vector<32x64xf32>, vector<16x64xf32> -> vector<16x64xf32>
    %c0_15 = arith.constant 0 : index
    %c0_16 = arith.constant 0 : index
    %13 = vector.load %arg7[%c0_15, %c0_16] : memref<1x64xf32, #tpu.memory_space<vmem>>, vector<1x64xf32>
    %14 = vector.broadcast %13 : vector<1x64xf32> to vector<16x64xf32>
    %15 = arith.addf %12, %14 : vector<16x64xf32>
    %16 = vector.extract_strided_slice %10 {offsets = [0, 0], sizes = [16, 8], strides = [1, 1]} : vector<16x32xf32> to vector<16x8xf32>
    %17 = vector.extract_strided_slice %15 {offsets = [0, 0], sizes = [16, 8], strides = [1, 1]} : vector<16x64xf32> to vector<16x8xf32>
    %18 = vector.extract_strided_slice %15 {offsets = [0, 32], sizes = [16, 8], strides = [1, 1]} : vector<16x64xf32> to vector<16x8xf32>
    %cst_17 = arith.constant dense<0.000000e+00> : vector<16x16xf32>
    %19 = tpu.matmul %16, %17, %cst_17 {dimension_numbers = #tpu.dot_dimension_numbers<[1], [1], [0], [0], [0, 0, 1, 0], [], []>} : vector<16x8xf32>, vector<16x8xf32>, vector<16x16xf32> -> vector<16x16xf32>
    %cst_18 = arith.constant 0.353553385 : f32
    %20 = vector.broadcast %cst_18 : f32 to vector<16x16xf32>
    %21 = arith.mulf %19, %20 : vector<16x16xf32>
    %22 = arith.addf %21, %5 : vector<16x16xf32>
    %cst_19 = arith.constant dense<0xFF800000> : vector<16xf32>
    %23 = vector.multi_reduction <maximumf>, %22, %cst_19 [1] : vector<16x16xf32> to vector<16xf32>
    %24 = vector.shape_cast %23 : vector<16xf32> to vector<16x1xf32>
    %25 = vector.broadcast %24 : vector<16x1xf32> to vector<16x16xf32>
    %26 = arith.subf %22, %25 : vector<16x16xf32>
    %27 = math.exp %26 : vector<16x16xf32>
    %cst_20 = arith.constant dense<0.000000e+00> : vector<16xf32>
    %28 = vector.multi_reduction <add>, %27, %cst_20 [1] : vector<16x16xf32> to vector<16xf32>
    %29 = vector.shape_cast %28 : vector<16xf32> to vector<16x1xf32>
    %30 = tpu.reciprocal %29 {approx = true} : vector<16x1xf32> -> vector<16x1xf32>
    %31 = vector.broadcast %30 : vector<16x1xf32> to vector<16x16xf32>
    %32 = arith.mulf %27, %31 : vector<16x16xf32>
    %cst_21 = arith.constant dense<0.000000e+00> : vector<16x8xf32>
    %33 = tpu.matmul %32, %18, %cst_21 {dimension_numbers = #tpu.dot_dimension_numbers<[1], [0], [0], [1], [0, 0, 1, 1], [], []>} : vector<16x16xf32>, vector<16x8xf32>, vector<16x8xf32> -> vector<16x8xf32>
    %34 = vector.extract_strided_slice %10 {offsets = [0, 8], sizes = [16, 8], strides = [1, 1]} : vector<16x32xf32> to vector<16x8xf32>
    %35 = vector.extract_strided_slice %15 {offsets = [0, 8], sizes = [16, 8], strides = [1, 1]} : vector<16x64xf32> to vector<16x8xf32>
    %36 = vector.extract_strided_slice %15 {offsets = [0, 40], sizes = [16, 8], strides = [1, 1]} : vector<16x64xf32> to vector<16x8xf32>
    %cst_22 = arith.constant dense<0.000000e+00> : vector<16x16xf32>
    %37 = tpu.matmul %34, %35, %cst_22 {dimension_numbers = #tpu.dot_dimension_numbers<[1], [1], [0], [0], [0, 0, 1, 0], [], []>} : vector<16x8xf32>, vector<16x8xf32>, vector<16x16xf32> -> vector<16x16xf32>
    %cst_23 = arith.constant 0.353553385 : f32
    %38 = vector.broadcast %cst_23 : f32 to vector<16x16xf32>
    %39 = arith.mulf %37, %38 : vector<16x16xf32>
    %40 = arith.addf %39, %5 : vector<16x16xf32>
    %cst_24 = arith.constant dense<0xFF800000> : vector<16xf32>
    %41 = vector.multi_reduction <maximumf>, %40, %cst_24 [1] : vector<16x16xf32> to vector<16xf32>
    %42 = vector.shape_cast %41 : vector<16xf32> to vector<16x1xf32>
    %43 = vector.broadcast %42 : vector<16x1xf32> to vector<16x16xf32>
    %44 = arith.subf %40, %43 : vector<16x16xf32>
    %45 = math.exp %44 : vector<16x16xf32>
    %cst_25 = arith.constant dense<0.000000e+00> : vector<16xf32>
    %46 = vector.multi_reduction <add>, %45, %cst_25 [1] : vector<16x16xf32> to vector<16xf32>
    %47 = vector.shape_cast %46 : vector<16xf32> to vector<16x1xf32>
    %48 = tpu.reciprocal %47 {approx = true} : vector<16x1xf32> -> vector<16x1xf32>
    %49 = vector.broadcast %48 : vector<16x1xf32> to vector<16x16xf32>
    %50 = arith.mulf %45, %49 : vector<16x16xf32>
    %cst_26 = arith.constant dense<0.000000e+00> : vector<16x8xf32>
    %51 = tpu.matmul %50, %36, %cst_26 {dimension_numbers = #tpu.dot_dimension_numbers<[1], [0], [0], [1], [0, 0, 1, 1], [], []>} : vector<16x16xf32>, vector<16x8xf32>, vector<16x8xf32> -> vector<16x8xf32>
    %52 = vector.extract_strided_slice %10 {offsets = [0, 16], sizes = [16, 8], strides = [1, 1]} : vector<16x32xf32> to vector<16x8xf32>
    %53 = vector.extract_strided_slice %15 {offsets = [0, 16], sizes = [16, 8], strides = [1, 1]} : vector<16x64xf32> to vector<16x8xf32>
    %54 = vector.extract_strided_slice %15 {offsets = [0, 48], sizes = [16, 8], strides = [1, 1]} : vector<16x64xf32> to vector<16x8xf32>
    %cst_27 = arith.constant dense<0.000000e+00> : vector<16x16xf32>
    %55 = tpu.matmul %52, %53, %cst_27 {dimension_numbers = #tpu.dot_dimension_numbers<[1], [1], [0], [0], [0, 0, 1, 0], [], []>} : vector<16x8xf32>, vector<16x8xf32>, vector<16x16xf32> -> vector<16x16xf32>
    %cst_28 = arith.constant 0.353553385 : f32
    %56 = vector.broadcast %cst_28 : f32 to vector<16x16xf32>
    %57 = arith.mulf %55, %56 : vector<16x16xf32>
    %58 = arith.addf %57, %5 : vector<16x16xf32>
    %cst_29 = arith.constant dense<0xFF800000> : vector<16xf32>
    %59 = vector.multi_reduction <maximumf>, %58, %cst_29 [1] : vector<16x16xf32> to vector<16xf32>
    %60 = vector.shape_cast %59 : vector<16xf32> to vector<16x1xf32>
    %61 = vector.broadcast %60 : vector<16x1xf32> to vector<16x16xf32>
    %62 = arith.subf %58, %61 : vector<16x16xf32>
    %63 = math.exp %62 : vector<16x16xf32>
    %cst_30 = arith.constant dense<0.000000e+00> : vector<16xf32>
    %64 = vector.multi_reduction <add>, %63, %cst_30 [1] : vector<16x16xf32> to vector<16xf32>
    %65 = vector.shape_cast %64 : vector<16xf32> to vector<16x1xf32>
    %66 = tpu.reciprocal %65 {approx = true} : vector<16x1xf32> -> vector<16x1xf32>
    %67 = vector.broadcast %66 : vector<16x1xf32> to vector<16x16xf32>
    %68 = arith.mulf %63, %67 : vector<16x16xf32>
    %cst_31 = arith.constant dense<0.000000e+00> : vector<16x8xf32>
    %69 = tpu.matmul %68, %54, %cst_31 {dimension_numbers = #tpu.dot_dimension_numbers<[1], [0], [0], [1], [0, 0, 1, 1], [], []>} : vector<16x16xf32>, vector<16x8xf32>, vector<16x8xf32> -> vector<16x8xf32>
    %70 = vector.extract_strided_slice %10 {offsets = [0, 24], sizes = [16, 8], strides = [1, 1]} : vector<16x32xf32> to vector<16x8xf32>
    %71 = vector.extract_strided_slice %15 {offsets = [0, 24], sizes = [16, 8], strides = [1, 1]} : vector<16x64xf32> to vector<16x8xf32>
    %72 = vector.extract_strided_slice %15 {offsets = [0, 56], sizes = [16, 8], strides = [1, 1]} : vector<16x64xf32> to vector<16x8xf32>
    %cst_32 = arith.constant dense<0.000000e+00> : vector<16x16xf32>
    %73 = tpu.matmul %70, %71, %cst_32 {dimension_numbers = #tpu.dot_dimension_numbers<[1], [1], [0], [0], [0, 0, 1, 0], [], []>} : vector<16x8xf32>, vector<16x8xf32>, vector<16x16xf32> -> vector<16x16xf32>
    %cst_33 = arith.constant 0.353553385 : f32
    %74 = vector.broadcast %cst_33 : f32 to vector<16x16xf32>
    %75 = arith.mulf %73, %74 : vector<16x16xf32>
    %76 = arith.addf %75, %5 : vector<16x16xf32>
    %cst_34 = arith.constant dense<0xFF800000> : vector<16xf32>
    %77 = vector.multi_reduction <maximumf>, %76, %cst_34 [1] : vector<16x16xf32> to vector<16xf32>
    %78 = vector.shape_cast %77 : vector<16xf32> to vector<16x1xf32>
    %79 = vector.broadcast %78 : vector<16x1xf32> to vector<16x16xf32>
    %80 = arith.subf %76, %79 : vector<16x16xf32>
    %81 = math.exp %80 : vector<16x16xf32>
    %cst_35 = arith.constant dense<0.000000e+00> : vector<16xf32>
    %82 = vector.multi_reduction <add>, %81, %cst_35 [1] : vector<16x16xf32> to vector<16xf32>
    %83 = vector.shape_cast %82 : vector<16xf32> to vector<16x1xf32>
    %84 = tpu.reciprocal %83 {approx = true} : vector<16x1xf32> -> vector<16x1xf32>
    %85 = vector.broadcast %84 : vector<16x1xf32> to vector<16x16xf32>
    %86 = arith.mulf %81, %85 : vector<16x16xf32>
    %cst_36 = arith.constant dense<0.000000e+00> : vector<16x8xf32>
    %87 = tpu.matmul %86, %72, %cst_36 {dimension_numbers = #tpu.dot_dimension_numbers<[1], [0], [0], [1], [0, 0, 1, 1], [], []>} : vector<16x16xf32>, vector<16x8xf32>, vector<16x8xf32> -> vector<16x8xf32>
    %88 = tpu.concatenate %33, %51, %69, %87 in 1 : vector<16x8xf32>, vector<16x8xf32>, vector<16x8xf32>, vector<16x8xf32> -> vector<16x32xf32>
    %c0_37 = arith.constant 0 : index
    %c0_38 = arith.constant 0 : index
    %89 = vector.load %arg8[%c0_37, %c0_38] : memref<32x32xf32, #tpu.memory_space<vmem>>, vector<32x32xf32>
    %cst_39 = arith.constant dense<0.000000e+00> : vector<16x32xf32>
    %90 = tpu.matmul %88, %89, %cst_39 {dimension_numbers = #tpu.dot_dimension_numbers<[1], [0], [0], [1], [0, 0, 1, 1], [], []>} : vector<16x32xf32>, vector<32x32xf32>, vector<16x32xf32> -> vector<16x32xf32>
    %c0_40 = arith.constant 0 : index
    %c0_41 = arith.constant 0 : index
    %91 = vector.load %arg9[%c0_40, %c0_41] : memref<1x32xf32, #tpu.memory_space<vmem>>, vector<1x32xf32>
    %92 = vector.broadcast %91 : vector<1x32xf32> to vector<16x32xf32>
    %93 = arith.addf %90, %92 : vector<16x32xf32>
    %94 = arith.addf %93, %1 : vector<16x32xf32>
    %cst_42 = arith.constant dense<0.000000e+00> : vector<16xf32>
    %95 = vector.multi_reduction <add>, %94, %cst_42 [1] : vector<16x32xf32> to vector<16xf32>
    %96 = vector.shape_cast %95 : vector<16xf32> to vector<16x1xf32>
    %cst_43 = arith.constant 3.200000e+01 : f32
    %97 = vector.broadcast %cst_43 : f32 to vector<16x1xf32>
    %98 = arith.divf %96, %97 : vector<16x1xf32>
    %99 = vector.broadcast %98 : vector<16x1xf32> to vector<16x32xf32>
    %100 = arith.subf %94, %99 : vector<16x32xf32>
    %101 = vector.broadcast %98 : vector<16x1xf32> to vector<16x32xf32>
    %102 = arith.subf %94, %101 : vector<16x32xf32>
    %103 = arith.mulf %100, %102 : vector<16x32xf32>
    %cst_44 = arith.constant dense<0.000000e+00> : vector<16xf32>
    %104 = vector.multi_reduction <add>, %103, %cst_44 [1] : vector<16x32xf32> to vector<16xf32>
    %105 = vector.shape_cast %104 : vector<16xf32> to vector<16x1xf32>
    %cst_45 = arith.constant 3.200000e+01 : f32
    %106 = vector.broadcast %cst_45 : f32 to vector<16x1xf32>
    %107 = arith.divf %105, %106 : vector<16x1xf32>
    %108 = vector.broadcast %98 : vector<16x1xf32> to vector<16x32xf32>
    %109 = arith.subf %94, %108 : vector<16x32xf32>
    %cst_46 = arith.constant 9.99999996E-13 : f32
    %110 = vector.broadcast %cst_46 : f32 to vector<16x1xf32>
    %111 = arith.addf %107, %110 : vector<16x1xf32>
    %112 = math.rsqrt %111 : vector<16x1xf32>
    %113 = vector.broadcast %112 : vector<16x1xf32> to vector<16x32xf32>
    %114 = arith.mulf %109, %113 : vector<16x32xf32>
    %c0_47 = arith.constant 0 : index
    %c0_48 = arith.constant 0 : index
    %115 = vector.load %arg10[%c0_47, %c0_48] : memref<1x32xf32, #tpu.memory_space<vmem>>, vector<1x32xf32>
    %116 = vector.broadcast %115 : vector<1x32xf32> to vector<16x32xf32>
    %117 = arith.mulf %114, %116 : vector<16x32xf32>
    %c0_49 = arith.constant 0 : index
    %c0_50 = arith.constant 0 : index
    %118 = vector.load %arg11[%c0_49, %c0_50] : memref<1x32xf32, #tpu.memory_space<vmem>>, vector<1x32xf32>
    %119 = vector.broadcast %118 : vector<1x32xf32> to vector<16x32xf32>
    %120 = arith.addf %117, %119 : vector<16x32xf32>
    %c0_51 = arith.constant 0 : index
    %c0_52 = arith.constant 0 : index
    %c0_53 = arith.constant 0 : index
    %121 = vector.load %arg12[%c0_51, %c0_52, %c0_53] : memref<1x16x32xf32, #tpu.memory_space<vmem>>, vector<1x16x32xf32>
    %122 = vector.shape_cast %121 : vector<1x16x32xf32> to vector<16x32xf32>
    %123 = vector.shape_cast %120 : vector<16x32xf32> to vector<1x16x32xf32>
    tpu.vector_store %arg12[%c0_51, %c0_52, %c0_53], %123 {strides = array<i32>} : memref<1x16x32xf32, #tpu.memory_space<vmem>>, vector<1x16x32xf32>,
    return
  }
  func.func @transform_0(%arg0: i32) -> (i32, i32, i32) {
    %c0_i32 = arith.constant 0 : i32
    %c0_i32_0 = arith.constant 0 : i32
    %c0_i32_1 = arith.constant 0 : i32
    return %arg0, %c0_i32, %c0_i32_0 : i32, i32, i32
  }
  func.func @transform_1(%arg0: i32) -> (i32, i32, i32) {
    %c0_i32 = arith.constant 0 : i32
    %c0_i32_0 = arith.constant 0 : i32
    %c0_i32_1 = arith.constant 0 : i32
    return %arg0, %c0_i32, %c0_i32_0 : i32, i32, i32
  }
  func.func @transform_2(%arg0: i32) -> (i32, i32, i32) {
    %c0_i32 = arith.constant 0 : i32
    %c0_i32_0 = arith.constant 0 : i32
    %c0_i32_1 = arith.constant 0 : i32
    return %arg0, %c0_i32, %c0_i32_0 : i32, i32, i32
  }
  func.func @transform_3(%arg0: i32) -> (i32, i32) {
    %c0_i32 = arith.constant 0 : i32
    %c0_i32_0 = arith.constant 0 : i32
    %c0_i32_1 = arith.constant 0 : i32
    return %c0_i32, %c0_i32_0 : i32, i32
  }
  func.func @transform_4(%arg0: i32) -> (i32, i32) {
    %c0_i32 = arith.constant 0 : i32
    %c0_i32_0 = arith.constant 0 : i32
    %c0_i32_1 = arith.constant 0 : i32
    return %c0_i32, %c0_i32_0 : i32, i32
  }
  func.func @transform_5(%arg0: i32) -> (i32, i32) {
    %c0_i32 = arith.constant 0 : i32
    %c0_i32_0 = arith.constant 0 : i32
    %c0_i32_1 = arith.constant 0 : i32
    return %c0_i32, %c0_i32_0 : i32, i32
  }
  func.func @transform_6(%arg0: i32) -> (i32, i32) {
    %c0_i32 = arith.constant 0 : i32
    %c0_i32_0 = arith.constant 0 : i32
    %c0_i32_1 = arith.constant 0 : i32
    return %c0_i32, %c0_i32_0 : i32, i32
  }
  func.func @transform_7(%arg0: i32) -> (i32, i32) {
    %c0_i32 = arith.constant 0 : i32
    %c0_i32_0 = arith.constant 0 : i32
    %c0_i32_1 = arith.constant 0 : i32
    return %c0_i32, %c0_i32_0 : i32, i32
  }
  func.func @transform_8(%arg0: i32) -> (i32, i32) {
    %c0_i32 = arith.constant 0 : i32
    %c0_i32_0 = arith.constant 0 : i32
    %c0_i32_1 = arith.constant 0 : i32
    return %c0_i32, %c0_i32_0 : i32, i32
  }
  func.func @transform_9(%arg0: i32) -> (i32, i32) {
    %c0_i32 = arith.constant 0 : i32
    %c0_i32_0 = arith.constant 0 : i32
    %c0_i32_1 = arith.constant 0 : i32
    return %c0_i32, %c0_i32_0 : i32, i32
  }
  func.func @transform_10(%arg0: i32) -> (i32, i32) {
    %c0_i32 = arith.constant 0 : i32
    %c0_i32_0 = arith.constant 0 : i32
    %c0_i32_1 = arith.constant 0 : i32
    return %c0_i32, %c0_i32_0 : i32, i32
  }
  func.func @transform_11(%arg0: i32) -> (i32, i32, i32) {
    %c0_i32 = arith.constant 0 : i32
    %c0_i32_0 = arith.constant 0 : i32
    %c0_i32_1 = arith.constant 0 : i32
    return %arg0, %c0_i32, %c0_i32_0 : i32, i32, i32
  }
}

module attributes {stable_mosaic.version = 11 : i64} {
  func.func @_ffn_kernel(%arg0: memref<32x32xf32, #tpu.memory_space<vmem>>, %arg1: memref<32x64xf32, #tpu.memory_space<vmem>>, %arg2: memref<1x64xf32, #tpu.memory_space<vmem>>, %arg3: memref<64x32xf32, #tpu.memory_space<vmem>>, %arg4: memref<1x32xf32, #tpu.memory_space<vmem>>, %arg5: memref<1x32xf32, #tpu.memory_space<vmem>>, %arg6: memref<1x32xf32, #tpu.memory_space<vmem>>, %arg7: memref<32x32xf32, #tpu.memory_space<vmem>>) attributes {dimension_semantics = [], scalar_prefetch = 0 : i64, scratch_operands = 0 : i64, tpu.core_type = #tpu.core_type<tc>} {
    %c0 = arith.constant 0 : index
    %c0_0 = arith.constant 0 : index
    %0 = vector.load %arg0[%c0, %c0_0] : memref<32x32xf32, #tpu.memory_space<vmem>>, vector<32x32xf32>
    %c0_1 = arith.constant 0 : index
    %c0_2 = arith.constant 0 : index
    %1 = vector.load %arg1[%c0_1, %c0_2] : memref<32x64xf32, #tpu.memory_space<vmem>>, vector<32x64xf32>
    %cst = arith.constant dense<0.000000e+00> : vector<32x64xf32>
    %2 = tpu.matmul %0, %1, %cst {dimension_numbers = #tpu.dot_dimension_numbers<[1], [0], [0], [1], [0, 0, 1, 1], [], []>} : vector<32x32xf32>, vector<32x64xf32>, vector<32x64xf32> -> vector<32x64xf32>
    %c0_3 = arith.constant 0 : index
    %c0_4 = arith.constant 0 : index
    %3 = vector.load %arg2[%c0_3, %c0_4] : memref<1x64xf32, #tpu.memory_space<vmem>>, vector<1x64xf32>
    %4 = vector.broadcast %3 : vector<1x64xf32> to vector<32x64xf32>
    %5 = arith.addf %2, %4 : vector<32x64xf32>
    %cst_5 = arith.constant 5.000000e-01 : f32
    %6 = vector.broadcast %cst_5 : f32 to vector<32x64xf32>
    %7 = arith.mulf %6, %5 : vector<32x64xf32>
    %cst_6 = arith.constant 4.471500e-02 : f32
    %8 = vector.broadcast %cst_6 : f32 to vector<32x64xf32>
    %9 = arith.mulf %8, %5 : vector<32x64xf32>
    %10 = arith.mulf %9, %5 : vector<32x64xf32>
    %11 = arith.mulf %10, %5 : vector<32x64xf32>
    %12 = arith.addf %5, %11 : vector<32x64xf32>
    %cst_7 = arith.constant 0.797884583 : f32
    %13 = vector.broadcast %cst_7 : f32 to vector<32x64xf32>
    %14 = arith.mulf %13, %12 : vector<32x64xf32>
    %15 = math.tanh %14 : vector<32x64xf32>
    %cst_8 = arith.constant 1.000000e+00 : f32
    %16 = vector.broadcast %cst_8 : f32 to vector<32x64xf32>
    %17 = arith.addf %16, %15 : vector<32x64xf32>
    %18 = arith.mulf %7, %17 : vector<32x64xf32>
    %c0_9 = arith.constant 0 : index
    %c0_10 = arith.constant 0 : index
    %19 = vector.load %arg3[%c0_9, %c0_10] : memref<64x32xf32, #tpu.memory_space<vmem>>, vector<64x32xf32>
    %cst_11 = arith.constant dense<0.000000e+00> : vector<32x32xf32>
    %20 = tpu.matmul %18, %19, %cst_11 {dimension_numbers = #tpu.dot_dimension_numbers<[1], [0], [0], [1], [0, 0, 1, 1], [], []>} : vector<32x64xf32>, vector<64x32xf32>, vector<32x32xf32> -> vector<32x32xf32>
    %c0_12 = arith.constant 0 : index
    %c0_13 = arith.constant 0 : index
    %21 = vector.load %arg4[%c0_12, %c0_13] : memref<1x32xf32, #tpu.memory_space<vmem>>, vector<1x32xf32>
    %22 = vector.broadcast %21 : vector<1x32xf32> to vector<32x32xf32>
    %23 = arith.addf %20, %22 : vector<32x32xf32>
    %24 = arith.addf %23, %0 : vector<32x32xf32>
    %cst_14 = arith.constant dense<0.000000e+00> : vector<32xf32>
    %25 = vector.multi_reduction <add>, %24, %cst_14 [1] : vector<32x32xf32> to vector<32xf32>
    %26 = vector.shape_cast %25 : vector<32xf32> to vector<32x1xf32>
    %cst_15 = arith.constant 3.200000e+01 : f32
    %27 = vector.broadcast %cst_15 : f32 to vector<32x1xf32>
    %28 = arith.divf %26, %27 : vector<32x1xf32>
    %29 = vector.broadcast %28 : vector<32x1xf32> to vector<32x32xf32>
    %30 = arith.subf %24, %29 : vector<32x32xf32>
    %31 = vector.broadcast %28 : vector<32x1xf32> to vector<32x32xf32>
    %32 = arith.subf %24, %31 : vector<32x32xf32>
    %33 = arith.mulf %30, %32 : vector<32x32xf32>
    %cst_16 = arith.constant dense<0.000000e+00> : vector<32xf32>
    %34 = vector.multi_reduction <add>, %33, %cst_16 [1] : vector<32x32xf32> to vector<32xf32>
    %35 = vector.shape_cast %34 : vector<32xf32> to vector<32x1xf32>
    %cst_17 = arith.constant 3.200000e+01 : f32
    %36 = vector.broadcast %cst_17 : f32 to vector<32x1xf32>
    %37 = arith.divf %35, %36 : vector<32x1xf32>
    %38 = vector.broadcast %28 : vector<32x1xf32> to vector<32x32xf32>
    %39 = arith.subf %24, %38 : vector<32x32xf32>
    %cst_18 = arith.constant 9.99999996E-13 : f32
    %40 = vector.broadcast %cst_18 : f32 to vector<32x1xf32>
    %41 = arith.addf %37, %40 : vector<32x1xf32>
    %42 = math.rsqrt %41 : vector<32x1xf32>
    %43 = vector.broadcast %42 : vector<32x1xf32> to vector<32x32xf32>
    %44 = arith.mulf %39, %43 : vector<32x32xf32>
    %c0_19 = arith.constant 0 : index
    %c0_20 = arith.constant 0 : index
    %45 = vector.load %arg5[%c0_19, %c0_20] : memref<1x32xf32, #tpu.memory_space<vmem>>, vector<1x32xf32>
    %46 = vector.broadcast %45 : vector<1x32xf32> to vector<32x32xf32>
    %47 = arith.mulf %44, %46 : vector<32x32xf32>
    %c0_21 = arith.constant 0 : index
    %c0_22 = arith.constant 0 : index
    %48 = vector.load %arg6[%c0_21, %c0_22] : memref<1x32xf32, #tpu.memory_space<vmem>>, vector<1x32xf32>
    %49 = vector.broadcast %48 : vector<1x32xf32> to vector<32x32xf32>
    %50 = arith.addf %47, %49 : vector<32x32xf32>
    %c0_23 = arith.constant 0 : index
    %c0_24 = arith.constant 0 : index
    %51 = vector.load %arg7[%c0_23, %c0_24] : memref<32x32xf32, #tpu.memory_space<vmem>>, vector<32x32xf32>
    tpu.vector_store %arg7[%c0_23, %c0_24], %50 {strides = array<i32>} : memref<32x32xf32, #tpu.memory_space<vmem>>, vector<32x32xf32>,
    return
  }
}

module attributes {stable_mosaic.version = 11 : i64} {
  func.func @_mha_kernel(%arg0: i32, %arg1: memref<1x8x32xf32, #tpu.memory_space<vmem>>, %arg2: memref<1x16x32xf32, #tpu.memory_space<vmem>>, %arg3: memref<1x8x16xf32, #tpu.memory_space<vmem>>, %arg4: memref<32x32xf32, #tpu.memory_space<vmem>>, %arg5: memref<1x32xf32, #tpu.memory_space<vmem>>, %arg6: memref<32x64xf32, #tpu.memory_space<vmem>>, %arg7: memref<1x64xf32, #tpu.memory_space<vmem>>, %arg8: memref<32x32xf32, #tpu.memory_space<vmem>>, %arg9: memref<1x32xf32, #tpu.memory_space<vmem>>, %arg10: memref<1x32xf32, #tpu.memory_space<vmem>>, %arg11: memref<1x32xf32, #tpu.memory_space<vmem>>, %arg12: memref<1x8x32xf32, #tpu.memory_space<vmem>>) attributes {dimension_semantics = [#tpu.dimension_semantics<parallel>], iteration_bounds = array<i64: 2>, scalar_prefetch = 0 : i64, scratch_operands = 0 : i64, tpu.core_type = #tpu.core_type<tc>, window_params = [{transform_indices = @transform_0, window_bounds = array<i64: 1, 8, 32>}, {transform_indices = @transform_1, window_bounds = array<i64: 1, 16, 32>}, {transform_indices = @transform_2, window_bounds = array<i64: 1, 8, 16>}, {pipeline_mode = #tpu.pipeline_mode<synchronous>, transform_indices = @transform_3, window_bounds = array<i64: 32, 32>}, {pipeline_mode = #tpu.pipeline_mode<synchronous>, transform_indices = @transform_4, window_bounds = array<i64: 1, 32>}, {pipeline_mode = #tpu.pipeline_mode<synchronous>, transform_indices = @transform_5, window_bounds = array<i64: 32, 64>}, {pipeline_mode = #tpu.pipeline_mode<synchronous>, transform_indices = @transform_6, window_bounds = array<i64: 1, 64>}, {pipeline_mode = #tpu.pipeline_mode<synchronous>, transform_indices = @transform_7, window_bounds = array<i64: 32, 32>}, {pipeline_mode = #tpu.pipeline_mode<synchronous>, transform_indices = @transform_8, window_bounds = array<i64: 1, 32>}, {pipeline_mode = #tpu.pipeline_mode<synchronous>, transform_indices = @transform_9, window_bounds = array<i64: 1, 32>}, {pipeline_mode = #tpu.pipeline_mode<synchronous>, transform_indices = @transform_10, window_bounds = array<i64: 1, 32>}, {transform_indices = @transform_11, window_bounds = array<i64: 1, 8, 32>}]} {
    %c0 = arith.constant 0 : index
    %c0_0 = arith.constant 0 : index
    %c0_1 = arith.constant 0 : index
    %0 = vector.load %arg1[%c0, %c0_0, %c0_1] : memref<1x8x32xf32, #tpu.memory_space<vmem>>, vector<1x8x32xf32>
    %1 = vector.shape_cast %0 : vector<1x8x32xf32> to vector<8x32xf32>
    %c0_2 = arith.constant 0 : index
    %c0_3 = arith.constant 0 : index
    %c0_4 = arith.constant 0 : index
    %2 = vector.load %arg2[%c0_2, %c0_3, %c0_4] : memref<1x16x32xf32, #tpu.memory_space<vmem>>, vector<1x16x32xf32>
    %3 = vector.shape_cast %2 : vector<1x16x32xf32> to vector<16x32xf32>
    %c0_5 = arith.constant 0 : index
    %c0_6 = arith.constant 0 : index
    %c0_7 = arith.constant 0 : index
    %4 = vector.load %arg3[%c0_5, %c0_6, %c0_7] : memref<1x8x16xf32, #tpu.memory_space<vmem>>, vector<1x8x16xf32>
    %5 = vector.shape_cast %4 : vector<1x8x16xf32> to vector<8x16xf32>
    %c0_8 = arith.constant 0 : index
    %c0_9 = arith.constant 0 : index
    %6 = vector.load %arg4[%c0_8, %c0_9] : memref<32x32xf32, #tpu.memory_space<vmem>>, vector<32x32xf32>
    %cst = arith.constant dense<0.000000e+00> : vector<8x32xf32>
    %7 = tpu.matmul %1, %6, %cst {dimension_numbers = #tpu.dot_dimension_numbers<[1], [0], [0], [1], [0, 0, 1, 1], [], []>} : vector<8x32xf32>, vector<32x32xf32>, vector<8x32xf32> -> vector<8x32xf32>
    %c0_10 = arith.constant 0 : index
    %c0_11 = arith.constant 0 : index
    %8 = vector.load %arg5[%c0_10, %c0_11] : memref<1x32xf32, #tpu.memory_space<vmem>>, vector<1x32xf32>
    %9 = vector.broadcast %8 : vector<1x32xf32> to vector<8x32xf32>
    %10 = arith.addf %7, %9 : vector<8x32xf32>
    %c0_12 = arith.constant 0 : index
    %c0_13 = arith.constant 0 : index
    %11 = vector.load %arg6[%c0_12, %c0_13] : memref<32x64xf32, #tpu.memory_space<vmem>>, vector<32x64xf32>
    %cst_14 = arith.constant dense<0.000000e+00> : vector<16x64xf32>
    %12 = tpu.matmul %3, %11, %cst_14 {dimension_numbers = #tpu.dot_dimension_numbers<[1], [0], [0], [1], [0, 0, 1, 1], [], []>} : vector<16x32xf32>, vector<32x64xf32>, vector<16x64xf32> -> vector<16x64xf32>
    %c0_15 = arith.constant 0 : index
    %c0_16 = arith.constant 0 : index
    %13 = vector.load %arg7[%c0_15, %c0_16] : memref<1x64xf32, #tpu.memory_space<vmem>>, vector<1x64xf32>
    %14 = vector.broadcast %13 : vector<1x64xf32> to vector<16x64xf32>
    %15 = arith.addf %12, %14 : vector<16x64xf32>
    %16 = vector.extract_strided_slice %10 {offsets = [0, 0], sizes = [8, 8], strides = [1, 1]} : vector<8x32xf32> to vector<8x8xf32>
    %17 = vector.extract_strided_slice %15 {offsets = [0, 0], sizes = [16, 8], strides = [1, 1]} : vector<16x64xf32> to vector<16x8xf32>
    %18 = vector.extract_strided_slice %15 {offsets = [0, 32], sizes = [16, 8], strides = [1, 1]} : vector<16x64xf32> to vector<16x8xf32>
    %cst_17 = arith.constant dense<0.000000e+00> : vector<8x16xf32>
    %19 = tpu.matmul %16, %17, %cst_17 {dimension_numbers = #tpu.dot_dimension_numbers<[1], [1], [0], [0], [0, 0, 1, 0], [], []>} : vector<8x8xf32>, vector<16x8xf32>, vector<8x16xf32> -> vector<8x16xf32>
    %cst_18 = arith.constant 0.353553385 : f32
    %20 = vector.broadcast %cst_18 : f32 to vector<8x16xf32>
    %21 = arith.mulf %19, %20 : vector<8x16xf32>
    %22 = arith.addf %21, %5 : vector<8x16xf32>
    %cst_19 = arith.constant dense<0xFF800000> : vector<8xf32>
    %23 = vector.multi_reduction <maximumf>, %22, %cst_19 [1] : vector<8x16xf32> to vector<8xf32>
    %24 = vector.shape_cast %23 : vector<8xf32> to vector<8x1xf32>
    %25 = vector.broadcast %24 : vector<8x1xf32> to vector<8x16xf32>
    %26 = arith.subf %22, %25 : vector<8x16xf32>
    %27 = math.exp %26 : vector<8x16xf32>
    %cst_20 = arith.constant dense<0.000000e+00> : vector<8xf32>
    %28 = vector.multi_reduction <add>, %27, %cst_20 [1] : vector<8x16xf32> to vector<8xf32>
    %29 = vector.shape_cast %28 : vector<8xf32> to vector<8x1xf32>
    %30 = tpu.reciprocal %29 {approx = true} : vector<8x1xf32> -> vector<8x1xf32>
    %31 = vector.broadcast %30 : vector<8x1xf32> to vector<8x16xf32>
    %32 = arith.mulf %27, %31 : vector<8x16xf32>
    %cst_21 = arith.constant dense<0.000000e+00> : vector<8x8xf32>
    %33 = tpu.matmul %32, %18, %cst_21 {dimension_numbers = #tpu.dot_dimension_numbers<[1], [0], [0], [1], [0, 0, 1, 1], [], []>} : vector<8x16xf32>, vector<16x8xf32>, vector<8x8xf32> -> vector<8x8xf32>
    %34 = vector.extract_strided_slice %10 {offsets = [0, 8], sizes = [8, 8], strides = [1, 1]} : vector<8x32xf32> to vector<8x8xf32>
    %35 = vector.extract_strided_slice %15 {offsets = [0, 8], sizes = [16, 8], strides = [1, 1]} : vector<16x64xf32> to vector<16x8xf32>
    %36 = vector.extract_strided_slice %15 {offsets = [0, 40], sizes = [16, 8], strides = [1, 1]} : vector<16x64xf32> to vector<16x8xf32>
    %cst_22 = arith.constant dense<0.000000e+00> : vector<8x16xf32>
    %37 = tpu.matmul %34, %35, %cst_22 {dimension_numbers = #tpu.dot_dimension_numbers<[1], [1], [0], [0], [0, 0, 1, 0], [], []>} : vector<8x8xf32>, vector<16x8xf32>, vector<8x16xf32> -> vector<8x16xf32>
    %cst_23 = arith.constant 0.353553385 : f32
    %38 = vector.broadcast %cst_23 : f32 to vector<8x16xf32>
    %39 = arith.mulf %37, %38 : vector<8x16xf32>
    %40 = arith.addf %39, %5 : vector<8x16xf32>
    %cst_24 = arith.constant dense<0xFF800000> : vector<8xf32>
    %41 = vector.multi_reduction <maximumf>, %40, %cst_24 [1] : vector<8x16xf32> to vector<8xf32>
    %42 = vector.shape_cast %41 : vector<8xf32> to vector<8x1xf32>
    %43 = vector.broadcast %42 : vector<8x1xf32> to vector<8x16xf32>
    %44 = arith.subf %40, %43 : vector<8x16xf32>
    %45 = math.exp %44 : vector<8x16xf32>
    %cst_25 = arith.constant dense<0.000000e+00> : vector<8xf32>
    %46 = vector.multi_reduction <add>, %45, %cst_25 [1] : vector<8x16xf32> to vector<8xf32>
    %47 = vector.shape_cast %46 : vector<8xf32> to vector<8x1xf32>
    %48 = tpu.reciprocal %47 {approx = true} : vector<8x1xf32> -> vector<8x1xf32>
    %49 = vector.broadcast %48 : vector<8x1xf32> to vector<8x16xf32>
    %50 = arith.mulf %45, %49 : vector<8x16xf32>
    %cst_26 = arith.constant dense<0.000000e+00> : vector<8x8xf32>
    %51 = tpu.matmul %50, %36, %cst_26 {dimension_numbers = #tpu.dot_dimension_numbers<[1], [0], [0], [1], [0, 0, 1, 1], [], []>} : vector<8x16xf32>, vector<16x8xf32>, vector<8x8xf32> -> vector<8x8xf32>
    %52 = vector.extract_strided_slice %10 {offsets = [0, 16], sizes = [8, 8], strides = [1, 1]} : vector<8x32xf32> to vector<8x8xf32>
    %53 = vector.extract_strided_slice %15 {offsets = [0, 16], sizes = [16, 8], strides = [1, 1]} : vector<16x64xf32> to vector<16x8xf32>
    %54 = vector.extract_strided_slice %15 {offsets = [0, 48], sizes = [16, 8], strides = [1, 1]} : vector<16x64xf32> to vector<16x8xf32>
    %cst_27 = arith.constant dense<0.000000e+00> : vector<8x16xf32>
    %55 = tpu.matmul %52, %53, %cst_27 {dimension_numbers = #tpu.dot_dimension_numbers<[1], [1], [0], [0], [0, 0, 1, 0], [], []>} : vector<8x8xf32>, vector<16x8xf32>, vector<8x16xf32> -> vector<8x16xf32>
    %cst_28 = arith.constant 0.353553385 : f32
    %56 = vector.broadcast %cst_28 : f32 to vector<8x16xf32>
    %57 = arith.mulf %55, %56 : vector<8x16xf32>
    %58 = arith.addf %57, %5 : vector<8x16xf32>
    %cst_29 = arith.constant dense<0xFF800000> : vector<8xf32>
    %59 = vector.multi_reduction <maximumf>, %58, %cst_29 [1] : vector<8x16xf32> to vector<8xf32>
    %60 = vector.shape_cast %59 : vector<8xf32> to vector<8x1xf32>
    %61 = vector.broadcast %60 : vector<8x1xf32> to vector<8x16xf32>
    %62 = arith.subf %58, %61 : vector<8x16xf32>
    %63 = math.exp %62 : vector<8x16xf32>
    %cst_30 = arith.constant dense<0.000000e+00> : vector<8xf32>
    %64 = vector.multi_reduction <add>, %63, %cst_30 [1] : vector<8x16xf32> to vector<8xf32>
    %65 = vector.shape_cast %64 : vector<8xf32> to vector<8x1xf32>
    %66 = tpu.reciprocal %65 {approx = true} : vector<8x1xf32> -> vector<8x1xf32>
    %67 = vector.broadcast %66 : vector<8x1xf32> to vector<8x16xf32>
    %68 = arith.mulf %63, %67 : vector<8x16xf32>
    %cst_31 = arith.constant dense<0.000000e+00> : vector<8x8xf32>
    %69 = tpu.matmul %68, %54, %cst_31 {dimension_numbers = #tpu.dot_dimension_numbers<[1], [0], [0], [1], [0, 0, 1, 1], [], []>} : vector<8x16xf32>, vector<16x8xf32>, vector<8x8xf32> -> vector<8x8xf32>
    %70 = vector.extract_strided_slice %10 {offsets = [0, 24], sizes = [8, 8], strides = [1, 1]} : vector<8x32xf32> to vector<8x8xf32>
    %71 = vector.extract_strided_slice %15 {offsets = [0, 24], sizes = [16, 8], strides = [1, 1]} : vector<16x64xf32> to vector<16x8xf32>
    %72 = vector.extract_strided_slice %15 {offsets = [0, 56], sizes = [16, 8], strides = [1, 1]} : vector<16x64xf32> to vector<16x8xf32>
    %cst_32 = arith.constant dense<0.000000e+00> : vector<8x16xf32>
    %73 = tpu.matmul %70, %71, %cst_32 {dimension_numbers = #tpu.dot_dimension_numbers<[1], [1], [0], [0], [0, 0, 1, 0], [], []>} : vector<8x8xf32>, vector<16x8xf32>, vector<8x16xf32> -> vector<8x16xf32>
    %cst_33 = arith.constant 0.353553385 : f32
    %74 = vector.broadcast %cst_33 : f32 to vector<8x16xf32>
    %75 = arith.mulf %73, %74 : vector<8x16xf32>
    %76 = arith.addf %75, %5 : vector<8x16xf32>
    %cst_34 = arith.constant dense<0xFF800000> : vector<8xf32>
    %77 = vector.multi_reduction <maximumf>, %76, %cst_34 [1] : vector<8x16xf32> to vector<8xf32>
    %78 = vector.shape_cast %77 : vector<8xf32> to vector<8x1xf32>
    %79 = vector.broadcast %78 : vector<8x1xf32> to vector<8x16xf32>
    %80 = arith.subf %76, %79 : vector<8x16xf32>
    %81 = math.exp %80 : vector<8x16xf32>
    %cst_35 = arith.constant dense<0.000000e+00> : vector<8xf32>
    %82 = vector.multi_reduction <add>, %81, %cst_35 [1] : vector<8x16xf32> to vector<8xf32>
    %83 = vector.shape_cast %82 : vector<8xf32> to vector<8x1xf32>
    %84 = tpu.reciprocal %83 {approx = true} : vector<8x1xf32> -> vector<8x1xf32>
    %85 = vector.broadcast %84 : vector<8x1xf32> to vector<8x16xf32>
    %86 = arith.mulf %81, %85 : vector<8x16xf32>
    %cst_36 = arith.constant dense<0.000000e+00> : vector<8x8xf32>
    %87 = tpu.matmul %86, %72, %cst_36 {dimension_numbers = #tpu.dot_dimension_numbers<[1], [0], [0], [1], [0, 0, 1, 1], [], []>} : vector<8x16xf32>, vector<16x8xf32>, vector<8x8xf32> -> vector<8x8xf32>
    %88 = tpu.concatenate %33, %51, %69, %87 in 1 : vector<8x8xf32>, vector<8x8xf32>, vector<8x8xf32>, vector<8x8xf32> -> vector<8x32xf32>
    %c0_37 = arith.constant 0 : index
    %c0_38 = arith.constant 0 : index
    %89 = vector.load %arg8[%c0_37, %c0_38] : memref<32x32xf32, #tpu.memory_space<vmem>>, vector<32x32xf32>
    %cst_39 = arith.constant dense<0.000000e+00> : vector<8x32xf32>
    %90 = tpu.matmul %88, %89, %cst_39 {dimension_numbers = #tpu.dot_dimension_numbers<[1], [0], [0], [1], [0, 0, 1, 1], [], []>} : vector<8x32xf32>, vector<32x32xf32>, vector<8x32xf32> -> vector<8x32xf32>
    %c0_40 = arith.constant 0 : index
    %c0_41 = arith.constant 0 : index
    %91 = vector.load %arg9[%c0_40, %c0_41] : memref<1x32xf32, #tpu.memory_space<vmem>>, vector<1x32xf32>
    %92 = vector.broadcast %91 : vector<1x32xf32> to vector<8x32xf32>
    %93 = arith.addf %90, %92 : vector<8x32xf32>
    %94 = arith.addf %93, %1 : vector<8x32xf32>
    %cst_42 = arith.constant dense<0.000000e+00> : vector<8xf32>
    %95 = vector.multi_reduction <add>, %94, %cst_42 [1] : vector<8x32xf32> to vector<8xf32>
    %96 = vector.shape_cast %95 : vector<8xf32> to vector<8x1xf32>
    %cst_43 = arith.constant 3.200000e+01 : f32
    %97 = vector.broadcast %cst_43 : f32 to vector<8x1xf32>
    %98 = arith.divf %96, %97 : vector<8x1xf32>
    %99 = vector.broadcast %98 : vector<8x1xf32> to vector<8x32xf32>
    %100 = arith.subf %94, %99 : vector<8x32xf32>
    %101 = vector.broadcast %98 : vector<8x1xf32> to vector<8x32xf32>
    %102 = arith.subf %94, %101 : vector<8x32xf32>
    %103 = arith.mulf %100, %102 : vector<8x32xf32>
    %cst_44 = arith.constant dense<0.000000e+00> : vector<8xf32>
    %104 = vector.multi_reduction <add>, %103, %cst_44 [1] : vector<8x32xf32> to vector<8xf32>
    %105 = vector.shape_cast %104 : vector<8xf32> to vector<8x1xf32>
    %cst_45 = arith.constant 3.200000e+01 : f32
    %106 = vector.broadcast %cst_45 : f32 to vector<8x1xf32>
    %107 = arith.divf %105, %106 : vector<8x1xf32>
    %108 = vector.broadcast %98 : vector<8x1xf32> to vector<8x32xf32>
    %109 = arith.subf %94, %108 : vector<8x32xf32>
    %cst_46 = arith.constant 9.99999974E-6 : f32
    %110 = vector.broadcast %cst_46 : f32 to vector<8x1xf32>
    %111 = arith.addf %107, %110 : vector<8x1xf32>
    %112 = math.rsqrt %111 : vector<8x1xf32>
    %113 = vector.broadcast %112 : vector<8x1xf32> to vector<8x32xf32>
    %114 = arith.mulf %109, %113 : vector<8x32xf32>
    %c0_47 = arith.constant 0 : index
    %c0_48 = arith.constant 0 : index
    %115 = vector.load %arg10[%c0_47, %c0_48] : memref<1x32xf32, #tpu.memory_space<vmem>>, vector<1x32xf32>
    %116 = vector.broadcast %115 : vector<1x32xf32> to vector<8x32xf32>
    %117 = arith.mulf %114, %116 : vector<8x32xf32>
    %c0_49 = arith.constant 0 : index
    %c0_50 = arith.constant 0 : index
    %118 = vector.load %arg11[%c0_49, %c0_50] : memref<1x32xf32, #tpu.memory_space<vmem>>, vector<1x32xf32>
    %119 = vector.broadcast %118 : vector<1x32xf32> to vector<8x32xf32>
    %120 = arith.addf %117, %119 : vector<8x32xf32>
    %c0_51 = arith.constant 0 : index
    %c0_52 = arith.constant 0 : index
    %c0_53 = arith.constant 0 : index
    %121 = vector.load %arg12[%c0_51, %c0_52, %c0_53] : memref<1x8x32xf32, #tpu.memory_space<vmem>>, vector<1x8x32xf32>
    %122 = vector.shape_cast %121 : vector<1x8x32xf32> to vector<8x32xf32>
    %123 = vector.shape_cast %120 : vector<8x32xf32> to vector<1x8x32xf32>
    tpu.vector_store %arg12[%c0_51, %c0_52, %c0_53], %123 {strides = array<i32>} : memref<1x8x32xf32, #tpu.memory_space<vmem>>, vector<1x8x32xf32>,
    return
  }
  func.func @transform_0(%arg0: i32) -> (i32, i32, i32) {
    %c0_i32 = arith.constant 0 : i32
    %c0_i32_0 = arith.constant 0 : i32
    %c0_i32_1 = arith.constant 0 : i32
    return %arg0, %c0_i32, %c0_i32_0 : i32, i32, i32
  }
  func.func @transform_1(%arg0: i32) -> (i32, i32, i32) {
    %c0_i32 = arith.constant 0 : i32
    %c0_i32_0 = arith.constant 0 : i32
    %c0_i32_1 = arith.constant 0 : i32
    return %arg0, %c0_i32, %c0_i32_0 : i32, i32, i32
  }
  func.func @transform_2(%arg0: i32) -> (i32, i32, i32) {
    %c0_i32 = arith.constant 0 : i32
    %c0_i32_0 = arith.constant 0 : i32
    %c0_i32_1 = arith.constant 0 : i32
    return %arg0, %c0_i32, %c0_i32_0 : i32, i32, i32
  }
  func.func @transform_3(%arg0: i32) -> (i32, i32) {
    %c0_i32 = arith.constant 0 : i32
    %c0_i32_0 = arith.constant 0 : i32
    %c0_i32_1 = arith.constant 0 : i32
    return %c0_i32, %c0_i32_0 : i32, i32
  }
  func.func @transform_4(%arg0: i32) -> (i32, i32) {
    %c0_i32 = arith.constant 0 : i32
    %c0_i32_0 = arith.constant 0 : i32
    %c0_i32_1 = arith.constant 0 : i32
    return %c0_i32, %c0_i32_0 : i32, i32
  }
  func.func @transform_5(%arg0: i32) -> (i32, i32) {
    %c0_i32 = arith.constant 0 : i32
    %c0_i32_0 = arith.constant 0 : i32
    %c0_i32_1 = arith.constant 0 : i32
    return %c0_i32, %c0_i32_0 : i32, i32
  }
  func.func @transform_6(%arg0: i32) -> (i32, i32) {
    %c0_i32 = arith.constant 0 : i32
    %c0_i32_0 = arith.constant 0 : i32
    %c0_i32_1 = arith.constant 0 : i32
    return %c0_i32, %c0_i32_0 : i32, i32
  }
  func.func @transform_7(%arg0: i32) -> (i32, i32) {
    %c0_i32 = arith.constant 0 : i32
    %c0_i32_0 = arith.constant 0 : i32
    %c0_i32_1 = arith.constant 0 : i32
    return %c0_i32, %c0_i32_0 : i32, i32
  }
  func.func @transform_8(%arg0: i32) -> (i32, i32) {
    %c0_i32 = arith.constant 0 : i32
    %c0_i32_0 = arith.constant 0 : i32
    %c0_i32_1 = arith.constant 0 : i32
    return %c0_i32, %c0_i32_0 : i32, i32
  }
  func.func @transform_9(%arg0: i32) -> (i32, i32) {
    %c0_i32 = arith.constant 0 : i32
    %c0_i32_0 = arith.constant 0 : i32
    %c0_i32_1 = arith.constant 0 : i32
    return %c0_i32, %c0_i32_0 : i32, i32
  }
  func.func @transform_10(%arg0: i32) -> (i32, i32) {
    %c0_i32 = arith.constant 0 : i32
    %c0_i32_0 = arith.constant 0 : i32
    %c0_i32_1 = arith.constant 0 : i32
    return %c0_i32, %c0_i32_0 : i32, i32
  }
  func.func @transform_11(%arg0: i32) -> (i32, i32, i32) {
    %c0_i32 = arith.constant 0 : i32
    %c0_i32_0 = arith.constant 0 : i32
    %c0_i32_1 = arith.constant 0 : i32
    return %arg0, %c0_i32, %c0_i32_0 : i32, i32, i32
  }
}

module attributes {stable_mosaic.version = 11 : i64} {
  func.func @_ffn_kernel(%arg0: memref<16x32xf32, #tpu.memory_space<vmem>>, %arg1: memref<32x64xf32, #tpu.memory_space<vmem>>, %arg2: memref<1x64xf32, #tpu.memory_space<vmem>>, %arg3: memref<64x32xf32, #tpu.memory_space<vmem>>, %arg4: memref<1x32xf32, #tpu.memory_space<vmem>>, %arg5: memref<1x32xf32, #tpu.memory_space<vmem>>, %arg6: memref<1x32xf32, #tpu.memory_space<vmem>>, %arg7: memref<16x32xf32, #tpu.memory_space<vmem>>) attributes {dimension_semantics = [], scalar_prefetch = 0 : i64, scratch_operands = 0 : i64, tpu.core_type = #tpu.core_type<tc>} {
    %c0 = arith.constant 0 : index
    %c0_0 = arith.constant 0 : index
    %0 = vector.load %arg0[%c0, %c0_0] : memref<16x32xf32, #tpu.memory_space<vmem>>, vector<16x32xf32>
    %c0_1 = arith.constant 0 : index
    %c0_2 = arith.constant 0 : index
    %1 = vector.load %arg1[%c0_1, %c0_2] : memref<32x64xf32, #tpu.memory_space<vmem>>, vector<32x64xf32>
    %cst = arith.constant dense<0.000000e+00> : vector<16x64xf32>
    %2 = tpu.matmul %0, %1, %cst {dimension_numbers = #tpu.dot_dimension_numbers<[1], [0], [0], [1], [0, 0, 1, 1], [], []>} : vector<16x32xf32>, vector<32x64xf32>, vector<16x64xf32> -> vector<16x64xf32>
    %c0_3 = arith.constant 0 : index
    %c0_4 = arith.constant 0 : index
    %3 = vector.load %arg2[%c0_3, %c0_4] : memref<1x64xf32, #tpu.memory_space<vmem>>, vector<1x64xf32>
    %4 = vector.broadcast %3 : vector<1x64xf32> to vector<16x64xf32>
    %5 = arith.addf %2, %4 : vector<16x64xf32>
    %cst_5 = arith.constant 0.000000e+00 : f32
    %6 = vector.broadcast %cst_5 : f32 to vector<16x64xf32>
    %7 = arith.maximumf %5, %6 : vector<16x64xf32>
    %c0_6 = arith.constant 0 : index
    %c0_7 = arith.constant 0 : index
    %8 = vector.load %arg3[%c0_6, %c0_7] : memref<64x32xf32, #tpu.memory_space<vmem>>, vector<64x32xf32>
    %cst_8 = arith.constant dense<0.000000e+00> : vector<16x32xf32>
    %9 = tpu.matmul %7, %8, %cst_8 {dimension_numbers = #tpu.dot_dimension_numbers<[1], [0], [0], [1], [0, 0, 1, 1], [], []>} : vector<16x64xf32>, vector<64x32xf32>, vector<16x32xf32> -> vector<16x32xf32>
    %c0_9 = arith.constant 0 : index
    %c0_10 = arith.constant 0 : index
    %10 = vector.load %arg4[%c0_9, %c0_10] : memref<1x32xf32, #tpu.memory_space<vmem>>, vector<1x32xf32>
    %11 = vector.broadcast %10 : vector<1x32xf32> to vector<16x32xf32>
    %12 = arith.addf %9, %11 : vector<16x32xf32>
    %13 = arith.addf %12, %0 : vector<16x32xf32>
    %cst_11 = arith.constant dense<0.000000e+00> : vector<16xf32>
    %14 = vector.multi_reduction <add>, %13, %cst_11 [1] : vector<16x32xf32> to vector<16xf32>
    %15 = vector.shape_cast %14 : vector<16xf32> to vector<16x1xf32>
    %cst_12 = arith.constant 3.200000e+01 : f32
    %16 = vector.broadcast %cst_12 : f32 to vector<16x1xf32>
    %17 = arith.divf %15, %16 : vector<16x1xf32>
    %18 = vector.broadcast %17 : vector<16x1xf32> to vector<16x32xf32>
    %19 = arith.subf %13, %18 : vector<16x32xf32>
    %20 = vector.broadcast %17 : vector<16x1xf32> to vector<16x32xf32>
    %21 = arith.subf %13, %20 : vector<16x32xf32>
    %22 = arith.mulf %19, %21 : vector<16x32xf32>
    %cst_13 = arith.constant dense<0.000000e+00> : vector<16xf32>
    %23 = vector.multi_reduction <add>, %22, %cst_13 [1] : vector<16x32xf32> to vector<16xf32>
    %24 = vector.shape_cast %23 : vector<16xf32> to vector<16x1xf32>
    %cst_14 = arith.constant 3.200000e+01 : f32
    %25 = vector.broadcast %cst_14 : f32 to vector<16x1xf32>
    %26 = arith.divf %24, %25 : vector<16x1xf32>
    %27 = vector.broadcast %17 : vector<16x1xf32> to vector<16x32xf32>
    %28 = arith.subf %13, %27 : vector<16x32xf32>
    %cst_15 = arith.constant 9.99999974E-6 : f32
    %29 = vector.broadcast %cst_15 : f32 to vector<16x1xf32>
    %30 = arith.addf %26, %29 : vector<16x1xf32>
    %31 = math.rsqrt %30 : vector<16x1xf32>
    %32 = vector.broadcast %31 : vector<16x1xf32> to vector<16x32xf32>
    %33 = arith.mulf %28, %32 : vector<16x32xf32>
    %c0_16 = arith.constant 0 : index
    %c0_17 = arith.constant 0 : index
    %34 = vector.load %arg5[%c0_16, %c0_17] : memref<1x32xf32, #tpu.memory_space<vmem>>, vector<1x32xf32>
    %35 = vector.broadcast %34 : vector<1x32xf32> to vector<16x32xf32>
    %36 = arith.mulf %33, %35 : vector<16x32xf32>
    %c0_18 = arith.constant 0 : index
    %c0_19 = arith.constant 0 : index
    %37 = vector.load %arg6[%c0_18, %c0_19] : memref<1x32xf32, #tpu.memory_space<vmem>>, vector<1x32xf32>
    %38 = vector.broadcast %37 : vector<1x32xf32> to vector<16x32xf32>
    %39 = arith.addf %36, %38 : vector<16x32xf32>
    %c0_20 = arith.constant 0 : index
    %c0_21 = arith.constant 0 : index
    %40 = vector.load %arg7[%c0_20, %c0_21] : memref<16x32xf32, #tpu.memory_space<vmem>>, vector<16x32xf32>
    tpu.vector_store %arg7[%c0_20, %c0_21], %39 {strides = array<i32>} : memref<16x32xf32, #tpu.memory_space<vmem>>, vector<16x32xf32>,
    return
  }
}

module attributes {stable_mosaic.version = 11 : i64} {
  func.func @_matmul_bias_kernel(%arg0: memref<16x32xf32, #tpu.memory_space<vmem>>, %arg1: memref<32x128xf32, #tpu.memory_space<vmem>>, %arg2: memref<1x128xf32, #tpu.memory_space<vmem>>, %arg3: memref<16x128xf32, #tpu.memory_space<vmem>>) attributes {dimension_semantics = [], scalar_prefetch = 0 : i64, scratch_operands = 0 : i64, tpu.core_type = #tpu.core_type<tc>} {
    %c0 = arith.constant 0 : index
    %c0_0 = arith.constant 0 : index
    %0 = vector.load %arg0[%c0, %c0_0] : memref<16x32xf32, #tpu.memory_space<vmem>>, vector<16x32xf32>
    %c0_1 = arith.constant 0 : index
    %c0_2 = arith.constant 0 : index
    %1 = vector.load %arg1[%c0_1, %c0_2] : memref<32x128xf32, #tpu.memory_space<vmem>>, vector<32x128xf32>
    %cst = arith.constant dense<0.000000e+00> : vector<16x128xf32>
    %2 = tpu.matmul %0, %1, %cst {dimension_numbers = #tpu.dot_dimension_numbers<[1], [0], [0], [1], [0, 0, 1, 1], [], []>} : vector<16x32xf32>, vector<32x128xf32>, vector<16x128xf32> -> vector<16x128xf32>
    %c0_3 = arith.constant 0 : index
    %c0_4 = arith.constant 0 : index
    %3 = vector.load %arg2[%c0_3, %c0_4] : memref<1x128xf32, #tpu.memory_space<vmem>>, vector<1x128xf32>
    %4 = vector.broadcast %3 : vector<1x128xf32> to vector<16x128xf32>
    %5 = arith.addf %2, %4 : vector<16x128xf32>
    %c0_5 = arith.constant 0 : index
    %c0_6 = arith.constant 0 : index
    %6 = vector.load %arg3[%c0_5, %c0_6] : memref<16x128xf32, #tpu.memory_space<vmem>>, vector<16x128xf32>
    tpu.vector_store %arg3[%c0_5, %c0_6], %5 {strides = array<i32>} : memref<16x128xf32, #tpu.memory_space<vmem>>, vector<16x128xf32>,
    return
  }
}

</mosaic_0001>

<llo_original>
// kernel: bert_abs_sum_forward.18
$region0: #{bert_abs_sum_forward.18}
  #allocation0 [shape = 'u32[]', space=smem, size = 0x4, offset = 0x4, fixed_abs, tag = 'smem constant byte address 0x4 - core index']
  #allocation1 [shape = 'u32[144,128]{1,0:T(1,128)}', space=vmem, size = 0x12000, scoped, tag = 'internal scratch']
  %s0 = inlined_call_operand.vmem [shape: f32[16,32], index: 0, kind: input, shape index: {}]
  %s1 = inlined_call_operand.vmem [shape: f32[1,32], index: 1, kind: input, shape index: {}]
  %s2 = inlined_call_operand.vmem [shape: f32[1,32], index: 2, kind: input, shape index: {}]
  %s3 = inlined_call_operand.vmem [shape: f32[16,32], index: 3, kind: output, shape index: {}]
  %s4 = sld [smem:[#allocation0]]
  $region22: #{bert_abs_sum_forward.18} parent=0
    _
  %s6 = ssub.s32 1, %s4
  %s7 = scalar_select 0, %s6, %s4
  // Predicated region
  $region2: #{bert_abs_sum_forward.18} parent=0 // pred_check
    _
  $region3: #{bert_abs_sum_forward.18} parent=0 // pred_check_branch
    %9 = sbr.rel (0) target = $region5
  $region4: #{bert_abs_sum_forward.18} parent=0 // pred_region
    _
  $region5: #{bert_abs_sum_forward.18} parent=0 // pred_fallthru
    _
  // Predicated region
  $region6: #{bert_abs_sum_forward.18} parent=0 // pred_check
    _
  $region7: #{bert_abs_sum_forward.18} parent=0 // pred_check_branch
    %11 = sbr.rel (0) target = $region9
  $region8: #{bert_abs_sum_forward.18} parent=0 // pred_region
    _
  $region9: #{bert_abs_sum_forward.18} parent=0 // pred_fallthru
    _
  // Predicated region
  $region10: #{bert_abs_sum_forward.18} parent=0 // pred_check
    _
  $region11: #{bert_abs_sum_forward.18} parent=0 // pred_check_branch
    %13 = sbr.rel (0) target = $region13
  $region12: #{bert_abs_sum_forward.18} parent=0 // pred_region
    _
  $region13: #{bert_abs_sum_forward.18} parent=0 // pred_fallthru
    _
  %v14 = vld [vmem:[%s0] sm:$0xff]
  %v15 = vld [vmem:[%s0 + $0x8] sm:$0xff]
  %vm16 = vcmask 261120
  %v17 = vsel %vm16, %v14, 0.0
  %18 = vadd.xlane.f32.xlu0 %v17
  %v19 = vpop.xlane.xlu0 %18
  %v20 = vsel %vm16, %v15, 0.0
  %21 = vadd.xlane.f32.xlu0 %v20
  %v22 = vpop.xlane.xlu0 %21
  %v23 = vrcp.pop 32.0
  %v24 = vmul.f32 %v19, %v23
  %v25 = vmul.f32 %v22, %v23
  %v26 = vsub.f32 %v14, %v24
  %v27 = vsub.f32 %v15, %v25
  %v28 = vmul.f32 %v26, %v26
  %v29 = vmul.f32 %v27, %v27
  %v30 = vsel %vm16, %v28, 0.0
  %31 = vadd.xlane.f32.xlu0 %v30
  %v32 = vpop.xlane.xlu0 %31
  %v33 = vsel %vm16, %v29, 0.0
  %34 = vadd.xlane.f32.xlu0 %v33
  %v35 = vpop.xlane.xlu0 %34
  %v36 = vmul.f32 %v32, %v23
  %v37 = vmul.f32 %v35, %v23
  %v38 = vadd.f32 %v36, 1e-12
  %v39 = vadd.f32 %v37, 1e-12
  %v40 = vrsqrt.pop %v38
  %v41 = vrsqrt.pop %v39
  %v42 = vmul.f32 %v26, %v40
  %v43 = vmul.f32 %v27, %v41
  %v44 = vld [vmem:[%s1] sm:$0x1]
  %v46 = vlaneseq
  %v47 = vshrl.u32 %v46, 7
  %v48 = vsub.s32 0, %v47
  %v49 = vrot.slane %v44, %v48
  %v51 = vmul.f32 %v42, %v49
  %v52 = vmul.f32 %v43, %v49
  %v53 = vld [vmem:[%s2] sm:$0x1]
  %v55 = vlaneseq
  %v56 = vshrl.u32 %v55, 7
  %v57 = vsub.s32 0, %v56
  %v58 = vrot.slane %v53, %v57
  %v60 = vadd.f32 %v51, %v58
  %v61 = vadd.f32 %v52, %v58
  %62 = vst.msk [vmem:[%s3] sm:$0xff] %vm16, %v60
  %63 = vst.msk [vmem:[%s3 + $0x8] sm:$0xff] %vm16, %v61
  // Predicated region
  $region14: #{bert_abs_sum_forward.18} parent=0 // pred_check
    _
  $region15: #{bert_abs_sum_forward.18} parent=0 // pred_check_branch
    %65 = sbr.rel (0) target = $region17
  $region16: #{bert_abs_sum_forward.18} parent=0 // pred_region
    _
  $region17: #{bert_abs_sum_forward.18} parent=0 // pred_fallthru
    _
  // Predicated region
  $region18: #{bert_abs_sum_forward.18} parent=0 // pred_check
    _
  $region19: #{bert_abs_sum_forward.18} parent=0 // pred_check_branch
    %67 = sbr.rel (0) target = $region21
  $region20: #{bert_abs_sum_forward.18} parent=0 // pred_region
    _
  $region21: #{bert_abs_sum_forward.18} parent=0 // pred_fallthru
    _

// kernel: bert_abs_sum_forward.13
$region0: #{bert_abs_sum_forward.13}
  #allocation0 [shape = 'u32[]', space=smem, size = 0x4, offset = 0x4, fixed_abs, tag = 'smem constant byte address 0x4 - core index']
  #allocation1 [shape = 'u32[144,128]{1,0:T(1,128)}', space=vmem, size = 0x12000, scoped, tag = 'internal scratch']
  %s0 = inlined_call_operand.vmem [shape: f32[32,32], index: 0, kind: input, shape index: {}]
  %s1 = inlined_call_operand.vmem [shape: f32[1,32], index: 1, kind: input, shape index: {}]
  %s2 = inlined_call_operand.vmem [shape: f32[1,32], index: 2, kind: input, shape index: {}]
  %s3 = inlined_call_operand.vmem [shape: f32[32,32], index: 3, kind: output, shape index: {}]
  %s4 = sld [smem:[#allocation0]]
  $region22: #{bert_abs_sum_forward.13} parent=0
    _
  %s6 = ssub.s32 1, %s4
  %s7 = scalar_select 0, %s6, %s4
  // Predicated region
  $region2: #{bert_abs_sum_forward.13} parent=0 // pred_check
    _
  $region3: #{bert_abs_sum_forward.13} parent=0 // pred_check_branch
    %9 = sbr.rel (0) target = $region5
  $region4: #{bert_abs_sum_forward.13} parent=0 // pred_region
    _
  $region5: #{bert_abs_sum_forward.13} parent=0 // pred_fallthru
    _
  // Predicated region
  $region6: #{bert_abs_sum_forward.13} parent=0 // pred_check
    _
  $region7: #{bert_abs_sum_forward.13} parent=0 // pred_check_branch
    %11 = sbr.rel (0) target = $region9
  $region8: #{bert_abs_sum_forward.13} parent=0 // pred_region
    _
  $region9: #{bert_abs_sum_forward.13} parent=0 // pred_fallthru
    _
  // Predicated region
  $region10: #{bert_abs_sum_forward.13} parent=0 // pred_check
    _
  $region11: #{bert_abs_sum_forward.13} parent=0 // pred_check_branch
    %13 = sbr.rel (0) target = $region13
  $region12: #{bert_abs_sum_forward.13} parent=0 // pred_region
    _
  $region13: #{bert_abs_sum_forward.13} parent=0 // pred_fallthru
    _
  %v14 = vld [vmem:[%s0] sm:$0xff]
  %v15 = vld [vmem:[%s0 + $0x8] sm:$0xff]
  %v16 = vld [vmem:[%s0 + $0x10] sm:$0xff]
  %v17 = vld [vmem:[%s0 + $0x18] sm:$0xff]
  %vm18 = vcmask 261120
  %v19 = vsel %vm18, %v14, 0.0
  %20 = vadd.xlane.f32.xlu0 %v19
  %v21 = vpop.xlane.xlu0 %20
  %v22 = vsel %vm18, %v15, 0.0
  %23 = vadd.xlane.f32.xlu0 %v22
  %v24 = vpop.xlane.xlu0 %23
  %v25 = vsel %vm18, %v16, 0.0
  %26 = vadd.xlane.f32.xlu0 %v25
  %v27 = vpop.xlane.xlu0 %26
  %v28 = vsel %vm18, %v17, 0.0
  %29 = vadd.xlane.f32.xlu0 %v28
  %v30 = vpop.xlane.xlu0 %29
  %v31 = vrcp.pop 32.0
  %v32 = vmul.f32 %v21, %v31
  %v33 = vmul.f32 %v24, %v31
  %v34 = vmul.f32 %v27, %v31
  %v35 = vmul.f32 %v30, %v31
  %v36 = vsub.f32 %v14, %v32
  %v37 = vsub.f32 %v15, %v33
  %v38 = vsub.f32 %v16, %v34
  %v39 = vsub.f32 %v17, %v35
  %v40 = vmul.f32 %v36, %v36
  %v41 = vmul.f32 %v37, %v37
  %v42 = vmul.f32 %v38, %v38
  %v43 = vmul.f32 %v39, %v39
  %v44 = vsel %vm18, %v40, 0.0
  %45 = vadd.xlane.f32.xlu0 %v44
  %v46 = vpop.xlane.xlu0 %45
  %v47 = vsel %vm18, %v41, 0.0
  %48 = vadd.xlane.f32.xlu0 %v47
  %v49 = vpop.xlane.xlu0 %48
  %v50 = vsel %vm18, %v42, 0.0
  %51 = vadd.xlane.f32.xlu0 %v50
  %v52 = vpop.xlane.xlu0 %51
  %v53 = vsel %vm18, %v43, 0.0
  %54 = vadd.xlane.f32.xlu0 %v53
  %v55 = vpop.xlane.xlu0 %54
  %v56 = vmul.f32 %v46, %v31
  %v57 = vmul.f32 %v49, %v31
  %v58 = vmul.f32 %v52, %v31
  %v59 = vmul.f32 %v55, %v31
  %v60 = vadd.f32 %v56, 1e-12
  %v61 = vadd.f32 %v57, 1e-12
  %v62 = vadd.f32 %v58, 1e-12
  %v63 = vadd.f32 %v59, 1e-12
  %v64 = vrsqrt.pop %v60
  %v65 = vrsqrt.pop %v61
  %v66 = vrsqrt.pop %v62
  %v67 = vrsqrt.pop %v63
  %v68 = vmul.f32 %v36, %v64
  %v69 = vmul.f32 %v37, %v65
  %v70 = vmul.f32 %v38, %v66
  %v71 = vmul.f32 %v39, %v67
  %v72 = vld [vmem:[%s1] sm:$0x1]
  %v74 = vlaneseq
  %v75 = vshrl.u32 %v74, 7
  %v76 = vsub.s32 0, %v75
  %v77 = vrot.slane %v72, %v76
  %v79 = vmul.f32 %v68, %v77
  %v80 = vmul.f32 %v69, %v77
  %v81 = vmul.f32 %v70, %v77
  %v82 = vmul.f32 %v71, %v77
  %v83 = vld [vmem:[%s2] sm:$0x1]
  %v85 = vlaneseq
  %v86 = vshrl.u32 %v85, 7
  %v87 = vsub.s32 0, %v86
  %v88 = vrot.slane %v83, %v87
  %v90 = vadd.f32 %v79, %v88
  %v91 = vadd.f32 %v80, %v88
  %v92 = vadd.f32 %v81, %v88
  %v93 = vadd.f32 %v82, %v88
  %94 = vst.msk [vmem:[%s3] sm:$0xff] %vm18, %v90
  %95 = vst.msk [vmem:[%s3 + $0x8] sm:$0xff] %vm18, %v91
  %96 = vst.msk [vmem:[%s3 + $0x10] sm:$0xff] %vm18, %v92
  %97 = vst.msk [vmem:[%s3 + $0x18] sm:$0xff] %vm18, %v93
  // Predicated region
  $region14: #{bert_abs_sum_forward.13} parent=0 // pred_check
    _
  $region15: #{bert_abs_sum_forward.13} parent=0 // pred_check_branch
    %99 = sbr.rel (0) target = $region17
  $region16: #{bert_abs_sum_forward.13} parent=0 // pred_region
    _
  $region17: #{bert_abs_sum_forward.13} parent=0 // pred_fallthru
    _
  // Predicated region
  $region18: #{bert_abs_sum_forward.13} parent=0 // pred_check
    _
  $region19: #{bert_abs_sum_forward.13} parent=0 // pred_check_branch
    %101 = sbr.rel (0) target = $region21
  $region20: #{bert_abs_sum_forward.13} parent=0 // pred_region
    _
  $region21: #{bert_abs_sum_forward.13} parent=0 // pred_fallthru
    _

// kernel: bert_abs_sum_forward.19
$region0: #{bert_abs_sum_forward.19}
  #allocation0 [shape = 'u32[]', space=smem, size = 0x4, offset = 0x4, fixed_abs, tag = 'smem constant byte address 0x4 - core index']
  #allocation1 [shape = 'u32[144,128]{1,0:T(1,128)}', space=vmem, size = 0x12000, scoped, tag = 'internal scratch']
  %s0 = inlined_call_operand.vmem [shape: f32[2,8,32], index: 0, kind: input, shape index: {}, may-alias: {0,1}]
  %s1 = inlined_call_operand.vmem [shape: f32[2,8,32], index: 1, kind: input, shape index: {}, may-alias: {0,1}]
  %s2 = inlined_call_operand.vmem [shape: f32[2,8,8], index: 2, kind: input, shape index: {}]
  %s3 = inlined_call_operand.vmem [shape: f32[32,32], index: 3, kind: input, shape index: {}]
  %s4 = inlined_call_operand.vmem [shape: f32[1,32], index: 4, kind: input, shape index: {}]
  %s5 = inlined_call_operand.vmem [shape: f32[32,64], index: 5, kind: input, shape index: {}]
  %s6 = inlined_call_operand.vmem [shape: f32[1,64], index: 6, kind: input, shape index: {}]
  %s7 = inlined_call_operand.vmem [shape: f32[32,32], index: 7, kind: input, shape index: {}]
  %s8 = inlined_call_operand.vmem [shape: f32[1,32], index: 8, kind: input, shape index: {}]
  %s9 = inlined_call_operand.vmem [shape: f32[1,32], index: 9, kind: input, shape index: {}]
  %s10 = inlined_call_operand.vmem [shape: f32[1,32], index: 10, kind: input, shape index: {}]
  %s11 = inlined_call_operand.vmem [shape: f32[2,8,32], index: 11, kind: output, shape index: {}]
  %s12 = sld [smem:[#allocation0]]
  $region77: #{bert_abs_sum_forward.19} parent=0
    _
  %s14 = ssub.s32 1, %s12
  %s15 = scalar_select 0, %s14, %s12
  loop: start=0, step=1, limit=4
  $region2: #{bert_abs_sum_forward.19} parent=0 // loop_pre_header
    _
  $region3: #{bert_abs_sum_forward.19} parent=0 // loop_header
    %s17 = sphi 0, %s21
    %p18 = scmp.ge.s32.totalorder %s17, 4
    %s27 = sphi 0, %s29
    %s30 = sphi 0, %s27
    %s31 = sphi 0, %s30
    %s47 = sphi 0, %s31
    %s53 = sphi 0, %s55
    %s56 = sphi 0, %s53
    %s57 = sphi 0, %s56
    %s73 = sphi 0, %s57
    %s79 = sphi 0, %s81
    %s82 = sphi 0, %s79
    %s83 = sphi 0, %s82
    %s99 = sphi 0, %s83
    %s103 = sphi 0, %s103
    %s105 = sphi 0, %s103
    %s106 = sphi 0, %s105
    %s120 = sphi 0, %s106
    %s124 = sphi 0, %s124
    %s126 = sphi 0, %s124
    %s127 = sphi 0, %s126
    %s141 = sphi 0, %s127
    %s145 = sphi 0, %s145
    %s147 = sphi 0, %s145
    %s148 = sphi 0, %s147
    %s162 = sphi 0, %s148
    %s166 = sphi 0, %s166
    %s168 = sphi 0, %s166
    %s169 = sphi 0, %s168
    %s183 = sphi 0, %s169
    %s187 = sphi 0, %s187
    %s189 = sphi 0, %s187
    %s190 = sphi 0, %s189
    %s204 = sphi 0, %s190
    %s208 = sphi 0, %s208
    %s210 = sphi 0, %s208
    %s211 = sphi 0, %s210
    %s225 = sphi 0, %s211
    %s229 = sphi 0, %s229
    %s231 = sphi 0, %s229
    %s232 = sphi 0, %s231
    %s246 = sphi 0, %s232
    %s250 = sphi 0, %s250
    %s252 = sphi 0, %s250
    %s253 = sphi 0, %s252
    %s267 = sphi 0, %s253
    %s273 = sphi 0, %s275
    %s276 = sphi 0, %s273
    %s277 = sphi 0, %s276
    %s293 = sphi 0, %s277
  $region4: #{bert_abs_sum_forward.19} parent=0 // loop_header_branch
    %20 = sbr.rel (%p18) target = $region8
  $region5: #{bert_abs_sum_forward.19} parent=0 // loop_body
    %s22 = ssub.s32 %s17, 1
    %s23 = ssub.s32 %s17, 2
    %s24 = sadd.s32 %s17, 1
    %s25 = ssub.s32 %s17, %s24
    %p26 = scmp.eq.s32.totalorder %s25, 0
    %s28 = sadd.s32 %s27, 1
    %s29 = scalar_select %p26, %s27, %s28
    %p32 = pneg %p26
    %p33 = scmp.eq.s32.totalorder %s17, 1
    %p34 = por %p32, %p33
    %p35 = scmp.ne.s32.totalorder %s27, %s30
    %p36 = scmp.eq.s32.totalorder %s17, 0
    %p37 = por %p35, %p36
    %p38 = scmp.ne.s32.totalorder %s27, %s30
    %p39 = scmp.eq.s32.totalorder %s22, 1
    %p40 = por %p38, %p39
    %p41 = scmp.ne.s32.totalorder %s30, %s31
    %p42 = scmp.eq.s32.totalorder %s22, 0
    %p43 = por %p41, %p42
    %p44 = scmp.ne.s32.totalorder %s30, %s31
    %p45 = scmp.eq.s32.totalorder %s23, 1
    %p46 = por %p44, %p45
    %p48 = scmp.ne.s32.totalorder %s31, %s47
    %p49 = scmp.eq.s32.totalorder %s23, 0
    %p50 = por %p48, %p49
    %s51 = ssub.s32 %s17, %s24
    %p52 = scmp.eq.s32.totalorder %s51, 0
    %s54 = sadd.s32 %s53, 1
    %s55 = scalar_select %p52, %s53, %s54
    %p58 = pneg %p52
    %p59 = scmp.eq.s32.totalorder %s17, 1
    %p60 = por %p58, %p59
    %p61 = scmp.ne.s32.totalorder %s53, %s56
    %p62 = scmp.eq.s32.totalorder %s17, 0
    %p63 = por %p61, %p62
    %p64 = scmp.ne.s32.totalorder %s53, %s56
    %p65 = scmp.eq.s32.totalorder %s22, 1
    %p66 = por %p64, %p65
    %p67 = scmp.ne.s32.totalorder %s56, %s57
    %p68 = scmp.eq.s32.totalorder %s22, 0
    %p69 = por %p67, %p68
    %p70 = scmp.ne.s32.totalorder %s56, %s57
    %p71 = scmp.eq.s32.totalorder %s23, 1
    %p72 = por %p70, %p71
    %p74 = scmp.ne.s32.totalorder %s57, %s73
    %p75 = scmp.eq.s32.totalorder %s23, 0
    %p76 = por %p74, %p75
    %s77 = ssub.s32 %s17, %s24
    %p78 = scmp.eq.s32.totalorder %s77, 0
    %s80 = sadd.s32 %s79, 1
    %s81 = scalar_select %p78, %s79, %s80
    %p84 = pneg %p78
    %p85 = scmp.eq.s32.totalorder %s17, 1
    %p86 = por %p84, %p85
    %p87 = scmp.ne.s32.totalorder %s79, %s82
    %p88 = scmp.eq.s32.totalorder %s17, 0
    %p89 = por %p87, %p88
    %p90 = scmp.ne.s32.totalorder %s79, %s82
    %p91 = scmp.eq.s32.totalorder %s22, 1
    %p92 = por %p90, %p91
    %p93 = scmp.ne.s32.totalorder %s82, %s83
    %p94 = scmp.eq.s32.totalorder %s22, 0
    %p95 = por %p93, %p94
    %p96 = scmp.ne.s32.totalorder %s82, %s83
    %p97 = scmp.eq.s32.totalorder %s23, 1
    %p98 = por %p96, %p97
    %p100 = scmp.ne.s32.totalorder %s83, %s99
    %p101 = scmp.eq.s32.totalorder %s23, 0
    %p102 = por %p100, %p101
    %s104 = sadd.s32 %s103, 1
    %p107 = scmp.eq.s32.totalorder %s17, 1
    %p108 = scmp.ne.s32.totalorder %s103, %s105
    %p109 = scmp.eq.s32.totalorder %s17, 0
    %p110 = por %p108, %p109
    %p111 = scmp.ne.s32.totalorder %s103, %s105
    %p112 = scmp.eq.s32.totalorder %s22, 1
    %p113 = por %p111, %p112
    %p114 = scmp.ne.s32.totalorder %s105, %s106
    %p115 = scmp.eq.s32.totalorder %s22, 0
    %p116 = por %p114, %p115
    %p117 = scmp.ne.s32.totalorder %s105, %s106
    %p118 = scmp.eq.s32.totalorder %s23, 1
    %p119 = por %p117, %p118
    %p121 = scmp.ne.s32.totalorder %s106, %s120
    %p122 = scmp.eq.s32.totalorder %s23, 0
    %p123 = por %p121, %p122
    %s125 = sadd.s32 %s124, 1
    %p128 = scmp.eq.s32.totalorder %s17, 1
    %p129 = scmp.ne.s32.totalorder %s124, %s126
    %p130 = scmp.eq.s32.totalorder %s17, 0
    %p131 = por %p129, %p130
    %p132 = scmp.ne.s32.totalorder %s124, %s126
    %p133 = scmp.eq.s32.totalorder %s22, 1
    %p134 = por %p132, %p133
    %p135 = scmp.ne.s32.totalorder %s126, %s127
    %p136 = scmp.eq.s32.totalorder %s22, 0
    %p137 = por %p135, %p136
    %p138 = scmp.ne.s32.totalorder %s126, %s127
    %p139 = scmp.eq.s32.totalorder %s23, 1
    %p140 = por %p138, %p139
    %p142 = scmp.ne.s32.totalorder %s127, %s141
    %p143 = scmp.eq.s32.totalorder %s23, 0
    %p144 = por %p142, %p143
    %s146 = sadd.s32 %s145, 1
    %p149 = scmp.eq.s32.totalorder %s17, 1
    %p150 = scmp.ne.s32.totalorder %s145, %s147
    %p151 = scmp.eq.s32.totalorder %s17, 0
    %p152 = por %p150, %p151
    %p153 = scmp.ne.s32.totalorder %s145, %s147
    %p154 = scmp.eq.s32.totalorder %s22, 1
    %p155 = por %p153, %p154
    %p156 = scmp.ne.s32.totalorder %s147, %s148
    %p157 = scmp.eq.s32.totalorder %s22, 0
    %p158 = por %p156, %p157
    %p159 = scmp.ne.s32.totalorder %s147, %s148
    %p160 = scmp.eq.s32.totalorder %s23, 1
    %p161 = por %p159, %p160
    %p163 = scmp.ne.s32.totalorder %s148, %s162
    %p164 = scmp.eq.s32.totalorder %s23, 0
    %p165 = por %p163, %p164
    %s167 = sadd.s32 %s166, 1
    %p170 = scmp.eq.s32.totalorder %s17, 1
    %p171 = scmp.ne.s32.totalorder %s166, %s168
    %p172 = scmp.eq.s32.totalorder %s17, 0
    %p173 = por %p171, %p172
    %p174 = scmp.ne.s32.totalorder %s166, %s168
    %p175 = scmp.eq.s32.totalorder %s22, 1
    %p176 = por %p174, %p175
    %p177 = scmp.ne.s32.totalorder %s168, %s169
    %p178 = scmp.eq.s32.totalorder %s22, 0
    %p179 = por %p177, %p178
    %p180 = scmp.ne.s32.totalorder %s168, %s169
    %p181 = scmp.eq.s32.totalorder %s23, 1
    %p182 = por %p180, %p181
    %p184 = scmp.ne.s32.totalorder %s169, %s183
    %p185 = scmp.eq.s32.totalorder %s23, 0
    %p186 = por %p184, %p185
    %s188 = sadd.s32 %s187, 1
    %p191 = scmp.eq.s32.totalorder %s17, 1
    %p192 = scmp.ne.s32.totalorder %s187, %s189
    %p193 = scmp.eq.s32.totalorder %s17, 0
    %p194 = por %p192, %p193
    %p195 = scmp.ne.s32.totalorder %s187, %s189
    %p196 = scmp.eq.s32.totalorder %s22, 1
    %p197 = por %p195, %p196
    %p198 = scmp.ne.s32.totalorder %s189, %s190
    %p199 = scmp.eq.s32.totalorder %s22, 0
    %p200 = por %p198, %p199
    %p201 = scmp.ne.s32.totalorder %s189, %s190
    %p202 = scmp.eq.s32.totalorder %s23, 1
    %p203 = por %p201, %p202
    %p205 = scmp.ne.s32.totalorder %s190, %s204
    %p206 = scmp.eq.s32.totalorder %s23, 0
    %p207 = por %p205, %p206
    %s209 = sadd.s32 %s208, 1
    %p212 = scmp.eq.s32.totalorder %s17, 1
    %p213 = scmp.ne.s32.totalorder %s208, %s210
    %p214 = scmp.eq.s32.totalorder %s17, 0
    %p215 = por %p213, %p214
    %p216 = scmp.ne.s32.totalorder %s208, %s210
    %p217 = scmp.eq.s32.totalorder %s22, 1
    %p218 = por %p216, %p217
    %p219 = scmp.ne.s32.totalorder %s210, %s211
    %p220 = scmp.eq.s32.totalorder %s22, 0
    %p221 = por %p219, %p220
    %p222 = scmp.ne.s32.totalorder %s210, %s211
    %p223 = scmp.eq.s32.totalorder %s23, 1
    %p224 = por %p222, %p223
    %p226 = scmp.ne.s32.totalorder %s211, %s225
    %p227 = scmp.eq.s32.totalorder %s23, 0
    %p228 = por %p226, %p227
    %s230 = sadd.s32 %s229, 1
    %p233 = scmp.eq.s32.totalorder %s17, 1
    %p234 = scmp.ne.s32.totalorder %s229, %s231
    %p235 = scmp.eq.s32.totalorder %s17, 0
    %p236 = por %p234, %p235
    %p237 = scmp.ne.s32.totalorder %s229, %s231
    %p238 = scmp.eq.s32.totalorder %s22, 1
    %p239 = por %p237, %p238
    %p240 = scmp.ne.s32.totalorder %s231, %s232
    %p241 = scmp.eq.s32.totalorder %s22, 0
    %p242 = por %p240, %p241
    %p243 = scmp.ne.s32.totalorder %s231, %s232
    %p244 = scmp.eq.s32.totalorder %s23, 1
    %p245 = por %p243, %p244
    %p247 = scmp.ne.s32.totalorder %s232, %s246
    %p248 = scmp.eq.s32.totalorder %s23, 0
    %p249 = por %p247, %p248
    %s251 = sadd.s32 %s250, 1
    %p254 = scmp.eq.s32.totalorder %s17, 1
    %p255 = scmp.ne.s32.totalorder %s250, %s252
    %p256 = scmp.eq.s32.totalorder %s17, 0
    %p257 = por %p255, %p256
    %p258 = scmp.ne.s32.totalorder %s250, %s252
    %p259 = scmp.eq.s32.totalorder %s22, 1
    %p260 = por %p258, %p259
    %p261 = scmp.ne.s32.totalorder %s252, %s253
    %p262 = scmp.eq.s32.totalorder %s22, 0
    %p263 = por %p261, %p262
    %p264 = scmp.ne.s32.totalorder %s252, %s253
    %p265 = scmp.eq.s32.totalorder %s23, 1
    %p266 = por %p264, %p265
    %p268 = scmp.ne.s32.totalorder %s253, %s267
    %p269 = scmp.eq.s32.totalorder %s23, 0
    %p270 = por %p268, %p269
    %s271 = ssub.s32 %s17, %s24
    %p272 = scmp.eq.s32.totalorder %s271, 0
    %s274 = sadd.s32 %s273, 1
    %s275 = scalar_select %p272, %s273, %s274
    %p278 = pneg %p272
    %p279 = scmp.eq.s32.totalorder %s17, 1
    %p280 = por %p278, %p279
    %p281 = scmp.ne.s32.totalorder %s273, %s276
    %p282 = scmp.eq.s32.totalorder %s17, 0
    %p283 = por %p281, %p282
    %p284 = scmp.ne.s32.totalorder %s273, %s276
    %p285 = scmp.eq.s32.totalorder %s22, 1
    %p286 = por %p284, %p285
    %p287 = scmp.ne.s32.totalorder %s276, %s277
    %p288 = scmp.eq.s32.totalorder %s22, 0
    %p289 = por %p287, %p288
    %p290 = scmp.ne.s32.totalorder %s276, %s277
    %p291 = scmp.eq.s32.totalorder %s23, 1
    %p292 = por %p290, %p291
    %p294 = scmp.ne.s32.totalorder %s277, %s293
    %p295 = scmp.eq.s32.totalorder %s23, 0
    %p296 = por %p294, %p295
    %p297 = scmp.le.s32.totalorder 1, %s17
    %p298 = scmp.lt.s32.totalorder %s17, 3
    %p299 = pnand %p297, %p298
    %p300 = pneg %p299
    // Predicated region
    $region9: #{bert_abs_sum_forward.19} parent=5 // pred_check
      _
    $region10: #{bert_abs_sum_forward.19} parent=5 // pred_check_branch
      %302 = sbr.rel (%p299) target = $region12
    $region11: #{bert_abs_sum_forward.19} parent=5 // pred_region
      %s303 = ssub.s32 %s17, 1
      // Predicated region
      $region13: #{bert_abs_sum_forward.19} parent=11 // pred_check
        %p304 = pneg %p116
      $region14: #{bert_abs_sum_forward.19} parent=11 // pred_check_branch
        %306 = sbr.rel (%p304) target = $region16
      $region15: #{bert_abs_sum_forward.19} parent=11 // pred_region
        _
      $region16: #{bert_abs_sum_forward.19} parent=11 // pred_fallthru
        _
      // Predicated region
      $region17: #{bert_abs_sum_forward.19} parent=11 // pred_check
        %p307 = pneg %p137
      $region18: #{bert_abs_sum_forward.19} parent=11 // pred_check_branch
        %309 = sbr.rel (%p307) target = $region20
      $region19: #{bert_abs_sum_forward.19} parent=11 // pred_region
        _
      $region20: #{bert_abs_sum_forward.19} parent=11 // pred_fallthru
        _
      // Predicated region
      $region21: #{bert_abs_sum_forward.19} parent=11 // pred_check
        %p310 = pneg %p158
      $region22: #{bert_abs_sum_forward.19} parent=11 // pred_check_branch
        %312 = sbr.rel (%p310) target = $region24
      $region23: #{bert_abs_sum_forward.19} parent=11 // pred_region
        _
      $region24: #{bert_abs_sum_forward.19} parent=11 // pred_fallthru
        _
      // Predicated region
      $region25: #{bert_abs_sum_forward.19} parent=11 // pred_check
        %p313 = pneg %p179
      $region26: #{bert_abs_sum_forward.19} parent=11 // pred_check_branch
        %315 = sbr.rel (%p313) target = $region28
      $region27: #{bert_abs_sum_forward.19} parent=11 // pred_region
        _
      $region28: #{bert_abs_sum_forward.19} parent=11 // pred_fallthru
        _
      // Predicated region
      $region29: #{bert_abs_sum_forward.19} parent=11 // pred_check
        %p316 = pneg %p200
      $region30: #{bert_abs_sum_forward.19} parent=11 // pred_check_branch
        %318 = sbr.rel (%p316) target = $region32
      $region31: #{bert_abs_sum_forward.19} parent=11 // pred_region
        _
      $region32: #{bert_abs_sum_forward.19} parent=11 // pred_fallthru
        _
      // Predicated region
      $region33: #{bert_abs_sum_forward.19} parent=11 // pred_check
        %p319 = pneg %p221
      $region34: #{bert_abs_sum_forward.19} parent=11 // pred_check_branch
        %321 = sbr.rel (%p319) target = $region36
      $region35: #{bert_abs_sum_forward.19} parent=11 // pred_region
        _
      $region36: #{bert_abs_sum_forward.19} parent=11 // pred_fallthru
        _
      // Predicated region
      $region37: #{bert_abs_sum_forward.19} parent=11 // pred_check
        %p322 = pneg %p242
      $region38: #{bert_abs_sum_forward.19} parent=11 // pred_check_branch
        %324 = sbr.rel (%p322) target = $region40
      $region39: #{bert_abs_sum_forward.19} parent=11 // pred_region
        _
      $region40: #{bert_abs_sum_forward.19} parent=11 // pred_fallthru
        _
      // Predicated region
      $region41: #{bert_abs_sum_forward.19} parent=11 // pred_check
        %p325 = pneg %p263
      $region42: #{bert_abs_sum_forward.19} parent=11 // pred_check_branch
        %327 = sbr.rel (%p325) target = $region44
      $region43: #{bert_abs_sum_forward.19} parent=11 // pred_region
        _
      $region44: #{bert_abs_sum_forward.19} parent=11 // pred_fallthru
        _
    $region12: #{bert_abs_sum_forward.19} parent=5 // pred_fallthru
      _
    %p328 = scmp.lt.s32.totalorder %s17, 2
    // Predicated region
    $region45: #{bert_abs_sum_forward.19} parent=5 // pred_check
      %p329 = pneg %p328
    $region46: #{bert_abs_sum_forward.19} parent=5 // pred_check_branch
      %331 = sbr.rel (%p329) target = $region48
    $region47: #{bert_abs_sum_forward.19} parent=5 // pred_region
      // Predicated region
      $region49: #{bert_abs_sum_forward.19} parent=47 // pred_check
        %p332 = pneg %p37
      $region50: #{bert_abs_sum_forward.19} parent=47 // pred_check_branch
        %334 = sbr.rel (%p332) target = $region52
      $region51: #{bert_abs_sum_forward.19} parent=47 // pred_region
        %p335 = scmp.lt.s32.totalorder %s17, 1
        %s336 = scalar_select %p335, %s17, 1
        %s337 = smul.addr %s336, 8
        %s338 = scalar_lea.vmem %s0, %s337
      $region52: #{bert_abs_sum_forward.19} parent=47 // pred_fallthru
        _
      // Predicated region
      $region53: #{bert_abs_sum_forward.19} parent=47 // pred_check
        %p339 = pneg %p63
      $region54: #{bert_abs_sum_forward.19} parent=47 // pred_check_branch
        %341 = sbr.rel (%p339) target = $region56
      $region55: #{bert_abs_sum_forward.19} parent=47 // pred_region
        %p342 = scmp.lt.s32.totalorder %s17, 1
        %s343 = scalar_select %p342, %s17, 1
        %s344 = smul.addr %s343, 8
        %s345 = scalar_lea.vmem %s1, %s344
      $region56: #{bert_abs_sum_forward.19} parent=47 // pred_fallthru
        _
      // Predicated region
      $region57: #{bert_abs_sum_forward.19} parent=47 // pred_check
        %p346 = pneg %p89
      $region58: #{bert_abs_sum_forward.19} parent=47 // pred_check_branch
        %348 = sbr.rel (%p346) target = $region60
      $region59: #{bert_abs_sum_forward.19} parent=47 // pred_region
        %p349 = scmp.lt.s32.totalorder %s17, 1
        %s350 = scalar_select %p349, %s17, 1
        %s351 = smul.addr %s350, 8
        %s352 = scalar_lea.vmem %s2, %s351
      $region60: #{bert_abs_sum_forward.19} parent=47 // pred_fallthru
        _
    $region48: #{bert_abs_sum_forward.19} parent=5 // pred_fallthru
      _
    %p353 = scmp.le.s32.totalorder 1, %s17
    %p354 = scmp.lt.s32.totalorder %s17, 3
    %p355 = pnand %p353, %p354
    %p356 = pneg %p355
    // Predicated region
    $region61: #{bert_abs_sum_forward.19} parent=5 // pred_check
      _
    $region62: #{bert_abs_sum_forward.19} parent=5 // pred_check_branch
      %358 = sbr.rel (%p355) target = $region64
    $region63: #{bert_abs_sum_forward.19} parent=5 // pred_region
      %s359 = ssub.s32 %s17, 1
      %p360 = scmp.lt.s32.totalorder %s22, 1
      %s361 = scalar_select %p360, %s22, 1
      %s362 = smul.addr %s361, 8
      %s363 = scalar_lea.vmem %s0, %s362
      %p364 = pneg %p43
      %p365 = pneg %p40
      %p366 = scmp.lt.s32.totalorder %s22, 1
      %s367 = scalar_select %p366, %s22, 1
      %s368 = smul.addr %s367, 8
      %s369 = scalar_lea.vmem %s1, %s368
      %p370 = pneg %p69
      %p371 = pneg %p66
      %p372 = scmp.lt.s32.totalorder %s22, 1
      %s373 = scalar_select %p372, %s22, 1
      %s374 = smul.addr %s373, 8
      %s375 = scalar_lea.vmem %s2, %s374
      %p376 = pneg %p95
      %p377 = pneg %p92
      %p378 = pneg %p116
      %p379 = pneg %p113
      %p380 = pneg %p137
      %p381 = pneg %p134
      %p382 = pneg %p158
      %p383 = pneg %p155
      %p384 = pneg %p179
      %p385 = pneg %p176
      %p386 = pneg %p200
      %p387 = pneg %p197
      %p388 = pneg %p221
      %p389 = pneg %p218
      %p390 = pneg %p242
      %p391 = pneg %p239
      %p392 = pneg %p263
      %p393 = pneg %p260
      %p394 = pneg %p289
      %p395 = pneg %p286
      %p396 = scmp.lt.s32.totalorder %s22, 1
      %s397 = scalar_select %p396, %s22, 1
      %s398 = smul.addr %s397, 8
      %s399 = scalar_lea.vmem %s11, %s398
      %p400 = scmp.lt.s32.totalorder %s22, 1
      %s401 = scalar_select %p400, %s22, 1
      %s402 = smul.addr %s401, 8
      %s403 = scalar_lea.vmem %s0, %s402
      %p404 = scmp.lt.s32.totalorder %s22, 1
      %s405 = scalar_select %p404, %s22, 1
      %s406 = smul.addr %s405, 8
      %s407 = scalar_lea.vmem %s1, %s406
      %p408 = scmp.lt.s32.totalorder %s22, 1
      %s409 = scalar_select %p408, %s22, 1
      %s410 = smul.addr %s409, 8
      %s411 = scalar_lea.vmem %s2, %s410
      %p412 = scmp.lt.s32.totalorder %s22, 1
      %s413 = scalar_select %p412, %s22, 1
      %s414 = smul.addr %s413, 8
      %s415 = scalar_lea.vmem %s11, %s414
      %v416 = vld [vmem:[%s403] sm:$0xff]
      %v417 = vld [vmem:[%s407] sm:$0xff]
      %v418 = vld [vmem:[%s411] sm:$0xff]
      %v419 = vld [vmem:[%s3] sm:$0xff]
      %v420 = vld [vmem:[%s3 + $0x8] sm:$0xff]
      %v421 = vld [vmem:[%s3 + $0x10] sm:$0xff]
      %v422 = vld [vmem:[%s3 + $0x18] sm:$0xff]
      %v423 = vld [vmem:[%s4] sm:$0x1]
      %v425 = vlaneseq
      %v426 = vshrl.u32 %v425, 7
      %v427 = vsub.s32 0, %v426
      %v428 = vrot.slane %v423, %v427
      %vm430 = vcmask 261120
      %v432 = vsel %vm430, %v416, 0
      %434 = vmatprep.subr.mxu0 0.0
      %435 = vmatpush1.msra.mxu0 %v419
      %436 = vmatprep.subr.mxu0 0.0
      %437 = vmatpush1.msra.mxu0 %v420
      %438 = vmatprep.subr.mxu0 0.0
      %439 = vmatpush1.msra.mxu0 %v421
      %440 = vmatprep.subr.mxu0 0.0
      %441 = vmatpush1.msra.mxu0 %v422
      %442 = vmatprep.subr.mxu0 0.0
      %443 = vmatpush1.msra.mxu0 0.0
      %444 = vmatprep.subr.mxu0 0.0
      %445 = vmatpush1.msra.mxu0 0.0
      %446 = vmatprep.subr.mxu0 0.0
      %447 = vmatpush1.msra.mxu0 0.0
      %448 = vmatprep.subr.mxu0 0.0
      %449 = vmatpush1.msra.mxu0 0.0
      %450 = vmatprep.subr.mxu0 0.0
      %451 = vmatpush1.msra.mxu0 0.0
      %452 = vmatprep.subr.mxu0 0.0
      %453 = vmatpush1.msra.mxu0 0.0
      %454 = vmatprep.subr.mxu0 0.0
      %455 = vmatpush1.msra.mxu0 0.0
      %456 = vmatprep.subr.mxu0 0.0
      %457 = vmatpush1.msra.mxu0 0.0
      %458 = vmatprep.subr.mxu0 0.0
      %459 = vmatpush1.msra.mxu0 0.0
      %460 = vmatprep.subr.mxu0 0.0
      %461 = vmatpush1.msra.mxu0 0.0
      %462 = vmatprep.subr.mxu0 0.0
      %463 = vmatpush1.msra.mxu0 0.0
      %464 = vmatprep.subr.mxu0 0.0
      %465 = vmatpush1.msra.mxu0 0.0
      %466 = vmatprep.subr.mxu0 0.0
      %467 = vmatpush1.msra.mxu0 0.0
      %468 = vmatprep.subr.mxu0 0.0
      %469 = vmatpush1.msra.mxu0 0.0
      %470 = vmatprep.subr.mxu0 0.0
      %471 = vmatpush1.msra.mxu0 0.0
      %472 = vmatprep.subr.mxu0 0.0
      %473 = vmatpush1.msra.mxu0 0.0
      %474 = vmatprep.subr.mxu0 0.0
      %475 = vmatpush1.msra.mxu0 0.0
      %476 = vmatprep.subr.mxu0 0.0
      %477 = vmatpush1.msra.mxu0 0.0
      %478 = vmatprep.subr.mxu0 0.0
      %479 = vmatpush1.msra.mxu0 0.0
      %480 = vmatprep.subr.mxu0 0.0
      %481 = vmatpush1.msra.mxu0 0.0
      %482 = vmatprep.subr.mxu0 0.0
      %483 = vmatpush1.msra.mxu0 0.0
      %484 = vmatprep.subr.mxu0 0.0
      %485 = vmatpush1.msra.mxu0 0.0
      %486 = vmatprep.subr.mxu0 0.0
      %487 = vmatpush1.msra.mxu0 0.0
      %488 = vmatprep.subr.mxu0 0.0
      %489 = vmatpush1.msra.mxu0 0.0
      %490 = vmatprep.subr.mxu0 0.0
      %491 = vmatpush1.msra.mxu0 0.0
      %492 = vmatprep.subr.mxu0 0.0
      %493 = vmatpush1.msra.mxu0 0.0
      %494 = vmatprep.subr.mxu0 0.0
      %495 = vmatpush1.msra.mxu0 0.0
      %496 = vmatprep.subr.mxu0 0.0
      %497 = vmatpush1.msra.mxu0 0.0
      %498 = vmatprep.mubr.f32.mxu0 0.0
      %499 = vmatmul.mubr.f32.gmra.mrb[0].mxu0 %v432
      %v500 = vpop.f32.mrb[0].mxu0
      %v501 = vadd.f32 %v428, %v500
      %v502 = vpop.f32.mrb[0].mxu0
      %503 = vdwg.mxu0
      %v504 = vld [vmem:[%s5] sm:$0xff]
      %v505 = vld [vmem:[%s5 + $0x8] sm:$0xff]
      %v506 = vld [vmem:[%s5 + $0x10] sm:$0xff]
      %v507 = vld [vmem:[%s5 + $0x18] sm:$0xff]
      %v508 = vld [vmem:[%s6] sm:$0x1]
      %v510 = vlaneseq
      %v511 = vshrl.u32 %v510, 7
      %v512 = vsub.s32 0, %v511
      %v513 = vrot.slane %v508, %v512
      %v516 = vsel %vm430, %v417, 0
      %518 = vmatprep.subr.mxu0 0.0
      %519 = vmatpush1.msra.mxu0 %v504
      %520 = vmatprep.subr.mxu0 0.0
      %521 = vmatpush1.msra.mxu0 %v505
      %522 = vmatprep.subr.mxu0 0.0
      %523 = vmatpush1.msra.mxu0 %v506
      %524 = vmatprep.subr.mxu0 0.0
      %525 = vmatpush1.msra.mxu0 %v507
      %526 = vmatprep.subr.mxu0 0.0
      %527 = vmatpush1.msra.mxu0 0.0
      %528 = vmatprep.subr.mxu0 0.0
      %529 = vmatpush1.msra.mxu0 0.0
      %530 = vmatprep.subr.mxu0 0.0
      %531 = vmatpush1.msra.mxu0 0.0
      %532 = vmatprep.subr.mxu0 0.0
      %533 = vmatpush1.msra.mxu0 0.0
      %534 = vmatprep.subr.mxu0 0.0
      %535 = vmatpush1.msra.mxu0 0.0
      %536 = vmatprep.subr.mxu0 0.0
      %537 = vmatpush1.msra.mxu0 0.0
      %538 = vmatprep.subr.mxu0 0.0
      %539 = vmatpush1.msra.mxu0 0.0
      %540 = vmatprep.subr.mxu0 0.0
      %541 = vmatpush1.msra.mxu0 0.0
      %542 = vmatprep.subr.mxu0 0.0
      %543 = vmatpush1.msra.mxu0 0.0
      %544 = vmatprep.subr.mxu0 0.0
      %545 = vmatpush1.msra.mxu0 0.0
      %546 = vmatprep.subr.mxu0 0.0
      %547 = vmatpush1.msra.mxu0 0.0
      %548 = vmatprep.subr.mxu0 0.0
      %549 = vmatpush1.msra.mxu0 0.0
      %550 = vmatprep.subr.mxu0 0.0
      %551 = vmatpush1.msra.mxu0 0.0
      %552 = vmatprep.subr.mxu0 0.0
      %553 = vmatpush1.msra.mxu0 0.0
      %554 = vmatprep.subr.mxu0 0.0
      %555 = vmatpush1.msra.mxu0 0.0
      %556 = vmatprep.subr.mxu0 0.0
      %557 = vmatpush1.msra.mxu0 0.0
      %558 = vmatprep.subr.mxu0 0.0
      %559 = vmatpush1.msra.mxu0 0.0
      %560 = vmatprep.subr.mxu0 0.0
      %561 = vmatpush1.msra.mxu0 0.0
      %562 = vmatprep.subr.mxu0 0.0
      %563 = vmatpush1.msra.mxu0 0.0
      %564 = vmatprep.subr.mxu0 0.0
      %565 = vmatpush1.msra.mxu0 0.0
      %566 = vmatprep.subr.mxu0 0.0
      %567 = vmatpush1.msra.mxu0 0.0
      %568 = vmatprep.subr.mxu0 0.0
      %569 = vmatpush1.msra.mxu0 0.0
      %570 = vmatprep.subr.mxu0 0.0
      %571 = vmatpush1.msra.mxu0 0.0
      %572 = vmatprep.subr.mxu0 0.0
      %573 = vmatpush1.msra.mxu0 0.0
      %574 = vmatprep.subr.mxu0 0.0
      %575 = vmatpush1.msra.mxu0 0.0
      %576 = vmatprep.subr.mxu0 0.0
      %577 = vmatpush1.msra.mxu0 0.0
      %578 = vmatprep.subr.mxu0 0.0
      %579 = vmatpush1.msra.mxu0 0.0
      %580 = vmatprep.subr.mxu0 0.0
      %581 = vmatpush1.msra.mxu0 0.0
      %582 = vmatprep.mubr.f32.mxu0 0.0
      %583 = vmatmul.mubr.f32.gmra.mrb[0].mxu0 %v516
      %v584 = vpop.f32.mrb[0].mxu0
      %v585 = vadd.f32 %v513, %v584
      %v586 = vpop.f32.mrb[0].mxu0
      %587 = vdwg.mxu0
      %vm588 = vcmask 64512
      %v590 = vsel %vm588, %v501, 0
      %v593 = vsel %vm588, %v585, 0
      %595 = vmatprep.subr.mxu0 0.0
      %596 = vmatpush1.xpose.msra.mxu0 %v593
      %597 = vmatprep.subr.mxu0 0.0
      %598 = vmatpush1.xpose.msra.mxu0 0.0
      %599 = vmatprep.subr.mxu0 0.0
      %600 = vmatpush1.xpose.msra.mxu0 0.0
      %601 = vmatprep.subr.mxu0 0.0
      %602 = vmatpush1.xpose.msra.mxu0 0.0
      %603 = vmatprep.subr.mxu0 0.0
      %604 = vmatpush1.xpose.msra.mxu0 0.0
      %605 = vmatprep.subr.mxu0 0.0
      %606 = vmatpush1.xpose.msra.mxu0 0.0
      %607 = vmatprep.subr.mxu0 0.0
      %608 = vmatpush1.xpose.msra.mxu0 0.0
      %609 = vmatprep.subr.mxu0 0.0
      %610 = vmatpush1.xpose.msra.mxu0 0.0
      %611 = vmatprep.subr.mxu0 0.0
      %612 = vmatpush1.xpose.msra.mxu0 0.0
      %613 = vmatprep.subr.mxu0 0.0
      %614 = vmatpush1.xpose.msra.mxu0 0.0
      %615 = vmatprep.subr.mxu0 0.0
      %616 = vmatpush1.xpose.msra.mxu0 0.0
      %617 = vmatprep.subr.mxu0 0.0
      %618 = vmatpush1.xpose.msra.mxu0 0.0
      %619 = vmatprep.subr.mxu0 0.0
      %620 = vmatpush1.xpose.msra.mxu0 0.0
      %621 = vmatprep.subr.mxu0 0.0
      %622 = vmatpush1.xpose.msra.mxu0 0.0
      %623 = vmatprep.subr.mxu0 0.0
      %624 = vmatpush1.xpose.msra.mxu0 0.0
      %625 = vmatprep.subr.mxu0 0.0
      %626 = vmatpush1.xpose.msra.mxu0 0.0
      %627 = vmatprep.subr.mxu0 0.0
      %628 = vmatpush1.xpose.msra.mxu0 0.0
      %629 = vmatprep.subr.mxu0 0.0
      %630 = vmatpush1.xpose.msra.mxu0 0.0
      %631 = vmatprep.subr.mxu0 0.0
      %632 = vmatpush1.xpose.msra.mxu0 0.0
      %633 = vmatprep.subr.mxu0 0.0
      %634 = vmatpush1.xpose.msra.mxu0 0.0
      %635 = vmatprep.subr.mxu0 0.0
      %636 = vmatpush1.xpose.msra.mxu0 0.0
      %637 = vmatprep.subr.mxu0 0.0
      %638 = vmatpush1.xpose.msra.mxu0 0.0
      %639 = vmatprep.subr.mxu0 0.0
      %640 = vmatpush1.xpose.msra.mxu0 0.0
      %641 = vmatprep.subr.mxu0 0.0
      %642 = vmatpush1.xpose.msra.mxu0 0.0
      %643 = vmatprep.subr.mxu0 0.0
      %644 = vmatpush1.xpose.msra.mxu0 0.0
      %645 = vmatprep.subr.mxu0 0.0
      %646 = vmatpush1.xpose.msra.mxu0 0.0
      %647 = vmatprep.subr.mxu0 0.0
      %648 = vmatpush1.xpose.msra.mxu0 0.0
      %649 = vmatprep.subr.mxu0 0.0
      %650 = vmatpush1.xpose.msra.mxu0 0.0
      %651 = vmatprep.subr.mxu0 0.0
      %652 = vmatpush1.xpose.msra.mxu0 0.0
      %653 = vmatprep.subr.mxu0 0.0
      %654 = vmatpush1.xpose.msra.mxu0 0.0
      %655 = vmatprep.subr.mxu0 0.0
      %656 = vmatpush1.xpose.msra.mxu0 0.0
      %657 = vmatprep.subr.mxu0 0.0
      %658 = vmatpush1.xpose.msra.mxu0 0.0
      %659 = vmatprep.mubr.f32.mxu0 0.0
      %660 = vmatmul.mubr.f32.gmra.mrb[0].mxu0 %v590
      %v661 = vpop.f32.mrb[0].mxu0
      %v662 = vadd.f32 0.0, %v661
      %v663 = vpop.f32.mrb[0].mxu0
      %664 = vdwg.mxu0
      %v665 = vmul.f32 %v662, 0.35355338
      %v666 = vadd.f32 %v665, %v418
      %v667 = vsel %vm588, %v666, -inf
      %668 = vmax.xlane.f32.xlu0 %v667
      %v669 = vpop.xlane.xlu0 %668
      %v670 = vsub.f32 %v666, %v669
      %v671 = vmul.f32 %v670, 1.442695
      %v672 = vpow.pop %v671
      %v673 = vsel %vm588, %v672, 0.0
      %674 = vadd.xlane.f32.xlu0 %v673
      %v675 = vpop.xlane.xlu0 %674
      %v676 = vrcp.pop %v675
      %v677 = vmul.f32 %v672, %v676
      %678 = vrot.lane.b32.xlu0 %v585, 96
      %v679 = vpop.permute.xlu0 %678
      %v682 = vsel %vm588, %v677, 0
      %684 = vmatprep.subr.mxu0 0.0
      %685 = vmatpush1.msra.mxu0 %v679
      %686 = vmatprep.subr.mxu0 0.0
      %687 = vmatpush1.msra.mxu0 0.0
      %688 = vmatprep.subr.mxu0 0.0
      %689 = vmatpush1.msra.mxu0 0.0
      %690 = vmatprep.subr.mxu0 0.0
      %691 = vmatpush1.msra.mxu0 0.0
      %692 = vmatprep.subr.mxu0 0.0
      %693 = vmatpush1.msra.mxu0 0.0
      %694 = vmatprep.subr.mxu0 0.0
      %695 = vmatpush1.msra.mxu0 0.0
      %696 = vmatprep.subr.mxu0 0.0
      %697 = vmatpush1.msra.mxu0 0.0
      %698 = vmatprep.subr.mxu0 0.0
      %699 = vmatpush1.msra.mxu0 0.0
      %700 = vmatprep.subr.mxu0 0.0
      %701 = vmatpush1.msra.mxu0 0.0
      %702 = vmatprep.subr.mxu0 0.0
      %703 = vmatpush1.msra.mxu0 0.0
      %704 = vmatprep.subr.mxu0 0.0
      %705 = vmatpush1.msra.mxu0 0.0
      %706 = vmatprep.subr.mxu0 0.0
      %707 = vmatpush1.msra.mxu0 0.0
      %708 = vmatprep.subr.mxu0 0.0
      %709 = vmatpush1.msra.mxu0 0.0
      %710 = vmatprep.subr.mxu0 0.0
      %711 = vmatpush1.msra.mxu0 0.0
      %712 = vmatprep.subr.mxu0 0.0
      %713 = vmatpush1.msra.mxu0 0.0
      %714 = vmatprep.subr.mxu0 0.0
      %715 = vmatpush1.msra.mxu0 0.0
      %716 = vmatprep.subr.mxu0 0.0
      %717 = vmatpush1.msra.mxu0 0.0
      %718 = vmatprep.subr.mxu0 0.0
      %719 = vmatpush1.msra.mxu0 0.0
      %720 = vmatprep.subr.mxu0 0.0
      %721 = vmatpush1.msra.mxu0 0.0
      %722 = vmatprep.subr.mxu0 0.0
      %723 = vmatpush1.msra.mxu0 0.0
      %724 = vmatprep.subr.mxu0 0.0
      %725 = vmatpush1.msra.mxu0 0.0
      %726 = vmatprep.subr.mxu0 0.0
      %727 = vmatpush1.msra.mxu0 0.0
      %728 = vmatprep.subr.mxu0 0.0
      %729 = vmatpush1.msra.mxu0 0.0
      %730 = vmatprep.subr.mxu0 0.0
      %731 = vmatpush1.msra.mxu0 0.0
      %732 = vmatprep.subr.mxu0 0.0
      %733 = vmatpush1.msra.mxu0 0.0
      %734 = vmatprep.subr.mxu0 0.0
      %735 = vmatpush1.msra.mxu0 0.0
      %736 = vmatprep.subr.mxu0 0.0
      %737 = vmatpush1.msra.mxu0 0.0
      %738 = vmatprep.subr.mxu0 0.0
      %739 = vmatpush1.msra.mxu0 0.0
      %740 = vmatprep.subr.mxu0 0.0
      %741 = vmatpush1.msra.mxu0 0.0
      %742 = vmatprep.subr.mxu0 0.0
      %743 = vmatpush1.msra.mxu0 0.0
      %744 = vmatprep.subr.mxu0 0.0
      %745 = vmatpush1.msra.mxu0 0.0
      %746 = vmatprep.subr.mxu0 0.0
      %747 = vmatpush1.msra.mxu0 0.0
      %748 = vmatprep.mubr.f32.mxu0 0.0
      %749 = vmatmul.mubr.f32.gmra.mrb[0].mxu0 %v682
      %v750 = vpop.f32.mrb[0].mxu0
      %v751 = vadd.f32 0.0, %v750
      %v752 = vpop.f32.mrb[0].mxu0
      %753 = vdwg.mxu0
      %754 = vrot.lane.b32.xlu0 %v501, 120
      %v755 = vpop.permute.xlu0 %754
      %756 = vrot.lane.b32.xlu0 %v585, 120
      %v757 = vpop.permute.xlu0 %756
      %v758 = vsel %vm588, %v755, 0
      %v760 = vsel %vm588, %v757, 0
      %762 = vmatprep.subr.mxu0 0.0
      %763 = vmatpush1.xpose.msra.mxu0 %v760
      %764 = vmatprep.subr.mxu0 0.0
      %765 = vmatpush1.xpose.msra.mxu0 0.0
      %766 = vmatprep.subr.mxu0 0.0
      %767 = vmatpush1.xpose.msra.mxu0 0.0
      %768 = vmatprep.subr.mxu0 0.0
      %769 = vmatpush1.xpose.msra.mxu0 0.0
      %770 = vmatprep.subr.mxu0 0.0
      %771 = vmatpush1.xpose.msra.mxu0 0.0
      %772 = vmatprep.subr.mxu0 0.0
      %773 = vmatpush1.xpose.msra.mxu0 0.0
      %774 = vmatprep.subr.mxu0 0.0
      %775 = vmatpush1.xpose.msra.mxu0 0.0
      %776 = vmatprep.subr.mxu0 0.0
      %777 = vmatpush1.xpose.msra.mxu0 0.0
      %778 = vmatprep.subr.mxu0 0.0
      %779 = vmatpush1.xpose.msra.mxu0 0.0
      %780 = vmatprep.subr.mxu0 0.0
      %781 = vmatpush1.xpose.msra.mxu0 0.0
      %782 = vmatprep.subr.mxu0 0.0
      %783 = vmatpush1.xpose.msra.mxu0 0.0
      %784 = vmatprep.subr.mxu0 0.0
      %785 = vmatpush1.xpose.msra.mxu0 0.0
      %786 = vmatprep.subr.mxu0 0.0
      %787 = vmatpush1.xpose.msra.mxu0 0.0
      %788 = vmatprep.subr.mxu0 0.0
      %789 = vmatpush1.xpose.msra.mxu0 0.0
      %790 = vmatprep.subr.mxu0 0.0
      %791 = vmatpush1.xpose.msra.mxu0 0.0
      %792 = vmatprep.subr.mxu0 0.0
      %793 = vmatpush1.xpose.msra.mxu0 0.0
      %794 = vmatprep.subr.mxu0 0.0
      %795 = vmatpush1.xpose.msra.mxu0 0.0
      %796 = vmatprep.subr.mxu0 0.0
      %797 = vmatpush1.xpose.msra.mxu0 0.0
      %798 = vmatprep.subr.mxu0 0.0
      %799 = vmatpush1.xpose.msra.mxu0 0.0
      %800 = vmatprep.subr.mxu0 0.0
      %801 = vmatpush1.xpose.msra.mxu0 0.0
      %802 = vmatprep.subr.mxu0 0.0
      %803 = vmatpush1.xpose.msra.mxu0 0.0
      %804 = vmatprep.subr.mxu0 0.0
      %805 = vmatpush1.xpose.msra.mxu0 0.0
      %806 = vmatprep.subr.mxu0 0.0
      %807 = vmatpush1.xpose.msra.mxu0 0.0
      %808 = vmatprep.subr.mxu0 0.0
      %809 = vmatpush1.xpose.msra.mxu0 0.0
      %810 = vmatprep.subr.mxu0 0.0
      %811 = vmatpush1.xpose.msra.mxu0 0.0
      %812 = vmatprep.subr.mxu0 0.0
      %813 = vmatpush1.xpose.msra.mxu0 0.0
      %814 = vmatprep.subr.mxu0 0.0
      %815 = vmatpush1.xpose.msra.mxu0 0.0
      %816 = vmatprep.subr.mxu0 0.0
      %817 = vmatpush1.xpose.msra.mxu0 0.0
      %818 = vmatprep.subr.mxu0 0.0
      %819 = vmatpush1.xpose.msra.mxu0 0.0
      %820 = vmatprep.subr.mxu0 0.0
      %821 = vmatpush1.xpose.msra.mxu0 0.0
      %822 = vmatprep.subr.mxu0 0.0
      %823 = vmatpush1.xpose.msra.mxu0 0.0
      %824 = vmatprep.subr.mxu0 0.0
      %825 = vmatpush1.xpose.msra.mxu0 0.0
      %826 = vmatprep.mubr.f32.mxu0 0.0
      %827 = vmatmul.mubr.f32.gmra.mrb[0].mxu0 %v758
      %v828 = vpop.f32.mrb[0].mxu0
      %v829 = vadd.f32 0.0, %v828
      %v830 = vpop.f32.mrb[0].mxu0
      %831 = vdwg.mxu0
      %v832 = vmul.f32 %v829, 0.35355338
      %v833 = vadd.f32 %v832, %v418
      %v834 = vsel %vm588, %v833, -inf
      %835 = vmax.xlane.f32.xlu0 %v834
      %v836 = vpop.xlane.xlu0 %835
      %v837 = vsub.f32 %v833, %v836
      %v838 = vmul.f32 %v837, 1.442695
      %v839 = vpow.pop %v838
      %v840 = vsel %vm588, %v839, 0.0
      %841 = vadd.xlane.f32.xlu0 %v840
      %v842 = vpop.xlane.xlu0 %841
      %v843 = vrcp.pop %v842
      %v844 = vmul.f32 %v839, %v843
      %845 = vrot.lane.b32.xlu0 %v585, 88
      %v846 = vpop.permute.xlu0 %845
      %v849 = vsel %vm588, %v844, 0
      %851 = vmatprep.subr.mxu0 0.0
      %852 = vmatpush1.msra.mxu0 %v846
      %853 = vmatprep.subr.mxu0 0.0
      %854 = vmatpush1.msra.mxu0 0.0
      %855 = vmatprep.subr.mxu0 0.0
      %856 = vmatpush1.msra.mxu0 0.0
      %857 = vmatprep.subr.mxu0 0.0
      %858 = vmatpush1.msra.mxu0 0.0
      %859 = vmatprep.subr.mxu0 0.0
      %860 = vmatpush1.msra.mxu0 0.0
      %861 = vmatprep.subr.mxu0 0.0
      %862 = vmatpush1.msra.mxu0 0.0
      %863 = vmatprep.subr.mxu0 0.0
      %864 = vmatpush1.msra.mxu0 0.0
      %865 = vmatprep.subr.mxu0 0.0
      %866 = vmatpush1.msra.mxu0 0.0
      %867 = vmatprep.subr.mxu0 0.0
      %868 = vmatpush1.msra.mxu0 0.0
      %869 = vmatprep.subr.mxu0 0.0
      %870 = vmatpush1.msra.mxu0 0.0
      %871 = vmatprep.subr.mxu0 0.0
      %872 = vmatpush1.msra.mxu0 0.0
      %873 = vmatprep.subr.mxu0 0.0
      %874 = vmatpush1.msra.mxu0 0.0
      %875 = vmatprep.subr.mxu0 0.0
      %876 = vmatpush1.msra.mxu0 0.0
      %877 = vmatprep.subr.mxu0 0.0
      %878 = vmatpush1.msra.mxu0 0.0
      %879 = vmatprep.subr.mxu0 0.0
      %880 = vmatpush1.msra.mxu0 0.0
      %881 = vmatprep.subr.mxu0 0.0
      %882 = vmatpush1.msra.mxu0 0.0
      %883 = vmatprep.subr.mxu0 0.0
      %884 = vmatpush1.msra.mxu0 0.0
      %885 = vmatprep.subr.mxu0 0.0
      %886 = vmatpush1.msra.mxu0 0.0
      %887 = vmatprep.subr.mxu0 0.0
      %888 = vmatpush1.msra.mxu0 0.0
      %889 = vmatprep.subr.mxu0 0.0
      %890 = vmatpush1.msra.mxu0 0.0
      %891 = vmatprep.subr.mxu0 0.0
      %892 = vmatpush1.msra.mxu0 0.0
      %893 = vmatprep.subr.mxu0 0.0
      %894 = vmatpush1.msra.mxu0 0.0
      %895 = vmatprep.subr.mxu0 0.0
      %896 = vmatpush1.msra.mxu0 0.0
      %897 = vmatprep.subr.mxu0 0.0
      %898 = vmatpush1.msra.mxu0 0.0
      %899 = vmatprep.subr.mxu0 0.0
      %900 = vmatpush1.msra.mxu0 0.0
      %901 = vmatprep.subr.mxu0 0.0
      %902 = vmatpush1.msra.mxu0 0.0
      %903 = vmatprep.subr.mxu0 0.0
      %904 = vmatpush1.msra.mxu0 0.0
      %905 = vmatprep.subr.mxu0 0.0
      %906 = vmatpush1.msra.mxu0 0.0
      %907 = vmatprep.subr.mxu0 0.0
      %908 = vmatpush1.msra.mxu0 0.0
      %909 = vmatprep.subr.mxu0 0.0
      %910 = vmatpush1.msra.mxu0 0.0
      %911 = vmatprep.subr.mxu0 0.0
      %912 = vmatpush1.msra.mxu0 0.0
      %913 = vmatprep.subr.mxu0 0.0
      %914 = vmatpush1.msra.mxu0 0.0
      %915 = vmatprep.mubr.f32.mxu0 0.0
      %916 = vmatmul.mubr.f32.gmra.mrb[0].mxu0 %v849
      %v917 = vpop.f32.mrb[0].mxu0
      %v918 = vadd.f32 0.0, %v917
      %v919 = vpop.f32.mrb[0].mxu0
      %920 = vdwg.mxu0
      %921 = vrot.lane.b32.xlu0 %v501, 112
      %v922 = vpop.permute.xlu0 %921
      %923 = vrot.lane.b32.xlu0 %v585, 112
      %v924 = vpop.permute.xlu0 %923
      %v925 = vsel %vm588, %v922, 0
      %v927 = vsel %vm588, %v924, 0
      %929 = vmatprep.subr.mxu0 0.0
      %930 = vmatpush1.xpose.msra.mxu0 %v927
      %931 = vmatprep.subr.mxu0 0.0
      %932 = vmatpush1.xpose.msra.mxu0 0.0
      %933 = vmatprep.subr.mxu0 0.0
      %934 = vmatpush1.xpose.msra.mxu0 0.0
      %935 = vmatprep.subr.mxu0 0.0
      %936 = vmatpush1.xpose.msra.mxu0 0.0
      %937 = vmatprep.subr.mxu0 0.0
      %938 = vmatpush1.xpose.msra.mxu0 0.0
      %939 = vmatprep.subr.mxu0 0.0
      %940 = vmatpush1.xpose.msra.mxu0 0.0
      %941 = vmatprep.subr.mxu0 0.0
      %942 = vmatpush1.xpose.msra.mxu0 0.0
      %943 = vmatprep.subr.mxu0 0.0
      %944 = vmatpush1.xpose.msra.mxu0 0.0
      %945 = vmatprep.subr.mxu0 0.0
      %946 = vmatpush1.xpose.msra.mxu0 0.0
      %947 = vmatprep.subr.mxu0 0.0
      %948 = vmatpush1.xpose.msra.mxu0 0.0
      %949 = vmatprep.subr.mxu0 0.0
      %950 = vmatpush1.xpose.msra.mxu0 0.0
      %951 = vmatprep.subr.mxu0 0.0
      %952 = vmatpush1.xpose.msra.mxu0 0.0
      %953 = vmatprep.subr.mxu0 0.0
      %954 = vmatpush1.xpose.msra.mxu0 0.0
      %955 = vmatprep.subr.mxu0 0.0
      %956 = vmatpush1.xpose.msra.mxu0 0.0
      %957 = vmatprep.subr.mxu0 0.0
      %958 = vmatpush1.xpose.msra.mxu0 0.0
      %959 = vmatprep.subr.mxu0 0.0
      %960 = vmatpush1.xpose.msra.mxu0 0.0
      %961 = vmatprep.subr.mxu0 0.0
      %962 = vmatpush1.xpose.msra.mxu0 0.0
      %963 = vmatprep.subr.mxu0 0.0
      %964 = vmatpush1.xpose.msra.mxu0 0.0
      %965 = vmatprep.subr.mxu0 0.0
      %966 = vmatpush1.xpose.msra.mxu0 0.0
      %967 = vmatprep.subr.mxu0 0.0
      %968 = vmatpush1.xpose.msra.mxu0 0.0
      %969 = vmatprep.subr.mxu0 0.0
      %970 = vmatpush1.xpose.msra.mxu0 0.0
      %971 = vmatprep.subr.mxu0 0.0
      %972 = vmatpush1.xpose.msra.mxu0 0.0
      %973 = vmatprep.subr.mxu0 0.0
      %974 = vmatpush1.xpose.msra.mxu0 0.0
      %975 = vmatprep.subr.mxu0 0.0
      %976 = vmatpush1.xpose.msra.mxu0 0.0
      %977 = vmatprep.subr.mxu0 0.0
      %978 = vmatpush1.xpose.msra.mxu0 0.0
      %979 = vmatprep.subr.mxu0 0.0
      %980 = vmatpush1.xpose.msra.mxu0 0.0
      %981 = vmatprep.subr.mxu0 0.0
      %982 = vmatpush1.xpose.msra.mxu0 0.0
      %983 = vmatprep.subr.mxu0 0.0
      %984 = vmatpush1.xpose.msra.mxu0 0.0
      %985 = vmatprep.subr.mxu0 0.0
      %986 = vmatpush1.xpose.msra.mxu0 0.0
      %987 = vmatprep.subr.mxu0 0.0
      %988 = vmatpush1.xpose.msra.mxu0 0.0
      %989 = vmatprep.subr.mxu0 0.0
      %990 = vmatpush1.xpose.msra.mxu0 0.0
      %991 = vmatprep.subr.mxu0 0.0
      %992 = vmatpush1.xpose.msra.mxu0 0.0
      %993 = vmatprep.mubr.f32.mxu0 0.0
      %994 = vmatmul.mubr.f32.gmra.mrb[0].mxu0 %v925
      %v995 = vpop.f32.mrb[0].mxu0
      %v996 = vadd.f32 0.0, %v995
      %v997 = vpop.f32.mrb[0].mxu0
      %998 = vdwg.mxu0
      %v999 = vmul.f32 %v996, 0.35355338
      %v1000 = vadd.f32 %v999, %v418
      %v1001 = vsel %vm588, %v1000, -inf
      %1002 = vmax.xlane.f32.xlu0 %v1001
      %v1003 = vpop.xlane.xlu0 %1002
      %v1004 = vsub.f32 %v1000, %v1003
      %v1005 = vmul.f32 %v1004, 1.442695
      %v1006 = vpow.pop %v1005
      %v1007 = vsel %vm588, %v1006, 0.0
      %1008 = vadd.xlane.f32.xlu0 %v1007
      %v1009 = vpop.xlane.xlu0 %1008
      %v1010 = vrcp.pop %v1009
      %v1011 = vmul.f32 %v1006, %v1010
      %1012 = vrot.lane.b32.xlu0 %v585, 80
      %v1013 = vpop.permute.xlu0 %1012
      %v1016 = vsel %vm588, %v1011, 0
      %1018 = vmatprep.subr.mxu0 0.0
      %1019 = vmatpush1.msra.mxu0 %v1013
      %1020 = vmatprep.subr.mxu0 0.0
      %1021 = vmatpush1.msra.mxu0 0.0
      %1022 = vmatprep.subr.mxu0 0.0
      %1023 = vmatpush1.msra.mxu0 0.0
      %1024 = vmatprep.subr.mxu0 0.0
      %1025 = vmatpush1.msra.mxu0 0.0
      %1026 = vmatprep.subr.mxu0 0.0
      %1027 = vmatpush1.msra.mxu0 0.0
      %1028 = vmatprep.subr.mxu0 0.0
      %1029 = vmatpush1.msra.mxu0 0.0
      %1030 = vmatprep.subr.mxu0 0.0
      %1031 = vmatpush1.msra.mxu0 0.0
      %1032 = vmatprep.subr.mxu0 0.0
      %1033 = vmatpush1.msra.mxu0 0.0
      %1034 = vmatprep.subr.mxu0 0.0
      %1035 = vmatpush1.msra.mxu0 0.0
      %1036 = vmatprep.subr.mxu0 0.0
      %1037 = vmatpush1.msra.mxu0 0.0
      %1038 = vmatprep.subr.mxu0 0.0
      %1039 = vmatpush1.msra.mxu0 0.0
      %1040 = vmatprep.subr.mxu0 0.0
      %1041 = vmatpush1.msra.mxu0 0.0
      %1042 = vmatprep.subr.mxu0 0.0
      %1043 = vmatpush1.msra.mxu0 0.0
      %1044 = vmatprep.subr.mxu0 0.0
      %1045 = vmatpush1.msra.mxu0 0.0
      %1046 = vmatprep.subr.mxu0 0.0
      %1047 = vmatpush1.msra.mxu0 0.0
      %1048 = vmatprep.subr.mxu0 0.0
      %1049 = vmatpush1.msra.mxu0 0.0
      %1050 = vmatprep.subr.mxu0 0.0
      %1051 = vmatpush1.msra.mxu0 0.0
      %1052 = vmatprep.subr.mxu0 0.0
      %1053 = vmatpush1.msra.mxu0 0.0
      %1054 = vmatprep.subr.mxu0 0.0
      %1055 = vmatpush1.msra.mxu0 0.0
      %1056 = vmatprep.subr.mxu0 0.0
      %1057 = vmatpush1.msra.mxu0 0.0
      %1058 = vmatprep.subr.mxu0 0.0
      %1059 = vmatpush1.msra.mxu0 0.0
      %1060 = vmatprep.subr.mxu0 0.0
      %1061 = vmatpush1.msra.mxu0 0.0
      %1062 = vmatprep.subr.mxu0 0.0
      %1063 = vmatpush1.msra.mxu0 0.0
      %1064 = vmatprep.subr.mxu0 0.0
      %1065 = vmatpush1.msra.mxu0 0.0
      %1066 = vmatprep.subr.mxu0 0.0
      %1067 = vmatpush1.msra.mxu0 0.0
      %1068 = vmatprep.subr.mxu0 0.0
      %1069 = vmatpush1.msra.mxu0 0.0
      %1070 = vmatprep.subr.mxu0 0.0
      %1071 = vmatpush1.msra.mxu0 0.0
      %1072 = vmatprep.subr.mxu0 0.0
      %1073 = vmatpush1.msra.mxu0 0.0
      %1074 = vmatprep.subr.mxu0 0.0
      %1075 = vmatpush1.msra.mxu0 0.0
      %1076 = vmatprep.subr.mxu0 0.0
      %1077 = vmatpush1.msra.mxu0 0.0
      %1078 = vmatprep.subr.mxu0 0.0
      %1079 = vmatpush1.msra.mxu0 0.0
      %1080 = vmatprep.subr.mxu0 0.0
      %1081 = vmatpush1.msra.mxu0 0.0
      %1082 = vmatprep.mubr.f32.mxu0 0.0
      %1083 = vmatmul.mubr.f32.gmra.mrb[0].mxu0 %v1016
      %v1084 = vpop.f32.mrb[0].mxu0
      %v1085 = vadd.f32 0.0, %v1084
      %v1086 = vpop.f32.mrb[0].mxu0
      %1087 = vdwg.mxu0
      %1088 = vrot.lane.b32.xlu0 %v501, 104
      %v1089 = vpop.permute.xlu0 %1088
      %1090 = vrot.lane.b32.xlu0 %v585, 104
      %v1091 = vpop.permute.xlu0 %1090
      %v1092 = vsel %vm588, %v1089, 0
      %v1094 = vsel %vm588, %v1091, 0
      %1096 = vmatprep.subr.mxu0 0.0
      %1097 = vmatpush1.xpose.msra.mxu0 %v1094
      %1098 = vmatprep.subr.mxu0 0.0
      %1099 = vmatpush1.xpose.msra.mxu0 0.0
      %1100 = vmatprep.subr.mxu0 0.0
      %1101 = vmatpush1.xpose.msra.mxu0 0.0
      %1102 = vmatprep.subr.mxu0 0.0
      %1103 = vmatpush1.xpose.msra.mxu0 0.0
      %1104 = vmatprep.subr.mxu0 0.0
      %1105 = vmatpush1.xpose.msra.mxu0 0.0
      %1106 = vmatprep.subr.mxu0 0.0
      %1107 = vmatpush1.xpose.msra.mxu0 0.0
      %1108 = vmatprep.subr.mxu0 0.0
      %1109 = vmatpush1.xpose.msra.mxu0 0.0
      %1110 = vmatprep.subr.mxu0 0.0
      %1111 = vmatpush1.xpose.msra.mxu0 0.0
      %1112 = vmatprep.subr.mxu0 0.0
      %1113 = vmatpush1.xpose.msra.mxu0 0.0
      %1114 = vmatprep.subr.mxu0 0.0
      %1115 = vmatpush1.xpose.msra.mxu0 0.0
      %1116 = vmatprep.subr.mxu0 0.0
      %1117 = vmatpush1.xpose.msra.mxu0 0.0
      %1118 = vmatprep.subr.mxu0 0.0
      %1119 = vmatpush1.xpose.msra.mxu0 0.0
      %1120 = vmatprep.subr.mxu0 0.0
      %1121 = vmatpush1.xpose.msra.mxu0 0.0
      %1122 = vmatprep.subr.mxu0 0.0
      %1123 = vmatpush1.xpose.msra.mxu0 0.0
      %1124 = vmatprep.subr.mxu0 0.0
      %1125 = vmatpush1.xpose.msra.mxu0 0.0
      %1126 = vmatprep.subr.mxu0 0.0
      %1127 = vmatpush1.xpose.msra.mxu0 0.0
      %1128 = vmatprep.subr.mxu0 0.0
      %1129 = vmatpush1.xpose.msra.mxu0 0.0
      %1130 = vmatprep.subr.mxu0 0.0
      %1131 = vmatpush1.xpose.msra.mxu0 0.0
      %1132 = vmatprep.subr.mxu0 0.0
      %1133 = vmatpush1.xpose.msra.mxu0 0.0
      %1134 = vmatprep.subr.mxu0 0.0
      %1135 = vmatpush1.xpose.msra.mxu0 0.0
      %1136 = vmatprep.subr.mxu0 0.0
      %1137 = vmatpush1.xpose.msra.mxu0 0.0
      %1138 = vmatprep.subr.mxu0 0.0
      %1139 = vmatpush1.xpose.msra.mxu0 0.0
      %1140 = vmatprep.subr.mxu0 0.0
      %1141 = vmatpush1.xpose.msra.mxu0 0.0
      %1142 = vmatprep.subr.mxu0 0.0
      %1143 = vmatpush1.xpose.msra.mxu0 0.0
      %1144 = vmatprep.subr.mxu0 0.0
      %1145 = vmatpush1.xpose.msra.mxu0 0.0
      %1146 = vmatprep.subr.mxu0 0.0
      %1147 = vmatpush1.xpose.msra.mxu0 0.0
      %1148 = vmatprep.subr.mxu0 0.0
      %1149 = vmatpush1.xpose.msra.mxu0 0.0
      %1150 = vmatprep.subr.mxu0 0.0
      %1151 = vmatpush1.xpose.msra.mxu0 0.0
      %1152 = vmatprep.subr.mxu0 0.0
      %1153 = vmatpush1.xpose.msra.mxu0 0.0
      %1154 = vmatprep.subr.mxu0 0.0
      %1155 = vmatpush1.xpose.msra.mxu0 0.0
      %1156 = vmatprep.subr.mxu0 0.0
      %1157 = vmatpush1.xpose.msra.mxu0 0.0
      %1158 = vmatprep.subr.mxu0 0.0
      %1159 = vmatpush1.xpose.msra.mxu0 0.0
      %1160 = vmatprep.mubr.f32.mxu0 0.0
      %1161 = vmatmul.mubr.f32.gmra.mrb[0].mxu0 %v1092
      %v1162 = vpop.f32.mrb[0].mxu0
      %v1163 = vadd.f32 0.0, %v1162
      %v1164 = vpop.f32.mrb[0].mxu0
      %1165 = vdwg.mxu0
      %v1166 = vmul.f32 %v1163, 0.35355338
      %v1167 = vadd.f32 %v1166, %v418
      %v1168 = vsel %vm588, %v1167, -inf
      %1169 = vmax.xlane.f32.xlu0 %v1168
      %v1170 = vpop.xlane.xlu0 %1169
      %v1171 = vsub.f32 %v1167, %v1170
      %v1172 = vmul.f32 %v1171, 1.442695
      %v1173 = vpow.pop %v1172
      %v1174 = vsel %vm588, %v1173, 0.0
      %1175 = vadd.xlane.f32.xlu0 %v1174
      %v1176 = vpop.xlane.xlu0 %1175
      %v1177 = vrcp.pop %v1176
      %v1178 = vmul.f32 %v1173, %v1177
      %1179 = vrot.lane.b32.xlu0 %v585, 72
      %v1180 = vpop.permute.xlu0 %1179
      %v1183 = vsel %vm588, %v1178, 0
      %1185 = vmatprep.subr.mxu0 0.0
      %1186 = vmatpush1.msra.mxu0 %v1180
      %1187 = vmatprep.subr.mxu0 0.0
      %1188 = vmatpush1.msra.mxu0 0.0
      %1189 = vmatprep.subr.mxu0 0.0
      %1190 = vmatpush1.msra.mxu0 0.0
      %1191 = vmatprep.subr.mxu0 0.0
      %1192 = vmatpush1.msra.mxu0 0.0
      %1193 = vmatprep.subr.mxu0 0.0
      %1194 = vmatpush1.msra.mxu0 0.0
      %1195 = vmatprep.subr.mxu0 0.0
      %1196 = vmatpush1.msra.mxu0 0.0
      %1197 = vmatprep.subr.mxu0 0.0
      %1198 = vmatpush1.msra.mxu0 0.0
      %1199 = vmatprep.subr.mxu0 0.0
      %1200 = vmatpush1.msra.mxu0 0.0
      %1201 = vmatprep.subr.mxu0 0.0
      %1202 = vmatpush1.msra.mxu0 0.0
      %1203 = vmatprep.subr.mxu0 0.0
      %1204 = vmatpush1.msra.mxu0 0.0
      %1205 = vmatprep.subr.mxu0 0.0
      %1206 = vmatpush1.msra.mxu0 0.0
      %1207 = vmatprep.subr.mxu0 0.0
      %1208 = vmatpush1.msra.mxu0 0.0
      %1209 = vmatprep.subr.mxu0 0.0
      %1210 = vmatpush1.msra.mxu0 0.0
      %1211 = vmatprep.subr.mxu0 0.0
      %1212 = vmatpush1.msra.mxu0 0.0
      %1213 = vmatprep.subr.mxu0 0.0
      %1214 = vmatpush1.msra.mxu0 0.0
      %1215 = vmatprep.subr.mxu0 0.0
      %1216 = vmatpush1.msra.mxu0 0.0
      %1217 = vmatprep.subr.mxu0 0.0
      %1218 = vmatpush1.msra.mxu0 0.0
      %1219 = vmatprep.subr.mxu0 0.0
      %1220 = vmatpush1.msra.mxu0 0.0
      %1221 = vmatprep.subr.mxu0 0.0
      %1222 = vmatpush1.msra.mxu0 0.0
      %1223 = vmatprep.subr.mxu0 0.0
      %1224 = vmatpush1.msra.mxu0 0.0
      %1225 = vmatprep.subr.mxu0 0.0
      %1226 = vmatpush1.msra.mxu0 0.0
      %1227 = vmatprep.subr.mxu0 0.0
      %1228 = vmatpush1.msra.mxu0 0.0
      %1229 = vmatprep.subr.mxu0 0.0
      %1230 = vmatpush1.msra.mxu0 0.0
      %1231 = vmatprep.subr.mxu0 0.0
      %1232 = vmatpush1.msra.mxu0 0.0
      %1233 = vmatprep.subr.mxu0 0.0
      %1234 = vmatpush1.msra.mxu0 0.0
      %1235 = vmatprep.subr.mxu0 0.0
      %1236 = vmatpush1.msra.mxu0 0.0
      %1237 = vmatprep.subr.mxu0 0.0
      %1238 = vmatpush1.msra.mxu0 0.0
      %1239 = vmatprep.subr.mxu0 0.0
      %1240 = vmatpush1.msra.mxu0 0.0
      %1241 = vmatprep.subr.mxu0 0.0
      %1242 = vmatpush1.msra.mxu0 0.0
      %1243 = vmatprep.subr.mxu0 0.0
      %1244 = vmatpush1.msra.mxu0 0.0
      %1245 = vmatprep.subr.mxu0 0.0
      %1246 = vmatpush1.msra.mxu0 0.0
      %1247 = vmatprep.subr.mxu0 0.0
      %1248 = vmatpush1.msra.mxu0 0.0
      %1249 = vmatprep.mubr.f32.mxu0 0.0
      %1250 = vmatmul.mubr.f32.gmra.mrb[0].mxu0 %v1183
      %v1251 = vpop.f32.mrb[0].mxu0
      %v1252 = vadd.f32 0.0, %v1251
      %v1253 = vpop.f32.mrb[0].mxu0
      %1254 = vdwg.mxu0
      %1256 = vrot.lane.b32.xlu0 %v918, 8
      %v1257 = vpop.permute.xlu0 %1256
      %1260 = vrot.lane.b32.xlu0 %v1085, 16
      %v1261 = vpop.permute.xlu0 %1260
      %1264 = vrot.lane.b32.xlu0 %v1252, 24
      %v1265 = vpop.permute.xlu0 %1264
      %v1267 = vsel %vm588, %v751, %v1257
      %vm1268 = vcmask 130048
      %v1269 = vsel %vm1268, %v1267, %v1261
      %vm1270 = vcmask 195584
      %v1271 = vsel %vm1270, %v1269, %v1265
      %v1272 = vld [vmem:[%s7] sm:$0xff]
      %v1273 = vld [vmem:[%s7 + $0x8] sm:$0xff]
      %v1274 = vld [vmem:[%s7 + $0x10] sm:$0xff]
      %v1275 = vld [vmem:[%s7 + $0x18] sm:$0xff]
      %v1276 = vld [vmem:[%s8] sm:$0x1]
      %v1278 = vlaneseq
      %v1279 = vshrl.u32 %v1278, 7
      %v1280 = vsub.s32 0, %v1279
      %v1281 = vrot.slane %v1276, %v1280
      %v1284 = vsel %vm430, %v1271, 0
      %1286 = vmatprep.subr.mxu0 0.0
      %1287 = vmatpush1.msra.mxu0 %v1272
      %1288 = vmatprep.subr.mxu0 0.0
      %1289 = vmatpush1.msra.mxu0 %v1273
      %1290 = vmatprep.subr.mxu0 0.0
      %1291 = vmatpush1.msra.mxu0 %v1274
      %1292 = vmatprep.subr.mxu0 0.0
      %1293 = vmatpush1.msra.mxu0 %v1275
      %1294 = vmatprep.subr.mxu0 0.0
      %1295 = vmatpush1.msra.mxu0 0.0
      %1296 = vmatprep.subr.mxu0 0.0
      %1297 = vmatpush1.msra.mxu0 0.0
      %1298 = vmatprep.subr.mxu0 0.0
      %1299 = vmatpush1.msra.mxu0 0.0
      %1300 = vmatprep.subr.mxu0 0.0
      %1301 = vmatpush1.msra.mxu0 0.0
      %1302 = vmatprep.subr.mxu0 0.0
      %1303 = vmatpush1.msra.mxu0 0.0
      %1304 = vmatprep.subr.mxu0 0.0
      %1305 = vmatpush1.msra.mxu0 0.0
      %1306 = vmatprep.subr.mxu0 0.0
      %1307 = vmatpush1.msra.mxu0 0.0
      %1308 = vmatprep.subr.mxu0 0.0
      %1309 = vmatpush1.msra.mxu0 0.0
      %1310 = vmatprep.subr.mxu0 0.0
      %1311 = vmatpush1.msra.mxu0 0.0
      %1312 = vmatprep.subr.mxu0 0.0
      %1313 = vmatpush1.msra.mxu0 0.0
      %1314 = vmatprep.subr.mxu0 0.0
      %1315 = vmatpush1.msra.mxu0 0.0
      %1316 = vmatprep.subr.mxu0 0.0
      %1317 = vmatpush1.msra.mxu0 0.0
      %1318 = vmatprep.subr.mxu0 0.0
      %1319 = vmatpush1.msra.mxu0 0.0
      %1320 = vmatprep.subr.mxu0 0.0
      %1321 = vmatpush1.msra.mxu0 0.0
      %1322 = vmatprep.subr.mxu0 0.0
      %1323 = vmatpush1.msra.mxu0 0.0
      %1324 = vmatprep.subr.mxu0 0.0
      %1325 = vmatpush1.msra.mxu0 0.0
      %1326 = vmatprep.subr.mxu0 0.0
      %1327 = vmatpush1.msra.mxu0 0.0
      %1328 = vmatprep.subr.mxu0 0.0
      %1329 = vmatpush1.msra.mxu0 0.0
      %1330 = vmatprep.subr.mxu0 0.0
      %1331 = vmatpush1.msra.mxu0 0.0
      %1332 = vmatprep.subr.mxu0 0.0
      %1333 = vmatpush1.msra.mxu0 0.0
      %1334 = vmatprep.subr.mxu0 0.0
      %1335 = vmatpush1.msra.mxu0 0.0
      %1336 = vmatprep.subr.mxu0 0.0
      %1337 = vmatpush1.msra.mxu0 0.0
      %1338 = vmatprep.subr.mxu0 0.0
      %1339 = vmatpush1.msra.mxu0 0.0
      %1340 = vmatprep.subr.mxu0 0.0
      %1341 = vmatpush1.msra.mxu0 0.0
      %1342 = vmatprep.subr.mxu0 0.0
      %1343 = vmatpush1.msra.mxu0 0.0
      %1344 = vmatprep.subr.mxu0 0.0
      %1345 = vmatpush1.msra.mxu0 0.0
      %1346 = vmatprep.subr.mxu0 0.0
      %1347 = vmatpush1.msra.mxu0 0.0
      %1348 = vmatprep.subr.mxu0 0.0
      %1349 = vmatpush1.msra.mxu0 0.0
      %1350 = vmatprep.mubr.f32.mxu0 0.0
      %1351 = vmatmul.mubr.f32.gmra.mrb[0].mxu0 %v1284
      %v1352 = vpop.f32.mrb[0].mxu0
      %v1353 = vadd.f32 %v1281, %v1352
      %v1354 = vpop.f32.mrb[0].mxu0
      %1355 = vdwg.mxu0
      %v1356 = vadd.f32 %v1353, %v416
      %v1357 = vsel %vm430, %v1356, 0.0
      %1358 = vadd.xlane.f32.xlu0 %v1357
      %v1359 = vpop.xlane.xlu0 %1358
      %v1360 = vrcp.pop 32.0
      %v1361 = vmul.f32 %v1359, %v1360
      %v1362 = vsub.f32 %v1356, %v1361
      %v1363 = vmul.f32 %v1362, %v1362
      %v1364 = vsel %vm430, %v1363, 0.0
      %1365 = vadd.xlane.f32.xlu0 %v1364
      %v1366 = vpop.xlane.xlu0 %1365
      %v1367 = vmul.f32 %v1366, %v1360
      %v1368 = vadd.f32 %v1367, 1e-05
      %v1369 = vrsqrt.pop %v1368
      %v1370 = vmul.f32 %v1362, %v1369
      %v1371 = vld [vmem:[%s9] sm:$0x1]
      %v1373 = vlaneseq
      %v1374 = vshrl.u32 %v1373, 7
      %v1375 = vsub.s32 0, %v1374
      %v1376 = vrot.slane %v1371, %v1375
      %v1378 = vmul.f32 %v1370, %v1376
      %v1379 = vld [vmem:[%s10] sm:$0x1]
      %v1381 = vlaneseq
      %v1382 = vshrl.u32 %v1381, 7
      %v1383 = vsub.s32 0, %v1382
      %v1384 = vrot.slane %v1379, %v1383
      %v1386 = vadd.f32 %v1378, %v1384
      %1387 = vst.msk [vmem:[%s415] sm:$0xff] %vm430, %v1386
      %p1388 = scmp.lt.s32.totalorder %s22, 1
      %s1389 = scalar_select %p1388, %s22, 1
      %s1390 = smul.addr %s1389, 8
      %s1391 = scalar_lea.vmem %s11, %s1390
      // Predicated region
      $region65: #{bert_abs_sum_forward.19} parent=63 // pred_check
        %p1392 = pneg %p286
      $region66: #{bert_abs_sum_forward.19} parent=63 // pred_check_branch
        %1394 = sbr.rel (%p1392) target = $region68
      $region67: #{bert_abs_sum_forward.19} parent=63 // pred_region
        _
      $region68: #{bert_abs_sum_forward.19} parent=63 // pred_fallthru
        _
    $region64: #{bert_abs_sum_forward.19} parent=5 // pred_fallthru
      _
    %p1395 = scmp.le.s32.totalorder 2, %s17
    // Predicated region
    $region69: #{bert_abs_sum_forward.19} parent=5 // pred_check
      %p1396 = pneg %p1395
    $region70: #{bert_abs_sum_forward.19} parent=5 // pred_check_branch
      %1398 = sbr.rel (%p1396) target = $region72
    $region71: #{bert_abs_sum_forward.19} parent=5 // pred_region
      %s1399 = ssub.s32 %s17, 2
      // Predicated region
      $region73: #{bert_abs_sum_forward.19} parent=71 // pred_check
        %p1400 = pneg %p292
      $region74: #{bert_abs_sum_forward.19} parent=71 // pred_check_branch
        %1402 = sbr.rel (%p1400) target = $region76
      $region75: #{bert_abs_sum_forward.19} parent=71 // pred_region
        %p1403 = scmp.lt.s32.totalorder %s23, 1
        %s1404 = scalar_select %p1403, %s23, 1
        %s1405 = smul.addr %s1404, 8
        %s1406 = scalar_lea.vmem %s11, %s1405
      $region76: #{bert_abs_sum_forward.19} parent=71 // pred_fallthru
        _
    $region72: #{bert_abs_sum_forward.19} parent=5 // pred_fallthru
      _
  $region6: #{bert_abs_sum_forward.19} parent=0 // loop_footer
    %s21 = sadd.s32 1, %s17
  $region7: #{bert_abs_sum_forward.19} parent=0 // loop_footer_branch
    %16 = sbr.rel target = $region3
  $region8: #{bert_abs_sum_forward.19} parent=0 // loop_exit
    _

// kernel: bert_abs_sum_forward.14
$region0: #{bert_abs_sum_forward.14}
  #allocation0 [shape = 'u32[]', space=smem, size = 0x4, offset = 0x4, fixed_abs, tag = 'smem constant byte address 0x4 - core index']
  #allocation1 [shape = 'u32[144,128]{1,0:T(1,128)}', space=vmem, size = 0x12000, scoped, tag = 'internal scratch']
  %s0 = inlined_call_operand.vmem [shape: f32[2,16,32], index: 0, kind: input, shape index: {}, may-alias: {0,1}]
  %s1 = inlined_call_operand.vmem [shape: f32[2,16,32], index: 1, kind: input, shape index: {}, may-alias: {0,1}]
  %s2 = inlined_call_operand.vmem [shape: f32[2,16,16], index: 2, kind: input, shape index: {}]
  %s3 = inlined_call_operand.vmem [shape: f32[32,32], index: 3, kind: input, shape index: {}]
  %s4 = inlined_call_operand.vmem [shape: f32[1,32], index: 4, kind: input, shape index: {}]
  %s5 = inlined_call_operand.vmem [shape: f32[32,64], index: 5, kind: input, shape index: {}]
  %s6 = inlined_call_operand.vmem [shape: f32[1,64], index: 6, kind: input, shape index: {}]
  %s7 = inlined_call_operand.vmem [shape: f32[32,32], index: 7, kind: input, shape index: {}]
  %s8 = inlined_call_operand.vmem [shape: f32[1,32], index: 8, kind: input, shape index: {}]
  %s9 = inlined_call_operand.vmem [shape: f32[1,32], index: 9, kind: input, shape index: {}]
  %s10 = inlined_call_operand.vmem [shape: f32[1,32], index: 10, kind: input, shape index: {}]
  %s11 = inlined_call_operand.vmem [shape: f32[2,16,32], index: 11, kind: output, shape index: {}]
  %s12 = sld [smem:[#allocation0]]
  $region77: #{bert_abs_sum_forward.14} parent=0
    _
  %s14 = ssub.s32 1, %s12
  %s15 = scalar_select 0, %s14, %s12
  loop: start=0, step=1, limit=4
  $region2: #{bert_abs_sum_forward.14} parent=0 // loop_pre_header
    _
  $region3: #{bert_abs_sum_forward.14} parent=0 // loop_header
    %s17 = sphi 0, %s21
    %p18 = scmp.ge.s32.totalorder %s17, 4
    %s27 = sphi 0, %s29
    %s30 = sphi 0, %s27
    %s31 = sphi 0, %s30
    %s47 = sphi 0, %s31
    %s53 = sphi 0, %s55
    %s56 = sphi 0, %s53
    %s57 = sphi 0, %s56
    %s73 = sphi 0, %s57
    %s79 = sphi 0, %s81
    %s82 = sphi 0, %s79
    %s83 = sphi 0, %s82
    %s99 = sphi 0, %s83
    %s103 = sphi 0, %s103
    %s105 = sphi 0, %s103
    %s106 = sphi 0, %s105
    %s120 = sphi 0, %s106
    %s124 = sphi 0, %s124
    %s126 = sphi 0, %s124
    %s127 = sphi 0, %s126
    %s141 = sphi 0, %s127
    %s145 = sphi 0, %s145
    %s147 = sphi 0, %s145
    %s148 = sphi 0, %s147
    %s162 = sphi 0, %s148
    %s166 = sphi 0, %s166
    %s168 = sphi 0, %s166
    %s169 = sphi 0, %s168
    %s183 = sphi 0, %s169
    %s187 = sphi 0, %s187
    %s189 = sphi 0, %s187
    %s190 = sphi 0, %s189
    %s204 = sphi 0, %s190
    %s208 = sphi 0, %s208
    %s210 = sphi 0, %s208
    %s211 = sphi 0, %s210
    %s225 = sphi 0, %s211
    %s229 = sphi 0, %s229
    %s231 = sphi 0, %s229
    %s232 = sphi 0, %s231
    %s246 = sphi 0, %s232
    %s250 = sphi 0, %s250
    %s252 = sphi 0, %s250
    %s253 = sphi 0, %s252
    %s267 = sphi 0, %s253
    %s273 = sphi 0, %s275
    %s276 = sphi 0, %s273
    %s277 = sphi 0, %s276
    %s293 = sphi 0, %s277
  $region4: #{bert_abs_sum_forward.14} parent=0 // loop_header_branch
    %20 = sbr.rel (%p18) target = $region8
  $region5: #{bert_abs_sum_forward.14} parent=0 // loop_body
    %s22 = ssub.s32 %s17, 1
    %s23 = ssub.s32 %s17, 2
    %s24 = sadd.s32 %s17, 1
    %s25 = ssub.s32 %s17, %s24
    %p26 = scmp.eq.s32.totalorder %s25, 0
    %s28 = sadd.s32 %s27, 1
    %s29 = scalar_select %p26, %s27, %s28
    %p32 = pneg %p26
    %p33 = scmp.eq.s32.totalorder %s17, 1
    %p34 = por %p32, %p33
    %p35 = scmp.ne.s32.totalorder %s27, %s30
    %p36 = scmp.eq.s32.totalorder %s17, 0
    %p37 = por %p35, %p36
    %p38 = scmp.ne.s32.totalorder %s27, %s30
    %p39 = scmp.eq.s32.totalorder %s22, 1
    %p40 = por %p38, %p39
    %p41 = scmp.ne.s32.totalorder %s30, %s31
    %p42 = scmp.eq.s32.totalorder %s22, 0
    %p43 = por %p41, %p42
    %p44 = scmp.ne.s32.totalorder %s30, %s31
    %p45 = scmp.eq.s32.totalorder %s23, 1
    %p46 = por %p44, %p45
    %p48 = scmp.ne.s32.totalorder %s31, %s47
    %p49 = scmp.eq.s32.totalorder %s23, 0
    %p50 = por %p48, %p49
    %s51 = ssub.s32 %s17, %s24
    %p52 = scmp.eq.s32.totalorder %s51, 0
    %s54 = sadd.s32 %s53, 1
    %s55 = scalar_select %p52, %s53, %s54
    %p58 = pneg %p52
    %p59 = scmp.eq.s32.totalorder %s17, 1
    %p60 = por %p58, %p59
    %p61 = scmp.ne.s32.totalorder %s53, %s56
    %p62 = scmp.eq.s32.totalorder %s17, 0
    %p63 = por %p61, %p62
    %p64 = scmp.ne.s32.totalorder %s53, %s56
    %p65 = scmp.eq.s32.totalorder %s22, 1
    %p66 = por %p64, %p65
    %p67 = scmp.ne.s32.totalorder %s56, %s57
    %p68 = scmp.eq.s32.totalorder %s22, 0
    %p69 = por %p67, %p68
    %p70 = scmp.ne.s32.totalorder %s56, %s57
    %p71 = scmp.eq.s32.totalorder %s23, 1
    %p72 = por %p70, %p71
    %p74 = scmp.ne.s32.totalorder %s57, %s73
    %p75 = scmp.eq.s32.totalorder %s23, 0
    %p76 = por %p74, %p75
    %s77 = ssub.s32 %s17, %s24
    %p78 = scmp.eq.s32.totalorder %s77, 0
    %s80 = sadd.s32 %s79, 1
    %s81 = scalar_select %p78, %s79, %s80
    %p84 = pneg %p78
    %p85 = scmp.eq.s32.totalorder %s17, 1
    %p86 = por %p84, %p85
    %p87 = scmp.ne.s32.totalorder %s79, %s82
    %p88 = scmp.eq.s32.totalorder %s17, 0
    %p89 = por %p87, %p88
    %p90 = scmp.ne.s32.totalorder %s79, %s82
    %p91 = scmp.eq.s32.totalorder %s22, 1
    %p92 = por %p90, %p91
    %p93 = scmp.ne.s32.totalorder %s82, %s83
    %p94 = scmp.eq.s32.totalorder %s22, 0
    %p95 = por %p93, %p94
    %p96 = scmp.ne.s32.totalorder %s82, %s83
    %p97 = scmp.eq.s32.totalorder %s23, 1
    %p98 = por %p96, %p97
    %p100 = scmp.ne.s32.totalorder %s83, %s99
    %p101 = scmp.eq.s32.totalorder %s23, 0
    %p102 = por %p100, %p101
    %s104 = sadd.s32 %s103, 1
    %p107 = scmp.eq.s32.totalorder %s17, 1
    %p108 = scmp.ne.s32.totalorder %s103, %s105
    %p109 = scmp.eq.s32.totalorder %s17, 0
    %p110 = por %p108, %p109
    %p111 = scmp.ne.s32.totalorder %s103, %s105
    %p112 = scmp.eq.s32.totalorder %s22, 1
    %p113 = por %p111, %p112
    %p114 = scmp.ne.s32.totalorder %s105, %s106
    %p115 = scmp.eq.s32.totalorder %s22, 0
    %p116 = por %p114, %p115
    %p117 = scmp.ne.s32.totalorder %s105, %s106
    %p118 = scmp.eq.s32.totalorder %s23, 1
    %p119 = por %p117, %p118
    %p121 = scmp.ne.s32.totalorder %s106, %s120
    %p122 = scmp.eq.s32.totalorder %s23, 0
    %p123 = por %p121, %p122
    %s125 = sadd.s32 %s124, 1
    %p128 = scmp.eq.s32.totalorder %s17, 1
    %p129 = scmp.ne.s32.totalorder %s124, %s126
    %p130 = scmp.eq.s32.totalorder %s17, 0
    %p131 = por %p129, %p130
    %p132 = scmp.ne.s32.totalorder %s124, %s126
    %p133 = scmp.eq.s32.totalorder %s22, 1
    %p134 = por %p132, %p133
    %p135 = scmp.ne.s32.totalorder %s126, %s127
    %p136 = scmp.eq.s32.totalorder %s22, 0
    %p137 = por %p135, %p136
    %p138 = scmp.ne.s32.totalorder %s126, %s127
    %p139 = scmp.eq.s32.totalorder %s23, 1
    %p140 = por %p138, %p139
    %p142 = scmp.ne.s32.totalorder %s127, %s141
    %p143 = scmp.eq.s32.totalorder %s23, 0
    %p144 = por %p142, %p143
    %s146 = sadd.s32 %s145, 1
    %p149 = scmp.eq.s32.totalorder %s17, 1
    %p150 = scmp.ne.s32.totalorder %s145, %s147
    %p151 = scmp.eq.s32.totalorder %s17, 0
    %p152 = por %p150, %p151
    %p153 = scmp.ne.s32.totalorder %s145, %s147
    %p154 = scmp.eq.s32.totalorder %s22, 1
    %p155 = por %p153, %p154
    %p156 = scmp.ne.s32.totalorder %s147, %s148
    %p157 = scmp.eq.s32.totalorder %s22, 0
    %p158 = por %p156, %p157
    %p159 = scmp.ne.s32.totalorder %s147, %s148
    %p160 = scmp.eq.s32.totalorder %s23, 1
    %p161 = por %p159, %p160
    %p163 = scmp.ne.s32.totalorder %s148, %s162
    %p164 = scmp.eq.s32.totalorder %s23, 0
    %p165 = por %p163, %p164
    %s167 = sadd.s32 %s166, 1
    %p170 = scmp.eq.s32.totalorder %s17, 1
    %p171 = scmp.ne.s32.totalorder %s166, %s168
    %p172 = scmp.eq.s32.totalorder %s17, 0
    %p173 = por %p171, %p172
    %p174 = scmp.ne.s32.totalorder %s166, %s168
    %p175 = scmp.eq.s32.totalorder %s22, 1
    %p176 = por %p174, %p175
    %p177 = scmp.ne.s32.totalorder %s168, %s169
    %p178 = scmp.eq.s32.totalorder %s22, 0
    %p179 = por %p177, %p178
    %p180 = scmp.ne.s32.totalorder %s168, %s169
    %p181 = scmp.eq.s32.totalorder %s23, 1
    %p182 = por %p180, %p181
    %p184 = scmp.ne.s32.totalorder %s169, %s183
    %p185 = scmp.eq.s32.totalorder %s23, 0
    %p186 = por %p184, %p185
    %s188 = sadd.s32 %s187, 1
    %p191 = scmp.eq.s32.totalorder %s17, 1
    %p192 = scmp.ne.s32.totalorder %s187, %s189
    %p193 = scmp.eq.s32.totalorder %s17, 0
    %p194 = por %p192, %p193
    %p195 = scmp.ne.s32.totalorder %s187, %s189
    %p196 = scmp.eq.s32.totalorder %s22, 1
    %p197 = por %p195, %p196
    %p198 = scmp.ne.s32.totalorder %s189, %s190
    %p199 = scmp.eq.s32.totalorder %s22, 0
    %p200 = por %p198, %p199
    %p201 = scmp.ne.s32.totalorder %s189, %s190
    %p202 = scmp.eq.s32.totalorder %s23, 1
    %p203 = por %p201, %p202
    %p205 = scmp.ne.s32.totalorder %s190, %s204
    %p206 = scmp.eq.s32.totalorder %s23, 0
    %p207 = por %p205, %p206
    %s209 = sadd.s32 %s208, 1
    %p212 = scmp.eq.s32.totalorder %s17, 1
    %p213 = scmp.ne.s32.totalorder %s208, %s210
    %p214 = scmp.eq.s32.totalorder %s17, 0
    %p215 = por %p213, %p214
    %p216 = scmp.ne.s32.totalorder %s208, %s210
    %p217 = scmp.eq.s32.totalorder %s22, 1
    %p218 = por %p216, %p217
    %p219 = scmp.ne.s32.totalorder %s210, %s211
    %p220 = scmp.eq.s32.totalorder %s22, 0
    %p221 = por %p219, %p220
    %p222 = scmp.ne.s32.totalorder %s210, %s211
    %p223 = scmp.eq.s32.totalorder %s23, 1
    %p224 = por %p222, %p223
    %p226 = scmp.ne.s32.totalorder %s211, %s225
    %p227 = scmp.eq.s32.totalorder %s23, 0
    %p228 = por %p226, %p227
    %s230 = sadd.s32 %s229, 1
    %p233 = scmp.eq.s32.totalorder %s17, 1
    %p234 = scmp.ne.s32.totalorder %s229, %s231
    %p235 = scmp.eq.s32.totalorder %s17, 0
    %p236 = por %p234, %p235
    %p237 = scmp.ne.s32.totalorder %s229, %s231
    %p238 = scmp.eq.s32.totalorder %s22, 1
    %p239 = por %p237, %p238
    %p240 = scmp.ne.s32.totalorder %s231, %s232
    %p241 = scmp.eq.s32.totalorder %s22, 0
    %p242 = por %p240, %p241
    %p243 = scmp.ne.s32.totalorder %s231, %s232
    %p244 = scmp.eq.s32.totalorder %s23, 1
    %p245 = por %p243, %p244
    %p247 = scmp.ne.s32.totalorder %s232, %s246
    %p248 = scmp.eq.s32.totalorder %s23, 0
    %p249 = por %p247, %p248
    %s251 = sadd.s32 %s250, 1
    %p254 = scmp.eq.s32.totalorder %s17, 1
    %p255 = scmp.ne.s32.totalorder %s250, %s252
    %p256 = scmp.eq.s32.totalorder %s17, 0
    %p257 = por %p255, %p256
    %p258 = scmp.ne.s32.totalorder %s250, %s252
    %p259 = scmp.eq.s32.totalorder %s22, 1
    %p260 = por %p258, %p259
    %p261 = scmp.ne.s32.totalorder %s252, %s253
    %p262 = scmp.eq.s32.totalorder %s22, 0
    %p263 = por %p261, %p262
    %p264 = scmp.ne.s32.totalorder %s252, %s253
    %p265 = scmp.eq.s32.totalorder %s23, 1
    %p266 = por %p264, %p265
    %p268 = scmp.ne.s32.totalorder %s253, %s267
    %p269 = scmp.eq.s32.totalorder %s23, 0
    %p270 = por %p268, %p269
    %s271 = ssub.s32 %s17, %s24
    %p272 = scmp.eq.s32.totalorder %s271, 0
    %s274 = sadd.s32 %s273, 1
    %s275 = scalar_select %p272, %s273, %s274
    %p278 = pneg %p272
    %p279 = scmp.eq.s32.totalorder %s17, 1
    %p280 = por %p278, %p279
    %p281 = scmp.ne.s32.totalorder %s273, %s276
    %p282 = scmp.eq.s32.totalorder %s17, 0
    %p283 = por %p281, %p282
    %p284 = scmp.ne.s32.totalorder %s273, %s276
    %p285 = scmp.eq.s32.totalorder %s22, 1
    %p286 = por %p284, %p285
    %p287 = scmp.ne.s32.totalorder %s276, %s277
    %p288 = scmp.eq.s32.totalorder %s22, 0
    %p289 = por %p287, %p288
    %p290 = scmp.ne.s32.totalorder %s276, %s277
    %p291 = scmp.eq.s32.totalorder %s23, 1
    %p292 = por %p290, %p291
    %p294 = scmp.ne.s32.totalorder %s277, %s293
    %p295 = scmp.eq.s32.totalorder %s23, 0
    %p296 = por %p294, %p295
    %p297 = scmp.le.s32.totalorder 1, %s17
    %p298 = scmp.lt.s32.totalorder %s17, 3
    %p299 = pnand %p297, %p298
    %p300 = pneg %p299
    // Predicated region
    $region9: #{bert_abs_sum_forward.14} parent=5 // pred_check
      _
    $region10: #{bert_abs_sum_forward.14} parent=5 // pred_check_branch
      %302 = sbr.rel (%p299) target = $region12
    $region11: #{bert_abs_sum_forward.14} parent=5 // pred_region
      %s303 = ssub.s32 %s17, 1
      // Predicated region
      $region13: #{bert_abs_sum_forward.14} parent=11 // pred_check
        %p304 = pneg %p116
      $region14: #{bert_abs_sum_forward.14} parent=11 // pred_check_branch
        %306 = sbr.rel (%p304) target = $region16
      $region15: #{bert_abs_sum_forward.14} parent=11 // pred_region
        _
      $region16: #{bert_abs_sum_forward.14} parent=11 // pred_fallthru
        _
      // Predicated region
      $region17: #{bert_abs_sum_forward.14} parent=11 // pred_check
        %p307 = pneg %p137
      $region18: #{bert_abs_sum_forward.14} parent=11 // pred_check_branch
        %309 = sbr.rel (%p307) target = $region20
      $region19: #{bert_abs_sum_forward.14} parent=11 // pred_region
        _
      $region20: #{bert_abs_sum_forward.14} parent=11 // pred_fallthru
        _
      // Predicated region
      $region21: #{bert_abs_sum_forward.14} parent=11 // pred_check
        %p310 = pneg %p158
      $region22: #{bert_abs_sum_forward.14} parent=11 // pred_check_branch
        %312 = sbr.rel (%p310) target = $region24
      $region23: #{bert_abs_sum_forward.14} parent=11 // pred_region
        _
      $region24: #{bert_abs_sum_forward.14} parent=11 // pred_fallthru
        _
      // Predicated region
      $region25: #{bert_abs_sum_forward.14} parent=11 // pred_check
        %p313 = pneg %p179
      $region26: #{bert_abs_sum_forward.14} parent=11 // pred_check_branch
        %315 = sbr.rel (%p313) target = $region28
      $region27: #{bert_abs_sum_forward.14} parent=11 // pred_region
        _
      $region28: #{bert_abs_sum_forward.14} parent=11 // pred_fallthru
        _
      // Predicated region
      $region29: #{bert_abs_sum_forward.14} parent=11 // pred_check
        %p316 = pneg %p200
      $region30: #{bert_abs_sum_forward.14} parent=11 // pred_check_branch
        %318 = sbr.rel (%p316) target = $region32
      $region31: #{bert_abs_sum_forward.14} parent=11 // pred_region
        _
      $region32: #{bert_abs_sum_forward.14} parent=11 // pred_fallthru
        _
      // Predicated region
      $region33: #{bert_abs_sum_forward.14} parent=11 // pred_check
        %p319 = pneg %p221
      $region34: #{bert_abs_sum_forward.14} parent=11 // pred_check_branch
        %321 = sbr.rel (%p319) target = $region36
      $region35: #{bert_abs_sum_forward.14} parent=11 // pred_region
        _
      $region36: #{bert_abs_sum_forward.14} parent=11 // pred_fallthru
        _
      // Predicated region
      $region37: #{bert_abs_sum_forward.14} parent=11 // pred_check
        %p322 = pneg %p242
      $region38: #{bert_abs_sum_forward.14} parent=11 // pred_check_branch
        %324 = sbr.rel (%p322) target = $region40
      $region39: #{bert_abs_sum_forward.14} parent=11 // pred_region
        _
      $region40: #{bert_abs_sum_forward.14} parent=11 // pred_fallthru
        _
      // Predicated region
      $region41: #{bert_abs_sum_forward.14} parent=11 // pred_check
        %p325 = pneg %p263
      $region42: #{bert_abs_sum_forward.14} parent=11 // pred_check_branch
        %327 = sbr.rel (%p325) target = $region44
      $region43: #{bert_abs_sum_forward.14} parent=11 // pred_region
        _
      $region44: #{bert_abs_sum_forward.14} parent=11 // pred_fallthru
        _
    $region12: #{bert_abs_sum_forward.14} parent=5 // pred_fallthru
      _
    %p328 = scmp.lt.s32.totalorder %s17, 2
    // Predicated region
    $region45: #{bert_abs_sum_forward.14} parent=5 // pred_check
      %p329 = pneg %p328
    $region46: #{bert_abs_sum_forward.14} parent=5 // pred_check_branch
      %331 = sbr.rel (%p329) target = $region48
    $region47: #{bert_abs_sum_forward.14} parent=5 // pred_region
      // Predicated region
      $region49: #{bert_abs_sum_forward.14} parent=47 // pred_check
        %p332 = pneg %p37
      $region50: #{bert_abs_sum_forward.14} parent=47 // pred_check_branch
        %334 = sbr.rel (%p332) target = $region52
      $region51: #{bert_abs_sum_forward.14} parent=47 // pred_region
        %p335 = scmp.lt.s32.totalorder %s17, 1
        %s336 = scalar_select %p335, %s17, 1
        %s337 = smul.addr %s336, 2
        %s338 = smul.addr %s337, 8
        %s339 = scalar_lea.vmem %s0, %s338
      $region52: #{bert_abs_sum_forward.14} parent=47 // pred_fallthru
        _
      // Predicated region
      $region53: #{bert_abs_sum_forward.14} parent=47 // pred_check
        %p340 = pneg %p63
      $region54: #{bert_abs_sum_forward.14} parent=47 // pred_check_branch
        %342 = sbr.rel (%p340) target = $region56
      $region55: #{bert_abs_sum_forward.14} parent=47 // pred_region
        %p343 = scmp.lt.s32.totalorder %s17, 1
        %s344 = scalar_select %p343, %s17, 1
        %s345 = smul.addr %s344, 2
        %s346 = smul.addr %s345, 8
        %s347 = scalar_lea.vmem %s1, %s346
      $region56: #{bert_abs_sum_forward.14} parent=47 // pred_fallthru
        _
      // Predicated region
      $region57: #{bert_abs_sum_forward.14} parent=47 // pred_check
        %p348 = pneg %p89
      $region58: #{bert_abs_sum_forward.14} parent=47 // pred_check_branch
        %350 = sbr.rel (%p348) target = $region60
      $region59: #{bert_abs_sum_forward.14} parent=47 // pred_region
        %p351 = scmp.lt.s32.totalorder %s17, 1
        %s352 = scalar_select %p351, %s17, 1
        %s353 = smul.addr %s352, 2
        %s354 = smul.addr %s353, 8
        %s355 = scalar_lea.vmem %s2, %s354
      $region60: #{bert_abs_sum_forward.14} parent=47 // pred_fallthru
        _
    $region48: #{bert_abs_sum_forward.14} parent=5 // pred_fallthru
      _
    %p356 = scmp.le.s32.totalorder 1, %s17
    %p357 = scmp.lt.s32.totalorder %s17, 3
    %p358 = pnand %p356, %p357
    %p359 = pneg %p358
    // Predicated region
    $region61: #{bert_abs_sum_forward.14} parent=5 // pred_check
      _
    $region62: #{bert_abs_sum_forward.14} parent=5 // pred_check_branch
      %361 = sbr.rel (%p358) target = $region64
    $region63: #{bert_abs_sum_forward.14} parent=5 // pred_region
      %s362 = ssub.s32 %s17, 1
      %p363 = scmp.lt.s32.totalorder %s22, 1
      %s364 = scalar_select %p363, %s22, 1
      %s365 = smul.addr %s364, 2
      %s366 = smul.addr %s365, 8
      %s367 = scalar_lea.vmem %s0, %s366
      %p368 = pneg %p43
      %p369 = pneg %p40
      %p370 = scmp.lt.s32.totalorder %s22, 1
      %s371 = scalar_select %p370, %s22, 1
      %s372 = smul.addr %s371, 2
      %s373 = smul.addr %s372, 8
      %s374 = scalar_lea.vmem %s1, %s373
      %p375 = pneg %p69
      %p376 = pneg %p66
      %p377 = scmp.lt.s32.totalorder %s22, 1
      %s378 = scalar_select %p377, %s22, 1
      %s379 = smul.addr %s378, 2
      %s380 = smul.addr %s379, 8
      %s381 = scalar_lea.vmem %s2, %s380
      %p382 = pneg %p95
      %p383 = pneg %p92
      %p384 = pneg %p116
      %p385 = pneg %p113
      %p386 = pneg %p137
      %p387 = pneg %p134
      %p388 = pneg %p158
      %p389 = pneg %p155
      %p390 = pneg %p179
      %p391 = pneg %p176
      %p392 = pneg %p200
      %p393 = pneg %p197
      %p394 = pneg %p221
      %p395 = pneg %p218
      %p396 = pneg %p242
      %p397 = pneg %p239
      %p398 = pneg %p263
      %p399 = pneg %p260
      %p400 = pneg %p289
      %p401 = pneg %p286
      %p402 = scmp.lt.s32.totalorder %s22, 1
      %s403 = scalar_select %p402, %s22, 1
      %s404 = smul.addr %s403, 2
      %s405 = smul.addr %s404, 8
      %s406 = scalar_lea.vmem %s11, %s405
      %p407 = scmp.lt.s32.totalorder %s22, 1
      %s408 = scalar_select %p407, %s22, 1
      %s409 = smul.addr %s408, 2
      %s410 = smul.addr %s409, 8
      %s411 = scalar_lea.vmem %s0, %s410
      %p412 = scmp.lt.s32.totalorder %s22, 1
      %s413 = scalar_select %p412, %s22, 1
      %s414 = smul.addr %s413, 2
      %s415 = smul.addr %s414, 8
      %s416 = scalar_lea.vmem %s1, %s415
      %p417 = scmp.lt.s32.totalorder %s22, 1
      %s418 = scalar_select %p417, %s22, 1
      %s419 = smul.addr %s418, 2
      %s420 = smul.addr %s419, 8
      %s421 = scalar_lea.vmem %s2, %s420
      %p422 = scmp.lt.s32.totalorder %s22, 1
      %s423 = scalar_select %p422, %s22, 1
      %s424 = smul.addr %s423, 2
      %s425 = smul.addr %s424, 8
      %s426 = scalar_lea.vmem %s11, %s425
      %v427 = vld [vmem:[%s411] sm:$0xff]
      %v428 = vld [vmem:[%s411 + $0x8] sm:$0xff]
      %v429 = vld [vmem:[%s416] sm:$0xff]
      %v430 = vld [vmem:[%s416 + $0x8] sm:$0xff]
      %v431 = vld [vmem:[%s421] sm:$0xff]
      %v432 = vld [vmem:[%s421 + $0x8] sm:$0xff]
      %v433 = vld [vmem:[%s3] sm:$0xff]
      %v434 = vld [vmem:[%s3 + $0x8] sm:$0xff]
      %v435 = vld [vmem:[%s3 + $0x10] sm:$0xff]
      %v436 = vld [vmem:[%s3 + $0x18] sm:$0xff]
      %v437 = vld [vmem:[%s4] sm:$0x1]
      %v439 = vlaneseq
      %v440 = vshrl.u32 %v439, 7
      %v441 = vsub.s32 0, %v440
      %v442 = vrot.slane %v437, %v441
      %vm444 = vcmask 261120
      %v446 = vsel %vm444, %v427, 0
      %v449 = vsel %vm444, %v428, 0
      %451 = vmatprep.subr.mxu0 0.0
      %452 = vmatpush1.msra.mxu0 %v433
      %453 = vmatprep.subr.mxu0 0.0
      %454 = vmatpush1.msra.mxu0 %v434
      %455 = vmatprep.subr.mxu0 0.0
      %456 = vmatpush1.msra.mxu0 %v435
      %457 = vmatprep.subr.mxu0 0.0
      %458 = vmatpush1.msra.mxu0 %v436
      %459 = vmatprep.subr.mxu0 0.0
      %460 = vmatpush1.msra.mxu0 0.0
      %461 = vmatprep.subr.mxu0 0.0
      %462 = vmatpush1.msra.mxu0 0.0
      %463 = vmatprep.subr.mxu0 0.0
      %464 = vmatpush1.msra.mxu0 0.0
      %465 = vmatprep.subr.mxu0 0.0
      %466 = vmatpush1.msra.mxu0 0.0
      %467 = vmatprep.subr.mxu0 0.0
      %468 = vmatpush1.msra.mxu0 0.0
      %469 = vmatprep.subr.mxu0 0.0
      %470 = vmatpush1.msra.mxu0 0.0
      %471 = vmatprep.subr.mxu0 0.0
      %472 = vmatpush1.msra.mxu0 0.0
      %473 = vmatprep.subr.mxu0 0.0
      %474 = vmatpush1.msra.mxu0 0.0
      %475 = vmatprep.subr.mxu0 0.0
      %476 = vmatpush1.msra.mxu0 0.0
      %477 = vmatprep.subr.mxu0 0.0
      %478 = vmatpush1.msra.mxu0 0.0
      %479 = vmatprep.subr.mxu0 0.0
      %480 = vmatpush1.msra.mxu0 0.0
      %481 = vmatprep.subr.mxu0 0.0
      %482 = vmatpush1.msra.mxu0 0.0
      %483 = vmatprep.subr.mxu0 0.0
      %484 = vmatpush1.msra.mxu0 0.0
      %485 = vmatprep.subr.mxu0 0.0
      %486 = vmatpush1.msra.mxu0 0.0
      %487 = vmatprep.subr.mxu0 0.0
      %488 = vmatpush1.msra.mxu0 0.0
      %489 = vmatprep.subr.mxu0 0.0
      %490 = vmatpush1.msra.mxu0 0.0
      %491 = vmatprep.subr.mxu0 0.0
      %492 = vmatpush1.msra.mxu0 0.0
      %493 = vmatprep.subr.mxu0 0.0
      %494 = vmatpush1.msra.mxu0 0.0
      %495 = vmatprep.subr.mxu0 0.0
      %496 = vmatpush1.msra.mxu0 0.0
      %497 = vmatprep.subr.mxu0 0.0
      %498 = vmatpush1.msra.mxu0 0.0
      %499 = vmatprep.subr.mxu0 0.0
      %500 = vmatpush1.msra.mxu0 0.0
      %501 = vmatprep.subr.mxu0 0.0
      %502 = vmatpush1.msra.mxu0 0.0
      %503 = vmatprep.subr.mxu0 0.0
      %504 = vmatpush1.msra.mxu0 0.0
      %505 = vmatprep.subr.mxu0 0.0
      %506 = vmatpush1.msra.mxu0 0.0
      %507 = vmatprep.subr.mxu0 0.0
      %508 = vmatpush1.msra.mxu0 0.0
      %509 = vmatprep.subr.mxu0 0.0
      %510 = vmatpush1.msra.mxu0 0.0
      %511 = vmatprep.subr.mxu0 0.0
      %512 = vmatpush1.msra.mxu0 0.0
      %513 = vmatprep.subr.mxu0 0.0
      %514 = vmatpush1.msra.mxu0 0.0
      %515 = vmatprep.mubr.f32.mxu0 0.0
      %516 = vmatmul.mubr.f32.gmra.mrb[0].mxu0 %v446
      %v517 = vpop.f32.mrb[0].mxu0
      %v518 = vadd.f32 %v442, %v517
      %v519 = vpop.f32.mrb[0].mxu0
      %520 = vmatprep.mubr.f32.mxu0 0.0
      %521 = vmatmul.mubr.f32.gmra.mrb[0].mxu0 %v449
      %v522 = vpop.f32.mrb[0].mxu0
      %v523 = vadd.f32 %v442, %v522
      %v524 = vpop.f32.mrb[0].mxu0
      %525 = vdwg.mxu0
      %v526 = vld [vmem:[%s5] sm:$0xff]
      %v527 = vld [vmem:[%s5 + $0x8] sm:$0xff]
      %v528 = vld [vmem:[%s5 + $0x10] sm:$0xff]
      %v529 = vld [vmem:[%s5 + $0x18] sm:$0xff]
      %v530 = vld [vmem:[%s6] sm:$0x1]
      %v532 = vlaneseq
      %v533 = vshrl.u32 %v532, 7
      %v534 = vsub.s32 0, %v533
      %v535 = vrot.slane %v530, %v534
      %v538 = vsel %vm444, %v429, 0
      %v541 = vsel %vm444, %v430, 0
      %543 = vmatprep.subr.mxu0 0.0
      %544 = vmatpush1.msra.mxu0 %v526
      %545 = vmatprep.subr.mxu0 0.0
      %546 = vmatpush1.msra.mxu0 %v527
      %547 = vmatprep.subr.mxu0 0.0
      %548 = vmatpush1.msra.mxu0 %v528
      %549 = vmatprep.subr.mxu0 0.0
      %550 = vmatpush1.msra.mxu0 %v529
      %551 = vmatprep.subr.mxu0 0.0
      %552 = vmatpush1.msra.mxu0 0.0
      %553 = vmatprep.subr.mxu0 0.0
      %554 = vmatpush1.msra.mxu0 0.0
      %555 = vmatprep.subr.mxu0 0.0
      %556 = vmatpush1.msra.mxu0 0.0
      %557 = vmatprep.subr.mxu0 0.0
      %558 = vmatpush1.msra.mxu0 0.0
      %559 = vmatprep.subr.mxu0 0.0
      %560 = vmatpush1.msra.mxu0 0.0
      %561 = vmatprep.subr.mxu0 0.0
      %562 = vmatpush1.msra.mxu0 0.0
      %563 = vmatprep.subr.mxu0 0.0
      %564 = vmatpush1.msra.mxu0 0.0
      %565 = vmatprep.subr.mxu0 0.0
      %566 = vmatpush1.msra.mxu0 0.0
      %567 = vmatprep.subr.mxu0 0.0
      %568 = vmatpush1.msra.mxu0 0.0
      %569 = vmatprep.subr.mxu0 0.0
      %570 = vmatpush1.msra.mxu0 0.0
      %571 = vmatprep.subr.mxu0 0.0
      %572 = vmatpush1.msra.mxu0 0.0
      %573 = vmatprep.subr.mxu0 0.0
      %574 = vmatpush1.msra.mxu0 0.0
      %575 = vmatprep.subr.mxu0 0.0
      %576 = vmatpush1.msra.mxu0 0.0
      %577 = vmatprep.subr.mxu0 0.0
      %578 = vmatpush1.msra.mxu0 0.0
      %579 = vmatprep.subr.mxu0 0.0
      %580 = vmatpush1.msra.mxu0 0.0
      %581 = vmatprep.subr.mxu0 0.0
      %582 = vmatpush1.msra.mxu0 0.0
      %583 = vmatprep.subr.mxu0 0.0
      %584 = vmatpush1.msra.mxu0 0.0
      %585 = vmatprep.subr.mxu0 0.0
      %586 = vmatpush1.msra.mxu0 0.0
      %587 = vmatprep.subr.mxu0 0.0
      %588 = vmatpush1.msra.mxu0 0.0
      %589 = vmatprep.subr.mxu0 0.0
      %590 = vmatpush1.msra.mxu0 0.0
      %591 = vmatprep.subr.mxu0 0.0
      %592 = vmatpush1.msra.mxu0 0.0
      %593 = vmatprep.subr.mxu0 0.0
      %594 = vmatpush1.msra.mxu0 0.0
      %595 = vmatprep.subr.mxu0 0.0
      %596 = vmatpush1.msra.mxu0 0.0
      %597 = vmatprep.subr.mxu0 0.0
      %598 = vmatpush1.msra.mxu0 0.0
      %599 = vmatprep.subr.mxu0 0.0
      %600 = vmatpush1.msra.mxu0 0.0
      %601 = vmatprep.subr.mxu0 0.0
      %602 = vmatpush1.msra.mxu0 0.0
      %603 = vmatprep.subr.mxu0 0.0
      %604 = vmatpush1.msra.mxu0 0.0
      %605 = vmatprep.subr.mxu0 0.0
      %606 = vmatpush1.msra.mxu0 0.0
      %607 = vmatprep.mubr.f32.mxu0 0.0
      %608 = vmatmul.mubr.f32.gmra.mrb[0].mxu0 %v538
      %v609 = vpop.f32.mrb[0].mxu0
      %v610 = vadd.f32 %v535, %v609
      %v611 = vpop.f32.mrb[0].mxu0
      %612 = vmatprep.mubr.f32.mxu0 0.0
      %613 = vmatmul.mubr.f32.gmra.mrb[0].mxu0 %v541
      %v614 = vpop.f32.mrb[0].mxu0
      %v615 = vadd.f32 %v535, %v614
      %v616 = vpop.f32.mrb[0].mxu0
      %617 = vdwg.mxu0
      %vm618 = vcmask 64512
      %v620 = vsel %vm618, %v518, 0
      %v623 = vsel %vm618, %v523, 0
      %v626 = vsel %vm618, %v610, 0
      %v629 = vsel %vm618, %v615, 0
      %631 = vmatprep.subr.mxu0 0.0
      %632 = vmatpush1.xpose.msra.mxu0 %v626
      %633 = vmatprep.subr.mxu0 0.0
      %634 = vmatpush1.xpose.msra.mxu0 %v629
      %635 = vmatprep.subr.mxu0 0.0
      %636 = vmatpush1.xpose.msra.mxu0 0.0
      %637 = vmatprep.subr.mxu0 0.0
      %638 = vmatpush1.xpose.msra.mxu0 0.0
      %639 = vmatprep.subr.mxu0 0.0
      %640 = vmatpush1.xpose.msra.mxu0 0.0
      %641 = vmatprep.subr.mxu0 0.0
      %642 = vmatpush1.xpose.msra.mxu0 0.0
      %643 = vmatprep.subr.mxu0 0.0
      %644 = vmatpush1.xpose.msra.mxu0 0.0
      %645 = vmatprep.subr.mxu0 0.0
      %646 = vmatpush1.xpose.msra.mxu0 0.0
      %647 = vmatprep.subr.mxu0 0.0
      %648 = vmatpush1.xpose.msra.mxu0 0.0
      %649 = vmatprep.subr.mxu0 0.0
      %650 = vmatpush1.xpose.msra.mxu0 0.0
      %651 = vmatprep.subr.mxu0 0.0
      %652 = vmatpush1.xpose.msra.mxu0 0.0
      %653 = vmatprep.subr.mxu0 0.0
      %654 = vmatpush1.xpose.msra.mxu0 0.0
      %655 = vmatprep.subr.mxu0 0.0
      %656 = vmatpush1.xpose.msra.mxu0 0.0
      %657 = vmatprep.subr.mxu0 0.0
      %658 = vmatpush1.xpose.msra.mxu0 0.0
      %659 = vmatprep.subr.mxu0 0.0
      %660 = vmatpush1.xpose.msra.mxu0 0.0
      %661 = vmatprep.subr.mxu0 0.0
      %662 = vmatpush1.xpose.msra.mxu0 0.0
      %663 = vmatprep.subr.mxu0 0.0
      %664 = vmatpush1.xpose.msra.mxu0 0.0
      %665 = vmatprep.subr.mxu0 0.0
      %666 = vmatpush1.xpose.msra.mxu0 0.0
      %667 = vmatprep.subr.mxu0 0.0
      %668 = vmatpush1.xpose.msra.mxu0 0.0
      %669 = vmatprep.subr.mxu0 0.0
      %670 = vmatpush1.xpose.msra.mxu0 0.0
      %671 = vmatprep.subr.mxu0 0.0
      %672 = vmatpush1.xpose.msra.mxu0 0.0
      %673 = vmatprep.subr.mxu0 0.0
      %674 = vmatpush1.xpose.msra.mxu0 0.0
      %675 = vmatprep.subr.mxu0 0.0
      %676 = vmatpush1.xpose.msra.mxu0 0.0
      %677 = vmatprep.subr.mxu0 0.0
      %678 = vmatpush1.xpose.msra.mxu0 0.0
      %679 = vmatprep.subr.mxu0 0.0
      %680 = vmatpush1.xpose.msra.mxu0 0.0
      %681 = vmatprep.subr.mxu0 0.0
      %682 = vmatpush1.xpose.msra.mxu0 0.0
      %683 = vmatprep.subr.mxu0 0.0
      %684 = vmatpush1.xpose.msra.mxu0 0.0
      %685 = vmatprep.subr.mxu0 0.0
      %686 = vmatpush1.xpose.msra.mxu0 0.0
      %687 = vmatprep.subr.mxu0 0.0
      %688 = vmatpush1.xpose.msra.mxu0 0.0
      %689 = vmatprep.subr.mxu0 0.0
      %690 = vmatpush1.xpose.msra.mxu0 0.0
      %691 = vmatprep.subr.mxu0 0.0
      %692 = vmatpush1.xpose.msra.mxu0 0.0
      %693 = vmatprep.subr.mxu0 0.0
      %694 = vmatpush1.xpose.msra.mxu0 0.0
      %695 = vmatprep.mubr.f32.mxu0 0.0
      %696 = vmatmul.mubr.f32.gmra.mrb[0].mxu0 %v620
      %v697 = vpop.f32.mrb[0].mxu0
      %v698 = vadd.f32 0.0, %v697
      %v699 = vpop.f32.mrb[0].mxu0
      %700 = vmatprep.mubr.f32.mxu0 0.0
      %701 = vmatmul.mubr.f32.gmra.mrb[0].mxu0 %v623
      %v702 = vpop.f32.mrb[0].mxu0
      %v703 = vadd.f32 0.0, %v702
      %v704 = vpop.f32.mrb[0].mxu0
      %705 = vdwg.mxu0
      %v706 = vmul.f32 %v698, 0.35355338
      %v707 = vmul.f32 %v703, 0.35355338
      %v708 = vadd.f32 %v706, %v431
      %v709 = vadd.f32 %v707, %v432
      %vm710 = vcmask 130048
      %v711 = vsel %vm710, %v708, -inf
      %712 = vmax.xlane.f32.xlu0 %v711
      %v713 = vpop.xlane.xlu0 %712
      %v714 = vsel %vm710, %v709, -inf
      %715 = vmax.xlane.f32.xlu0 %v714
      %v716 = vpop.xlane.xlu0 %715
      %v717 = vsub.f32 %v708, %v713
      %v718 = vsub.f32 %v709, %v716
      %v719 = vmul.f32 %v717, 1.442695
      %v720 = vpow.pop %v719
      %v721 = vmul.f32 %v718, 1.442695
      %v722 = vpow.pop %v721
      %v723 = vsel %vm710, %v720, 0.0
      %724 = vadd.xlane.f32.xlu0 %v723
      %v725 = vpop.xlane.xlu0 %724
      %v726 = vsel %vm710, %v722, 0.0
      %727 = vadd.xlane.f32.xlu0 %v726
      %v728 = vpop.xlane.xlu0 %727
      %v729 = vrcp.pop %v725
      %v730 = vrcp.pop %v728
      %v731 = vmul.f32 %v720, %v729
      %v732 = vmul.f32 %v722, %v730
      %733 = vrot.lane.b32.xlu0 %v610, 96
      %v734 = vpop.permute.xlu0 %733
      %735 = vrot.lane.b32.xlu0 %v615, 96
      %v736 = vpop.permute.xlu0 %735
      %v740 = vsel %vm710, %v731, 0
      %v743 = vsel %vm710, %v732, 0
      %745 = vmatprep.subr.mxu0 0.0
      %746 = vmatpush1.msra.mxu0 %v734
      %747 = vmatprep.subr.mxu0 0.0
      %748 = vmatpush1.msra.mxu0 %v736
      %749 = vmatprep.subr.mxu0 0.0
      %750 = vmatpush1.msra.mxu0 0.0
      %751 = vmatprep.subr.mxu0 0.0
      %752 = vmatpush1.msra.mxu0 0.0
      %753 = vmatprep.subr.mxu0 0.0
      %754 = vmatpush1.msra.mxu0 0.0
      %755 = vmatprep.subr.mxu0 0.0
      %756 = vmatpush1.msra.mxu0 0.0
      %757 = vmatprep.subr.mxu0 0.0
      %758 = vmatpush1.msra.mxu0 0.0
      %759 = vmatprep.subr.mxu0 0.0
      %760 = vmatpush1.msra.mxu0 0.0
      %761 = vmatprep.subr.mxu0 0.0
      %762 = vmatpush1.msra.mxu0 0.0
      %763 = vmatprep.subr.mxu0 0.0
      %764 = vmatpush1.msra.mxu0 0.0
      %765 = vmatprep.subr.mxu0 0.0
      %766 = vmatpush1.msra.mxu0 0.0
      %767 = vmatprep.subr.mxu0 0.0
      %768 = vmatpush1.msra.mxu0 0.0
      %769 = vmatprep.subr.mxu0 0.0
      %770 = vmatpush1.msra.mxu0 0.0
      %771 = vmatprep.subr.mxu0 0.0
      %772 = vmatpush1.msra.mxu0 0.0
      %773 = vmatprep.subr.mxu0 0.0
      %774 = vmatpush1.msra.mxu0 0.0
      %775 = vmatprep.subr.mxu0 0.0
      %776 = vmatpush1.msra.mxu0 0.0
      %777 = vmatprep.subr.mxu0 0.0
      %778 = vmatpush1.msra.mxu0 0.0
      %779 = vmatprep.subr.mxu0 0.0
      %780 = vmatpush1.msra.mxu0 0.0
      %781 = vmatprep.subr.mxu0 0.0
      %782 = vmatpush1.msra.mxu0 0.0
      %783 = vmatprep.subr.mxu0 0.0
      %784 = vmatpush1.msra.mxu0 0.0
      %785 = vmatprep.subr.mxu0 0.0
      %786 = vmatpush1.msra.mxu0 0.0
      %787 = vmatprep.subr.mxu0 0.0
      %788 = vmatpush1.msra.mxu0 0.0
      %789 = vmatprep.subr.mxu0 0.0
      %790 = vmatpush1.msra.mxu0 0.0
      %791 = vmatprep.subr.mxu0 0.0
      %792 = vmatpush1.msra.mxu0 0.0
      %793 = vmatprep.subr.mxu0 0.0
      %794 = vmatpush1.msra.mxu0 0.0
      %795 = vmatprep.subr.mxu0 0.0
      %796 = vmatpush1.msra.mxu0 0.0
      %797 = vmatprep.subr.mxu0 0.0
      %798 = vmatpush1.msra.mxu0 0.0
      %799 = vmatprep.subr.mxu0 0.0
      %800 = vmatpush1.msra.mxu0 0.0
      %801 = vmatprep.subr.mxu0 0.0
      %802 = vmatpush1.msra.mxu0 0.0
      %803 = vmatprep.subr.mxu0 0.0
      %804 = vmatpush1.msra.mxu0 0.0
      %805 = vmatprep.subr.mxu0 0.0
      %806 = vmatpush1.msra.mxu0 0.0
      %807 = vmatprep.subr.mxu0 0.0
      %808 = vmatpush1.msra.mxu0 0.0
      %809 = vmatprep.mubr.f32.mxu0 0.0
      %810 = vmatmul.mubr.f32.gmra.mrb[0].mxu0 %v740
      %v811 = vpop.f32.mrb[0].mxu0
      %v812 = vadd.f32 0.0, %v811
      %v813 = vpop.f32.mrb[0].mxu0
      %814 = vmatprep.mubr.f32.mxu0 0.0
      %815 = vmatmul.mubr.f32.gmra.mrb[0].mxu0 %v743
      %v816 = vpop.f32.mrb[0].mxu0
      %v817 = vadd.f32 0.0, %v816
      %v818 = vpop.f32.mrb[0].mxu0
      %819 = vdwg.mxu0
      %820 = vrot.lane.b32.xlu0 %v518, 120
      %v821 = vpop.permute.xlu0 %820
      %822 = vrot.lane.b32.xlu0 %v523, 120
      %v823 = vpop.permute.xlu0 %822
      %824 = vrot.lane.b32.xlu0 %v610, 120
      %v825 = vpop.permute.xlu0 %824
      %826 = vrot.lane.b32.xlu0 %v615, 120
      %v827 = vpop.permute.xlu0 %826
      %v828 = vsel %vm618, %v821, 0
      %v830 = vsel %vm618, %v823, 0
      %v832 = vsel %vm618, %v825, 0
      %v834 = vsel %vm618, %v827, 0
      %836 = vmatprep.subr.mxu0 0.0
      %837 = vmatpush1.xpose.msra.mxu0 %v832
      %838 = vmatprep.subr.mxu0 0.0
      %839 = vmatpush1.xpose.msra.mxu0 %v834
      %840 = vmatprep.subr.mxu0 0.0
      %841 = vmatpush1.xpose.msra.mxu0 0.0
      %842 = vmatprep.subr.mxu0 0.0
      %843 = vmatpush1.xpose.msra.mxu0 0.0
      %844 = vmatprep.subr.mxu0 0.0
      %845 = vmatpush1.xpose.msra.mxu0 0.0
      %846 = vmatprep.subr.mxu0 0.0
      %847 = vmatpush1.xpose.msra.mxu0 0.0
      %848 = vmatprep.subr.mxu0 0.0
      %849 = vmatpush1.xpose.msra.mxu0 0.0
      %850 = vmatprep.subr.mxu0 0.0
      %851 = vmatpush1.xpose.msra.mxu0 0.0
      %852 = vmatprep.subr.mxu0 0.0
      %853 = vmatpush1.xpose.msra.mxu0 0.0
      %854 = vmatprep.subr.mxu0 0.0
      %855 = vmatpush1.xpose.msra.mxu0 0.0
      %856 = vmatprep.subr.mxu0 0.0
      %857 = vmatpush1.xpose.msra.mxu0 0.0
      %858 = vmatprep.subr.mxu0 0.0
      %859 = vmatpush1.xpose.msra.mxu0 0.0
      %860 = vmatprep.subr.mxu0 0.0
      %861 = vmatpush1.xpose.msra.mxu0 0.0
      %862 = vmatprep.subr.mxu0 0.0
      %863 = vmatpush1.xpose.msra.mxu0 0.0
      %864 = vmatprep.subr.mxu0 0.0
      %865 = vmatpush1.xpose.msra.mxu0 0.0
      %866 = vmatprep.subr.mxu0 0.0
      %867 = vmatpush1.xpose.msra.mxu0 0.0
      %868 = vmatprep.subr.mxu0 0.0
      %869 = vmatpush1.xpose.msra.mxu0 0.0
      %870 = vmatprep.subr.mxu0 0.0
      %871 = vmatpush1.xpose.msra.mxu0 0.0
      %872 = vmatprep.subr.mxu0 0.0
      %873 = vmatpush1.xpose.msra.mxu0 0.0
      %874 = vmatprep.subr.mxu0 0.0
      %875 = vmatpush1.xpose.msra.mxu0 0.0
      %876 = vmatprep.subr.mxu0 0.0
      %877 = vmatpush1.xpose.msra.mxu0 0.0
      %878 = vmatprep.subr.mxu0 0.0
      %879 = vmatpush1.xpose.msra.mxu0 0.0
      %880 = vmatprep.subr.mxu0 0.0
      %881 = vmatpush1.xpose.msra.mxu0 0.0
      %882 = vmatprep.subr.mxu0 0.0
      %883 = vmatpush1.xpose.msra.mxu0 0.0
      %884 = vmatprep.subr.mxu0 0.0
      %885 = vmatpush1.xpose.msra.mxu0 0.0
      %886 = vmatprep.subr.mxu0 0.0
      %887 = vmatpush1.xpose.msra.mxu0 0.0
      %888 = vmatprep.subr.mxu0 0.0
      %889 = vmatpush1.xpose.msra.mxu0 0.0
      %890 = vmatprep.subr.mxu0 0.0
      %891 = vmatpush1.xpose.msra.mxu0 0.0
      %892 = vmatprep.subr.mxu0 0.0
      %893 = vmatpush1.xpose.msra.mxu0 0.0
      %894 = vmatprep.subr.mxu0 0.0
      %895 = vmatpush1.xpose.msra.mxu0 0.0
      %896 = vmatprep.subr.mxu0 0.0
      %897 = vmatpush1.xpose.msra.mxu0 0.0
      %898 = vmatprep.subr.mxu0 0.0
      %899 = vmatpush1.xpose.msra.mxu0 0.0
      %900 = vmatprep.mubr.f32.mxu0 0.0
      %901 = vmatmul.mubr.f32.gmra.mrb[0].mxu0 %v828
      %v902 = vpop.f32.mrb[0].mxu0
      %v903 = vadd.f32 0.0, %v902
      %v904 = vpop.f32.mrb[0].mxu0
      %905 = vmatprep.mubr.f32.mxu0 0.0
      %906 = vmatmul.mubr.f32.gmra.mrb[0].mxu0 %v830
      %v907 = vpop.f32.mrb[0].mxu0
      %v908 = vadd.f32 0.0, %v907
      %v909 = vpop.f32.mrb[0].mxu0
      %910 = vdwg.mxu0
      %v911 = vmul.f32 %v903, 0.35355338
      %v912 = vmul.f32 %v908, 0.35355338
      %v913 = vadd.f32 %v911, %v431
      %v914 = vadd.f32 %v912, %v432
      %v915 = vsel %vm710, %v913, -inf
      %916 = vmax.xlane.f32.xlu0 %v915
      %v917 = vpop.xlane.xlu0 %916
      %v918 = vsel %vm710, %v914, -inf
      %919 = vmax.xlane.f32.xlu0 %v918
      %v920 = vpop.xlane.xlu0 %919
      %v921 = vsub.f32 %v913, %v917
      %v922 = vsub.f32 %v914, %v920
      %v923 = vmul.f32 %v921, 1.442695
      %v924 = vpow.pop %v923
      %v925 = vmul.f32 %v922, 1.442695
      %v926 = vpow.pop %v925
      %v927 = vsel %vm710, %v924, 0.0
      %928 = vadd.xlane.f32.xlu0 %v927
      %v929 = vpop.xlane.xlu0 %928
      %v930 = vsel %vm710, %v926, 0.0
      %931 = vadd.xlane.f32.xlu0 %v930
      %v932 = vpop.xlane.xlu0 %931
      %v933 = vrcp.pop %v929
      %v934 = vrcp.pop %v932
      %v935 = vmul.f32 %v924, %v933
      %v936 = vmul.f32 %v926, %v934
      %937 = vrot.lane.b32.xlu0 %v610, 88
      %v938 = vpop.permute.xlu0 %937
      %939 = vrot.lane.b32.xlu0 %v615, 88
      %v940 = vpop.permute.xlu0 %939
      %v944 = vsel %vm710, %v935, 0
      %v947 = vsel %vm710, %v936, 0
      %949 = vmatprep.subr.mxu0 0.0
      %950 = vmatpush1.msra.mxu0 %v938
      %951 = vmatprep.subr.mxu0 0.0
      %952 = vmatpush1.msra.mxu0 %v940
      %953 = vmatprep.subr.mxu0 0.0
      %954 = vmatpush1.msra.mxu0 0.0
      %955 = vmatprep.subr.mxu0 0.0
      %956 = vmatpush1.msra.mxu0 0.0
      %957 = vmatprep.subr.mxu0 0.0
      %958 = vmatpush1.msra.mxu0 0.0
      %959 = vmatprep.subr.mxu0 0.0
      %960 = vmatpush1.msra.mxu0 0.0
      %961 = vmatprep.subr.mxu0 0.0
      %962 = vmatpush1.msra.mxu0 0.0
      %963 = vmatprep.subr.mxu0 0.0
      %964 = vmatpush1.msra.mxu0 0.0
      %965 = vmatprep.subr.mxu0 0.0
      %966 = vmatpush1.msra.mxu0 0.0
      %967 = vmatprep.subr.mxu0 0.0
      %968 = vmatpush1.msra.mxu0 0.0
      %969 = vmatprep.subr.mxu0 0.0
      %970 = vmatpush1.msra.mxu0 0.0
      %971 = vmatprep.subr.mxu0 0.0
      %972 = vmatpush1.msra.mxu0 0.0
      %973 = vmatprep.subr.mxu0 0.0
      %974 = vmatpush1.msra.mxu0 0.0
      %975 = vmatprep.subr.mxu0 0.0
      %976 = vmatpush1.msra.mxu0 0.0
      %977 = vmatprep.subr.mxu0 0.0
      %978 = vmatpush1.msra.mxu0 0.0
      %979 = vmatprep.subr.mxu0 0.0
      %980 = vmatpush1.msra.mxu0 0.0
      %981 = vmatprep.subr.mxu0 0.0
      %982 = vmatpush1.msra.mxu0 0.0
      %983 = vmatprep.subr.mxu0 0.0
      %984 = vmatpush1.msra.mxu0 0.0
      %985 = vmatprep.subr.mxu0 0.0
      %986 = vmatpush1.msra.mxu0 0.0
      %987 = vmatprep.subr.mxu0 0.0
      %988 = vmatpush1.msra.mxu0 0.0
      %989 = vmatprep.subr.mxu0 0.0
      %990 = vmatpush1.msra.mxu0 0.0
      %991 = vmatprep.subr.mxu0 0.0
      %992 = vmatpush1.msra.mxu0 0.0
      %993 = vmatprep.subr.mxu0 0.0
      %994 = vmatpush1.msra.mxu0 0.0
      %995 = vmatprep.subr.mxu0 0.0
      %996 = vmatpush1.msra.mxu0 0.0
      %997 = vmatprep.subr.mxu0 0.0
      %998 = vmatpush1.msra.mxu0 0.0
      %999 = vmatprep.subr.mxu0 0.0
      %1000 = vmatpush1.msra.mxu0 0.0
      %1001 = vmatprep.subr.mxu0 0.0
      %1002 = vmatpush1.msra.mxu0 0.0
      %1003 = vmatprep.subr.mxu0 0.0
      %1004 = vmatpush1.msra.mxu0 0.0
      %1005 = vmatprep.subr.mxu0 0.0
      %1006 = vmatpush1.msra.mxu0 0.0
      %1007 = vmatprep.subr.mxu0 0.0
      %1008 = vmatpush1.msra.mxu0 0.0
      %1009 = vmatprep.subr.mxu0 0.0
      %1010 = vmatpush1.msra.mxu0 0.0
      %1011 = vmatprep.subr.mxu0 0.0
      %1012 = vmatpush1.msra.mxu0 0.0
      %1013 = vmatprep.mubr.f32.mxu0 0.0
      %1014 = vmatmul.mubr.f32.gmra.mrb[0].mxu0 %v944
      %v1015 = vpop.f32.mrb[0].mxu0
      %v1016 = vadd.f32 0.0, %v1015
      %v1017 = vpop.f32.mrb[0].mxu0
      %1018 = vmatprep.mubr.f32.mxu0 0.0
      %1019 = vmatmul.mubr.f32.gmra.mrb[0].mxu0 %v947
      %v1020 = vpop.f32.mrb[0].mxu0
      %v1021 = vadd.f32 0.0, %v1020
      %v1022 = vpop.f32.mrb[0].mxu0
      %1023 = vdwg.mxu0
      %1024 = vrot.lane.b32.xlu0 %v518, 112
      %v1025 = vpop.permute.xlu0 %1024
      %1026 = vrot.lane.b32.xlu0 %v523, 112
      %v1027 = vpop.permute.xlu0 %1026
      %1028 = vrot.lane.b32.xlu0 %v610, 112
      %v1029 = vpop.permute.xlu0 %1028
      %1030 = vrot.lane.b32.xlu0 %v615, 112
      %v1031 = vpop.permute.xlu0 %1030
      %v1032 = vsel %vm618, %v1025, 0
      %v1034 = vsel %vm618, %v1027, 0
      %v1036 = vsel %vm618, %v1029, 0
      %v1038 = vsel %vm618, %v1031, 0
      %1040 = vmatprep.subr.mxu0 0.0
      %1041 = vmatpush1.xpose.msra.mxu0 %v1036
      %1042 = vmatprep.subr.mxu0 0.0
      %1043 = vmatpush1.xpose.msra.mxu0 %v1038
      %1044 = vmatprep.subr.mxu0 0.0
      %1045 = vmatpush1.xpose.msra.mxu0 0.0
      %1046 = vmatprep.subr.mxu0 0.0
      %1047 = vmatpush1.xpose.msra.mxu0 0.0
      %1048 = vmatprep.subr.mxu0 0.0
      %1049 = vmatpush1.xpose.msra.mxu0 0.0
      %1050 = vmatprep.subr.mxu0 0.0
      %1051 = vmatpush1.xpose.msra.mxu0 0.0
      %1052 = vmatprep.subr.mxu0 0.0
      %1053 = vmatpush1.xpose.msra.mxu0 0.0
      %1054 = vmatprep.subr.mxu0 0.0
      %1055 = vmatpush1.xpose.msra.mxu0 0.0
      %1056 = vmatprep.subr.mxu0 0.0
      %1057 = vmatpush1.xpose.msra.mxu0 0.0
      %1058 = vmatprep.subr.mxu0 0.0
      %1059 = vmatpush1.xpose.msra.mxu0 0.0
      %1060 = vmatprep.subr.mxu0 0.0
      %1061 = vmatpush1.xpose.msra.mxu0 0.0
      %1062 = vmatprep.subr.mxu0 0.0
      %1063 = vmatpush1.xpose.msra.mxu0 0.0
      %1064 = vmatprep.subr.mxu0 0.0
      %1065 = vmatpush1.xpose.msra.mxu0 0.0
      %1066 = vmatprep.subr.mxu0 0.0
      %1067 = vmatpush1.xpose.msra.mxu0 0.0
      %1068 = vmatprep.subr.mxu0 0.0
      %1069 = vmatpush1.xpose.msra.mxu0 0.0
      %1070 = vmatprep.subr.mxu0 0.0
      %1071 = vmatpush1.xpose.msra.mxu0 0.0
      %1072 = vmatprep.subr.mxu0 0.0
      %1073 = vmatpush1.xpose.msra.mxu0 0.0
      %1074 = vmatprep.subr.mxu0 0.0
      %1075 = vmatpush1.xpose.msra.mxu0 0.0
      %1076 = vmatprep.subr.mxu0 0.0
      %1077 = vmatpush1.xpose.msra.mxu0 0.0
      %1078 = vmatprep.subr.mxu0 0.0
      %1079 = vmatpush1.xpose.msra.mxu0 0.0
      %1080 = vmatprep.subr.mxu0 0.0
      %1081 = vmatpush1.xpose.msra.mxu0 0.0
      %1082 = vmatprep.subr.mxu0 0.0
      %1083 = vmatpush1.xpose.msra.mxu0 0.0
      %1084 = vmatprep.subr.mxu0 0.0
      %1085 = vmatpush1.xpose.msra.mxu0 0.0
      %1086 = vmatprep.subr.mxu0 0.0
      %1087 = vmatpush1.xpose.msra.mxu0 0.0
      %1088 = vmatprep.subr.mxu0 0.0
      %1089 = vmatpush1.xpose.msra.mxu0 0.0
      %1090 = vmatprep.subr.mxu0 0.0
      %1091 = vmatpush1.xpose.msra.mxu0 0.0
      %1092 = vmatprep.subr.mxu0 0.0
      %1093 = vmatpush1.xpose.msra.mxu0 0.0
      %1094 = vmatprep.subr.mxu0 0.0
      %1095 = vmatpush1.xpose.msra.mxu0 0.0
      %1096 = vmatprep.subr.mxu0 0.0
      %1097 = vmatpush1.xpose.msra.mxu0 0.0
      %1098 = vmatprep.subr.mxu0 0.0
      %1099 = vmatpush1.xpose.msra.mxu0 0.0
      %1100 = vmatprep.subr.mxu0 0.0
      %1101 = vmatpush1.xpose.msra.mxu0 0.0
      %1102 = vmatprep.subr.mxu0 0.0
      %1103 = vmatpush1.xpose.msra.mxu0 0.0
      %1104 = vmatprep.mubr.f32.mxu0 0.0
      %1105 = vmatmul.mubr.f32.gmra.mrb[0].mxu0 %v1032
      %v1106 = vpop.f32.mrb[0].mxu0
      %v1107 = vadd.f32 0.0, %v1106
      %v1108 = vpop.f32.mrb[0].mxu0
      %1109 = vmatprep.mubr.f32.mxu0 0.0
      %1110 = vmatmul.mubr.f32.gmra.mrb[0].mxu0 %v1034
      %v1111 = vpop.f32.mrb[0].mxu0
      %v1112 = vadd.f32 0.0, %v1111
      %v1113 = vpop.f32.mrb[0].mxu0
      %1114 = vdwg.mxu0
      %v1115 = vmul.f32 %v1107, 0.35355338
      %v1116 = vmul.f32 %v1112, 0.35355338
      %v1117 = vadd.f32 %v1115, %v431
      %v1118 = vadd.f32 %v1116, %v432
      %v1119 = vsel %vm710, %v1117, -inf
      %1120 = vmax.xlane.f32.xlu0 %v1119
      %v1121 = vpop.xlane.xlu0 %1120
      %v1122 = vsel %vm710, %v1118, -inf
      %1123 = vmax.xlane.f32.xlu0 %v1122
      %v1124 = vpop.xlane.xlu0 %1123
      %v1125 = vsub.f32 %v1117, %v1121
      %v1126 = vsub.f32 %v1118, %v1124
      %v1127 = vmul.f32 %v1125, 1.442695
      %v1128 = vpow.pop %v1127
      %v1129 = vmul.f32 %v1126, 1.442695
      %v1130 = vpow.pop %v1129
      %v1131 = vsel %vm710, %v1128, 0.0
      %1132 = vadd.xlane.f32.xlu0 %v1131
      %v1133 = vpop.xlane.xlu0 %1132
      %v1134 = vsel %vm710, %v1130, 0.0
      %1135 = vadd.xlane.f32.xlu0 %v1134
      %v1136 = vpop.xlane.xlu0 %1135
      %v1137 = vrcp.pop %v1133
      %v1138 = vrcp.pop %v1136
      %v1139 = vmul.f32 %v1128, %v1137
      %v1140 = vmul.f32 %v1130, %v1138
      %1141 = vrot.lane.b32.xlu0 %v610, 80
      %v1142 = vpop.permute.xlu0 %1141
      %1143 = vrot.lane.b32.xlu0 %v615, 80
      %v1144 = vpop.permute.xlu0 %1143
      %v1148 = vsel %vm710, %v1139, 0
      %v1151 = vsel %vm710, %v1140, 0
      %1153 = vmatprep.subr.mxu0 0.0
      %1154 = vmatpush1.msra.mxu0 %v1142
      %1155 = vmatprep.subr.mxu0 0.0
      %1156 = vmatpush1.msra.mxu0 %v1144
      %1157 = vmatprep.subr.mxu0 0.0
      %1158 = vmatpush1.msra.mxu0 0.0
      %1159 = vmatprep.subr.mxu0 0.0
      %1160 = vmatpush1.msra.mxu0 0.0
      %1161 = vmatprep.subr.mxu0 0.0
      %1162 = vmatpush1.msra.mxu0 0.0
      %1163 = vmatprep.subr.mxu0 0.0
      %1164 = vmatpush1.msra.mxu0 0.0
      %1165 = vmatprep.subr.mxu0 0.0
      %1166 = vmatpush1.msra.mxu0 0.0
      %1167 = vmatprep.subr.mxu0 0.0
      %1168 = vmatpush1.msra.mxu0 0.0
      %1169 = vmatprep.subr.mxu0 0.0
      %1170 = vmatpush1.msra.mxu0 0.0
      %1171 = vmatprep.subr.mxu0 0.0
      %1172 = vmatpush1.msra.mxu0 0.0
      %1173 = vmatprep.subr.mxu0 0.0
      %1174 = vmatpush1.msra.mxu0 0.0
      %1175 = vmatprep.subr.mxu0 0.0
      %1176 = vmatpush1.msra.mxu0 0.0
      %1177 = vmatprep.subr.mxu0 0.0
      %1178 = vmatpush1.msra.mxu0 0.0
      %1179 = vmatprep.subr.mxu0 0.0
      %1180 = vmatpush1.msra.mxu0 0.0
      %1181 = vmatprep.subr.mxu0 0.0
      %1182 = vmatpush1.msra.mxu0 0.0
      %1183 = vmatprep.subr.mxu0 0.0
      %1184 = vmatpush1.msra.mxu0 0.0
      %1185 = vmatprep.subr.mxu0 0.0
      %1186 = vmatpush1.msra.mxu0 0.0
      %1187 = vmatprep.subr.mxu0 0.0
      %1188 = vmatpush1.msra.mxu0 0.0
      %1189 = vmatprep.subr.mxu0 0.0
      %1190 = vmatpush1.msra.mxu0 0.0
      %1191 = vmatprep.subr.mxu0 0.0
      %1192 = vmatpush1.msra.mxu0 0.0
      %1193 = vmatprep.subr.mxu0 0.0
      %1194 = vmatpush1.msra.mxu0 0.0
      %1195 = vmatprep.subr.mxu0 0.0
      %1196 = vmatpush1.msra.mxu0 0.0
      %1197 = vmatprep.subr.mxu0 0.0
      %1198 = vmatpush1.msra.mxu0 0.0
      %1199 = vmatprep.subr.mxu0 0.0
      %1200 = vmatpush1.msra.mxu0 0.0
      %1201 = vmatprep.subr.mxu0 0.0
      %1202 = vmatpush1.msra.mxu0 0.0
      %1203 = vmatprep.subr.mxu0 0.0
      %1204 = vmatpush1.msra.mxu0 0.0
      %1205 = vmatprep.subr.mxu0 0.0
      %1206 = vmatpush1.msra.mxu0 0.0
      %1207 = vmatprep.subr.mxu0 0.0
      %1208 = vmatpush1.msra.mxu0 0.0
      %1209 = vmatprep.subr.mxu0 0.0
      %1210 = vmatpush1.msra.mxu0 0.0
      %1211 = vmatprep.subr.mxu0 0.0
      %1212 = vmatpush1.msra.mxu0 0.0
      %1213 = vmatprep.subr.mxu0 0.0
      %1214 = vmatpush1.msra.mxu0 0.0
      %1215 = vmatprep.subr.mxu0 0.0
      %1216 = vmatpush1.msra.mxu0 0.0
      %1217 = vmatprep.mubr.f32.mxu0 0.0
      %1218 = vmatmul.mubr.f32.gmra.mrb[0].mxu0 %v1148
      %v1219 = vpop.f32.mrb[0].mxu0
      %v1220 = vadd.f32 0.0, %v1219
      %v1221 = vpop.f32.mrb[0].mxu0
      %1222 = vmatprep.mubr.f32.mxu0 0.0
      %1223 = vmatmul.mubr.f32.gmra.mrb[0].mxu0 %v1151
      %v1224 = vpop.f32.mrb[0].mxu0
      %v1225 = vadd.f32 0.0, %v1224
      %v1226 = vpop.f32.mrb[0].mxu0
      %1227 = vdwg.mxu0
      %1228 = vrot.lane.b32.xlu0 %v518, 104
      %v1229 = vpop.permute.xlu0 %1228
      %1230 = vrot.lane.b32.xlu0 %v523, 104
      %v1231 = vpop.permute.xlu0 %1230
      %1232 = vrot.lane.b32.xlu0 %v610, 104
      %v1233 = vpop.permute.xlu0 %1232
      %1234 = vrot.lane.b32.xlu0 %v615, 104
      %v1235 = vpop.permute.xlu0 %1234
      %v1236 = vsel %vm618, %v1229, 0
      %v1238 = vsel %vm618, %v1231, 0
      %v1240 = vsel %vm618, %v1233, 0
      %v1242 = vsel %vm618, %v1235, 0
      %1244 = vmatprep.subr.mxu0 0.0
      %1245 = vmatpush1.xpose.msra.mxu0 %v1240
      %1246 = vmatprep.subr.mxu0 0.0
      %1247 = vmatpush1.xpose.msra.mxu0 %v1242
      %1248 = vmatprep.subr.mxu0 0.0
      %1249 = vmatpush1.xpose.msra.mxu0 0.0
      %1250 = vmatprep.subr.mxu0 0.0
      %1251 = vmatpush1.xpose.msra.mxu0 0.0
      %1252 = vmatprep.subr.mxu0 0.0
      %1253 = vmatpush1.xpose.msra.mxu0 0.0
      %1254 = vmatprep.subr.mxu0 0.0
      %1255 = vmatpush1.xpose.msra.mxu0 0.0
      %1256 = vmatprep.subr.mxu0 0.0
      %1257 = vmatpush1.xpose.msra.mxu0 0.0
      %1258 = vmatprep.subr.mxu0 0.0
      %1259 = vmatpush1.xpose.msra.mxu0 0.0
      %1260 = vmatprep.subr.mxu0 0.0
      %1261 = vmatpush1.xpose.msra.mxu0 0.0
      %1262 = vmatprep.subr.mxu0 0.0
      %1263 = vmatpush1.xpose.msra.mxu0 0.0
      %1264 = vmatprep.subr.mxu0 0.0
      %1265 = vmatpush1.xpose.msra.mxu0 0.0
      %1266 = vmatprep.subr.mxu0 0.0
      %1267 = vmatpush1.xpose.msra.mxu0 0.0
      %1268 = vmatprep.subr.mxu0 0.0
      %1269 = vmatpush1.xpose.msra.mxu0 0.0
      %1270 = vmatprep.subr.mxu0 0.0
      %1271 = vmatpush1.xpose.msra.mxu0 0.0
      %1272 = vmatprep.subr.mxu0 0.0
      %1273 = vmatpush1.xpose.msra.mxu0 0.0
      %1274 = vmatprep.subr.mxu0 0.0
      %1275 = vmatpush1.xpose.msra.mxu0 0.0
      %1276 = vmatprep.subr.mxu0 0.0
      %1277 = vmatpush1.xpose.msra.mxu0 0.0
      %1278 = vmatprep.subr.mxu0 0.0
      %1279 = vmatpush1.xpose.msra.mxu0 0.0
      %1280 = vmatprep.subr.mxu0 0.0
      %1281 = vmatpush1.xpose.msra.mxu0 0.0
      %1282 = vmatprep.subr.mxu0 0.0
      %1283 = vmatpush1.xpose.msra.mxu0 0.0
      %1284 = vmatprep.subr.mxu0 0.0
      %1285 = vmatpush1.xpose.msra.mxu0 0.0
      %1286 = vmatprep.subr.mxu0 0.0
      %1287 = vmatpush1.xpose.msra.mxu0 0.0
      %1288 = vmatprep.subr.mxu0 0.0
      %1289 = vmatpush1.xpose.msra.mxu0 0.0
      %1290 = vmatprep.subr.mxu0 0.0
      %1291 = vmatpush1.xpose.msra.mxu0 0.0
      %1292 = vmatprep.subr.mxu0 0.0
      %1293 = vmatpush1.xpose.msra.mxu0 0.0
      %1294 = vmatprep.subr.mxu0 0.0
      %1295 = vmatpush1.xpose.msra.mxu0 0.0
      %1296 = vmatprep.subr.mxu0 0.0
      %1297 = vmatpush1.xpose.msra.mxu0 0.0
      %1298 = vmatprep.subr.mxu0 0.0
      %1299 = vmatpush1.xpose.msra.mxu0 0.0
      %1300 = vmatprep.subr.mxu0 0.0
      %1301 = vmatpush1.xpose.msra.mxu0 0.0
      %1302 = vmatprep.subr.mxu0 0.0
      %1303 = vmatpush1.xpose.msra.mxu0 0.0
      %1304 = vmatprep.subr.mxu0 0.0
      %1305 = vmatpush1.xpose.msra.mxu0 0.0
      %1306 = vmatprep.subr.mxu0 0.0
      %1307 = vmatpush1.xpose.msra.mxu0 0.0
      %1308 = vmatprep.mubr.f32.mxu0 0.0
      %1309 = vmatmul.mubr.f32.gmra.mrb[0].mxu0 %v1236
      %v1310 = vpop.f32.mrb[0].mxu0
      %v1311 = vadd.f32 0.0, %v1310
      %v1312 = vpop.f32.mrb[0].mxu0
      %1313 = vmatprep.mubr.f32.mxu0 0.0
      %1314 = vmatmul.mubr.f32.gmra.mrb[0].mxu0 %v1238
      %v1315 = vpop.f32.mrb[0].mxu0
      %v1316 = vadd.f32 0.0, %v1315
      %v1317 = vpop.f32.mrb[0].mxu0
      %1318 = vdwg.mxu0
      %v1319 = vmul.f32 %v1311, 0.35355338
      %v1320 = vmul.f32 %v1316, 0.35355338
      %v1321 = vadd.f32 %v1319, %v431
      %v1322 = vadd.f32 %v1320, %v432
      %v1323 = vsel %vm710, %v1321, -inf
      %1324 = vmax.xlane.f32.xlu0 %v1323
      %v1325 = vpop.xlane.xlu0 %1324
      %v1326 = vsel %vm710, %v1322, -inf
      %1327 = vmax.xlane.f32.xlu0 %v1326
      %v1328 = vpop.xlane.xlu0 %1327
      %v1329 = vsub.f32 %v1321, %v1325
      %v1330 = vsub.f32 %v1322, %v1328
      %v1331 = vmul.f32 %v1329, 1.442695
      %v1332 = vpow.pop %v1331
      %v1333 = vmul.f32 %v1330, 1.442695
      %v1334 = vpow.pop %v1333
      %v1335 = vsel %vm710, %v1332, 0.0
      %1336 = vadd.xlane.f32.xlu0 %v1335
      %v1337 = vpop.xlane.xlu0 %1336
      %v1338 = vsel %vm710, %v1334, 0.0
      %1339 = vadd.xlane.f32.xlu0 %v1338
      %v1340 = vpop.xlane.xlu0 %1339
      %v1341 = vrcp.pop %v1337
      %v1342 = vrcp.pop %v1340
      %v1343 = vmul.f32 %v1332, %v1341
      %v1344 = vmul.f32 %v1334, %v1342
      %1345 = vrot.lane.b32.xlu0 %v610, 72
      %v1346 = vpop.permute.xlu0 %1345
      %1347 = vrot.lane.b32.xlu0 %v615, 72
      %v1348 = vpop.permute.xlu0 %1347
      %v1352 = vsel %vm710, %v1343, 0
      %v1355 = vsel %vm710, %v1344, 0
      %1357 = vmatprep.subr.mxu0 0.0
      %1358 = vmatpush1.msra.mxu0 %v1346
      %1359 = vmatprep.subr.mxu0 0.0
      %1360 = vmatpush1.msra.mxu0 %v1348
      %1361 = vmatprep.subr.mxu0 0.0
      %1362 = vmatpush1.msra.mxu0 0.0
      %1363 = vmatprep.subr.mxu0 0.0
      %1364 = vmatpush1.msra.mxu0 0.0
      %1365 = vmatprep.subr.mxu0 0.0
      %1366 = vmatpush1.msra.mxu0 0.0
      %1367 = vmatprep.subr.mxu0 0.0
      %1368 = vmatpush1.msra.mxu0 0.0
      %1369 = vmatprep.subr.mxu0 0.0
      %1370 = vmatpush1.msra.mxu0 0.0
      %1371 = vmatprep.subr.mxu0 0.0
      %1372 = vmatpush1.msra.mxu0 0.0
      %1373 = vmatprep.subr.mxu0 0.0
      %1374 = vmatpush1.msra.mxu0 0.0
      %1375 = vmatprep.subr.mxu0 0.0
      %1376 = vmatpush1.msra.mxu0 0.0
      %1377 = vmatprep.subr.mxu0 0.0
      %1378 = vmatpush1.msra.mxu0 0.0
      %1379 = vmatprep.subr.mxu0 0.0
      %1380 = vmatpush1.msra.mxu0 0.0
      %1381 = vmatprep.subr.mxu0 0.0
      %1382 = vmatpush1.msra.mxu0 0.0
      %1383 = vmatprep.subr.mxu0 0.0
      %1384 = vmatpush1.msra.mxu0 0.0
      %1385 = vmatprep.subr.mxu0 0.0
      %1386 = vmatpush1.msra.mxu0 0.0
      %1387 = vmatprep.subr.mxu0 0.0
      %1388 = vmatpush1.msra.mxu0 0.0
      %1389 = vmatprep.subr.mxu0 0.0
      %1390 = vmatpush1.msra.mxu0 0.0
      %1391 = vmatprep.subr.mxu0 0.0
      %1392 = vmatpush1.msra.mxu0 0.0
      %1393 = vmatprep.subr.mxu0 0.0
      %1394 = vmatpush1.msra.mxu0 0.0
      %1395 = vmatprep.subr.mxu0 0.0
      %1396 = vmatpush1.msra.mxu0 0.0
      %1397 = vmatprep.subr.mxu0 0.0
      %1398 = vmatpush1.msra.mxu0 0.0
      %1399 = vmatprep.subr.mxu0 0.0
      %1400 = vmatpush1.msra.mxu0 0.0
      %1401 = vmatprep.subr.mxu0 0.0
      %1402 = vmatpush1.msra.mxu0 0.0
      %1403 = vmatprep.subr.mxu0 0.0
      %1404 = vmatpush1.msra.mxu0 0.0
      %1405 = vmatprep.subr.mxu0 0.0
      %1406 = vmatpush1.msra.mxu0 0.0
      %1407 = vmatprep.subr.mxu0 0.0
      %1408 = vmatpush1.msra.mxu0 0.0
      %1409 = vmatprep.subr.mxu0 0.0
      %1410 = vmatpush1.msra.mxu0 0.0
      %1411 = vmatprep.subr.mxu0 0.0
      %1412 = vmatpush1.msra.mxu0 0.0
      %1413 = vmatprep.subr.mxu0 0.0
      %1414 = vmatpush1.msra.mxu0 0.0
      %1415 = vmatprep.subr.mxu0 0.0
      %1416 = vmatpush1.msra.mxu0 0.0
      %1417 = vmatprep.subr.mxu0 0.0
      %1418 = vmatpush1.msra.mxu0 0.0
      %1419 = vmatprep.subr.mxu0 0.0
      %1420 = vmatpush1.msra.mxu0 0.0
      %1421 = vmatprep.mubr.f32.mxu0 0.0
      %1422 = vmatmul.mubr.f32.gmra.mrb[0].mxu0 %v1352
      %v1423 = vpop.f32.mrb[0].mxu0
      %v1424 = vadd.f32 0.0, %v1423
      %v1425 = vpop.f32.mrb[0].mxu0
      %1426 = vmatprep.mubr.f32.mxu0 0.0
      %1427 = vmatmul.mubr.f32.gmra.mrb[0].mxu0 %v1355
      %v1428 = vpop.f32.mrb[0].mxu0
      %v1429 = vadd.f32 0.0, %v1428
      %v1430 = vpop.f32.mrb[0].mxu0
      %1431 = vdwg.mxu0
      %1434 = vrot.lane.b32.xlu0 %v1016, 8
      %v1435 = vpop.permute.xlu0 %1434
      %1436 = vrot.lane.b32.xlu0 %v1021, 8
      %v1437 = vpop.permute.xlu0 %1436
      %1442 = vrot.lane.b32.xlu0 %v1220, 16
      %v1443 = vpop.permute.xlu0 %1442
      %1444 = vrot.lane.b32.xlu0 %v1225, 16
      %v1445 = vpop.permute.xlu0 %1444
      %1450 = vrot.lane.b32.xlu0 %v1424, 24
      %v1451 = vpop.permute.xlu0 %1450
      %1452 = vrot.lane.b32.xlu0 %v1429, 24
      %v1453 = vpop.permute.xlu0 %1452
      %v1456 = vsel %vm618, %v812, %v1435
      %v1457 = vsel %vm618, %v817, %v1437
      %v1458 = vsel %vm710, %v1456, %v1443
      %v1459 = vsel %vm710, %v1457, %v1445
      %vm1460 = vcmask 195584
      %v1461 = vsel %vm1460, %v1458, %v1451
      %v1462 = vsel %vm1460, %v1459, %v1453
      %v1463 = vld [vmem:[%s7] sm:$0xff]
      %v1464 = vld [vmem:[%s7 + $0x8] sm:$0xff]
      %v1465 = vld [vmem:[%s7 + $0x10] sm:$0xff]
      %v1466 = vld [vmem:[%s7 + $0x18] sm:$0xff]
      %v1467 = vld [vmem:[%s8] sm:$0x1]
      %v1469 = vlaneseq
      %v1470 = vshrl.u32 %v1469, 7
      %v1471 = vsub.s32 0, %v1470
      %v1472 = vrot.slane %v1467, %v1471
      %v1475 = vsel %vm444, %v1461, 0
      %v1478 = vsel %vm444, %v1462, 0
      %1480 = vmatprep.subr.mxu0 0.0
      %1481 = vmatpush1.msra.mxu0 %v1463
      %1482 = vmatprep.subr.mxu0 0.0
      %1483 = vmatpush1.msra.mxu0 %v1464
      %1484 = vmatprep.subr.mxu0 0.0
      %1485 = vmatpush1.msra.mxu0 %v1465
      %1486 = vmatprep.subr.mxu0 0.0
      %1487 = vmatpush1.msra.mxu0 %v1466
      %1488 = vmatprep.subr.mxu0 0.0
      %1489 = vmatpush1.msra.mxu0 0.0
      %1490 = vmatprep.subr.mxu0 0.0
      %1491 = vmatpush1.msra.mxu0 0.0
      %1492 = vmatprep.subr.mxu0 0.0
      %1493 = vmatpush1.msra.mxu0 0.0
      %1494 = vmatprep.subr.mxu0 0.0
      %1495 = vmatpush1.msra.mxu0 0.0
      %1496 = vmatprep.subr.mxu0 0.0
      %1497 = vmatpush1.msra.mxu0 0.0
      %1498 = vmatprep.subr.mxu0 0.0
      %1499 = vmatpush1.msra.mxu0 0.0
      %1500 = vmatprep.subr.mxu0 0.0
      %1501 = vmatpush1.msra.mxu0 0.0
      %1502 = vmatprep.subr.mxu0 0.0
      %1503 = vmatpush1.msra.mxu0 0.0
      %1504 = vmatprep.subr.mxu0 0.0
      %1505 = vmatpush1.msra.mxu0 0.0
      %1506 = vmatprep.subr.mxu0 0.0
      %1507 = vmatpush1.msra.mxu0 0.0
      %1508 = vmatprep.subr.mxu0 0.0
      %1509 = vmatpush1.msra.mxu0 0.0
      %1510 = vmatprep.subr.mxu0 0.0
      %1511 = vmatpush1.msra.mxu0 0.0
      %1512 = vmatprep.subr.mxu0 0.0
      %1513 = vmatpush1.msra.mxu0 0.0
      %1514 = vmatprep.subr.mxu0 0.0
      %1515 = vmatpush1.msra.mxu0 0.0
      %1516 = vmatprep.subr.mxu0 0.0
      %1517 = vmatpush1.msra.mxu0 0.0
      %1518 = vmatprep.subr.mxu0 0.0
      %1519 = vmatpush1.msra.mxu0 0.0
      %1520 = vmatprep.subr.mxu0 0.0
      %1521 = vmatpush1.msra.mxu0 0.0
      %1522 = vmatprep.subr.mxu0 0.0
      %1523 = vmatpush1.msra.mxu0 0.0
      %1524 = vmatprep.subr.mxu0 0.0
      %1525 = vmatpush1.msra.mxu0 0.0
      %1526 = vmatprep.subr.mxu0 0.0
      %1527 = vmatpush1.msra.mxu0 0.0
      %1528 = vmatprep.subr.mxu0 0.0
      %1529 = vmatpush1.msra.mxu0 0.0
      %1530 = vmatprep.subr.mxu0 0.0
      %1531 = vmatpush1.msra.mxu0 0.0
      %1532 = vmatprep.subr.mxu0 0.0
      %1533 = vmatpush1.msra.mxu0 0.0
      %1534 = vmatprep.subr.mxu0 0.0
      %1535 = vmatpush1.msra.mxu0 0.0
      %1536 = vmatprep.subr.mxu0 0.0
      %1537 = vmatpush1.msra.mxu0 0.0
      %1538 = vmatprep.subr.mxu0 0.0
      %1539 = vmatpush1.msra.mxu0 0.0
      %1540 = vmatprep.subr.mxu0 0.0
      %1541 = vmatpush1.msra.mxu0 0.0
      %1542 = vmatprep.subr.mxu0 0.0
      %1543 = vmatpush1.msra.mxu0 0.0
      %1544 = vmatprep.mubr.f32.mxu0 0.0
      %1545 = vmatmul.mubr.f32.gmra.mrb[0].mxu0 %v1475
      %v1546 = vpop.f32.mrb[0].mxu0
      %v1547 = vadd.f32 %v1472, %v1546
      %v1548 = vpop.f32.mrb[0].mxu0
      %1549 = vmatprep.mubr.f32.mxu0 0.0
      %1550 = vmatmul.mubr.f32.gmra.mrb[0].mxu0 %v1478
      %v1551 = vpop.f32.mrb[0].mxu0
      %v1552 = vadd.f32 %v1472, %v1551
      %v1553 = vpop.f32.mrb[0].mxu0
      %1554 = vdwg.mxu0
      %v1555 = vadd.f32 %v1547, %v427
      %v1556 = vadd.f32 %v1552, %v428
      %v1557 = vsel %vm444, %v1555, 0.0
      %1558 = vadd.xlane.f32.xlu0 %v1557
      %v1559 = vpop.xlane.xlu0 %1558
      %v1560 = vsel %vm444, %v1556, 0.0
      %1561 = vadd.xlane.f32.xlu0 %v1560
      %v1562 = vpop.xlane.xlu0 %1561
      %v1563 = vrcp.pop 32.0
      %v1564 = vmul.f32 %v1559, %v1563
      %v1565 = vmul.f32 %v1562, %v1563
      %v1566 = vsub.f32 %v1555, %v1564
      %v1567 = vsub.f32 %v1556, %v1565
      %v1568 = vmul.f32 %v1566, %v1566
      %v1569 = vmul.f32 %v1567, %v1567
      %v1570 = vsel %vm444, %v1568, 0.0
      %1571 = vadd.xlane.f32.xlu0 %v1570
      %v1572 = vpop.xlane.xlu0 %1571
      %v1573 = vsel %vm444, %v1569, 0.0
      %1574 = vadd.xlane.f32.xlu0 %v1573
      %v1575 = vpop.xlane.xlu0 %1574
      %v1576 = vmul.f32 %v1572, %v1563
      %v1577 = vmul.f32 %v1575, %v1563
      %v1578 = vadd.f32 %v1576, 1e-12
      %v1579 = vadd.f32 %v1577, 1e-12
      %v1580 = vrsqrt.pop %v1578
      %v1581 = vrsqrt.pop %v1579
      %v1582 = vmul.f32 %v1566, %v1580
      %v1583 = vmul.f32 %v1567, %v1581
      %v1584 = vld [vmem:[%s9] sm:$0x1]
      %v1586 = vlaneseq
      %v1587 = vshrl.u32 %v1586, 7
      %v1588 = vsub.s32 0, %v1587
      %v1589 = vrot.slane %v1584, %v1588
      %v1591 = vmul.f32 %v1582, %v1589
      %v1592 = vmul.f32 %v1583, %v1589
      %v1593 = vld [vmem:[%s10] sm:$0x1]
      %v1595 = vlaneseq
      %v1596 = vshrl.u32 %v1595, 7
      %v1597 = vsub.s32 0, %v1596
      %v1598 = vrot.slane %v1593, %v1597
      %v1600 = vadd.f32 %v1591, %v1598
      %v1601 = vadd.f32 %v1592, %v1598
      %1602 = vst.msk [vmem:[%s426] sm:$0xff] %vm444, %v1600
      %1603 = vst.msk [vmem:[%s426 + $0x8] sm:$0xff] %vm444, %v1601
      %p1604 = scmp.lt.s32.totalorder %s22, 1
      %s1605 = scalar_select %p1604, %s22, 1
      %s1606 = smul.addr %s1605, 2
      %s1607 = smul.addr %s1606, 8
      %s1608 = scalar_lea.vmem %s11, %s1607
      // Predicated region
      $region65: #{bert_abs_sum_forward.14} parent=63 // pred_check
        %p1609 = pneg %p286
      $region66: #{bert_abs_sum_forward.14} parent=63 // pred_check_branch
        %1611 = sbr.rel (%p1609) target = $region68
      $region67: #{bert_abs_sum_forward.14} parent=63 // pred_region
        _
      $region68: #{bert_abs_sum_forward.14} parent=63 // pred_fallthru
        _
    $region64: #{bert_abs_sum_forward.14} parent=5 // pred_fallthru
      _
    %p1612 = scmp.le.s32.totalorder 2, %s17
    // Predicated region
    $region69: #{bert_abs_sum_forward.14} parent=5 // pred_check
      %p1613 = pneg %p1612
    $region70: #{bert_abs_sum_forward.14} parent=5 // pred_check_branch
      %1615 = sbr.rel (%p1613) target = $region72
    $region71: #{bert_abs_sum_forward.14} parent=5 // pred_region
      %s1616 = ssub.s32 %s17, 2
      // Predicated region
      $region73: #{bert_abs_sum_forward.14} parent=71 // pred_check
        %p1617 = pneg %p292
      $region74: #{bert_abs_sum_forward.14} parent=71 // pred_check_branch
        %1619 = sbr.rel (%p1617) target = $region76
      $region75: #{bert_abs_sum_forward.14} parent=71 // pred_region
        %p1620 = scmp.lt.s32.totalorder %s23, 1
        %s1621 = scalar_select %p1620, %s23, 1
        %s1622 = smul.addr %s1621, 2
        %s1623 = smul.addr %s1622, 8
        %s1624 = scalar_lea.vmem %s11, %s1623
      $region76: #{bert_abs_sum_forward.14} parent=71 // pred_fallthru
        _
    $region72: #{bert_abs_sum_forward.14} parent=5 // pred_fallthru
      _
  $region6: #{bert_abs_sum_forward.14} parent=0 // loop_footer
    %s21 = sadd.s32 1, %s17
  $region7: #{bert_abs_sum_forward.14} parent=0 // loop_footer_branch
    %16 = sbr.rel target = $region3
  $region8: #{bert_abs_sum_forward.14} parent=0 // loop_exit
    _

// kernel: bert_abs_sum_forward.15
$region0: #{bert_abs_sum_forward.15}
  #allocation0 [shape = 'u32[]', space=smem, size = 0x4, offset = 0x4, fixed_abs, tag = 'smem constant byte address 0x4 - core index']
  #allocation1 [shape = 'u32[144,128]{1,0:T(1,128)}', space=vmem, size = 0x12000, scoped, tag = 'internal scratch']
  %s0 = inlined_call_operand.vmem [shape: f32[32,32], index: 0, kind: input, shape index: {}]
  %s1 = inlined_call_operand.vmem [shape: f32[32,64], index: 1, kind: input, shape index: {}]
  %s2 = inlined_call_operand.vmem [shape: f32[1,64], index: 2, kind: input, shape index: {}]
  %s3 = inlined_call_operand.vmem [shape: f32[64,32], index: 3, kind: input, shape index: {}]
  %s4 = inlined_call_operand.vmem [shape: f32[1,32], index: 4, kind: input, shape index: {}]
  %s5 = inlined_call_operand.vmem [shape: f32[1,32], index: 5, kind: input, shape index: {}]
  %s6 = inlined_call_operand.vmem [shape: f32[1,32], index: 6, kind: input, shape index: {}]
  %s7 = inlined_call_operand.vmem [shape: f32[32,32], index: 7, kind: output, shape index: {}]
  %s8 = sld [smem:[#allocation0]]
  $region38: #{bert_abs_sum_forward.15} parent=0
    _
  %s10 = ssub.s32 1, %s8
  %s11 = scalar_select 0, %s10, %s8
  // Predicated region
  $region2: #{bert_abs_sum_forward.15} parent=0 // pred_check
    _
  $region3: #{bert_abs_sum_forward.15} parent=0 // pred_check_branch
    %13 = sbr.rel (0) target = $region5
  $region4: #{bert_abs_sum_forward.15} parent=0 // pred_region
    _
  $region5: #{bert_abs_sum_forward.15} parent=0 // pred_fallthru
    _
  // Predicated region
  $region6: #{bert_abs_sum_forward.15} parent=0 // pred_check
    _
  $region7: #{bert_abs_sum_forward.15} parent=0 // pred_check_branch
    %15 = sbr.rel (0) target = $region9
  $region8: #{bert_abs_sum_forward.15} parent=0 // pred_region
    _
  $region9: #{bert_abs_sum_forward.15} parent=0 // pred_fallthru
    _
  // Predicated region
  $region10: #{bert_abs_sum_forward.15} parent=0 // pred_check
    _
  $region11: #{bert_abs_sum_forward.15} parent=0 // pred_check_branch
    %17 = sbr.rel (0) target = $region13
  $region12: #{bert_abs_sum_forward.15} parent=0 // pred_region
    _
  $region13: #{bert_abs_sum_forward.15} parent=0 // pred_fallthru
    _
  // Predicated region
  $region14: #{bert_abs_sum_forward.15} parent=0 // pred_check
    _
  $region15: #{bert_abs_sum_forward.15} parent=0 // pred_check_branch
    %19 = sbr.rel (0) target = $region17
  $region16: #{bert_abs_sum_forward.15} parent=0 // pred_region
    _
  $region17: #{bert_abs_sum_forward.15} parent=0 // pred_fallthru
    _
  // Predicated region
  $region18: #{bert_abs_sum_forward.15} parent=0 // pred_check
    _
  $region19: #{bert_abs_sum_forward.15} parent=0 // pred_check_branch
    %21 = sbr.rel (0) target = $region21
  $region20: #{bert_abs_sum_forward.15} parent=0 // pred_region
    _
  $region21: #{bert_abs_sum_forward.15} parent=0 // pred_fallthru
    _
  // Predicated region
  $region22: #{bert_abs_sum_forward.15} parent=0 // pred_check
    _
  $region23: #{bert_abs_sum_forward.15} parent=0 // pred_check_branch
    %23 = sbr.rel (0) target = $region25
  $region24: #{bert_abs_sum_forward.15} parent=0 // pred_region
    _
  $region25: #{bert_abs_sum_forward.15} parent=0 // pred_fallthru
    _
  // Predicated region
  $region26: #{bert_abs_sum_forward.15} parent=0 // pred_check
    _
  $region27: #{bert_abs_sum_forward.15} parent=0 // pred_check_branch
    %25 = sbr.rel (0) target = $region29
  $region28: #{bert_abs_sum_forward.15} parent=0 // pred_region
    _
  $region29: #{bert_abs_sum_forward.15} parent=0 // pred_fallthru
    _
  %v26 = vld [vmem:[%s0] sm:$0xff]
  %v27 = vld [vmem:[%s0 + $0x8] sm:$0xff]
  %v28 = vld [vmem:[%s0 + $0x10] sm:$0xff]
  %v29 = vld [vmem:[%s0 + $0x18] sm:$0xff]
  %v30 = vld [vmem:[%s1] sm:$0xff]
  %v31 = vld [vmem:[%s1 + $0x8] sm:$0xff]
  %v32 = vld [vmem:[%s1 + $0x10] sm:$0xff]
  %v33 = vld [vmem:[%s1 + $0x18] sm:$0xff]
  %v34 = vld [vmem:[%s2] sm:$0x1]
  %v36 = vlaneseq
  %v37 = vshrl.u32 %v36, 7
  %v38 = vsub.s32 0, %v37
  %v39 = vrot.slane %v34, %v38
  %vm41 = vcmask 261120
  %v43 = vsel %vm41, %v26, 0
  %v46 = vsel %vm41, %v27, 0
  %v49 = vsel %vm41, %v28, 0
  %v52 = vsel %vm41, %v29, 0
  %54 = vmatprep.subr.mxu0 0.0
  %55 = vmatpush1.msra.mxu0 %v30
  %56 = vmatprep.subr.mxu0 0.0
  %57 = vmatpush1.msra.mxu0 %v31
  %58 = vmatprep.subr.mxu0 0.0
  %59 = vmatpush1.msra.mxu0 %v32
  %60 = vmatprep.subr.mxu0 0.0
  %61 = vmatpush1.msra.mxu0 %v33
  %62 = vmatprep.subr.mxu0 0.0
  %63 = vmatpush1.msra.mxu0 0.0
  %64 = vmatprep.subr.mxu0 0.0
  %65 = vmatpush1.msra.mxu0 0.0
  %66 = vmatprep.subr.mxu0 0.0
  %67 = vmatpush1.msra.mxu0 0.0
  %68 = vmatprep.subr.mxu0 0.0
  %69 = vmatpush1.msra.mxu0 0.0
  %70 = vmatprep.subr.mxu0 0.0
  %71 = vmatpush1.msra.mxu0 0.0
  %72 = vmatprep.subr.mxu0 0.0
  %73 = vmatpush1.msra.mxu0 0.0
  %74 = vmatprep.subr.mxu0 0.0
  %75 = vmatpush1.msra.mxu0 0.0
  %76 = vmatprep.subr.mxu0 0.0
  %77 = vmatpush1.msra.mxu0 0.0
  %78 = vmatprep.subr.mxu0 0.0
  %79 = vmatpush1.msra.mxu0 0.0
  %80 = vmatprep.subr.mxu0 0.0
  %81 = vmatpush1.msra.mxu0 0.0
  %82 = vmatprep.subr.mxu0 0.0
  %83 = vmatpush1.msra.mxu0 0.0
  %84 = vmatprep.subr.mxu0 0.0
  %85 = vmatpush1.msra.mxu0 0.0
  %86 = vmatprep.subr.mxu0 0.0
  %87 = vmatpush1.msra.mxu0 0.0
  %88 = vmatprep.subr.mxu0 0.0
  %89 = vmatpush1.msra.mxu0 0.0
  %90 = vmatprep.subr.mxu0 0.0
  %91 = vmatpush1.msra.mxu0 0.0
  %92 = vmatprep.subr.mxu0 0.0
  %93 = vmatpush1.msra.mxu0 0.0
  %94 = vmatprep.subr.mxu0 0.0
  %95 = vmatpush1.msra.mxu0 0.0
  %96 = vmatprep.subr.mxu0 0.0
  %97 = vmatpush1.msra.mxu0 0.0
  %98 = vmatprep.subr.mxu0 0.0
  %99 = vmatpush1.msra.mxu0 0.0
  %100 = vmatprep.subr.mxu0 0.0
  %101 = vmatpush1.msra.mxu0 0.0
  %102 = vmatprep.subr.mxu0 0.0
  %103 = vmatpush1.msra.mxu0 0.0
  %104 = vmatprep.subr.mxu0 0.0
  %105 = vmatpush1.msra.mxu0 0.0
  %106 = vmatprep.subr.mxu0 0.0
  %107 = vmatpush1.msra.mxu0 0.0
  %108 = vmatprep.subr.mxu0 0.0
  %109 = vmatpush1.msra.mxu0 0.0
  %110 = vmatprep.subr.mxu0 0.0
  %111 = vmatpush1.msra.mxu0 0.0
  %112 = vmatprep.subr.mxu0 0.0
  %113 = vmatpush1.msra.mxu0 0.0
  %114 = vmatprep.subr.mxu0 0.0
  %115 = vmatpush1.msra.mxu0 0.0
  %116 = vmatprep.subr.mxu0 0.0
  %117 = vmatpush1.msra.mxu0 0.0
  %118 = vmatprep.mubr.f32.mxu0 0.0
  %119 = vmatmul.mubr.f32.gmra.mrb[0].mxu0 %v43
  %v120 = vpop.f32.mrb[0].mxu0
  %v121 = vadd.f32 %v39, %v120
  %v122 = vpop.f32.mrb[0].mxu0
  %123 = vmatprep.mubr.f32.mxu0 0.0
  %124 = vmatmul.mubr.f32.gmra.mrb[0].mxu0 %v46
  %v125 = vpop.f32.mrb[0].mxu0
  %v126 = vadd.f32 %v39, %v125
  %v127 = vpop.f32.mrb[0].mxu0
  %128 = vmatprep.mubr.f32.mxu0 0.0
  %129 = vmatmul.mubr.f32.gmra.mrb[0].mxu0 %v49
  %v130 = vpop.f32.mrb[0].mxu0
  %v131 = vadd.f32 %v39, %v130
  %v132 = vpop.f32.mrb[0].mxu0
  %133 = vmatprep.mubr.f32.mxu0 0.0
  %134 = vmatmul.mubr.f32.gmra.mrb[0].mxu0 %v52
  %v135 = vpop.f32.mrb[0].mxu0
  %v136 = vadd.f32 %v39, %v135
  %v137 = vpop.f32.mrb[0].mxu0
  %138 = vdwg.mxu0
  %v139 = vmul.f32 %v121, 0.5
  %v140 = vmul.f32 %v126, 0.5
  %v141 = vmul.f32 %v131, 0.5
  %v142 = vmul.f32 %v136, 0.5
  %v143 = vmul.f32 %v121, 0.044715
  %v144 = vmul.f32 %v126, 0.044715
  %v145 = vmul.f32 %v131, 0.044715
  %v146 = vmul.f32 %v136, 0.044715
  %v147 = vmul.f32 %v143, %v121
  %v148 = vmul.f32 %v144, %v126
  %v149 = vmul.f32 %v145, %v131
  %v150 = vmul.f32 %v146, %v136
  %v151 = vmul.f32 %v147, %v121
  %v152 = vmul.f32 %v148, %v126
  %v153 = vmul.f32 %v149, %v131
  %v154 = vmul.f32 %v150, %v136
  %v155 = vadd.f32 %v121, %v151
  %v156 = vadd.f32 %v126, %v152
  %v157 = vadd.f32 %v131, %v153
  %v158 = vadd.f32 %v136, %v154
  %v159 = vmul.f32 %v155, 0.7978846
  %v160 = vmul.f32 %v156, 0.7978846
  %v161 = vmul.f32 %v157, 0.7978846
  %v162 = vmul.f32 %v158, 0.7978846
  %v163 = vtanh.pop %v159
  %v164 = vtanh.pop %v160
  %v165 = vtanh.pop %v161
  %v166 = vtanh.pop %v162
  %v167 = vadd.f32 %v163, 1.0
  %v168 = vadd.f32 %v164, 1.0
  %v169 = vadd.f32 %v165, 1.0
  %v170 = vadd.f32 %v166, 1.0
  %v171 = vmul.f32 %v139, %v167
  %v172 = vmul.f32 %v140, %v168
  %v173 = vmul.f32 %v141, %v169
  %v174 = vmul.f32 %v142, %v170
  %v175 = vld [vmem:[%s3] sm:$0xff]
  %v176 = vld [vmem:[%s3 + $0x8] sm:$0xff]
  %v177 = vld [vmem:[%s3 + $0x10] sm:$0xff]
  %v178 = vld [vmem:[%s3 + $0x18] sm:$0xff]
  %v179 = vld [vmem:[%s3 + $0x20] sm:$0xff]
  %v180 = vld [vmem:[%s3 + $0x28] sm:$0xff]
  %v181 = vld [vmem:[%s3 + $0x30] sm:$0xff]
  %v182 = vld [vmem:[%s3 + $0x38] sm:$0xff]
  %v183 = vld [vmem:[%s4] sm:$0x1]
  %v185 = vlaneseq
  %v186 = vshrl.u32 %v185, 7
  %v187 = vsub.s32 0, %v186
  %v188 = vrot.slane %v183, %v187
  %vm190 = vcmask 523264
  %v192 = vsel %vm190, %v171, 0
  %v195 = vsel %vm190, %v172, 0
  %v198 = vsel %vm190, %v173, 0
  %v201 = vsel %vm190, %v174, 0
  %203 = vmatprep.subr.mxu0 0.0
  %204 = vmatpush1.msra.mxu0 %v175
  %205 = vmatprep.subr.mxu0 0.0
  %206 = vmatpush1.msra.mxu0 %v176
  %207 = vmatprep.subr.mxu0 0.0
  %208 = vmatpush1.msra.mxu0 %v177
  %209 = vmatprep.subr.mxu0 0.0
  %210 = vmatpush1.msra.mxu0 %v178
  %211 = vmatprep.subr.mxu0 0.0
  %212 = vmatpush1.msra.mxu0 %v179
  %213 = vmatprep.subr.mxu0 0.0
  %214 = vmatpush1.msra.mxu0 %v180
  %215 = vmatprep.subr.mxu0 0.0
  %216 = vmatpush1.msra.mxu0 %v181
  %217 = vmatprep.subr.mxu0 0.0
  %218 = vmatpush1.msra.mxu0 %v182
  %219 = vmatprep.subr.mxu0 0.0
  %220 = vmatpush1.msra.mxu0 0.0
  %221 = vmatprep.subr.mxu0 0.0
  %222 = vmatpush1.msra.mxu0 0.0
  %223 = vmatprep.subr.mxu0 0.0
  %224 = vmatpush1.msra.mxu0 0.0
  %225 = vmatprep.subr.mxu0 0.0
  %226 = vmatpush1.msra.mxu0 0.0
  %227 = vmatprep.subr.mxu0 0.0
  %228 = vmatpush1.msra.mxu0 0.0
  %229 = vmatprep.subr.mxu0 0.0
  %230 = vmatpush1.msra.mxu0 0.0
  %231 = vmatprep.subr.mxu0 0.0
  %232 = vmatpush1.msra.mxu0 0.0
  %233 = vmatprep.subr.mxu0 0.0
  %234 = vmatpush1.msra.mxu0 0.0
  %235 = vmatprep.subr.mxu0 0.0
  %236 = vmatpush1.msra.mxu0 0.0
  %237 = vmatprep.subr.mxu0 0.0
  %238 = vmatpush1.msra.mxu0 0.0
  %239 = vmatprep.subr.mxu0 0.0
  %240 = vmatpush1.msra.mxu0 0.0
  %241 = vmatprep.subr.mxu0 0.0
  %242 = vmatpush1.msra.mxu0 0.0
  %243 = vmatprep.subr.mxu0 0.0
  %244 = vmatpush1.msra.mxu0 0.0
  %245 = vmatprep.subr.mxu0 0.0
  %246 = vmatpush1.msra.mxu0 0.0
  %247 = vmatprep.subr.mxu0 0.0
  %248 = vmatpush1.msra.mxu0 0.0
  %249 = vmatprep.subr.mxu0 0.0
  %250 = vmatpush1.msra.mxu0 0.0
  %251 = vmatprep.subr.mxu0 0.0
  %252 = vmatpush1.msra.mxu0 0.0
  %253 = vmatprep.subr.mxu0 0.0
  %254 = vmatpush1.msra.mxu0 0.0
  %255 = vmatprep.subr.mxu0 0.0
  %256 = vmatpush1.msra.mxu0 0.0
  %257 = vmatprep.subr.mxu0 0.0
  %258 = vmatpush1.msra.mxu0 0.0
  %259 = vmatprep.subr.mxu0 0.0
  %260 = vmatpush1.msra.mxu0 0.0
  %261 = vmatprep.subr.mxu0 0.0
  %262 = vmatpush1.msra.mxu0 0.0
  %263 = vmatprep.subr.mxu0 0.0
  %264 = vmatpush1.msra.mxu0 0.0
  %265 = vmatprep.subr.mxu0 0.0
  %266 = vmatpush1.msra.mxu0 0.0
  %267 = vmatprep.mubr.f32.mxu0 0.0
  %268 = vmatmul.mubr.f32.gmra.mrb[0].mxu0 %v192
  %v269 = vpop.f32.mrb[0].mxu0
  %v270 = vadd.f32 %v188, %v269
  %v271 = vpop.f32.mrb[0].mxu0
  %272 = vmatprep.mubr.f32.mxu0 0.0
  %273 = vmatmul.mubr.f32.gmra.mrb[0].mxu0 %v195
  %v274 = vpop.f32.mrb[0].mxu0
  %v275 = vadd.f32 %v188, %v274
  %v276 = vpop.f32.mrb[0].mxu0
  %277 = vmatprep.mubr.f32.mxu0 0.0
  %278 = vmatmul.mubr.f32.gmra.mrb[0].mxu0 %v198
  %v279 = vpop.f32.mrb[0].mxu0
  %v280 = vadd.f32 %v188, %v279
  %v281 = vpop.f32.mrb[0].mxu0
  %282 = vmatprep.mubr.f32.mxu0 0.0
  %283 = vmatmul.mubr.f32.gmra.mrb[0].mxu0 %v201
  %v284 = vpop.f32.mrb[0].mxu0
  %v285 = vadd.f32 %v188, %v284
  %v286 = vpop.f32.mrb[0].mxu0
  %287 = vdwg.mxu0
  %v288 = vadd.f32 %v270, %v26
  %v289 = vadd.f32 %v275, %v27
  %v290 = vadd.f32 %v280, %v28
  %v291 = vadd.f32 %v285, %v29
  %v292 = vsel %vm41, %v288, 0.0
  %293 = vadd.xlane.f32.xlu0 %v292
  %v294 = vpop.xlane.xlu0 %293
  %v295 = vsel %vm41, %v289, 0.0
  %296 = vadd.xlane.f32.xlu0 %v295
  %v297 = vpop.xlane.xlu0 %296
  %v298 = vsel %vm41, %v290, 0.0
  %299 = vadd.xlane.f32.xlu0 %v298
  %v300 = vpop.xlane.xlu0 %299
  %v301 = vsel %vm41, %v291, 0.0
  %302 = vadd.xlane.f32.xlu0 %v301
  %v303 = vpop.xlane.xlu0 %302
  %v304 = vrcp.pop 32.0
  %v305 = vmul.f32 %v294, %v304
  %v306 = vmul.f32 %v297, %v304
  %v307 = vmul.f32 %v300, %v304
  %v308 = vmul.f32 %v303, %v304
  %v309 = vsub.f32 %v288, %v305
  %v310 = vsub.f32 %v289, %v306
  %v311 = vsub.f32 %v290, %v307
  %v312 = vsub.f32 %v291, %v308
  %v313 = vmul.f32 %v309, %v309
  %v314 = vmul.f32 %v310, %v310
  %v315 = vmul.f32 %v311, %v311
  %v316 = vmul.f32 %v312, %v312
  %v317 = vsel %vm41, %v313, 0.0
  %318 = vadd.xlane.f32.xlu0 %v317
  %v319 = vpop.xlane.xlu0 %318
  %v320 = vsel %vm41, %v314, 0.0
  %321 = vadd.xlane.f32.xlu0 %v320
  %v322 = vpop.xlane.xlu0 %321
  %v323 = vsel %vm41, %v315, 0.0
  %324 = vadd.xlane.f32.xlu0 %v323
  %v325 = vpop.xlane.xlu0 %324
  %v326 = vsel %vm41, %v316, 0.0
  %327 = vadd.xlane.f32.xlu0 %v326
  %v328 = vpop.xlane.xlu0 %327
  %v329 = vmul.f32 %v319, %v304
  %v330 = vmul.f32 %v322, %v304
  %v331 = vmul.f32 %v325, %v304
  %v332 = vmul.f32 %v328, %v304
  %v333 = vadd.f32 %v329, 1e-12
  %v334 = vadd.f32 %v330, 1e-12
  %v335 = vadd.f32 %v331, 1e-12
  %v336 = vadd.f32 %v332, 1e-12
  %v337 = vrsqrt.pop %v333
  %v338 = vrsqrt.pop %v334
  %v339 = vrsqrt.pop %v335
  %v340 = vrsqrt.pop %v336
  %v341 = vmul.f32 %v309, %v337
  %v342 = vmul.f32 %v310, %v338
  %v343 = vmul.f32 %v311, %v339
  %v344 = vmul.f32 %v312, %v340
  %v345 = vld [vmem:[%s5] sm:$0x1]
  %v347 = vlaneseq
  %v348 = vshrl.u32 %v347, 7
  %v349 = vsub.s32 0, %v348
  %v350 = vrot.slane %v345, %v349
  %v352 = vmul.f32 %v341, %v350
  %v353 = vmul.f32 %v342, %v350
  %v354 = vmul.f32 %v343, %v350
  %v355 = vmul.f32 %v344, %v350
  %v356 = vld [vmem:[%s6] sm:$0x1]
  %v358 = vlaneseq
  %v359 = vshrl.u32 %v358, 7
  %v360 = vsub.s32 0, %v359
  %v361 = vrot.slane %v356, %v360
  %v363 = vadd.f32 %v352, %v361
  %v364 = vadd.f32 %v353, %v361
  %v365 = vadd.f32 %v354, %v361
  %v366 = vadd.f32 %v355, %v361
  %367 = vst.msk [vmem:[%s7] sm:$0xff] %vm41, %v363
  %368 = vst.msk [vmem:[%s7 + $0x8] sm:$0xff] %vm41, %v364
  %369 = vst.msk [vmem:[%s7 + $0x10] sm:$0xff] %vm41, %v365
  %370 = vst.msk [vmem:[%s7 + $0x18] sm:$0xff] %vm41, %v366
  // Predicated region
  $region30: #{bert_abs_sum_forward.15} parent=0 // pred_check
    _
  $region31: #{bert_abs_sum_forward.15} parent=0 // pred_check_branch
    %372 = sbr.rel (0) target = $region33
  $region32: #{bert_abs_sum_forward.15} parent=0 // pred_region
    _
  $region33: #{bert_abs_sum_forward.15} parent=0 // pred_fallthru
    _
  // Predicated region
  $region34: #{bert_abs_sum_forward.15} parent=0 // pred_check
    _
  $region35: #{bert_abs_sum_forward.15} parent=0 // pred_check_branch
    %374 = sbr.rel (0) target = $region37
  $region36: #{bert_abs_sum_forward.15} parent=0 // pred_region
    _
  $region37: #{bert_abs_sum_forward.15} parent=0 // pred_fallthru
    _

// kernel: bert_abs_sum_forward.20
$region0: #{bert_abs_sum_forward.20}
  #allocation0 [shape = 'u32[]', space=smem, size = 0x4, offset = 0x4, fixed_abs, tag = 'smem constant byte address 0x4 - core index']
  #allocation1 [shape = 'u32[144,128]{1,0:T(1,128)}', space=vmem, size = 0x12000, scoped, tag = 'internal scratch']
  %s0 = inlined_call_operand.vmem [shape: f32[2,8,32], index: 0, kind: input, shape index: {}]
  %s1 = inlined_call_operand.vmem [shape: f32[2,16,32], index: 1, kind: input, shape index: {}]
  %s2 = inlined_call_operand.vmem [shape: f32[2,8,16], index: 2, kind: input, shape index: {}]
  %s3 = inlined_call_operand.vmem [shape: f32[32,32], index: 3, kind: input, shape index: {}]
  %s4 = inlined_call_operand.vmem [shape: f32[1,32], index: 4, kind: input, shape index: {}]
  %s5 = inlined_call_operand.vmem [shape: f32[32,64], index: 5, kind: input, shape index: {}]
  %s6 = inlined_call_operand.vmem [shape: f32[1,64], index: 6, kind: input, shape index: {}]
  %s7 = inlined_call_operand.vmem [shape: f32[32,32], index: 7, kind: input, shape index: {}]
  %s8 = inlined_call_operand.vmem [shape: f32[1,32], index: 8, kind: input, shape index: {}]
  %s9 = inlined_call_operand.vmem [shape: f32[1,32], index: 9, kind: input, shape index: {}]
  %s10 = inlined_call_operand.vmem [shape: f32[1,32], index: 10, kind: input, shape index: {}]
  %s11 = inlined_call_operand.vmem [shape: f32[2,8,32], index: 11, kind: output, shape index: {}]
  %s12 = sld [smem:[#allocation0]]
  $region77: #{bert_abs_sum_forward.20} parent=0
    _
  %s14 = ssub.s32 1, %s12
  %s15 = scalar_select 0, %s14, %s12
  loop: start=0, step=1, limit=4
  $region2: #{bert_abs_sum_forward.20} parent=0 // loop_pre_header
    _
  $region3: #{bert_abs_sum_forward.20} parent=0 // loop_header
    %s17 = sphi 0, %s21
    %p18 = scmp.ge.s32.totalorder %s17, 4
    %s27 = sphi 0, %s29
    %s30 = sphi 0, %s27
    %s31 = sphi 0, %s30
    %s47 = sphi 0, %s31
    %s53 = sphi 0, %s55
    %s56 = sphi 0, %s53
    %s57 = sphi 0, %s56
    %s73 = sphi 0, %s57
    %s79 = sphi 0, %s81
    %s82 = sphi 0, %s79
    %s83 = sphi 0, %s82
    %s99 = sphi 0, %s83
    %s103 = sphi 0, %s103
    %s105 = sphi 0, %s103
    %s106 = sphi 0, %s105
    %s120 = sphi 0, %s106
    %s124 = sphi 0, %s124
    %s126 = sphi 0, %s124
    %s127 = sphi 0, %s126
    %s141 = sphi 0, %s127
    %s145 = sphi 0, %s145
    %s147 = sphi 0, %s145
    %s148 = sphi 0, %s147
    %s162 = sphi 0, %s148
    %s166 = sphi 0, %s166
    %s168 = sphi 0, %s166
    %s169 = sphi 0, %s168
    %s183 = sphi 0, %s169
    %s187 = sphi 0, %s187
    %s189 = sphi 0, %s187
    %s190 = sphi 0, %s189
    %s204 = sphi 0, %s190
    %s208 = sphi 0, %s208
    %s210 = sphi 0, %s208
    %s211 = sphi 0, %s210
    %s225 = sphi 0, %s211
    %s229 = sphi 0, %s229
    %s231 = sphi 0, %s229
    %s232 = sphi 0, %s231
    %s246 = sphi 0, %s232
    %s250 = sphi 0, %s250
    %s252 = sphi 0, %s250
    %s253 = sphi 0, %s252
    %s267 = sphi 0, %s253
    %s273 = sphi 0, %s275
    %s276 = sphi 0, %s273
    %s277 = sphi 0, %s276
    %s293 = sphi 0, %s277
  $region4: #{bert_abs_sum_forward.20} parent=0 // loop_header_branch
    %20 = sbr.rel (%p18) target = $region8
  $region5: #{bert_abs_sum_forward.20} parent=0 // loop_body
    %s22 = ssub.s32 %s17, 1
    %s23 = ssub.s32 %s17, 2
    %s24 = sadd.s32 %s17, 1
    %s25 = ssub.s32 %s17, %s24
    %p26 = scmp.eq.s32.totalorder %s25, 0
    %s28 = sadd.s32 %s27, 1
    %s29 = scalar_select %p26, %s27, %s28
    %p32 = pneg %p26
    %p33 = scmp.eq.s32.totalorder %s17, 1
    %p34 = por %p32, %p33
    %p35 = scmp.ne.s32.totalorder %s27, %s30
    %p36 = scmp.eq.s32.totalorder %s17, 0
    %p37 = por %p35, %p36
    %p38 = scmp.ne.s32.totalorder %s27, %s30
    %p39 = scmp.eq.s32.totalorder %s22, 1
    %p40 = por %p38, %p39
    %p41 = scmp.ne.s32.totalorder %s30, %s31
    %p42 = scmp.eq.s32.totalorder %s22, 0
    %p43 = por %p41, %p42
    %p44 = scmp.ne.s32.totalorder %s30, %s31
    %p45 = scmp.eq.s32.totalorder %s23, 1
    %p46 = por %p44, %p45
    %p48 = scmp.ne.s32.totalorder %s31, %s47
    %p49 = scmp.eq.s32.totalorder %s23, 0
    %p50 = por %p48, %p49
    %s51 = ssub.s32 %s17, %s24
    %p52 = scmp.eq.s32.totalorder %s51, 0
    %s54 = sadd.s32 %s53, 1
    %s55 = scalar_select %p52, %s53, %s54
    %p58 = pneg %p52
    %p59 = scmp.eq.s32.totalorder %s17, 1
    %p60 = por %p58, %p59
    %p61 = scmp.ne.s32.totalorder %s53, %s56
    %p62 = scmp.eq.s32.totalorder %s17, 0
    %p63 = por %p61, %p62
    %p64 = scmp.ne.s32.totalorder %s53, %s56
    %p65 = scmp.eq.s32.totalorder %s22, 1
    %p66 = por %p64, %p65
    %p67 = scmp.ne.s32.totalorder %s56, %s57
    %p68 = scmp.eq.s32.totalorder %s22, 0
    %p69 = por %p67, %p68
    %p70 = scmp.ne.s32.totalorder %s56, %s57
    %p71 = scmp.eq.s32.totalorder %s23, 1
    %p72 = por %p70, %p71
    %p74 = scmp.ne.s32.totalorder %s57, %s73
    %p75 = scmp.eq.s32.totalorder %s23, 0
    %p76 = por %p74, %p75
    %s77 = ssub.s32 %s17, %s24
    %p78 = scmp.eq.s32.totalorder %s77, 0
    %s80 = sadd.s32 %s79, 1
    %s81 = scalar_select %p78, %s79, %s80
    %p84 = pneg %p78
    %p85 = scmp.eq.s32.totalorder %s17, 1
    %p86 = por %p84, %p85
    %p87 = scmp.ne.s32.totalorder %s79, %s82
    %p88 = scmp.eq.s32.totalorder %s17, 0
    %p89 = por %p87, %p88
    %p90 = scmp.ne.s32.totalorder %s79, %s82
    %p91 = scmp.eq.s32.totalorder %s22, 1
    %p92 = por %p90, %p91
    %p93 = scmp.ne.s32.totalorder %s82, %s83
    %p94 = scmp.eq.s32.totalorder %s22, 0
    %p95 = por %p93, %p94
    %p96 = scmp.ne.s32.totalorder %s82, %s83
    %p97 = scmp.eq.s32.totalorder %s23, 1
    %p98 = por %p96, %p97
    %p100 = scmp.ne.s32.totalorder %s83, %s99
    %p101 = scmp.eq.s32.totalorder %s23, 0
    %p102 = por %p100, %p101
    %s104 = sadd.s32 %s103, 1
    %p107 = scmp.eq.s32.totalorder %s17, 1
    %p108 = scmp.ne.s32.totalorder %s103, %s105
    %p109 = scmp.eq.s32.totalorder %s17, 0
    %p110 = por %p108, %p109
    %p111 = scmp.ne.s32.totalorder %s103, %s105
    %p112 = scmp.eq.s32.totalorder %s22, 1
    %p113 = por %p111, %p112
    %p114 = scmp.ne.s32.totalorder %s105, %s106
    %p115 = scmp.eq.s32.totalorder %s22, 0
    %p116 = por %p114, %p115
    %p117 = scmp.ne.s32.totalorder %s105, %s106
    %p118 = scmp.eq.s32.totalorder %s23, 1
    %p119 = por %p117, %p118
    %p121 = scmp.ne.s32.totalorder %s106, %s120
    %p122 = scmp.eq.s32.totalorder %s23, 0
    %p123 = por %p121, %p122
    %s125 = sadd.s32 %s124, 1
    %p128 = scmp.eq.s32.totalorder %s17, 1
    %p129 = scmp.ne.s32.totalorder %s124, %s126
    %p130 = scmp.eq.s32.totalorder %s17, 0
    %p131 = por %p129, %p130
    %p132 = scmp.ne.s32.totalorder %s124, %s126
    %p133 = scmp.eq.s32.totalorder %s22, 1
    %p134 = por %p132, %p133
    %p135 = scmp.ne.s32.totalorder %s126, %s127
    %p136 = scmp.eq.s32.totalorder %s22, 0
    %p137 = por %p135, %p136
    %p138 = scmp.ne.s32.totalorder %s126, %s127
    %p139 = scmp.eq.s32.totalorder %s23, 1
    %p140 = por %p138, %p139
    %p142 = scmp.ne.s32.totalorder %s127, %s141
    %p143 = scmp.eq.s32.totalorder %s23, 0
    %p144 = por %p142, %p143
    %s146 = sadd.s32 %s145, 1
    %p149 = scmp.eq.s32.totalorder %s17, 1
    %p150 = scmp.ne.s32.totalorder %s145, %s147
    %p151 = scmp.eq.s32.totalorder %s17, 0
    %p152 = por %p150, %p151
    %p153 = scmp.ne.s32.totalorder %s145, %s147
    %p154 = scmp.eq.s32.totalorder %s22, 1
    %p155 = por %p153, %p154
    %p156 = scmp.ne.s32.totalorder %s147, %s148
    %p157 = scmp.eq.s32.totalorder %s22, 0
    %p158 = por %p156, %p157
    %p159 = scmp.ne.s32.totalorder %s147, %s148
    %p160 = scmp.eq.s32.totalorder %s23, 1
    %p161 = por %p159, %p160
    %p163 = scmp.ne.s32.totalorder %s148, %s162
    %p164 = scmp.eq.s32.totalorder %s23, 0
    %p165 = por %p163, %p164
    %s167 = sadd.s32 %s166, 1
    %p170 = scmp.eq.s32.totalorder %s17, 1
    %p171 = scmp.ne.s32.totalorder %s166, %s168
    %p172 = scmp.eq.s32.totalorder %s17, 0
    %p173 = por %p171, %p172
    %p174 = scmp.ne.s32.totalorder %s166, %s168
    %p175 = scmp.eq.s32.totalorder %s22, 1
    %p176 = por %p174, %p175
    %p177 = scmp.ne.s32.totalorder %s168, %s169
    %p178 = scmp.eq.s32.totalorder %s22, 0
    %p179 = por %p177, %p178
    %p180 = scmp.ne.s32.totalorder %s168, %s169
    %p181 = scmp.eq.s32.totalorder %s23, 1
    %p182 = por %p180, %p181
    %p184 = scmp.ne.s32.totalorder %s169, %s183
    %p185 = scmp.eq.s32.totalorder %s23, 0
    %p186 = por %p184, %p185
    %s188 = sadd.s32 %s187, 1
    %p191 = scmp.eq.s32.totalorder %s17, 1
    %p192 = scmp.ne.s32.totalorder %s187, %s189
    %p193 = scmp.eq.s32.totalorder %s17, 0
    %p194 = por %p192, %p193
    %p195 = scmp.ne.s32.totalorder %s187, %s189
    %p196 = scmp.eq.s32.totalorder %s22, 1
    %p197 = por %p195, %p196
    %p198 = scmp.ne.s32.totalorder %s189, %s190
    %p199 = scmp.eq.s32.totalorder %s22, 0
    %p200 = por %p198, %p199
    %p201 = scmp.ne.s32.totalorder %s189, %s190
    %p202 = scmp.eq.s32.totalorder %s23, 1
    %p203 = por %p201, %p202
    %p205 = scmp.ne.s32.totalorder %s190, %s204
    %p206 = scmp.eq.s32.totalorder %s23, 0
    %p207 = por %p205, %p206
    %s209 = sadd.s32 %s208, 1
    %p212 = scmp.eq.s32.totalorder %s17, 1
    %p213 = scmp.ne.s32.totalorder %s208, %s210
    %p214 = scmp.eq.s32.totalorder %s17, 0
    %p215 = por %p213, %p214
    %p216 = scmp.ne.s32.totalorder %s208, %s210
    %p217 = scmp.eq.s32.totalorder %s22, 1
    %p218 = por %p216, %p217
    %p219 = scmp.ne.s32.totalorder %s210, %s211
    %p220 = scmp.eq.s32.totalorder %s22, 0
    %p221 = por %p219, %p220
    %p222 = scmp.ne.s32.totalorder %s210, %s211
    %p223 = scmp.eq.s32.totalorder %s23, 1
    %p224 = por %p222, %p223
    %p226 = scmp.ne.s32.totalorder %s211, %s225
    %p227 = scmp.eq.s32.totalorder %s23, 0
    %p228 = por %p226, %p227
    %s230 = sadd.s32 %s229, 1
    %p233 = scmp.eq.s32.totalorder %s17, 1
    %p234 = scmp.ne.s32.totalorder %s229, %s231
    %p235 = scmp.eq.s32.totalorder %s17, 0
    %p236 = por %p234, %p235
    %p237 = scmp.ne.s32.totalorder %s229, %s231
    %p238 = scmp.eq.s32.totalorder %s22, 1
    %p239 = por %p237, %p238
    %p240 = scmp.ne.s32.totalorder %s231, %s232
    %p241 = scmp.eq.s32.totalorder %s22, 0
    %p242 = por %p240, %p241
    %p243 = scmp.ne.s32.totalorder %s231, %s232
    %p244 = scmp.eq.s32.totalorder %s23, 1
    %p245 = por %p243, %p244
    %p247 = scmp.ne.s32.totalorder %s232, %s246
    %p248 = scmp.eq.s32.totalorder %s23, 0
    %p249 = por %p247, %p248
    %s251 = sadd.s32 %s250, 1
    %p254 = scmp.eq.s32.totalorder %s17, 1
    %p255 = scmp.ne.s32.totalorder %s250, %s252
    %p256 = scmp.eq.s32.totalorder %s17, 0
    %p257 = por %p255, %p256
    %p258 = scmp.ne.s32.totalorder %s250, %s252
    %p259 = scmp.eq.s32.totalorder %s22, 1
    %p260 = por %p258, %p259
    %p261 = scmp.ne.s32.totalorder %s252, %s253
    %p262 = scmp.eq.s32.totalorder %s22, 0
    %p263 = por %p261, %p262
    %p264 = scmp.ne.s32.totalorder %s252, %s253
    %p265 = scmp.eq.s32.totalorder %s23, 1
    %p266 = por %p264, %p265
    %p268 = scmp.ne.s32.totalorder %s253, %s267
    %p269 = scmp.eq.s32.totalorder %s23, 0
    %p270 = por %p268, %p269
    %s271 = ssub.s32 %s17, %s24
    %p272 = scmp.eq.s32.totalorder %s271, 0
    %s274 = sadd.s32 %s273, 1
    %s275 = scalar_select %p272, %s273, %s274
    %p278 = pneg %p272
    %p279 = scmp.eq.s32.totalorder %s17, 1
    %p280 = por %p278, %p279
    %p281 = scmp.ne.s32.totalorder %s273, %s276
    %p282 = scmp.eq.s32.totalorder %s17, 0
    %p283 = por %p281, %p282
    %p284 = scmp.ne.s32.totalorder %s273, %s276
    %p285 = scmp.eq.s32.totalorder %s22, 1
    %p286 = por %p284, %p285
    %p287 = scmp.ne.s32.totalorder %s276, %s277
    %p288 = scmp.eq.s32.totalorder %s22, 0
    %p289 = por %p287, %p288
    %p290 = scmp.ne.s32.totalorder %s276, %s277
    %p291 = scmp.eq.s32.totalorder %s23, 1
    %p292 = por %p290, %p291
    %p294 = scmp.ne.s32.totalorder %s277, %s293
    %p295 = scmp.eq.s32.totalorder %s23, 0
    %p296 = por %p294, %p295
    %p297 = scmp.le.s32.totalorder 1, %s17
    %p298 = scmp.lt.s32.totalorder %s17, 3
    %p299 = pnand %p297, %p298
    %p300 = pneg %p299
    // Predicated region
    $region9: #{bert_abs_sum_forward.20} parent=5 // pred_check
      _
    $region10: #{bert_abs_sum_forward.20} parent=5 // pred_check_branch
      %302 = sbr.rel (%p299) target = $region12
    $region11: #{bert_abs_sum_forward.20} parent=5 // pred_region
      %s303 = ssub.s32 %s17, 1
      // Predicated region
      $region13: #{bert_abs_sum_forward.20} parent=11 // pred_check
        %p304 = pneg %p116
      $region14: #{bert_abs_sum_forward.20} parent=11 // pred_check_branch
        %306 = sbr.rel (%p304) target = $region16
      $region15: #{bert_abs_sum_forward.20} parent=11 // pred_region
        _
      $region16: #{bert_abs_sum_forward.20} parent=11 // pred_fallthru
        _
      // Predicated region
      $region17: #{bert_abs_sum_forward.20} parent=11 // pred_check
        %p307 = pneg %p137
      $region18: #{bert_abs_sum_forward.20} parent=11 // pred_check_branch
        %309 = sbr.rel (%p307) target = $region20
      $region19: #{bert_abs_sum_forward.20} parent=11 // pred_region
        _
      $region20: #{bert_abs_sum_forward.20} parent=11 // pred_fallthru
        _
      // Predicated region
      $region21: #{bert_abs_sum_forward.20} parent=11 // pred_check
        %p310 = pneg %p158
      $region22: #{bert_abs_sum_forward.20} parent=11 // pred_check_branch
        %312 = sbr.rel (%p310) target = $region24
      $region23: #{bert_abs_sum_forward.20} parent=11 // pred_region
        _
      $region24: #{bert_abs_sum_forward.20} parent=11 // pred_fallthru
        _
      // Predicated region
      $region25: #{bert_abs_sum_forward.20} parent=11 // pred_check
        %p313 = pneg %p179
      $region26: #{bert_abs_sum_forward.20} parent=11 // pred_check_branch
        %315 = sbr.rel (%p313) target = $region28
      $region27: #{bert_abs_sum_forward.20} parent=11 // pred_region
        _
      $region28: #{bert_abs_sum_forward.20} parent=11 // pred_fallthru
        _
      // Predicated region
      $region29: #{bert_abs_sum_forward.20} parent=11 // pred_check
        %p316 = pneg %p200
      $region30: #{bert_abs_sum_forward.20} parent=11 // pred_check_branch
        %318 = sbr.rel (%p316) target = $region32
      $region31: #{bert_abs_sum_forward.20} parent=11 // pred_region
        _
      $region32: #{bert_abs_sum_forward.20} parent=11 // pred_fallthru
        _
      // Predicated region
      $region33: #{bert_abs_sum_forward.20} parent=11 // pred_check
        %p319 = pneg %p221
      $region34: #{bert_abs_sum_forward.20} parent=11 // pred_check_branch
        %321 = sbr.rel (%p319) target = $region36
      $region35: #{bert_abs_sum_forward.20} parent=11 // pred_region
        _
      $region36: #{bert_abs_sum_forward.20} parent=11 // pred_fallthru
        _
      // Predicated region
      $region37: #{bert_abs_sum_forward.20} parent=11 // pred_check
        %p322 = pneg %p242
      $region38: #{bert_abs_sum_forward.20} parent=11 // pred_check_branch
        %324 = sbr.rel (%p322) target = $region40
      $region39: #{bert_abs_sum_forward.20} parent=11 // pred_region
        _
      $region40: #{bert_abs_sum_forward.20} parent=11 // pred_fallthru
        _
      // Predicated region
      $region41: #{bert_abs_sum_forward.20} parent=11 // pred_check
        %p325 = pneg %p263
      $region42: #{bert_abs_sum_forward.20} parent=11 // pred_check_branch
        %327 = sbr.rel (%p325) target = $region44
      $region43: #{bert_abs_sum_forward.20} parent=11 // pred_region
        _
      $region44: #{bert_abs_sum_forward.20} parent=11 // pred_fallthru
        _
    $region12: #{bert_abs_sum_forward.20} parent=5 // pred_fallthru
      _
    %p328 = scmp.lt.s32.totalorder %s17, 2
    // Predicated region
    $region45: #{bert_abs_sum_forward.20} parent=5 // pred_check
      %p329 = pneg %p328
    $region46: #{bert_abs_sum_forward.20} parent=5 // pred_check_branch
      %331 = sbr.rel (%p329) target = $region48
    $region47: #{bert_abs_sum_forward.20} parent=5 // pred_region
      // Predicated region
      $region49: #{bert_abs_sum_forward.20} parent=47 // pred_check
        %p332 = pneg %p37
      $region50: #{bert_abs_sum_forward.20} parent=47 // pred_check_branch
        %334 = sbr.rel (%p332) target = $region52
      $region51: #{bert_abs_sum_forward.20} parent=47 // pred_region
        %p335 = scmp.lt.s32.totalorder %s17, 1
        %s336 = scalar_select %p335, %s17, 1
        %s337 = smul.addr %s336, 8
        %s338 = scalar_lea.vmem %s0, %s337
      $region52: #{bert_abs_sum_forward.20} parent=47 // pred_fallthru
        _
      // Predicated region
      $region53: #{bert_abs_sum_forward.20} parent=47 // pred_check
        %p339 = pneg %p63
      $region54: #{bert_abs_sum_forward.20} parent=47 // pred_check_branch
        %341 = sbr.rel (%p339) target = $region56
      $region55: #{bert_abs_sum_forward.20} parent=47 // pred_region
        %p342 = scmp.lt.s32.totalorder %s17, 1
        %s343 = scalar_select %p342, %s17, 1
        %s344 = smul.addr %s343, 2
        %s345 = smul.addr %s344, 8
        %s346 = scalar_lea.vmem %s1, %s345
      $region56: #{bert_abs_sum_forward.20} parent=47 // pred_fallthru
        _
      // Predicated region
      $region57: #{bert_abs_sum_forward.20} parent=47 // pred_check
        %p347 = pneg %p89
      $region58: #{bert_abs_sum_forward.20} parent=47 // pred_check_branch
        %349 = sbr.rel (%p347) target = $region60
      $region59: #{bert_abs_sum_forward.20} parent=47 // pred_region
        %p350 = scmp.lt.s32.totalorder %s17, 1
        %s351 = scalar_select %p350, %s17, 1
        %s352 = smul.addr %s351, 8
        %s353 = scalar_lea.vmem %s2, %s352
      $region60: #{bert_abs_sum_forward.20} parent=47 // pred_fallthru
        _
    $region48: #{bert_abs_sum_forward.20} parent=5 // pred_fallthru
      _
    %p354 = scmp.le.s32.totalorder 1, %s17
    %p355 = scmp.lt.s32.totalorder %s17, 3
    %p356 = pnand %p354, %p355
    %p357 = pneg %p356
    // Predicated region
    $region61: #{bert_abs_sum_forward.20} parent=5 // pred_check
      _
    $region62: #{bert_abs_sum_forward.20} parent=5 // pred_check_branch
      %359 = sbr.rel (%p356) target = $region64
    $region63: #{bert_abs_sum_forward.20} parent=5 // pred_region
      %s360 = ssub.s32 %s17, 1
      %p361 = scmp.lt.s32.totalorder %s22, 1
      %s362 = scalar_select %p361, %s22, 1
      %s363 = smul.addr %s362, 8
      %s364 = scalar_lea.vmem %s0, %s363
      %p365 = pneg %p43
      %p366 = pneg %p40
      %p367 = scmp.lt.s32.totalorder %s22, 1
      %s368 = scalar_select %p367, %s22, 1
      %s369 = smul.addr %s368, 2
      %s370 = smul.addr %s369, 8
      %s371 = scalar_lea.vmem %s1, %s370
      %p372 = pneg %p69
      %p373 = pneg %p66
      %p374 = scmp.lt.s32.totalorder %s22, 1
      %s375 = scalar_select %p374, %s22, 1
      %s376 = smul.addr %s375, 8
      %s377 = scalar_lea.vmem %s2, %s376
      %p378 = pneg %p95
      %p379 = pneg %p92
      %p380 = pneg %p116
      %p381 = pneg %p113
      %p382 = pneg %p137
      %p383 = pneg %p134
      %p384 = pneg %p158
      %p385 = pneg %p155
      %p386 = pneg %p179
      %p387 = pneg %p176
      %p388 = pneg %p200
      %p389 = pneg %p197
      %p390 = pneg %p221
      %p391 = pneg %p218
      %p392 = pneg %p242
      %p393 = pneg %p239
      %p394 = pneg %p263
      %p395 = pneg %p260
      %p396 = pneg %p289
      %p397 = pneg %p286
      %p398 = scmp.lt.s32.totalorder %s22, 1
      %s399 = scalar_select %p398, %s22, 1
      %s400 = smul.addr %s399, 8
      %s401 = scalar_lea.vmem %s11, %s400
      %p402 = scmp.lt.s32.totalorder %s22, 1
      %s403 = scalar_select %p402, %s22, 1
      %s404 = smul.addr %s403, 8
      %s405 = scalar_lea.vmem %s0, %s404
      %p406 = scmp.lt.s32.totalorder %s22, 1
      %s407 = scalar_select %p406, %s22, 1
      %s408 = smul.addr %s407, 2
      %s409 = smul.addr %s408, 8
      %s410 = scalar_lea.vmem %s1, %s409
      %p411 = scmp.lt.s32.totalorder %s22, 1
      %s412 = scalar_select %p411, %s22, 1
      %s413 = smul.addr %s412, 8
      %s414 = scalar_lea.vmem %s2, %s413
      %p415 = scmp.lt.s32.totalorder %s22, 1
      %s416 = scalar_select %p415, %s22, 1
      %s417 = smul.addr %s416, 8
      %s418 = scalar_lea.vmem %s11, %s417
      %v419 = vld [vmem:[%s405] sm:$0xff]
      %v420 = vld [vmem:[%s410] sm:$0xff]
      %v421 = vld [vmem:[%s410 + $0x8] sm:$0xff]
      %v422 = vld [vmem:[%s414] sm:$0xff]
      %v423 = vld [vmem:[%s3] sm:$0xff]
      %v424 = vld [vmem:[%s3 + $0x8] sm:$0xff]
      %v425 = vld [vmem:[%s3 + $0x10] sm:$0xff]
      %v426 = vld [vmem:[%s3 + $0x18] sm:$0xff]
      %v427 = vld [vmem:[%s4] sm:$0x1]
      %v429 = vlaneseq
      %v430 = vshrl.u32 %v429, 7
      %v431 = vsub.s32 0, %v430
      %v432 = vrot.slane %v427, %v431
      %vm434 = vcmask 261120
      %v436 = vsel %vm434, %v419, 0
      %438 = vmatprep.subr.mxu0 0.0
      %439 = vmatpush1.msra.mxu0 %v423
      %440 = vmatprep.subr.mxu0 0.0
      %441 = vmatpush1.msra.mxu0 %v424
      %442 = vmatprep.subr.mxu0 0.0
      %443 = vmatpush1.msra.mxu0 %v425
      %444 = vmatprep.subr.mxu0 0.0
      %445 = vmatpush1.msra.mxu0 %v426
      %446 = vmatprep.subr.mxu0 0.0
      %447 = vmatpush1.msra.mxu0 0.0
      %448 = vmatprep.subr.mxu0 0.0
      %449 = vmatpush1.msra.mxu0 0.0
      %450 = vmatprep.subr.mxu0 0.0
      %451 = vmatpush1.msra.mxu0 0.0
      %452 = vmatprep.subr.mxu0 0.0
      %453 = vmatpush1.msra.mxu0 0.0
      %454 = vmatprep.subr.mxu0 0.0
      %455 = vmatpush1.msra.mxu0 0.0
      %456 = vmatprep.subr.mxu0 0.0
      %457 = vmatpush1.msra.mxu0 0.0
      %458 = vmatprep.subr.mxu0 0.0
      %459 = vmatpush1.msra.mxu0 0.0
      %460 = vmatprep.subr.mxu0 0.0
      %461 = vmatpush1.msra.mxu0 0.0
      %462 = vmatprep.subr.mxu0 0.0
      %463 = vmatpush1.msra.mxu0 0.0
      %464 = vmatprep.subr.mxu0 0.0
      %465 = vmatpush1.msra.mxu0 0.0
      %466 = vmatprep.subr.mxu0 0.0
      %467 = vmatpush1.msra.mxu0 0.0
      %468 = vmatprep.subr.mxu0 0.0
      %469 = vmatpush1.msra.mxu0 0.0
      %470 = vmatprep.subr.mxu0 0.0
      %471 = vmatpush1.msra.mxu0 0.0
      %472 = vmatprep.subr.mxu0 0.0
      %473 = vmatpush1.msra.mxu0 0.0
      %474 = vmatprep.subr.mxu0 0.0
      %475 = vmatpush1.msra.mxu0 0.0
      %476 = vmatprep.subr.mxu0 0.0
      %477 = vmatpush1.msra.mxu0 0.0
      %478 = vmatprep.subr.mxu0 0.0
      %479 = vmatpush1.msra.mxu0 0.0
      %480 = vmatprep.subr.mxu0 0.0
      %481 = vmatpush1.msra.mxu0 0.0
      %482 = vmatprep.subr.mxu0 0.0
      %483 = vmatpush1.msra.mxu0 0.0
      %484 = vmatprep.subr.mxu0 0.0
      %485 = vmatpush1.msra.mxu0 0.0
      %486 = vmatprep.subr.mxu0 0.0
      %487 = vmatpush1.msra.mxu0 0.0
      %488 = vmatprep.subr.mxu0 0.0
      %489 = vmatpush1.msra.mxu0 0.0
      %490 = vmatprep.subr.mxu0 0.0
      %491 = vmatpush1.msra.mxu0 0.0
      %492 = vmatprep.subr.mxu0 0.0
      %493 = vmatpush1.msra.mxu0 0.0
      %494 = vmatprep.subr.mxu0 0.0
      %495 = vmatpush1.msra.mxu0 0.0
      %496 = vmatprep.subr.mxu0 0.0
      %497 = vmatpush1.msra.mxu0 0.0
      %498 = vmatprep.subr.mxu0 0.0
      %499 = vmatpush1.msra.mxu0 0.0
      %500 = vmatprep.subr.mxu0 0.0
      %501 = vmatpush1.msra.mxu0 0.0
      %502 = vmatprep.mubr.f32.mxu0 0.0
      %503 = vmatmul.mubr.f32.gmra.mrb[0].mxu0 %v436
      %v504 = vpop.f32.mrb[0].mxu0
      %v505 = vadd.f32 %v432, %v504
      %v506 = vpop.f32.mrb[0].mxu0
      %507 = vdwg.mxu0
      %v508 = vld [vmem:[%s5] sm:$0xff]
      %v509 = vld [vmem:[%s5 + $0x8] sm:$0xff]
      %v510 = vld [vmem:[%s5 + $0x10] sm:$0xff]
      %v511 = vld [vmem:[%s5 + $0x18] sm:$0xff]
      %v512 = vld [vmem:[%s6] sm:$0x1]
      %v514 = vlaneseq
      %v515 = vshrl.u32 %v514, 7
      %v516 = vsub.s32 0, %v515
      %v517 = vrot.slane %v512, %v516
      %v520 = vsel %vm434, %v420, 0
      %v523 = vsel %vm434, %v421, 0
      %525 = vmatprep.subr.mxu0 0.0
      %526 = vmatpush1.msra.mxu0 %v508
      %527 = vmatprep.subr.mxu0 0.0
      %528 = vmatpush1.msra.mxu0 %v509
      %529 = vmatprep.subr.mxu0 0.0
      %530 = vmatpush1.msra.mxu0 %v510
      %531 = vmatprep.subr.mxu0 0.0
      %532 = vmatpush1.msra.mxu0 %v511
      %533 = vmatprep.subr.mxu0 0.0
      %534 = vmatpush1.msra.mxu0 0.0
      %535 = vmatprep.subr.mxu0 0.0
      %536 = vmatpush1.msra.mxu0 0.0
      %537 = vmatprep.subr.mxu0 0.0
      %538 = vmatpush1.msra.mxu0 0.0
      %539 = vmatprep.subr.mxu0 0.0
      %540 = vmatpush1.msra.mxu0 0.0
      %541 = vmatprep.subr.mxu0 0.0
      %542 = vmatpush1.msra.mxu0 0.0
      %543 = vmatprep.subr.mxu0 0.0
      %544 = vmatpush1.msra.mxu0 0.0
      %545 = vmatprep.subr.mxu0 0.0
      %546 = vmatpush1.msra.mxu0 0.0
      %547 = vmatprep.subr.mxu0 0.0
      %548 = vmatpush1.msra.mxu0 0.0
      %549 = vmatprep.subr.mxu0 0.0
      %550 = vmatpush1.msra.mxu0 0.0
      %551 = vmatprep.subr.mxu0 0.0
      %552 = vmatpush1.msra.mxu0 0.0
      %553 = vmatprep.subr.mxu0 0.0
      %554 = vmatpush1.msra.mxu0 0.0
      %555 = vmatprep.subr.mxu0 0.0
      %556 = vmatpush1.msra.mxu0 0.0
      %557 = vmatprep.subr.mxu0 0.0
      %558 = vmatpush1.msra.mxu0 0.0
      %559 = vmatprep.subr.mxu0 0.0
      %560 = vmatpush1.msra.mxu0 0.0
      %561 = vmatprep.subr.mxu0 0.0
      %562 = vmatpush1.msra.mxu0 0.0
      %563 = vmatprep.subr.mxu0 0.0
      %564 = vmatpush1.msra.mxu0 0.0
      %565 = vmatprep.subr.mxu0 0.0
      %566 = vmatpush1.msra.mxu0 0.0
      %567 = vmatprep.subr.mxu0 0.0
      %568 = vmatpush1.msra.mxu0 0.0
      %569 = vmatprep.subr.mxu0 0.0
      %570 = vmatpush1.msra.mxu0 0.0
      %571 = vmatprep.subr.mxu0 0.0
      %572 = vmatpush1.msra.mxu0 0.0
      %573 = vmatprep.subr.mxu0 0.0
      %574 = vmatpush1.msra.mxu0 0.0
      %575 = vmatprep.subr.mxu0 0.0
      %576 = vmatpush1.msra.mxu0 0.0
      %577 = vmatprep.subr.mxu0 0.0
      %578 = vmatpush1.msra.mxu0 0.0
      %579 = vmatprep.subr.mxu0 0.0
      %580 = vmatpush1.msra.mxu0 0.0
      %581 = vmatprep.subr.mxu0 0.0
      %582 = vmatpush1.msra.mxu0 0.0
      %583 = vmatprep.subr.mxu0 0.0
      %584 = vmatpush1.msra.mxu0 0.0
      %585 = vmatprep.subr.mxu0 0.0
      %586 = vmatpush1.msra.mxu0 0.0
      %587 = vmatprep.subr.mxu0 0.0
      %588 = vmatpush1.msra.mxu0 0.0
      %589 = vmatprep.mubr.f32.mxu0 0.0
      %590 = vmatmul.mubr.f32.gmra.mrb[0].mxu0 %v520
      %v591 = vpop.f32.mrb[0].mxu0
      %v592 = vadd.f32 %v517, %v591
      %v593 = vpop.f32.mrb[0].mxu0
      %594 = vmatprep.mubr.f32.mxu0 0.0
      %595 = vmatmul.mubr.f32.gmra.mrb[0].mxu0 %v523
      %v596 = vpop.f32.mrb[0].mxu0
      %v597 = vadd.f32 %v517, %v596
      %v598 = vpop.f32.mrb[0].mxu0
      %599 = vdwg.mxu0
      %vm600 = vcmask 64512
      %v602 = vsel %vm600, %v505, 0
      %v605 = vsel %vm600, %v592, 0
      %v608 = vsel %vm600, %v597, 0
      %610 = vmatprep.subr.mxu0 0.0
      %611 = vmatpush1.xpose.msra.mxu0 %v605
      %612 = vmatprep.subr.mxu0 0.0
      %613 = vmatpush1.xpose.msra.mxu0 %v608
      %614 = vmatprep.subr.mxu0 0.0
      %615 = vmatpush1.xpose.msra.mxu0 0.0
      %616 = vmatprep.subr.mxu0 0.0
      %617 = vmatpush1.xpose.msra.mxu0 0.0
      %618 = vmatprep.subr.mxu0 0.0
      %619 = vmatpush1.xpose.msra.mxu0 0.0
      %620 = vmatprep.subr.mxu0 0.0
      %621 = vmatpush1.xpose.msra.mxu0 0.0
      %622 = vmatprep.subr.mxu0 0.0
      %623 = vmatpush1.xpose.msra.mxu0 0.0
      %624 = vmatprep.subr.mxu0 0.0
      %625 = vmatpush1.xpose.msra.mxu0 0.0
      %626 = vmatprep.subr.mxu0 0.0
      %627 = vmatpush1.xpose.msra.mxu0 0.0
      %628 = vmatprep.subr.mxu0 0.0
      %629 = vmatpush1.xpose.msra.mxu0 0.0
      %630 = vmatprep.subr.mxu0 0.0
      %631 = vmatpush1.xpose.msra.mxu0 0.0
      %632 = vmatprep.subr.mxu0 0.0
      %633 = vmatpush1.xpose.msra.mxu0 0.0
      %634 = vmatprep.subr.mxu0 0.0
      %635 = vmatpush1.xpose.msra.mxu0 0.0
      %636 = vmatprep.subr.mxu0 0.0
      %637 = vmatpush1.xpose.msra.mxu0 0.0
      %638 = vmatprep.subr.mxu0 0.0
      %639 = vmatpush1.xpose.msra.mxu0 0.0
      %640 = vmatprep.subr.mxu0 0.0
      %641 = vmatpush1.xpose.msra.mxu0 0.0
      %642 = vmatprep.subr.mxu0 0.0
      %643 = vmatpush1.xpose.msra.mxu0 0.0
      %644 = vmatprep.subr.mxu0 0.0
      %645 = vmatpush1.xpose.msra.mxu0 0.0
      %646 = vmatprep.subr.mxu0 0.0
      %647 = vmatpush1.xpose.msra.mxu0 0.0
      %648 = vmatprep.subr.mxu0 0.0
      %649 = vmatpush1.xpose.msra.mxu0 0.0
      %650 = vmatprep.subr.mxu0 0.0
      %651 = vmatpush1.xpose.msra.mxu0 0.0
      %652 = vmatprep.subr.mxu0 0.0
      %653 = vmatpush1.xpose.msra.mxu0 0.0
      %654 = vmatprep.subr.mxu0 0.0
      %655 = vmatpush1.xpose.msra.mxu0 0.0
      %656 = vmatprep.subr.mxu0 0.0
      %657 = vmatpush1.xpose.msra.mxu0 0.0
      %658 = vmatprep.subr.mxu0 0.0
      %659 = vmatpush1.xpose.msra.mxu0 0.0
      %660 = vmatprep.subr.mxu0 0.0
      %661 = vmatpush1.xpose.msra.mxu0 0.0
      %662 = vmatprep.subr.mxu0 0.0
      %663 = vmatpush1.xpose.msra.mxu0 0.0
      %664 = vmatprep.subr.mxu0 0.0
      %665 = vmatpush1.xpose.msra.mxu0 0.0
      %666 = vmatprep.subr.mxu0 0.0
      %667 = vmatpush1.xpose.msra.mxu0 0.0
      %668 = vmatprep.subr.mxu0 0.0
      %669 = vmatpush1.xpose.msra.mxu0 0.0
      %670 = vmatprep.subr.mxu0 0.0
      %671 = vmatpush1.xpose.msra.mxu0 0.0
      %672 = vmatprep.subr.mxu0 0.0
      %673 = vmatpush1.xpose.msra.mxu0 0.0
      %674 = vmatprep.mubr.f32.mxu0 0.0
      %675 = vmatmul.mubr.f32.gmra.mrb[0].mxu0 %v602
      %v676 = vpop.f32.mrb[0].mxu0
      %v677 = vadd.f32 0.0, %v676
      %v678 = vpop.f32.mrb[0].mxu0
      %679 = vdwg.mxu0
      %v680 = vmul.f32 %v677, 0.35355338
      %v681 = vadd.f32 %v680, %v422
      %vm682 = vcmask 130048
      %v683 = vsel %vm682, %v681, -inf
      %684 = vmax.xlane.f32.xlu0 %v683
      %v685 = vpop.xlane.xlu0 %684
      %v686 = vsub.f32 %v681, %v685
      %v687 = vmul.f32 %v686, 1.442695
      %v688 = vpow.pop %v687
      %v689 = vsel %vm682, %v688, 0.0
      %690 = vadd.xlane.f32.xlu0 %v689
      %v691 = vpop.xlane.xlu0 %690
      %v692 = vrcp.pop %v691
      %v693 = vmul.f32 %v688, %v692
      %694 = vrot.lane.b32.xlu0 %v592, 96
      %v695 = vpop.permute.xlu0 %694
      %696 = vrot.lane.b32.xlu0 %v597, 96
      %v697 = vpop.permute.xlu0 %696
      %v701 = vsel %vm682, %v693, 0
      %703 = vmatprep.subr.mxu0 0.0
      %704 = vmatpush1.msra.mxu0 %v695
      %705 = vmatprep.subr.mxu0 0.0
      %706 = vmatpush1.msra.mxu0 %v697
      %707 = vmatprep.subr.mxu0 0.0
      %708 = vmatpush1.msra.mxu0 0.0
      %709 = vmatprep.subr.mxu0 0.0
      %710 = vmatpush1.msra.mxu0 0.0
      %711 = vmatprep.subr.mxu0 0.0
      %712 = vmatpush1.msra.mxu0 0.0
      %713 = vmatprep.subr.mxu0 0.0
      %714 = vmatpush1.msra.mxu0 0.0
      %715 = vmatprep.subr.mxu0 0.0
      %716 = vmatpush1.msra.mxu0 0.0
      %717 = vmatprep.subr.mxu0 0.0
      %718 = vmatpush1.msra.mxu0 0.0
      %719 = vmatprep.subr.mxu0 0.0
      %720 = vmatpush1.msra.mxu0 0.0
      %721 = vmatprep.subr.mxu0 0.0
      %722 = vmatpush1.msra.mxu0 0.0
      %723 = vmatprep.subr.mxu0 0.0
      %724 = vmatpush1.msra.mxu0 0.0
      %725 = vmatprep.subr.mxu0 0.0
      %726 = vmatpush1.msra.mxu0 0.0
      %727 = vmatprep.subr.mxu0 0.0
      %728 = vmatpush1.msra.mxu0 0.0
      %729 = vmatprep.subr.mxu0 0.0
      %730 = vmatpush1.msra.mxu0 0.0
      %731 = vmatprep.subr.mxu0 0.0
      %732 = vmatpush1.msra.mxu0 0.0
      %733 = vmatprep.subr.mxu0 0.0
      %734 = vmatpush1.msra.mxu0 0.0
      %735 = vmatprep.subr.mxu0 0.0
      %736 = vmatpush1.msra.mxu0 0.0
      %737 = vmatprep.subr.mxu0 0.0
      %738 = vmatpush1.msra.mxu0 0.0
      %739 = vmatprep.subr.mxu0 0.0
      %740 = vmatpush1.msra.mxu0 0.0
      %741 = vmatprep.subr.mxu0 0.0
      %742 = vmatpush1.msra.mxu0 0.0
      %743 = vmatprep.subr.mxu0 0.0
      %744 = vmatpush1.msra.mxu0 0.0
      %745 = vmatprep.subr.mxu0 0.0
      %746 = vmatpush1.msra.mxu0 0.0
      %747 = vmatprep.subr.mxu0 0.0
      %748 = vmatpush1.msra.mxu0 0.0
      %749 = vmatprep.subr.mxu0 0.0
      %750 = vmatpush1.msra.mxu0 0.0
      %751 = vmatprep.subr.mxu0 0.0
      %752 = vmatpush1.msra.mxu0 0.0
      %753 = vmatprep.subr.mxu0 0.0
      %754 = vmatpush1.msra.mxu0 0.0
      %755 = vmatprep.subr.mxu0 0.0
      %756 = vmatpush1.msra.mxu0 0.0
      %757 = vmatprep.subr.mxu0 0.0
      %758 = vmatpush1.msra.mxu0 0.0
      %759 = vmatprep.subr.mxu0 0.0
      %760 = vmatpush1.msra.mxu0 0.0
      %761 = vmatprep.subr.mxu0 0.0
      %762 = vmatpush1.msra.mxu0 0.0
      %763 = vmatprep.subr.mxu0 0.0
      %764 = vmatpush1.msra.mxu0 0.0
      %765 = vmatprep.subr.mxu0 0.0
      %766 = vmatpush1.msra.mxu0 0.0
      %767 = vmatprep.mubr.f32.mxu0 0.0
      %768 = vmatmul.mubr.f32.gmra.mrb[0].mxu0 %v701
      %v769 = vpop.f32.mrb[0].mxu0
      %v770 = vadd.f32 0.0, %v769
      %v771 = vpop.f32.mrb[0].mxu0
      %772 = vdwg.mxu0
      %773 = vrot.lane.b32.xlu0 %v505, 120
      %v774 = vpop.permute.xlu0 %773
      %775 = vrot.lane.b32.xlu0 %v592, 120
      %v776 = vpop.permute.xlu0 %775
      %777 = vrot.lane.b32.xlu0 %v597, 120
      %v778 = vpop.permute.xlu0 %777
      %v779 = vsel %vm600, %v774, 0
      %v781 = vsel %vm600, %v776, 0
      %v783 = vsel %vm600, %v778, 0
      %785 = vmatprep.subr.mxu0 0.0
      %786 = vmatpush1.xpose.msra.mxu0 %v781
      %787 = vmatprep.subr.mxu0 0.0
      %788 = vmatpush1.xpose.msra.mxu0 %v783
      %789 = vmatprep.subr.mxu0 0.0
      %790 = vmatpush1.xpose.msra.mxu0 0.0
      %791 = vmatprep.subr.mxu0 0.0
      %792 = vmatpush1.xpose.msra.mxu0 0.0
      %793 = vmatprep.subr.mxu0 0.0
      %794 = vmatpush1.xpose.msra.mxu0 0.0
      %795 = vmatprep.subr.mxu0 0.0
      %796 = vmatpush1.xpose.msra.mxu0 0.0
      %797 = vmatprep.subr.mxu0 0.0
      %798 = vmatpush1.xpose.msra.mxu0 0.0
      %799 = vmatprep.subr.mxu0 0.0
      %800 = vmatpush1.xpose.msra.mxu0 0.0
      %801 = vmatprep.subr.mxu0 0.0
      %802 = vmatpush1.xpose.msra.mxu0 0.0
      %803 = vmatprep.subr.mxu0 0.0
      %804 = vmatpush1.xpose.msra.mxu0 0.0
      %805 = vmatprep.subr.mxu0 0.0
      %806 = vmatpush1.xpose.msra.mxu0 0.0
      %807 = vmatprep.subr.mxu0 0.0
      %808 = vmatpush1.xpose.msra.mxu0 0.0
      %809 = vmatprep.subr.mxu0 0.0
      %810 = vmatpush1.xpose.msra.mxu0 0.0
      %811 = vmatprep.subr.mxu0 0.0
      %812 = vmatpush1.xpose.msra.mxu0 0.0
      %813 = vmatprep.subr.mxu0 0.0
      %814 = vmatpush1.xpose.msra.mxu0 0.0
      %815 = vmatprep.subr.mxu0 0.0
      %816 = vmatpush1.xpose.msra.mxu0 0.0
      %817 = vmatprep.subr.mxu0 0.0
      %818 = vmatpush1.xpose.msra.mxu0 0.0
      %819 = vmatprep.subr.mxu0 0.0
      %820 = vmatpush1.xpose.msra.mxu0 0.0
      %821 = vmatprep.subr.mxu0 0.0
      %822 = vmatpush1.xpose.msra.mxu0 0.0
      %823 = vmatprep.subr.mxu0 0.0
      %824 = vmatpush1.xpose.msra.mxu0 0.0
      %825 = vmatprep.subr.mxu0 0.0
      %826 = vmatpush1.xpose.msra.mxu0 0.0
      %827 = vmatprep.subr.mxu0 0.0
      %828 = vmatpush1.xpose.msra.mxu0 0.0
      %829 = vmatprep.subr.mxu0 0.0
      %830 = vmatpush1.xpose.msra.mxu0 0.0
      %831 = vmatprep.subr.mxu0 0.0
      %832 = vmatpush1.xpose.msra.mxu0 0.0
      %833 = vmatprep.subr.mxu0 0.0
      %834 = vmatpush1.xpose.msra.mxu0 0.0
      %835 = vmatprep.subr.mxu0 0.0
      %836 = vmatpush1.xpose.msra.mxu0 0.0
      %837 = vmatprep.subr.mxu0 0.0
      %838 = vmatpush1.xpose.msra.mxu0 0.0
      %839 = vmatprep.subr.mxu0 0.0
      %840 = vmatpush1.xpose.msra.mxu0 0.0
      %841 = vmatprep.subr.mxu0 0.0
      %842 = vmatpush1.xpose.msra.mxu0 0.0
      %843 = vmatprep.subr.mxu0 0.0
      %844 = vmatpush1.xpose.msra.mxu0 0.0
      %845 = vmatprep.subr.mxu0 0.0
      %846 = vmatpush1.xpose.msra.mxu0 0.0
      %847 = vmatprep.subr.mxu0 0.0
      %848 = vmatpush1.xpose.msra.mxu0 0.0
      %849 = vmatprep.mubr.f32.mxu0 0.0
      %850 = vmatmul.mubr.f32.gmra.mrb[0].mxu0 %v779
      %v851 = vpop.f32.mrb[0].mxu0
      %v852 = vadd.f32 0.0, %v851
      %v853 = vpop.f32.mrb[0].mxu0
      %854 = vdwg.mxu0
      %v855 = vmul.f32 %v852, 0.35355338
      %v856 = vadd.f32 %v855, %v422
      %v857 = vsel %vm682, %v856, -inf
      %858 = vmax.xlane.f32.xlu0 %v857
      %v859 = vpop.xlane.xlu0 %858
      %v860 = vsub.f32 %v856, %v859
      %v861 = vmul.f32 %v860, 1.442695
      %v862 = vpow.pop %v861
      %v863 = vsel %vm682, %v862, 0.0
      %864 = vadd.xlane.f32.xlu0 %v863
      %v865 = vpop.xlane.xlu0 %864
      %v866 = vrcp.pop %v865
      %v867 = vmul.f32 %v862, %v866
      %868 = vrot.lane.b32.xlu0 %v592, 88
      %v869 = vpop.permute.xlu0 %868
      %870 = vrot.lane.b32.xlu0 %v597, 88
      %v871 = vpop.permute.xlu0 %870
      %v875 = vsel %vm682, %v867, 0
      %877 = vmatprep.subr.mxu0 0.0
      %878 = vmatpush1.msra.mxu0 %v869
      %879 = vmatprep.subr.mxu0 0.0
      %880 = vmatpush1.msra.mxu0 %v871
      %881 = vmatprep.subr.mxu0 0.0
      %882 = vmatpush1.msra.mxu0 0.0
      %883 = vmatprep.subr.mxu0 0.0
      %884 = vmatpush1.msra.mxu0 0.0
      %885 = vmatprep.subr.mxu0 0.0
      %886 = vmatpush1.msra.mxu0 0.0
      %887 = vmatprep.subr.mxu0 0.0
      %888 = vmatpush1.msra.mxu0 0.0
      %889 = vmatprep.subr.mxu0 0.0
      %890 = vmatpush1.msra.mxu0 0.0
      %891 = vmatprep.subr.mxu0 0.0
      %892 = vmatpush1.msra.mxu0 0.0
      %893 = vmatprep.subr.mxu0 0.0
      %894 = vmatpush1.msra.mxu0 0.0
      %895 = vmatprep.subr.mxu0 0.0
      %896 = vmatpush1.msra.mxu0 0.0
      %897 = vmatprep.subr.mxu0 0.0
      %898 = vmatpush1.msra.mxu0 0.0
      %899 = vmatprep.subr.mxu0 0.0
      %900 = vmatpush1.msra.mxu0 0.0
      %901 = vmatprep.subr.mxu0 0.0
      %902 = vmatpush1.msra.mxu0 0.0
      %903 = vmatprep.subr.mxu0 0.0
      %904 = vmatpush1.msra.mxu0 0.0
      %905 = vmatprep.subr.mxu0 0.0
      %906 = vmatpush1.msra.mxu0 0.0
      %907 = vmatprep.subr.mxu0 0.0
      %908 = vmatpush1.msra.mxu0 0.0
      %909 = vmatprep.subr.mxu0 0.0
      %910 = vmatpush1.msra.mxu0 0.0
      %911 = vmatprep.subr.mxu0 0.0
      %912 = vmatpush1.msra.mxu0 0.0
      %913 = vmatprep.subr.mxu0 0.0
      %914 = vmatpush1.msra.mxu0 0.0
      %915 = vmatprep.subr.mxu0 0.0
      %916 = vmatpush1.msra.mxu0 0.0
      %917 = vmatprep.subr.mxu0 0.0
      %918 = vmatpush1.msra.mxu0 0.0
      %919 = vmatprep.subr.mxu0 0.0
      %920 = vmatpush1.msra.mxu0 0.0
      %921 = vmatprep.subr.mxu0 0.0
      %922 = vmatpush1.msra.mxu0 0.0
      %923 = vmatprep.subr.mxu0 0.0
      %924 = vmatpush1.msra.mxu0 0.0
      %925 = vmatprep.subr.mxu0 0.0
      %926 = vmatpush1.msra.mxu0 0.0
      %927 = vmatprep.subr.mxu0 0.0
      %928 = vmatpush1.msra.mxu0 0.0
      %929 = vmatprep.subr.mxu0 0.0
      %930 = vmatpush1.msra.mxu0 0.0
      %931 = vmatprep.subr.mxu0 0.0
      %932 = vmatpush1.msra.mxu0 0.0
      %933 = vmatprep.subr.mxu0 0.0
      %934 = vmatpush1.msra.mxu0 0.0
      %935 = vmatprep.subr.mxu0 0.0
      %936 = vmatpush1.msra.mxu0 0.0
      %937 = vmatprep.subr.mxu0 0.0
      %938 = vmatpush1.msra.mxu0 0.0
      %939 = vmatprep.subr.mxu0 0.0
      %940 = vmatpush1.msra.mxu0 0.0
      %941 = vmatprep.mubr.f32.mxu0 0.0
      %942 = vmatmul.mubr.f32.gmra.mrb[0].mxu0 %v875
      %v943 = vpop.f32.mrb[0].mxu0
      %v944 = vadd.f32 0.0, %v943
      %v945 = vpop.f32.mrb[0].mxu0
      %946 = vdwg.mxu0
      %947 = vrot.lane.b32.xlu0 %v505, 112
      %v948 = vpop.permute.xlu0 %947
      %949 = vrot.lane.b32.xlu0 %v592, 112
      %v950 = vpop.permute.xlu0 %949
      %951 = vrot.lane.b32.xlu0 %v597, 112
      %v952 = vpop.permute.xlu0 %951
      %v953 = vsel %vm600, %v948, 0
      %v955 = vsel %vm600, %v950, 0
      %v957 = vsel %vm600, %v952, 0
      %959 = vmatprep.subr.mxu0 0.0
      %960 = vmatpush1.xpose.msra.mxu0 %v955
      %961 = vmatprep.subr.mxu0 0.0
      %962 = vmatpush1.xpose.msra.mxu0 %v957
      %963 = vmatprep.subr.mxu0 0.0
      %964 = vmatpush1.xpose.msra.mxu0 0.0
      %965 = vmatprep.subr.mxu0 0.0
      %966 = vmatpush1.xpose.msra.mxu0 0.0
      %967 = vmatprep.subr.mxu0 0.0
      %968 = vmatpush1.xpose.msra.mxu0 0.0
      %969 = vmatprep.subr.mxu0 0.0
      %970 = vmatpush1.xpose.msra.mxu0 0.0
      %971 = vmatprep.subr.mxu0 0.0
      %972 = vmatpush1.xpose.msra.mxu0 0.0
      %973 = vmatprep.subr.mxu0 0.0
      %974 = vmatpush1.xpose.msra.mxu0 0.0
      %975 = vmatprep.subr.mxu0 0.0
      %976 = vmatpush1.xpose.msra.mxu0 0.0
      %977 = vmatprep.subr.mxu0 0.0
      %978 = vmatpush1.xpose.msra.mxu0 0.0
      %979 = vmatprep.subr.mxu0 0.0
      %980 = vmatpush1.xpose.msra.mxu0 0.0
      %981 = vmatprep.subr.mxu0 0.0
      %982 = vmatpush1.xpose.msra.mxu0 0.0
      %983 = vmatprep.subr.mxu0 0.0
      %984 = vmatpush1.xpose.msra.mxu0 0.0
      %985 = vmatprep.subr.mxu0 0.0
      %986 = vmatpush1.xpose.msra.mxu0 0.0
      %987 = vmatprep.subr.mxu0 0.0
      %988 = vmatpush1.xpose.msra.mxu0 0.0
      %989 = vmatprep.subr.mxu0 0.0
      %990 = vmatpush1.xpose.msra.mxu0 0.0
      %991 = vmatprep.subr.mxu0 0.0
      %992 = vmatpush1.xpose.msra.mxu0 0.0
      %993 = vmatprep.subr.mxu0 0.0
      %994 = vmatpush1.xpose.msra.mxu0 0.0
      %995 = vmatprep.subr.mxu0 0.0
      %996 = vmatpush1.xpose.msra.mxu0 0.0
      %997 = vmatprep.subr.mxu0 0.0
      %998 = vmatpush1.xpose.msra.mxu0 0.0
      %999 = vmatprep.subr.mxu0 0.0
      %1000 = vmatpush1.xpose.msra.mxu0 0.0
      %1001 = vmatprep.subr.mxu0 0.0
      %1002 = vmatpush1.xpose.msra.mxu0 0.0
      %1003 = vmatprep.subr.mxu0 0.0
      %1004 = vmatpush1.xpose.msra.mxu0 0.0
      %1005 = vmatprep.subr.mxu0 0.0
      %1006 = vmatpush1.xpose.msra.mxu0 0.0
      %1007 = vmatprep.subr.mxu0 0.0
      %1008 = vmatpush1.xpose.msra.mxu0 0.0
      %1009 = vmatprep.subr.mxu0 0.0
      %1010 = vmatpush1.xpose.msra.mxu0 0.0
      %1011 = vmatprep.subr.mxu0 0.0
      %1012 = vmatpush1.xpose.msra.mxu0 0.0
      %1013 = vmatprep.subr.mxu0 0.0
      %1014 = vmatpush1.xpose.msra.mxu0 0.0
      %1015 = vmatprep.subr.mxu0 0.0
      %1016 = vmatpush1.xpose.msra.mxu0 0.0
      %1017 = vmatprep.subr.mxu0 0.0
      %1018 = vmatpush1.xpose.msra.mxu0 0.0
      %1019 = vmatprep.subr.mxu0 0.0
      %1020 = vmatpush1.xpose.msra.mxu0 0.0
      %1021 = vmatprep.subr.mxu0 0.0
      %1022 = vmatpush1.xpose.msra.mxu0 0.0
      %1023 = vmatprep.mubr.f32.mxu0 0.0
      %1024 = vmatmul.mubr.f32.gmra.mrb[0].mxu0 %v953
      %v1025 = vpop.f32.mrb[0].mxu0
      %v1026 = vadd.f32 0.0, %v1025
      %v1027 = vpop.f32.mrb[0].mxu0
      %1028 = vdwg.mxu0
      %v1029 = vmul.f32 %v1026, 0.35355338
      %v1030 = vadd.f32 %v1029, %v422
      %v1031 = vsel %vm682, %v1030, -inf
      %1032 = vmax.xlane.f32.xlu0 %v1031
      %v1033 = vpop.xlane.xlu0 %1032
      %v1034 = vsub.f32 %v1030, %v1033
      %v1035 = vmul.f32 %v1034, 1.442695
      %v1036 = vpow.pop %v1035
      %v1037 = vsel %vm682, %v1036, 0.0
      %1038 = vadd.xlane.f32.xlu0 %v1037
      %v1039 = vpop.xlane.xlu0 %1038
      %v1040 = vrcp.pop %v1039
      %v1041 = vmul.f32 %v1036, %v1040
      %1042 = vrot.lane.b32.xlu0 %v592, 80
      %v1043 = vpop.permute.xlu0 %1042
      %1044 = vrot.lane.b32.xlu0 %v597, 80
      %v1045 = vpop.permute.xlu0 %1044
      %v1049 = vsel %vm682, %v1041, 0
      %1051 = vmatprep.subr.mxu0 0.0
      %1052 = vmatpush1.msra.mxu0 %v1043
      %1053 = vmatprep.subr.mxu0 0.0
      %1054 = vmatpush1.msra.mxu0 %v1045
      %1055 = vmatprep.subr.mxu0 0.0
      %1056 = vmatpush1.msra.mxu0 0.0
      %1057 = vmatprep.subr.mxu0 0.0
      %1058 = vmatpush1.msra.mxu0 0.0
      %1059 = vmatprep.subr.mxu0 0.0
      %1060 = vmatpush1.msra.mxu0 0.0
      %1061 = vmatprep.subr.mxu0 0.0
      %1062 = vmatpush1.msra.mxu0 0.0
      %1063 = vmatprep.subr.mxu0 0.0
      %1064 = vmatpush1.msra.mxu0 0.0
      %1065 = vmatprep.subr.mxu0 0.0
      %1066 = vmatpush1.msra.mxu0 0.0
      %1067 = vmatprep.subr.mxu0 0.0
      %1068 = vmatpush1.msra.mxu0 0.0
      %1069 = vmatprep.subr.mxu0 0.0
      %1070 = vmatpush1.msra.mxu0 0.0
      %1071 = vmatprep.subr.mxu0 0.0
      %1072 = vmatpush1.msra.mxu0 0.0
      %1073 = vmatprep.subr.mxu0 0.0
      %1074 = vmatpush1.msra.mxu0 0.0
      %1075 = vmatprep.subr.mxu0 0.0
      %1076 = vmatpush1.msra.mxu0 0.0
      %1077 = vmatprep.subr.mxu0 0.0
      %1078 = vmatpush1.msra.mxu0 0.0
      %1079 = vmatprep.subr.mxu0 0.0
      %1080 = vmatpush1.msra.mxu0 0.0
      %1081 = vmatprep.subr.mxu0 0.0
      %1082 = vmatpush1.msra.mxu0 0.0
      %1083 = vmatprep.subr.mxu0 0.0
      %1084 = vmatpush1.msra.mxu0 0.0
      %1085 = vmatprep.subr.mxu0 0.0
      %1086 = vmatpush1.msra.mxu0 0.0
      %1087 = vmatprep.subr.mxu0 0.0
      %1088 = vmatpush1.msra.mxu0 0.0
      %1089 = vmatprep.subr.mxu0 0.0
      %1090 = vmatpush1.msra.mxu0 0.0
      %1091 = vmatprep.subr.mxu0 0.0
      %1092 = vmatpush1.msra.mxu0 0.0
      %1093 = vmatprep.subr.mxu0 0.0
      %1094 = vmatpush1.msra.mxu0 0.0
      %1095 = vmatprep.subr.mxu0 0.0
      %1096 = vmatpush1.msra.mxu0 0.0
      %1097 = vmatprep.subr.mxu0 0.0
      %1098 = vmatpush1.msra.mxu0 0.0
      %1099 = vmatprep.subr.mxu0 0.0
      %1100 = vmatpush1.msra.mxu0 0.0
      %1101 = vmatprep.subr.mxu0 0.0
      %1102 = vmatpush1.msra.mxu0 0.0
      %1103 = vmatprep.subr.mxu0 0.0
      %1104 = vmatpush1.msra.mxu0 0.0
      %1105 = vmatprep.subr.mxu0 0.0
      %1106 = vmatpush1.msra.mxu0 0.0
      %1107 = vmatprep.subr.mxu0 0.0
      %1108 = vmatpush1.msra.mxu0 0.0
      %1109 = vmatprep.subr.mxu0 0.0
      %1110 = vmatpush1.msra.mxu0 0.0
      %1111 = vmatprep.subr.mxu0 0.0
      %1112 = vmatpush1.msra.mxu0 0.0
      %1113 = vmatprep.subr.mxu0 0.0
      %1114 = vmatpush1.msra.mxu0 0.0
      %1115 = vmatprep.mubr.f32.mxu0 0.0
      %1116 = vmatmul.mubr.f32.gmra.mrb[0].mxu0 %v1049
      %v1117 = vpop.f32.mrb[0].mxu0
      %v1118 = vadd.f32 0.0, %v1117
      %v1119 = vpop.f32.mrb[0].mxu0
      %1120 = vdwg.mxu0
      %1121 = vrot.lane.b32.xlu0 %v505, 104
      %v1122 = vpop.permute.xlu0 %1121
      %1123 = vrot.lane.b32.xlu0 %v592, 104
      %v1124 = vpop.permute.xlu0 %1123
      %1125 = vrot.lane.b32.xlu0 %v597, 104
      %v1126 = vpop.permute.xlu0 %1125
      %v1127 = vsel %vm600, %v1122, 0
      %v1129 = vsel %vm600, %v1124, 0
      %v1131 = vsel %vm600, %v1126, 0
      %1133 = vmatprep.subr.mxu0 0.0
      %1134 = vmatpush1.xpose.msra.mxu0 %v1129
      %1135 = vmatprep.subr.mxu0 0.0
      %1136 = vmatpush1.xpose.msra.mxu0 %v1131
      %1137 = vmatprep.subr.mxu0 0.0
      %1138 = vmatpush1.xpose.msra.mxu0 0.0
      %1139 = vmatprep.subr.mxu0 0.0
      %1140 = vmatpush1.xpose.msra.mxu0 0.0
      %1141 = vmatprep.subr.mxu0 0.0
      %1142 = vmatpush1.xpose.msra.mxu0 0.0
      %1143 = vmatprep.subr.mxu0 0.0
      %1144 = vmatpush1.xpose.msra.mxu0 0.0
      %1145 = vmatprep.subr.mxu0 0.0
      %1146 = vmatpush1.xpose.msra.mxu0 0.0
      %1147 = vmatprep.subr.mxu0 0.0
      %1148 = vmatpush1.xpose.msra.mxu0 0.0
      %1149 = vmatprep.subr.mxu0 0.0
      %1150 = vmatpush1.xpose.msra.mxu0 0.0
      %1151 = vmatprep.subr.mxu0 0.0
      %1152 = vmatpush1.xpose.msra.mxu0 0.0
      %1153 = vmatprep.subr.mxu0 0.0
      %1154 = vmatpush1.xpose.msra.mxu0 0.0
      %1155 = vmatprep.subr.mxu0 0.0
      %1156 = vmatpush1.xpose.msra.mxu0 0.0
      %1157 = vmatprep.subr.mxu0 0.0
      %1158 = vmatpush1.xpose.msra.mxu0 0.0
      %1159 = vmatprep.subr.mxu0 0.0
      %1160 = vmatpush1.xpose.msra.mxu0 0.0
      %1161 = vmatprep.subr.mxu0 0.0
      %1162 = vmatpush1.xpose.msra.mxu0 0.0
      %1163 = vmatprep.subr.mxu0 0.0
      %1164 = vmatpush1.xpose.msra.mxu0 0.0
      %1165 = vmatprep.subr.mxu0 0.0
      %1166 = vmatpush1.xpose.msra.mxu0 0.0
      %1167 = vmatprep.subr.mxu0 0.0
      %1168 = vmatpush1.xpose.msra.mxu0 0.0
      %1169 = vmatprep.subr.mxu0 0.0
      %1170 = vmatpush1.xpose.msra.mxu0 0.0
      %1171 = vmatprep.subr.mxu0 0.0
      %1172 = vmatpush1.xpose.msra.mxu0 0.0
      %1173 = vmatprep.subr.mxu0 0.0
      %1174 = vmatpush1.xpose.msra.mxu0 0.0
      %1175 = vmatprep.subr.mxu0 0.0
      %1176 = vmatpush1.xpose.msra.mxu0 0.0
      %1177 = vmatprep.subr.mxu0 0.0
      %1178 = vmatpush1.xpose.msra.mxu0 0.0
      %1179 = vmatprep.subr.mxu0 0.0
      %1180 = vmatpush1.xpose.msra.mxu0 0.0
      %1181 = vmatprep.subr.mxu0 0.0
      %1182 = vmatpush1.xpose.msra.mxu0 0.0
      %1183 = vmatprep.subr.mxu0 0.0
      %1184 = vmatpush1.xpose.msra.mxu0 0.0
      %1185 = vmatprep.subr.mxu0 0.0
      %1186 = vmatpush1.xpose.msra.mxu0 0.0
      %1187 = vmatprep.subr.mxu0 0.0
      %1188 = vmatpush1.xpose.msra.mxu0 0.0
      %1189 = vmatprep.subr.mxu0 0.0
      %1190 = vmatpush1.xpose.msra.mxu0 0.0
      %1191 = vmatprep.subr.mxu0 0.0
      %1192 = vmatpush1.xpose.msra.mxu0 0.0
      %1193 = vmatprep.subr.mxu0 0.0
      %1194 = vmatpush1.xpose.msra.mxu0 0.0
      %1195 = vmatprep.subr.mxu0 0.0
      %1196 = vmatpush1.xpose.msra.mxu0 0.0
      %1197 = vmatprep.mubr.f32.mxu0 0.0
      %1198 = vmatmul.mubr.f32.gmra.mrb[0].mxu0 %v1127
      %v1199 = vpop.f32.mrb[0].mxu0
      %v1200 = vadd.f32 0.0, %v1199
      %v1201 = vpop.f32.mrb[0].mxu0
      %1202 = vdwg.mxu0
      %v1203 = vmul.f32 %v1200, 0.35355338
      %v1204 = vadd.f32 %v1203, %v422
      %v1205 = vsel %vm682, %v1204, -inf
      %1206 = vmax.xlane.f32.xlu0 %v1205
      %v1207 = vpop.xlane.xlu0 %1206
      %v1208 = vsub.f32 %v1204, %v1207
      %v1209 = vmul.f32 %v1208, 1.442695
      %v1210 = vpow.pop %v1209
      %v1211 = vsel %vm682, %v1210, 0.0
      %1212 = vadd.xlane.f32.xlu0 %v1211
      %v1213 = vpop.xlane.xlu0 %1212
      %v1214 = vrcp.pop %v1213
      %v1215 = vmul.f32 %v1210, %v1214
      %1216 = vrot.lane.b32.xlu0 %v592, 72
      %v1217 = vpop.permute.xlu0 %1216
      %1218 = vrot.lane.b32.xlu0 %v597, 72
      %v1219 = vpop.permute.xlu0 %1218
      %v1223 = vsel %vm682, %v1215, 0
      %1225 = vmatprep.subr.mxu0 0.0
      %1226 = vmatpush1.msra.mxu0 %v1217
      %1227 = vmatprep.subr.mxu0 0.0
      %1228 = vmatpush1.msra.mxu0 %v1219
      %1229 = vmatprep.subr.mxu0 0.0
      %1230 = vmatpush1.msra.mxu0 0.0
      %1231 = vmatprep.subr.mxu0 0.0
      %1232 = vmatpush1.msra.mxu0 0.0
      %1233 = vmatprep.subr.mxu0 0.0
      %1234 = vmatpush1.msra.mxu0 0.0
      %1235 = vmatprep.subr.mxu0 0.0
      %1236 = vmatpush1.msra.mxu0 0.0
      %1237 = vmatprep.subr.mxu0 0.0
      %1238 = vmatpush1.msra.mxu0 0.0
      %1239 = vmatprep.subr.mxu0 0.0
      %1240 = vmatpush1.msra.mxu0 0.0
      %1241 = vmatprep.subr.mxu0 0.0
      %1242 = vmatpush1.msra.mxu0 0.0
      %1243 = vmatprep.subr.mxu0 0.0
      %1244 = vmatpush1.msra.mxu0 0.0
      %1245 = vmatprep.subr.mxu0 0.0
      %1246 = vmatpush1.msra.mxu0 0.0
      %1247 = vmatprep.subr.mxu0 0.0
      %1248 = vmatpush1.msra.mxu0 0.0
      %1249 = vmatprep.subr.mxu0 0.0
      %1250 = vmatpush1.msra.mxu0 0.0
      %1251 = vmatprep.subr.mxu0 0.0
      %1252 = vmatpush1.msra.mxu0 0.0
      %1253 = vmatprep.subr.mxu0 0.0
      %1254 = vmatpush1.msra.mxu0 0.0
      %1255 = vmatprep.subr.mxu0 0.0
      %1256 = vmatpush1.msra.mxu0 0.0
      %1257 = vmatprep.subr.mxu0 0.0
      %1258 = vmatpush1.msra.mxu0 0.0
      %1259 = vmatprep.subr.mxu0 0.0
      %1260 = vmatpush1.msra.mxu0 0.0
      %1261 = vmatprep.subr.mxu0 0.0
      %1262 = vmatpush1.msra.mxu0 0.0
      %1263 = vmatprep.subr.mxu0 0.0
      %1264 = vmatpush1.msra.mxu0 0.0
      %1265 = vmatprep.subr.mxu0 0.0
      %1266 = vmatpush1.msra.mxu0 0.0
      %1267 = vmatprep.subr.mxu0 0.0
      %1268 = vmatpush1.msra.mxu0 0.0
      %1269 = vmatprep.subr.mxu0 0.0
      %1270 = vmatpush1.msra.mxu0 0.0
      %1271 = vmatprep.subr.mxu0 0.0
      %1272 = vmatpush1.msra.mxu0 0.0
      %1273 = vmatprep.subr.mxu0 0.0
      %1274 = vmatpush1.msra.mxu0 0.0
      %1275 = vmatprep.subr.mxu0 0.0
      %1276 = vmatpush1.msra.mxu0 0.0
      %1277 = vmatprep.subr.mxu0 0.0
      %1278 = vmatpush1.msra.mxu0 0.0
      %1279 = vmatprep.subr.mxu0 0.0
      %1280 = vmatpush1.msra.mxu0 0.0
      %1281 = vmatprep.subr.mxu0 0.0
      %1282 = vmatpush1.msra.mxu0 0.0
      %1283 = vmatprep.subr.mxu0 0.0
      %1284 = vmatpush1.msra.mxu0 0.0
      %1285 = vmatprep.subr.mxu0 0.0
      %1286 = vmatpush1.msra.mxu0 0.0
      %1287 = vmatprep.subr.mxu0 0.0
      %1288 = vmatpush1.msra.mxu0 0.0
      %1289 = vmatprep.mubr.f32.mxu0 0.0
      %1290 = vmatmul.mubr.f32.gmra.mrb[0].mxu0 %v1223
      %v1291 = vpop.f32.mrb[0].mxu0
      %v1292 = vadd.f32 0.0, %v1291
      %v1293 = vpop.f32.mrb[0].mxu0
      %1294 = vdwg.mxu0
      %1296 = vrot.lane.b32.xlu0 %v944, 8
      %v1297 = vpop.permute.xlu0 %1296
      %1300 = vrot.lane.b32.xlu0 %v1118, 16
      %v1301 = vpop.permute.xlu0 %1300
      %1304 = vrot.lane.b32.xlu0 %v1292, 24
      %v1305 = vpop.permute.xlu0 %1304
      %v1307 = vsel %vm600, %v770, %v1297
      %v1308 = vsel %vm682, %v1307, %v1301
      %vm1309 = vcmask 195584
      %v1310 = vsel %vm1309, %v1308, %v1305
      %v1311 = vld [vmem:[%s7] sm:$0xff]
      %v1312 = vld [vmem:[%s7 + $0x8] sm:$0xff]
      %v1313 = vld [vmem:[%s7 + $0x10] sm:$0xff]
      %v1314 = vld [vmem:[%s7 + $0x18] sm:$0xff]
      %v1315 = vld [vmem:[%s8] sm:$0x1]
      %v1317 = vlaneseq
      %v1318 = vshrl.u32 %v1317, 7
      %v1319 = vsub.s32 0, %v1318
      %v1320 = vrot.slane %v1315, %v1319
      %v1323 = vsel %vm434, %v1310, 0
      %1325 = vmatprep.subr.mxu0 0.0
      %1326 = vmatpush1.msra.mxu0 %v1311
      %1327 = vmatprep.subr.mxu0 0.0
      %1328 = vmatpush1.msra.mxu0 %v1312
      %1329 = vmatprep.subr.mxu0 0.0
      %1330 = vmatpush1.msra.mxu0 %v1313
      %1331 = vmatprep.subr.mxu0 0.0
      %1332 = vmatpush1.msra.mxu0 %v1314
      %1333 = vmatprep.subr.mxu0 0.0
      %1334 = vmatpush1.msra.mxu0 0.0
      %1335 = vmatprep.subr.mxu0 0.0
      %1336 = vmatpush1.msra.mxu0 0.0
      %1337 = vmatprep.subr.mxu0 0.0
      %1338 = vmatpush1.msra.mxu0 0.0
      %1339 = vmatprep.subr.mxu0 0.0
      %1340 = vmatpush1.msra.mxu0 0.0
      %1341 = vmatprep.subr.mxu0 0.0
      %1342 = vmatpush1.msra.mxu0 0.0
      %1343 = vmatprep.subr.mxu0 0.0
      %1344 = vmatpush1.msra.mxu0 0.0
      %1345 = vmatprep.subr.mxu0 0.0
      %1346 = vmatpush1.msra.mxu0 0.0
      %1347 = vmatprep.subr.mxu0 0.0
      %1348 = vmatpush1.msra.mxu0 0.0
      %1349 = vmatprep.subr.mxu0 0.0
      %1350 = vmatpush1.msra.mxu0 0.0
      %1351 = vmatprep.subr.mxu0 0.0
      %1352 = vmatpush1.msra.mxu0 0.0
      %1353 = vmatprep.subr.mxu0 0.0
      %1354 = vmatpush1.msra.mxu0 0.0
      %1355 = vmatprep.subr.mxu0 0.0
      %1356 = vmatpush1.msra.mxu0 0.0
      %1357 = vmatprep.subr.mxu0 0.0
      %1358 = vmatpush1.msra.mxu0 0.0
      %1359 = vmatprep.subr.mxu0 0.0
      %1360 = vmatpush1.msra.mxu0 0.0
      %1361 = vmatprep.subr.mxu0 0.0
      %1362 = vmatpush1.msra.mxu0 0.0
      %1363 = vmatprep.subr.mxu0 0.0
      %1364 = vmatpush1.msra.mxu0 0.0
      %1365 = vmatprep.subr.mxu0 0.0
      %1366 = vmatpush1.msra.mxu0 0.0
      %1367 = vmatprep.subr.mxu0 0.0
      %1368 = vmatpush1.msra.mxu0 0.0
      %1369 = vmatprep.subr.mxu0 0.0
      %1370 = vmatpush1.msra.mxu0 0.0
      %1371 = vmatprep.subr.mxu0 0.0
      %1372 = vmatpush1.msra.mxu0 0.0
      %1373 = vmatprep.subr.mxu0 0.0
      %1374 = vmatpush1.msra.mxu0 0.0
      %1375 = vmatprep.subr.mxu0 0.0
      %1376 = vmatpush1.msra.mxu0 0.0
      %1377 = vmatprep.subr.mxu0 0.0
      %1378 = vmatpush1.msra.mxu0 0.0
      %1379 = vmatprep.subr.mxu0 0.0
      %1380 = vmatpush1.msra.mxu0 0.0
      %1381 = vmatprep.subr.mxu0 0.0
      %1382 = vmatpush1.msra.mxu0 0.0
      %1383 = vmatprep.subr.mxu0 0.0
      %1384 = vmatpush1.msra.mxu0 0.0
      %1385 = vmatprep.subr.mxu0 0.0
      %1386 = vmatpush1.msra.mxu0 0.0
      %1387 = vmatprep.subr.mxu0 0.0
      %1388 = vmatpush1.msra.mxu0 0.0
      %1389 = vmatprep.mubr.f32.mxu0 0.0
      %1390 = vmatmul.mubr.f32.gmra.mrb[0].mxu0 %v1323
      %v1391 = vpop.f32.mrb[0].mxu0
      %v1392 = vadd.f32 %v1320, %v1391
      %v1393 = vpop.f32.mrb[0].mxu0
      %1394 = vdwg.mxu0
      %v1395 = vadd.f32 %v1392, %v419
      %v1396 = vsel %vm434, %v1395, 0.0
      %1397 = vadd.xlane.f32.xlu0 %v1396
      %v1398 = vpop.xlane.xlu0 %1397
      %v1399 = vrcp.pop 32.0
      %v1400 = vmul.f32 %v1398, %v1399
      %v1401 = vsub.f32 %v1395, %v1400
      %v1402 = vmul.f32 %v1401, %v1401
      %v1403 = vsel %vm434, %v1402, 0.0
      %1404 = vadd.xlane.f32.xlu0 %v1403
      %v1405 = vpop.xlane.xlu0 %1404
      %v1406 = vmul.f32 %v1405, %v1399
      %v1407 = vadd.f32 %v1406, 1e-05
      %v1408 = vrsqrt.pop %v1407
      %v1409 = vmul.f32 %v1401, %v1408
      %v1410 = vld [vmem:[%s9] sm:$0x1]
      %v1412 = vlaneseq
      %v1413 = vshrl.u32 %v1412, 7
      %v1414 = vsub.s32 0, %v1413
      %v1415 = vrot.slane %v1410, %v1414
      %v1417 = vmul.f32 %v1409, %v1415
      %v1418 = vld [vmem:[%s10] sm:$0x1]
      %v1420 = vlaneseq
      %v1421 = vshrl.u32 %v1420, 7
      %v1422 = vsub.s32 0, %v1421
      %v1423 = vrot.slane %v1418, %v1422
      %v1425 = vadd.f32 %v1417, %v1423
      %1426 = vst.msk [vmem:[%s418] sm:$0xff] %vm434, %v1425
      %p1427 = scmp.lt.s32.totalorder %s22, 1
      %s1428 = scalar_select %p1427, %s22, 1
      %s1429 = smul.addr %s1428, 8
      %s1430 = scalar_lea.vmem %s11, %s1429
      // Predicated region
      $region65: #{bert_abs_sum_forward.20} parent=63 // pred_check
        %p1431 = pneg %p286
      $region66: #{bert_abs_sum_forward.20} parent=63 // pred_check_branch
        %1433 = sbr.rel (%p1431) target = $region68
      $region67: #{bert_abs_sum_forward.20} parent=63 // pred_region
        _
      $region68: #{bert_abs_sum_forward.20} parent=63 // pred_fallthru
        _
    $region64: #{bert_abs_sum_forward.20} parent=5 // pred_fallthru
      _
    %p1434 = scmp.le.s32.totalorder 2, %s17
    // Predicated region
    $region69: #{bert_abs_sum_forward.20} parent=5 // pred_check
      %p1435 = pneg %p1434
    $region70: #{bert_abs_sum_forward.20} parent=5 // pred_check_branch
      %1437 = sbr.rel (%p1435) target = $region72
    $region71: #{bert_abs_sum_forward.20} parent=5 // pred_region
      %s1438 = ssub.s32 %s17, 2
      // Predicated region
      $region73: #{bert_abs_sum_forward.20} parent=71 // pred_check
        %p1439 = pneg %p292
      $region74: #{bert_abs_sum_forward.20} parent=71 // pred_check_branch
        %1441 = sbr.rel (%p1439) target = $region76
      $region75: #{bert_abs_sum_forward.20} parent=71 // pred_region
        %p1442 = scmp.lt.s32.totalorder %s23, 1
        %s1443 = scalar_select %p1442, %s23, 1
        %s1444 = smul.addr %s1443, 8
        %s1445 = scalar_lea.vmem %s11, %s1444
      $region76: #{bert_abs_sum_forward.20} parent=71 // pred_fallthru
        _
    $region72: #{bert_abs_sum_forward.20} parent=5 // pred_fallthru
      _
  $region6: #{bert_abs_sum_forward.20} parent=0 // loop_footer
    %s21 = sadd.s32 1, %s17
  $region7: #{bert_abs_sum_forward.20} parent=0 // loop_footer_branch
    %16 = sbr.rel target = $region3
  $region8: #{bert_abs_sum_forward.20} parent=0 // loop_exit
    _

// kernel: bert_abs_sum_forward.25
$region0: #{bert_abs_sum_forward.25}
  #allocation0 [shape = 'u32[]', space=smem, size = 0x4, offset = 0x4, fixed_abs, tag = 'smem constant byte address 0x4 - core index']
  #allocation1 [shape = 'u32[144,128]{1,0:T(1,128)}', space=vmem, size = 0x12000, scoped, tag = 'internal scratch']
  %s0 = inlined_call_operand.vmem [shape: f32[16,32], index: 0, kind: input, shape index: {}]
  %s1 = inlined_call_operand.vmem [shape: f32[32,128], index: 1, kind: input, shape index: {}]
  %s2 = inlined_call_operand.vmem [shape: f32[1,128], index: 2, kind: input, shape index: {}]
  %s3 = inlined_call_operand.hbm [shape: f32[16,128], index: 3, kind: output, shape index: {}]
  %s4 = sld [smem:[#allocation0]]
  $region22: #{bert_abs_sum_forward.25} parent=0
    _
  %s6 = ssub.s32 1, %s4
  %s7 = scalar_select 0, %s6, %s4
  $region1: #{bert_abs_sum_forward.25} parent=0
    #allocation2 [shape = 'u8[8192]{0}', space=vmem, size = 0x2000, scoped, tag = 'output window, operand 0, single buffered']
    #allocation3 [shape = 's32[1]{0}', space=sflag, size = 0x4, scoped, tag = 'scoped memory for bert_abs_sum_forward.25']
    %8 = vsyncpa [#allocation3], 0
    // Predicated region
    $region2: #{bert_abs_sum_forward.25} parent=1 // pred_check
      _
    $region3: #{bert_abs_sum_forward.25} parent=1 // pred_check_branch
      %10 = sbr.rel (0) target = $region5
    $region4: #{bert_abs_sum_forward.25} parent=1 // pred_region
      _
    $region5: #{bert_abs_sum_forward.25} parent=1 // pred_fallthru
      _
    // Predicated region
    $region6: #{bert_abs_sum_forward.25} parent=1 // pred_check
      _
    $region7: #{bert_abs_sum_forward.25} parent=1 // pred_check_branch
      %12 = sbr.rel (0) target = $region9
    $region8: #{bert_abs_sum_forward.25} parent=1 // pred_region
      _
    $region9: #{bert_abs_sum_forward.25} parent=1 // pred_fallthru
      _
    // Predicated region
    $region10: #{bert_abs_sum_forward.25} parent=1 // pred_check
      _
    $region11: #{bert_abs_sum_forward.25} parent=1 // pred_check_branch
      %14 = sbr.rel (0) target = $region13
    $region12: #{bert_abs_sum_forward.25} parent=1 // pred_region
      _
    $region13: #{bert_abs_sum_forward.25} parent=1 // pred_fallthru
      _
    %v15 = vld [vmem:[%s0] sm:$0xff]
    %v16 = vld [vmem:[%s0 + $0x8] sm:$0xff]
    %v17 = vld [vmem:[%s1] sm:$0xff]
    %v18 = vld [vmem:[%s1 + $0x8] sm:$0xff]
    %v19 = vld [vmem:[%s1 + $0x10] sm:$0xff]
    %v20 = vld [vmem:[%s1 + $0x18] sm:$0xff]
    %v21 = vld [vmem:[%s2] sm:$0x1]
    %v23 = vlaneseq
    %v24 = vshrl.u32 %v23, 7
    %v25 = vsub.s32 0, %v24
    %v26 = vrot.slane %v21, %v25
    %vm28 = vcmask 261120
    %v30 = vsel %vm28, %v15, 0
    %v33 = vsel %vm28, %v16, 0
    %35 = vmatprep.subr.mxu0 0.0
    %36 = vmatpush1.msra.mxu0 %v17
    %37 = vmatprep.subr.mxu0 0.0
    %38 = vmatpush1.msra.mxu0 %v18
    %39 = vmatprep.subr.mxu0 0.0
    %40 = vmatpush1.msra.mxu0 %v19
    %41 = vmatprep.subr.mxu0 0.0
    %42 = vmatpush1.msra.mxu0 %v20
    %43 = vmatprep.subr.mxu0 0.0
    %44 = vmatpush1.msra.mxu0 0.0
    %45 = vmatprep.subr.mxu0 0.0
    %46 = vmatpush1.msra.mxu0 0.0
    %47 = vmatprep.subr.mxu0 0.0
    %48 = vmatpush1.msra.mxu0 0.0
    %49 = vmatprep.subr.mxu0 0.0
    %50 = vmatpush1.msra.mxu0 0.0
    %51 = vmatprep.subr.mxu0 0.0
    %52 = vmatpush1.msra.mxu0 0.0
    %53 = vmatprep.subr.mxu0 0.0
    %54 = vmatpush1.msra.mxu0 0.0
    %55 = vmatprep.subr.mxu0 0.0
    %56 = vmatpush1.msra.mxu0 0.0
    %57 = vmatprep.subr.mxu0 0.0
    %58 = vmatpush1.msra.mxu0 0.0
    %59 = vmatprep.subr.mxu0 0.0
    %60 = vmatpush1.msra.mxu0 0.0
    %61 = vmatprep.subr.mxu0 0.0
    %62 = vmatpush1.msra.mxu0 0.0
    %63 = vmatprep.subr.mxu0 0.0
    %64 = vmatpush1.msra.mxu0 0.0
    %65 = vmatprep.subr.mxu0 0.0
    %66 = vmatpush1.msra.mxu0 0.0
    %67 = vmatprep.subr.mxu0 0.0
    %68 = vmatpush1.msra.mxu0 0.0
    %69 = vmatprep.subr.mxu0 0.0
    %70 = vmatpush1.msra.mxu0 0.0
    %71 = vmatprep.subr.mxu0 0.0
    %72 = vmatpush1.msra.mxu0 0.0
    %73 = vmatprep.subr.mxu0 0.0
    %74 = vmatpush1.msra.mxu0 0.0
    %75 = vmatprep.subr.mxu0 0.0
    %76 = vmatpush1.msra.mxu0 0.0
    %77 = vmatprep.subr.mxu0 0.0
    %78 = vmatpush1.msra.mxu0 0.0
    %79 = vmatprep.subr.mxu0 0.0
    %80 = vmatpush1.msra.mxu0 0.0
    %81 = vmatprep.subr.mxu0 0.0
    %82 = vmatpush1.msra.mxu0 0.0
    %83 = vmatprep.subr.mxu0 0.0
    %84 = vmatpush1.msra.mxu0 0.0
    %85 = vmatprep.subr.mxu0 0.0
    %86 = vmatpush1.msra.mxu0 0.0
    %87 = vmatprep.subr.mxu0 0.0
    %88 = vmatpush1.msra.mxu0 0.0
    %89 = vmatprep.subr.mxu0 0.0
    %90 = vmatpush1.msra.mxu0 0.0
    %91 = vmatprep.subr.mxu0 0.0
    %92 = vmatpush1.msra.mxu0 0.0
    %93 = vmatprep.subr.mxu0 0.0
    %94 = vmatpush1.msra.mxu0 0.0
    %95 = vmatprep.subr.mxu0 0.0
    %96 = vmatpush1.msra.mxu0 0.0
    %97 = vmatprep.subr.mxu0 0.0
    %98 = vmatpush1.msra.mxu0 0.0
    %99 = vmatprep.mubr.f32.mxu0 0.0
    %100 = vmatmul.mubr.f32.gmra.mrb[0].mxu0 %v30
    %v101 = vpop.f32.mrb[0].mxu0
    %v102 = vadd.f32 %v26, %v101
    %v103 = vpop.f32.mrb[0].mxu0
    %104 = vmatprep.mubr.f32.mxu0 0.0
    %105 = vmatmul.mubr.f32.gmra.mrb[0].mxu0 %v33
    %v106 = vpop.f32.mrb[0].mxu0
    %v107 = vadd.f32 %v26, %v106
    %v108 = vpop.f32.mrb[0].mxu0
    %109 = vdwg.mxu0
    %110 = vst [vmem:[#allocation2] sm:$0xff] %v102
    %111 = vst [vmem:[#allocation2 + $0x8] sm:$0xff] %v107
    // Predicated region
    $region14: #{bert_abs_sum_forward.25} parent=1 // pred_check
      _
    $region15: #{bert_abs_sum_forward.25} parent=1 // pred_check_branch
      %113 = sbr.rel (0) target = $region17
    $region16: #{bert_abs_sum_forward.25} parent=1 // pred_region
      %s115 = ssub.s32 256, 256
      %116 = vsyncadd [#allocation3], %s115
      %s117 = sshll.u32 [#allocation2], 4
      %s118 = int_to_ptr.vmem [resolvable:$true] %s117
      %123 = dma.vmem_to_hbm [thread:$0]  %s118, 256, %s3, [#allocation3], 128, 128, 8
    $region17: #{bert_abs_sum_forward.25} parent=1 // pred_fallthru
      _
    // Predicated region
    $region18: #{bert_abs_sum_forward.25} parent=1 // pred_check
      _
    $region19: #{bert_abs_sum_forward.25} parent=1 // pred_check_branch
      %125 = sbr.rel (0) target = $region21
    $region20: #{bert_abs_sum_forward.25} parent=1 // pred_region
      %126 = dma.done [#allocation3], 256
    $region21: #{bert_abs_sum_forward.25} parent=1 // pred_fallthru
      _
    %127 = vsyncpa [#allocation3], 1

// kernel: bert_abs_sum_forward.21
$region0: #{bert_abs_sum_forward.21}
  #allocation0 [shape = 'u32[]', space=smem, size = 0x4, offset = 0x4, fixed_abs, tag = 'smem constant byte address 0x4 - core index']
  #allocation1 [shape = 'u32[144,128]{1,0:T(1,128)}', space=vmem, size = 0x12000, scoped, tag = 'internal scratch']
  %s0 = inlined_call_operand.vmem [shape: f32[16,32], index: 0, kind: input, shape index: {}]
  %s1 = inlined_call_operand.vmem [shape: f32[32,64], index: 1, kind: input, shape index: {}]
  %s2 = inlined_call_operand.vmem [shape: f32[1,64], index: 2, kind: input, shape index: {}]
  %s3 = inlined_call_operand.vmem [shape: f32[64,32], index: 3, kind: input, shape index: {}]
  %s4 = inlined_call_operand.vmem [shape: f32[1,32], index: 4, kind: input, shape index: {}]
  %s5 = inlined_call_operand.vmem [shape: f32[1,32], index: 5, kind: input, shape index: {}]
  %s6 = inlined_call_operand.vmem [shape: f32[1,32], index: 6, kind: input, shape index: {}]
  %s7 = inlined_call_operand.vmem [shape: f32[16,32], index: 7, kind: output, shape index: {}]
  %s8 = sld [smem:[#allocation0]]
  $region38: #{bert_abs_sum_forward.21} parent=0
    _
  %s10 = ssub.s32 1, %s8
  %s11 = scalar_select 0, %s10, %s8
  // Predicated region
  $region2: #{bert_abs_sum_forward.21} parent=0 // pred_check
    _
  $region3: #{bert_abs_sum_forward.21} parent=0 // pred_check_branch
    %13 = sbr.rel (0) target = $region5
  $region4: #{bert_abs_sum_forward.21} parent=0 // pred_region
    _
  $region5: #{bert_abs_sum_forward.21} parent=0 // pred_fallthru
    _
  // Predicated region
  $region6: #{bert_abs_sum_forward.21} parent=0 // pred_check
    _
  $region7: #{bert_abs_sum_forward.21} parent=0 // pred_check_branch
    %15 = sbr.rel (0) target = $region9
  $region8: #{bert_abs_sum_forward.21} parent=0 // pred_region
    _
  $region9: #{bert_abs_sum_forward.21} parent=0 // pred_fallthru
    _
  // Predicated region
  $region10: #{bert_abs_sum_forward.21} parent=0 // pred_check
    _
  $region11: #{bert_abs_sum_forward.21} parent=0 // pred_check_branch
    %17 = sbr.rel (0) target = $region13
  $region12: #{bert_abs_sum_forward.21} parent=0 // pred_region
    _
  $region13: #{bert_abs_sum_forward.21} parent=0 // pred_fallthru
    _
  // Predicated region
  $region14: #{bert_abs_sum_forward.21} parent=0 // pred_check
    _
  $region15: #{bert_abs_sum_forward.21} parent=0 // pred_check_branch
    %19 = sbr.rel (0) target = $region17
  $region16: #{bert_abs_sum_forward.21} parent=0 // pred_region
    _
  $region17: #{bert_abs_sum_forward.21} parent=0 // pred_fallthru
    _
  // Predicated region
  $region18: #{bert_abs_sum_forward.21} parent=0 // pred_check
    _
  $region19: #{bert_abs_sum_forward.21} parent=0 // pred_check_branch
    %21 = sbr.rel (0) target = $region21
  $region20: #{bert_abs_sum_forward.21} parent=0 // pred_region
    _
  $region21: #{bert_abs_sum_forward.21} parent=0 // pred_fallthru
    _
  // Predicated region
  $region22: #{bert_abs_sum_forward.21} parent=0 // pred_check
    _
  $region23: #{bert_abs_sum_forward.21} parent=0 // pred_check_branch
    %23 = sbr.rel (0) target = $region25
  $region24: #{bert_abs_sum_forward.21} parent=0 // pred_region
    _
  $region25: #{bert_abs_sum_forward.21} parent=0 // pred_fallthru
    _
  // Predicated region
  $region26: #{bert_abs_sum_forward.21} parent=0 // pred_check
    _
  $region27: #{bert_abs_sum_forward.21} parent=0 // pred_check_branch
    %25 = sbr.rel (0) target = $region29
  $region28: #{bert_abs_sum_forward.21} parent=0 // pred_region
    _
  $region29: #{bert_abs_sum_forward.21} parent=0 // pred_fallthru
    _
  %v26 = vld [vmem:[%s0] sm:$0xff]
  %v27 = vld [vmem:[%s0 + $0x8] sm:$0xff]
  %v28 = vld [vmem:[%s1] sm:$0xff]
  %v29 = vld [vmem:[%s1 + $0x8] sm:$0xff]
  %v30 = vld [vmem:[%s1 + $0x10] sm:$0xff]
  %v31 = vld [vmem:[%s1 + $0x18] sm:$0xff]
  %v32 = vld [vmem:[%s2] sm:$0x1]
  %v34 = vlaneseq
  %v35 = vshrl.u32 %v34, 7
  %v36 = vsub.s32 0, %v35
  %v37 = vrot.slane %v32, %v36
  %vm39 = vcmask 261120
  %v41 = vsel %vm39, %v26, 0
  %v44 = vsel %vm39, %v27, 0
  %46 = vmatprep.subr.mxu0 0.0
  %47 = vmatpush1.msra.mxu0 %v28
  %48 = vmatprep.subr.mxu0 0.0
  %49 = vmatpush1.msra.mxu0 %v29
  %50 = vmatprep.subr.mxu0 0.0
  %51 = vmatpush1.msra.mxu0 %v30
  %52 = vmatprep.subr.mxu0 0.0
  %53 = vmatpush1.msra.mxu0 %v31
  %54 = vmatprep.subr.mxu0 0.0
  %55 = vmatpush1.msra.mxu0 0.0
  %56 = vmatprep.subr.mxu0 0.0
  %57 = vmatpush1.msra.mxu0 0.0
  %58 = vmatprep.subr.mxu0 0.0
  %59 = vmatpush1.msra.mxu0 0.0
  %60 = vmatprep.subr.mxu0 0.0
  %61 = vmatpush1.msra.mxu0 0.0
  %62 = vmatprep.subr.mxu0 0.0
  %63 = vmatpush1.msra.mxu0 0.0
  %64 = vmatprep.subr.mxu0 0.0
  %65 = vmatpush1.msra.mxu0 0.0
  %66 = vmatprep.subr.mxu0 0.0
  %67 = vmatpush1.msra.mxu0 0.0
  %68 = vmatprep.subr.mxu0 0.0
  %69 = vmatpush1.msra.mxu0 0.0
  %70 = vmatprep.subr.mxu0 0.0
  %71 = vmatpush1.msra.mxu0 0.0
  %72 = vmatprep.subr.mxu0 0.0
  %73 = vmatpush1.msra.mxu0 0.0
  %74 = vmatprep.subr.mxu0 0.0
  %75 = vmatpush1.msra.mxu0 0.0
  %76 = vmatprep.subr.mxu0 0.0
  %77 = vmatpush1.msra.mxu0 0.0
  %78 = vmatprep.subr.mxu0 0.0
  %79 = vmatpush1.msra.mxu0 0.0
  %80 = vmatprep.subr.mxu0 0.0
  %81 = vmatpush1.msra.mxu0 0.0
  %82 = vmatprep.subr.mxu0 0.0
  %83 = vmatpush1.msra.mxu0 0.0
  %84 = vmatprep.subr.mxu0 0.0
  %85 = vmatpush1.msra.mxu0 0.0
  %86 = vmatprep.subr.mxu0 0.0
  %87 = vmatpush1.msra.mxu0 0.0
  %88 = vmatprep.subr.mxu0 0.0
  %89 = vmatpush1.msra.mxu0 0.0
  %90 = vmatprep.subr.mxu0 0.0
  %91 = vmatpush1.msra.mxu0 0.0
  %92 = vmatprep.subr.mxu0 0.0
  %93 = vmatpush1.msra.mxu0 0.0
  %94 = vmatprep.subr.mxu0 0.0
  %95 = vmatpush1.msra.mxu0 0.0
  %96 = vmatprep.subr.mxu0 0.0
  %97 = vmatpush1.msra.mxu0 0.0
  %98 = vmatprep.subr.mxu0 0.0
  %99 = vmatpush1.msra.mxu0 0.0
  %100 = vmatprep.subr.mxu0 0.0
  %101 = vmatpush1.msra.mxu0 0.0
  %102 = vmatprep.subr.mxu0 0.0
  %103 = vmatpush1.msra.mxu0 0.0
  %104 = vmatprep.subr.mxu0 0.0
  %105 = vmatpush1.msra.mxu0 0.0
  %106 = vmatprep.subr.mxu0 0.0
  %107 = vmatpush1.msra.mxu0 0.0
  %108 = vmatprep.subr.mxu0 0.0
  %109 = vmatpush1.msra.mxu0 0.0
  %110 = vmatprep.mubr.f32.mxu0 0.0
  %111 = vmatmul.mubr.f32.gmra.mrb[0].mxu0 %v41
  %v112 = vpop.f32.mrb[0].mxu0
  %v113 = vadd.f32 %v37, %v112
  %v114 = vpop.f32.mrb[0].mxu0
  %115 = vmatprep.mubr.f32.mxu0 0.0
  %116 = vmatmul.mubr.f32.gmra.mrb[0].mxu0 %v44
  %v117 = vpop.f32.mrb[0].mxu0
  %v118 = vadd.f32 %v37, %v117
  %v119 = vpop.f32.mrb[0].mxu0
  %120 = vdwg.mxu0
  %v121 = vmax.f32 %v113, 0.0
  %v122 = vmax.f32 %v118, 0.0
  %v123 = vld [vmem:[%s3] sm:$0xff]
  %v124 = vld [vmem:[%s3 + $0x8] sm:$0xff]
  %v125 = vld [vmem:[%s3 + $0x10] sm:$0xff]
  %v126 = vld [vmem:[%s3 + $0x18] sm:$0xff]
  %v127 = vld [vmem:[%s3 + $0x20] sm:$0xff]
  %v128 = vld [vmem:[%s3 + $0x28] sm:$0xff]
  %v129 = vld [vmem:[%s3 + $0x30] sm:$0xff]
  %v130 = vld [vmem:[%s3 + $0x38] sm:$0xff]
  %v131 = vld [vmem:[%s4] sm:$0x1]
  %v133 = vlaneseq
  %v134 = vshrl.u32 %v133, 7
  %v135 = vsub.s32 0, %v134
  %v136 = vrot.slane %v131, %v135
  %vm138 = vcmask 523264
  %v140 = vsel %vm138, %v121, 0
  %v143 = vsel %vm138, %v122, 0
  %145 = vmatprep.subr.mxu0 0.0
  %146 = vmatpush1.msra.mxu0 %v123
  %147 = vmatprep.subr.mxu0 0.0
  %148 = vmatpush1.msra.mxu0 %v124
  %149 = vmatprep.subr.mxu0 0.0
  %150 = vmatpush1.msra.mxu0 %v125
  %151 = vmatprep.subr.mxu0 0.0
  %152 = vmatpush1.msra.mxu0 %v126
  %153 = vmatprep.subr.mxu0 0.0
  %154 = vmatpush1.msra.mxu0 %v127
  %155 = vmatprep.subr.mxu0 0.0
  %156 = vmatpush1.msra.mxu0 %v128
  %157 = vmatprep.subr.mxu0 0.0
  %158 = vmatpush1.msra.mxu0 %v129
  %159 = vmatprep.subr.mxu0 0.0
  %160 = vmatpush1.msra.mxu0 %v130
  %161 = vmatprep.subr.mxu0 0.0
  %162 = vmatpush1.msra.mxu0 0.0
  %163 = vmatprep.subr.mxu0 0.0
  %164 = vmatpush1.msra.mxu0 0.0
  %165 = vmatprep.subr.mxu0 0.0
  %166 = vmatpush1.msra.mxu0 0.0
  %167 = vmatprep.subr.mxu0 0.0
  %168 = vmatpush1.msra.mxu0 0.0
  %169 = vmatprep.subr.mxu0 0.0
  %170 = vmatpush1.msra.mxu0 0.0
  %171 = vmatprep.subr.mxu0 0.0
  %172 = vmatpush1.msra.mxu0 0.0
  %173 = vmatprep.subr.mxu0 0.0
  %174 = vmatpush1.msra.mxu0 0.0
  %175 = vmatprep.subr.mxu0 0.0
  %176 = vmatpush1.msra.mxu0 0.0
  %177 = vmatprep.subr.mxu0 0.0
  %178 = vmatpush1.msra.mxu0 0.0
  %179 = vmatprep.subr.mxu0 0.0
  %180 = vmatpush1.msra.mxu0 0.0
  %181 = vmatprep.subr.mxu0 0.0
  %182 = vmatpush1.msra.mxu0 0.0
  %183 = vmatprep.subr.mxu0 0.0
  %184 = vmatpush1.msra.mxu0 0.0
  %185 = vmatprep.subr.mxu0 0.0
  %186 = vmatpush1.msra.mxu0 0.0
  %187 = vmatprep.subr.mxu0 0.0
  %188 = vmatpush1.msra.mxu0 0.0
  %189 = vmatprep.subr.mxu0 0.0
  %190 = vmatpush1.msra.mxu0 0.0
  %191 = vmatprep.subr.mxu0 0.0
  %192 = vmatpush1.msra.mxu0 0.0
  %193 = vmatprep.subr.mxu0 0.0
  %194 = vmatpush1.msra.mxu0 0.0
  %195 = vmatprep.subr.mxu0 0.0
  %196 = vmatpush1.msra.mxu0 0.0
  %197 = vmatprep.subr.mxu0 0.0
  %198 = vmatpush1.msra.mxu0 0.0
  %199 = vmatprep.subr.mxu0 0.0
  %200 = vmatpush1.msra.mxu0 0.0
  %201 = vmatprep.subr.mxu0 0.0
  %202 = vmatpush1.msra.mxu0 0.0
  %203 = vmatprep.subr.mxu0 0.0
  %204 = vmatpush1.msra.mxu0 0.0
  %205 = vmatprep.subr.mxu0 0.0
  %206 = vmatpush1.msra.mxu0 0.0
  %207 = vmatprep.subr.mxu0 0.0
  %208 = vmatpush1.msra.mxu0 0.0
  %209 = vmatprep.mubr.f32.mxu0 0.0
  %210 = vmatmul.mubr.f32.gmra.mrb[0].mxu0 %v140
  %v211 = vpop.f32.mrb[0].mxu0
  %v212 = vadd.f32 %v136, %v211
  %v213 = vpop.f32.mrb[0].mxu0
  %214 = vmatprep.mubr.f32.mxu0 0.0
  %215 = vmatmul.mubr.f32.gmra.mrb[0].mxu0 %v143
  %v216 = vpop.f32.mrb[0].mxu0
  %v217 = vadd.f32 %v136, %v216
  %v218 = vpop.f32.mrb[0].mxu0
  %219 = vdwg.mxu0
  %v220 = vadd.f32 %v212, %v26
  %v221 = vadd.f32 %v217, %v27
  %v222 = vsel %vm39, %v220, 0.0
  %223 = vadd.xlane.f32.xlu0 %v222
  %v224 = vpop.xlane.xlu0 %223
  %v225 = vsel %vm39, %v221, 0.0
  %226 = vadd.xlane.f32.xlu0 %v225
  %v227 = vpop.xlane.xlu0 %226
  %v228 = vrcp.pop 32.0
  %v229 = vmul.f32 %v224, %v228
  %v230 = vmul.f32 %v227, %v228
  %v231 = vsub.f32 %v220, %v229
  %v232 = vsub.f32 %v221, %v230
  %v233 = vmul.f32 %v231, %v231
  %v234 = vmul.f32 %v232, %v232
  %v235 = vsel %vm39, %v233, 0.0
  %236 = vadd.xlane.f32.xlu0 %v235
  %v237 = vpop.xlane.xlu0 %236
  %v238 = vsel %vm39, %v234, 0.0
  %239 = vadd.xlane.f32.xlu0 %v238
  %v240 = vpop.xlane.xlu0 %239
  %v241 = vmul.f32 %v237, %v228
  %v242 = vmul.f32 %v240, %v228
  %v243 = vadd.f32 %v241, 1e-05
  %v244 = vadd.f32 %v242, 1e-05
  %v245 = vrsqrt.pop %v243
  %v246 = vrsqrt.pop %v244
  %v247 = vmul.f32 %v231, %v245
  %v248 = vmul.f32 %v232, %v246
  %v249 = vld [vmem:[%s5] sm:$0x1]
  %v251 = vlaneseq
  %v252 = vshrl.u32 %v251, 7
  %v253 = vsub.s32 0, %v252
  %v254 = vrot.slane %v249, %v253
  %v256 = vmul.f32 %v247, %v254
  %v257 = vmul.f32 %v248, %v254
  %v258 = vld [vmem:[%s6] sm:$0x1]
  %v260 = vlaneseq
  %v261 = vshrl.u32 %v260, 7
  %v262 = vsub.s32 0, %v261
  %v263 = vrot.slane %v258, %v262
  %v265 = vadd.f32 %v256, %v263
  %v266 = vadd.f32 %v257, %v263
  %267 = vst.msk [vmem:[%s7] sm:$0xff] %vm39, %v265
  %268 = vst.msk [vmem:[%s7 + $0x8] sm:$0xff] %vm39, %v266
  // Predicated region
  $region30: #{bert_abs_sum_forward.21} parent=0 // pred_check
    _
  $region31: #{bert_abs_sum_forward.21} parent=0 // pred_check_branch
    %270 = sbr.rel (0) target = $region33
  $region32: #{bert_abs_sum_forward.21} parent=0 // pred_region
    _
  $region33: #{bert_abs_sum_forward.21} parent=0 // pred_fallthru
    _
  // Predicated region
  $region34: #{bert_abs_sum_forward.21} parent=0 // pred_check
    _
  $region35: #{bert_abs_sum_forward.21} parent=0 // pred_check_branch
    %272 = sbr.rel (0) target = $region37
  $region36: #{bert_abs_sum_forward.21} parent=0 // pred_region
    _
  $region37: #{bert_abs_sum_forward.21} parent=0 // pred_fallthru
    _

</llo_original>
